<compile_context>
chip_gen: v6e
topology: v6e:2x2x1
jax: 0.10.0
libtpu: 0.0.40
codegen_flags: <defaults>
</compile_context>

<pallas_src>
import jax
import jax.numpy as jnp
from jax import lax
from jax.experimental import pallas as pl
from jax.experimental.pallas import tpu as pltpu


# ----------------------------------------------------------------------------
# Fused kernel: 3 LSTM layers + Linear + Sigmoid.
# ----------------------------------------------------------------------------
def fused_lstm_classifier_kernel(
    x_ref,                                     # (T*B, F)   time-major input
    w_ih0_ref, w_hh0_ref, b0_ref,              # layer 0
    w_ih1_ref, w_hh1_ref, b1_ref,              # layer 1
    w_ih2_ref, w_hh2_ref, b2_ref,              # layer 2 (top)
    w_cls_ref, b_cls_ref,                      # classifier head
    out_ref,                                   # (B, C)
    gx_scr,                                    # VMEM (T*B, 4H)  precomputed input gates
    hseq_scr,                                  # VMEM (T*B, H)   per-layer hidden sequence
):
    TB, H = hseq_scr.shape
    B = out_ref.shape[0]
    T = TB // B

    def project(inp_2d, w_ih_ref, b_ref):
        # One big (T*B, F_in) @ (F_in, 4H) matmul: no recurrent dependence,
        # so it is hoisted off the serial per-timestep path.
        gx_scr[...] = (
            jnp.dot(inp_2d, w_ih_ref[...], preferred_element_type=jnp.float32)
            + b_ref[...]
        )

    def run_layer(w_hh_ref, write_seq):
        def step(t, carry):
            h_prev, c_prev = carry
            start = pl.multiple_of(t * B, B)
            # (B, 4H): precomputed input gates + recurrent matmul
            gates = gx_scr[pl.ds(start, B), :] + jnp.dot(
                h_prev, w_hh_ref[...], preferred_element_type=jnp.float32
            )
            i_g = jax.nn.sigmoid(gates[:, 0 * H:1 * H])
            f_g = jax.nn.sigmoid(gates[:, 1 * H:2 * H])
            g_g = jnp.tanh(gates[:, 2 * H:3 * H])
            o_g = jax.nn.sigmoid(gates[:, 3 * H:4 * H])
            c_new = f_g * c_prev + i_g * g_g
            h_new = o_g * jnp.tanh(c_new)
            if write_seq:
                hseq_scr[pl.ds(start, B), :] = h_new
            return h_new, c_new

        init = (
            jnp.zeros((B, H), jnp.float32),
            jnp.zeros((B, H), jnp.float32),
        )
        h_last, _ = lax.fori_loop(0, T, step, init, unroll=True)
        return h_last

    # Layer 0: input = x (time-major), writes its hidden sequence to VMEM.
    project(x_ref[...], w_ih0_ref, b0_ref)
    run_layer(w_hh0_ref, write_seq=True)

    # Layer 1: input = layer-0 hidden sequence (already VMEM-resident).
    project(hseq_scr[...], w_ih1_ref, b1_ref)
    run_layer(w_hh1_ref, write_seq=True)

    # Layer 2 (top): only the last-timestep hidden is needed -> never stored.
    project(hseq_scr[...], w_ih2_ref, b2_ref)
    h_last = run_layer(w_hh2_ref, write_seq=False)

    # Classifier head fused in: Linear + Sigmoid straight from VMEM/vregs.
    logits = (
        jnp.dot(h_last, w_cls_ref[...], preferred_element_type=jnp.float32)
        + b_cls_ref[...]
    )
    out_ref[...] = jax.nn.sigmoid(logits)


# ----------------------------------------------------------------------------
# Wrapper: single pallas_call, everything VMEM-resident (total < 2 MiB).
# ----------------------------------------------------------------------------
def _vmem_spec():
    return pl.BlockSpec(memory_space=pltpu.MemorySpace.VMEM)


@jax.jit
def time_series_classifier_forward(params, x):
    """x: (B, T, num_features) float32 -> (B, num_classes) sigmoid probabilities."""
    B, T, F = x.shape
    H = params["lstm"][0]["w_hh_t"].shape[0]
    C = params["cls"]["w_t"].shape[1]

    # Time-major, 2-D layout: row t*B + b is x[b, t, :].  Per-timestep tiles
    # inside the kernel are then contiguous (B, .) sublane-aligned slabs.
    x_tm = jnp.transpose(x, (1, 0, 2)).reshape(T * B, F)

    flat_args = [x_tm]
    for lp in params["lstm"]:
        flat_args += [lp["w_ih_t"], lp["w_hh_t"], lp["b"]]
    flat_args += [params["cls"]["w_t"], params["cls"]["b"]]

    return pl.pallas_call(
        fused_lstm_classifier_kernel,
        out_shape=jax.ShapeDtypeStruct((B, C), jnp.float32),
        in_specs=[_vmem_spec() for _ in flat_args],
        out_specs=_vmem_spec(),
        scratch_shapes=[
            pltpu.VMEM((T * B, 4 * H), jnp.float32),   # gx: hoisted input gates
            pltpu.VMEM((T * B, H), jnp.float32),       # hidden sequence buffer
        ],
    )(*flat_args)


# ----------------------------------------------------------------------------
# Parameter init (deterministic, PyTorch-style uniform(-1/sqrt(H), 1/sqrt(H))).
# Weights stored pre-transposed: (in, 4H) / (H, 4H) / (H, C).
# ----------------------------------------------------------------------------
def init_params(key, num_features, num_classes, hidden_size, num_layers):
    params = {"lstm": [], "cls": None}
    k = 1.0 / jnp.sqrt(hidden_size)
    for layer in range(num_layers):
        in_size = num_features if layer == 0 else hidden_size
        key, k1, k2, k3, k4 = jax.random.split(key, 5)
        w_ih = jax.random.uniform(k1, (4 * hidden_size, in_size), jnp.float32, -k, k)
        w_hh = jax.random.uniform(k2, (4 * hidden_size, hidden_size), jnp.float32, -k, k)
        b_ih = jax.random.uniform(k3, (4 * hidden_size,), jnp.float32, -k, k)
        b_hh = jax.random.uniform(k4, (4 * hidden_size,), jnp.float32, -k, k)
        params["lstm"].append(
            dict(
                w_ih_t=w_ih.T,                       # (in, 4H)
                w_hh_t=w_hh.T,                       # (H, 4H)
                b=(b_ih + b_hh).reshape(1, -1),      # (1, 4H)
            )
        )
    key, k5, k6 = jax.random.split(key, 3)
    w_cls = jax.random.uniform(k5, (num_classes, hidden_size), jnp.float32, -k, k)
    b_cls = jax.random.uniform(k6, (num_classes,), jnp.float32, -k, k)
    params["cls"] = dict(w_t=w_cls.T, b=b_cls.reshape(1, -1))
    return params


# ----------------------------------------------------------------------------
# Pure-JAX reference (same math, step-by-step) for a correctness check.
# ----------------------------------------------------------------------------
def reference_forward(params, x):
    B, T, _ = x.shape
    h_seq = x
    for lp in params["lstm"]:
        H = lp["w_hh_t"].shape[0]
        h = jnp.zeros((B, H), jnp.float32)
        c = jnp.zeros((B, H), jnp.float32)
        outs = []
        for t in range(T):
            gates = h_seq[:, t, :] @ lp["w_ih_t"] + h @ lp["w_hh_t"] + lp["b"]
            i_g = jax.nn.sigmoid(gates[:, 0 * H:1 * H])
            f_g = jax.nn.sigmoid(gates[:, 1 * H:2 * H])
            g_g = jnp.tanh(gates[:, 2 * H:3 * H])
            o_g = jax.nn.sigmoid(gates[:, 3 * H:4 * H])
            c = f_g * c + i_g * g_g
            h = o_g * jnp.tanh(c)
            outs.append(h)
        h_seq = jnp.stack(outs, axis=1)
    h_last = h_seq[:, -1, :]
    return jax.nn.sigmoid(h_last @ params["cls"]["w_t"] + params["cls"]["b"])


if __name__ == "__main__":
    # Small shapes consistent with the module's forward (batch_first LSTM).
    batch = 8
    seq_len = 8
    num_features = 8
    num_classes = 4
    hidden_size = 128
    num_layers = 3

    key = jax.random.PRNGKey(0)
    key, kx = jax.random.split(key)
    x = jax.random.normal(kx, (batch, seq_len, num_features), jnp.float32)

    params = init_params(key, num_features, num_classes, hidden_size, num_layers)

    out = time_series_classifier_forward(params, x)
    out = jax.block_until_ready(out)

    assert out.shape == (batch, num_classes)
    assert bool(jnp.all(jnp.isfinite(out)))
    assert bool(jnp.all((out >= 0.0) & (out <= 1.0)))

    ref = jax.block_until_ready(reference_forward(params, x))
    assert bool(jnp.allclose(out, ref, atol=2e-3, rtol=2e-3))

    print("KERNEL_OK")
</pallas_src>

<mosaic_0001>
module attributes {stable_mosaic.version = 11 : i64} {
  func.func @fused_lstm_classifier_kernel(%arg0: memref<64x8xf32, #tpu.memory_space<vmem>>, %arg1: memref<8x512xf32, #tpu.memory_space<vmem>>, %arg2: memref<128x512xf32, #tpu.memory_space<vmem>>, %arg3: memref<1x512xf32, #tpu.memory_space<vmem>>, %arg4: memref<128x512xf32, #tpu.memory_space<vmem>>, %arg5: memref<128x512xf32, #tpu.memory_space<vmem>>, %arg6: memref<1x512xf32, #tpu.memory_space<vmem>>, %arg7: memref<128x512xf32, #tpu.memory_space<vmem>>, %arg8: memref<128x512xf32, #tpu.memory_space<vmem>>, %arg9: memref<1x512xf32, #tpu.memory_space<vmem>>, %arg10: memref<128x4xf32, #tpu.memory_space<vmem>>, %arg11: memref<1x4xf32, #tpu.memory_space<vmem>>, %arg12: memref<8x4xf32, #tpu.memory_space<vmem>>, %arg13: memref<64x512xf32, #tpu.memory_space<vmem>>, %arg14: memref<64x128xf32, #tpu.memory_space<vmem>>) attributes {dimension_semantics = [], scalar_prefetch = 0 : i64, scratch_operands = 2 : i64, tpu.core_type = #tpu.core_type<tc>} {
    %c0 = arith.constant 0 : index
    %c0_0 = arith.constant 0 : index
    %0 = vector.load %arg0[%c0, %c0_0] : memref<64x8xf32, #tpu.memory_space<vmem>>, vector<64x8xf32>
    %c0_1 = arith.constant 0 : index
    %c0_2 = arith.constant 0 : index
    %1 = vector.load %arg1[%c0_1, %c0_2] : memref<8x512xf32, #tpu.memory_space<vmem>>, vector<8x512xf32>
    %cst = arith.constant dense<0.000000e+00> : vector<64x512xf32>
    %2 = tpu.matmul %0, %1, %cst {dimension_numbers = #tpu.dot_dimension_numbers<[1], [0], [0], [1], [0, 0, 1, 1], [], []>} : vector<64x8xf32>, vector<8x512xf32>, vector<64x512xf32> -> vector<64x512xf32>
    %c0_3 = arith.constant 0 : index
    %c0_4 = arith.constant 0 : index
    %3 = vector.load %arg3[%c0_3, %c0_4] : memref<1x512xf32, #tpu.memory_space<vmem>>, vector<1x512xf32>
    %4 = vector.broadcast %3 : vector<1x512xf32> to vector<64x512xf32>
    %5 = arith.addf %2, %4 : vector<64x512xf32>
    %c0_5 = arith.constant 0 : index
    %c0_6 = arith.constant 0 : index
    %6 = vector.load %arg13[%c0_5, %c0_6] : memref<64x512xf32, #tpu.memory_space<vmem>>, vector<64x512xf32>
    tpu.vector_store %arg13[%c0_5, %c0_6], %5 {strides = array<i32>} : memref<64x512xf32, #tpu.memory_space<vmem>>, vector<64x512xf32>,
    %cst_7 = arith.constant 0.000000e+00 : f32
    %7 = vector.broadcast %cst_7 : f32 to vector<8x128xf32>
    %cst_8 = arith.constant 0.000000e+00 : f32
    %8 = vector.broadcast %cst_8 : f32 to vector<8x128xf32>
    %c0_i32 = arith.constant 0 : i32
    %c8_i32 = arith.constant 8 : i32
    %9 = arith.muli %c0_i32, %c8_i32 : i32
    %10 = tpu.assume_multiple %9, 8 : i32
    %11 = arith.index_cast %10 : i32 to index
    %c0_9 = arith.constant 0 : index
    %12 = vector.load %arg13[%11, %c0_9] : memref<64x512xf32, #tpu.memory_space<vmem>>, vector<8x512xf32>
    %c0_10 = arith.constant 0 : index
    %c0_11 = arith.constant 0 : index
    %13 = vector.load %arg2[%c0_10, %c0_11] : memref<128x512xf32, #tpu.memory_space<vmem>>, vector<128x512xf32>
    %cst_12 = arith.constant dense<0.000000e+00> : vector<8x512xf32>
    %14 = tpu.matmul %7, %13, %cst_12 {dimension_numbers = #tpu.dot_dimension_numbers<[1], [0], [0], [1], [0, 0, 1, 1], [], []>} : vector<8x128xf32>, vector<128x512xf32>, vector<8x512xf32> -> vector<8x512xf32>
    %15 = arith.addf %12, %14 : vector<8x512xf32>
    %16 = vector.extract_strided_slice %15 {offsets = [0, 0], sizes = [8, 128], strides = [1, 1]} : vector<8x512xf32> to vector<8x128xf32>
    %17 = arith.negf %16 : vector<8x128xf32>
    %18 = math.exp %17 : vector<8x128xf32>
    %cst_13 = arith.constant 1.000000e+00 : f32
    %19 = vector.broadcast %cst_13 : f32 to vector<8x128xf32>
    %20 = arith.addf %19, %18 : vector<8x128xf32>
    %21 = arith.divf %19, %20 : vector<8x128xf32>
    %22 = vector.extract_strided_slice %15 {offsets = [0, 128], sizes = [8, 128], strides = [1, 1]} : vector<8x512xf32> to vector<8x128xf32>
    %23 = arith.negf %22 : vector<8x128xf32>
    %24 = math.exp %23 : vector<8x128xf32>
    %cst_14 = arith.constant 1.000000e+00 : f32
    %25 = vector.broadcast %cst_14 : f32 to vector<8x128xf32>
    %26 = arith.addf %25, %24 : vector<8x128xf32>
    %27 = arith.divf %25, %26 : vector<8x128xf32>
    %28 = vector.extract_strided_slice %15 {offsets = [0, 256], sizes = [8, 128], strides = [1, 1]} : vector<8x512xf32> to vector<8x128xf32>
    %29 = math.tanh %28 : vector<8x128xf32>
    %30 = vector.extract_strided_slice %15 {offsets = [0, 384], sizes = [8, 128], strides = [1, 1]} : vector<8x512xf32> to vector<8x128xf32>
    %31 = arith.negf %30 : vector<8x128xf32>
    %32 = math.exp %31 : vector<8x128xf32>
    %cst_15 = arith.constant 1.000000e+00 : f32
    %33 = vector.broadcast %cst_15 : f32 to vector<8x128xf32>
    %34 = arith.addf %33, %32 : vector<8x128xf32>
    %35 = arith.divf %33, %34 : vector<8x128xf32>
    %36 = arith.mulf %27, %8 : vector<8x128xf32>
    %37 = arith.mulf %21, %29 : vector<8x128xf32>
    %38 = arith.addf %36, %37 : vector<8x128xf32>
    %39 = math.tanh %38 : vector<8x128xf32>
    %40 = arith.mulf %35, %39 : vector<8x128xf32>
    %41 = arith.index_cast %10 : i32 to index
    %c0_16 = arith.constant 0 : index
    %42 = vector.load %arg14[%41, %c0_16] : memref<64x128xf32, #tpu.memory_space<vmem>>, vector<8x128xf32>
    tpu.vector_store %arg14[%41, %c0_16], %40 {strides = array<i32>} : memref<64x128xf32, #tpu.memory_space<vmem>>, vector<8x128xf32>,
    %c1_i32 = arith.constant 1 : i32
    %c8_i32_17 = arith.constant 8 : i32
    %43 = arith.muli %c1_i32, %c8_i32_17 : i32
    %44 = tpu.assume_multiple %43, 8 : i32
    %45 = arith.index_cast %44 : i32 to index
    %c0_18 = arith.constant 0 : index
    %46 = vector.load %arg13[%45, %c0_18] : memref<64x512xf32, #tpu.memory_space<vmem>>, vector<8x512xf32>
    %c0_19 = arith.constant 0 : index
    %c0_20 = arith.constant 0 : index
    %47 = vector.load %arg2[%c0_19, %c0_20] : memref<128x512xf32, #tpu.memory_space<vmem>>, vector<128x512xf32>
    %cst_21 = arith.constant dense<0.000000e+00> : vector<8x512xf32>
    %48 = tpu.matmul %40, %47, %cst_21 {dimension_numbers = #tpu.dot_dimension_numbers<[1], [0], [0], [1], [0, 0, 1, 1], [], []>} : vector<8x128xf32>, vector<128x512xf32>, vector<8x512xf32> -> vector<8x512xf32>
    %49 = arith.addf %46, %48 : vector<8x512xf32>
    %50 = vector.extract_strided_slice %49 {offsets = [0, 0], sizes = [8, 128], strides = [1, 1]} : vector<8x512xf32> to vector<8x128xf32>
    %51 = arith.negf %50 : vector<8x128xf32>
    %52 = math.exp %51 : vector<8x128xf32>
    %cst_22 = arith.constant 1.000000e+00 : f32
    %53 = vector.broadcast %cst_22 : f32 to vector<8x128xf32>
    %54 = arith.addf %53, %52 : vector<8x128xf32>
    %55 = arith.divf %53, %54 : vector<8x128xf32>
    %56 = vector.extract_strided_slice %49 {offsets = [0, 128], sizes = [8, 128], strides = [1, 1]} : vector<8x512xf32> to vector<8x128xf32>
    %57 = arith.negf %56 : vector<8x128xf32>
    %58 = math.exp %57 : vector<8x128xf32>
    %cst_23 = arith.constant 1.000000e+00 : f32
    %59 = vector.broadcast %cst_23 : f32 to vector<8x128xf32>
    %60 = arith.addf %59, %58 : vector<8x128xf32>
    %61 = arith.divf %59, %60 : vector<8x128xf32>
    %62 = vector.extract_strided_slice %49 {offsets = [0, 256], sizes = [8, 128], strides = [1, 1]} : vector<8x512xf32> to vector<8x128xf32>
    %63 = math.tanh %62 : vector<8x128xf32>
    %64 = vector.extract_strided_slice %49 {offsets = [0, 384], sizes = [8, 128], strides = [1, 1]} : vector<8x512xf32> to vector<8x128xf32>
    %65 = arith.negf %64 : vector<8x128xf32>
    %66 = math.exp %65 : vector<8x128xf32>
    %cst_24 = arith.constant 1.000000e+00 : f32
    %67 = vector.broadcast %cst_24 : f32 to vector<8x128xf32>
    %68 = arith.addf %67, %66 : vector<8x128xf32>
    %69 = arith.divf %67, %68 : vector<8x128xf32>
    %70 = arith.mulf %61, %38 : vector<8x128xf32>
    %71 = arith.mulf %55, %63 : vector<8x128xf32>
    %72 = arith.addf %70, %71 : vector<8x128xf32>
    %73 = math.tanh %72 : vector<8x128xf32>
    %74 = arith.mulf %69, %73 : vector<8x128xf32>
    %75 = arith.index_cast %44 : i32 to index
    %c0_25 = arith.constant 0 : index
    %76 = vector.load %arg14[%75, %c0_25] : memref<64x128xf32, #tpu.memory_space<vmem>>, vector<8x128xf32>
    tpu.vector_store %arg14[%75, %c0_25], %74 {strides = array<i32>} : memref<64x128xf32, #tpu.memory_space<vmem>>, vector<8x128xf32>,
    %c2_i32 = arith.constant 2 : i32
    %c8_i32_26 = arith.constant 8 : i32
    %77 = arith.muli %c2_i32, %c8_i32_26 : i32
    %78 = tpu.assume_multiple %77, 8 : i32
    %79 = arith.index_cast %78 : i32 to index
    %c0_27 = arith.constant 0 : index
    %80 = vector.load %arg13[%79, %c0_27] : memref<64x512xf32, #tpu.memory_space<vmem>>, vector<8x512xf32>
    %c0_28 = arith.constant 0 : index
    %c0_29 = arith.constant 0 : index
    %81 = vector.load %arg2[%c0_28, %c0_29] : memref<128x512xf32, #tpu.memory_space<vmem>>, vector<128x512xf32>
    %cst_30 = arith.constant dense<0.000000e+00> : vector<8x512xf32>
    %82 = tpu.matmul %74, %81, %cst_30 {dimension_numbers = #tpu.dot_dimension_numbers<[1], [0], [0], [1], [0, 0, 1, 1], [], []>} : vector<8x128xf32>, vector<128x512xf32>, vector<8x512xf32> -> vector<8x512xf32>
    %83 = arith.addf %80, %82 : vector<8x512xf32>
    %84 = vector.extract_strided_slice %83 {offsets = [0, 0], sizes = [8, 128], strides = [1, 1]} : vector<8x512xf32> to vector<8x128xf32>
    %85 = arith.negf %84 : vector<8x128xf32>
    %86 = math.exp %85 : vector<8x128xf32>
    %cst_31 = arith.constant 1.000000e+00 : f32
    %87 = vector.broadcast %cst_31 : f32 to vector<8x128xf32>
    %88 = arith.addf %87, %86 : vector<8x128xf32>
    %89 = arith.divf %87, %88 : vector<8x128xf32>
    %90 = vector.extract_strided_slice %83 {offsets = [0, 128], sizes = [8, 128], strides = [1, 1]} : vector<8x512xf32> to vector<8x128xf32>
    %91 = arith.negf %90 : vector<8x128xf32>
    %92 = math.exp %91 : vector<8x128xf32>
    %cst_32 = arith.constant 1.000000e+00 : f32
    %93 = vector.broadcast %cst_32 : f32 to vector<8x128xf32>
    %94 = arith.addf %93, %92 : vector<8x128xf32>
    %95 = arith.divf %93, %94 : vector<8x128xf32>
    %96 = vector.extract_strided_slice %83 {offsets = [0, 256], sizes = [8, 128], strides = [1, 1]} : vector<8x512xf32> to vector<8x128xf32>
    %97 = math.tanh %96 : vector<8x128xf32>
    %98 = vector.extract_strided_slice %83 {offsets = [0, 384], sizes = [8, 128], strides = [1, 1]} : vector<8x512xf32> to vector<8x128xf32>
    %99 = arith.negf %98 : vector<8x128xf32>
    %100 = math.exp %99 : vector<8x128xf32>
    %cst_33 = arith.constant 1.000000e+00 : f32
    %101 = vector.broadcast %cst_33 : f32 to vector<8x128xf32>
    %102 = arith.addf %101, %100 : vector<8x128xf32>
    %103 = arith.divf %101, %102 : vector<8x128xf32>
    %104 = arith.mulf %95, %72 : vector<8x128xf32>
    %105 = arith.mulf %89, %97 : vector<8x128xf32>
    %106 = arith.addf %104, %105 : vector<8x128xf32>
    %107 = math.tanh %106 : vector<8x128xf32>
    %108 = arith.mulf %103, %107 : vector<8x128xf32>
    %109 = arith.index_cast %78 : i32 to index
    %c0_34 = arith.constant 0 : index
    %110 = vector.load %arg14[%109, %c0_34] : memref<64x128xf32, #tpu.memory_space<vmem>>, vector<8x128xf32>
    tpu.vector_store %arg14[%109, %c0_34], %108 {strides = array<i32>} : memref<64x128xf32, #tpu.memory_space<vmem>>, vector<8x128xf32>,
    %c3_i32 = arith.constant 3 : i32
    %c8_i32_35 = arith.constant 8 : i32
    %111 = arith.muli %c3_i32, %c8_i32_35 : i32
    %112 = tpu.assume_multiple %111, 8 : i32
    %113 = arith.index_cast %112 : i32 to index
    %c0_36 = arith.constant 0 : index
    %114 = vector.load %arg13[%113, %c0_36] : memref<64x512xf32, #tpu.memory_space<vmem>>, vector<8x512xf32>
    %c0_37 = arith.constant 0 : index
    %c0_38 = arith.constant 0 : index
    %115 = vector.load %arg2[%c0_37, %c0_38] : memref<128x512xf32, #tpu.memory_space<vmem>>, vector<128x512xf32>
    %cst_39 = arith.constant dense<0.000000e+00> : vector<8x512xf32>
    %116 = tpu.matmul %108, %115, %cst_39 {dimension_numbers = #tpu.dot_dimension_numbers<[1], [0], [0], [1], [0, 0, 1, 1], [], []>} : vector<8x128xf32>, vector<128x512xf32>, vector<8x512xf32> -> vector<8x512xf32>
    %117 = arith.addf %114, %116 : vector<8x512xf32>
    %118 = vector.extract_strided_slice %117 {offsets = [0, 0], sizes = [8, 128], strides = [1, 1]} : vector<8x512xf32> to vector<8x128xf32>
    %119 = arith.negf %118 : vector<8x128xf32>
    %120 = math.exp %119 : vector<8x128xf32>
    %cst_40 = arith.constant 1.000000e+00 : f32
    %121 = vector.broadcast %cst_40 : f32 to vector<8x128xf32>
    %122 = arith.addf %121, %120 : vector<8x128xf32>
    %123 = arith.divf %121, %122 : vector<8x128xf32>
    %124 = vector.extract_strided_slice %117 {offsets = [0, 128], sizes = [8, 128], strides = [1, 1]} : vector<8x512xf32> to vector<8x128xf32>
    %125 = arith.negf %124 : vector<8x128xf32>
    %126 = math.exp %125 : vector<8x128xf32>
    %cst_41 = arith.constant 1.000000e+00 : f32
    %127 = vector.broadcast %cst_41 : f32 to vector<8x128xf32>
    %128 = arith.addf %127, %126 : vector<8x128xf32>
    %129 = arith.divf %127, %128 : vector<8x128xf32>
    %130 = vector.extract_strided_slice %117 {offsets = [0, 256], sizes = [8, 128], strides = [1, 1]} : vector<8x512xf32> to vector<8x128xf32>
    %131 = math.tanh %130 : vector<8x128xf32>
    %132 = vector.extract_strided_slice %117 {offsets = [0, 384], sizes = [8, 128], strides = [1, 1]} : vector<8x512xf32> to vector<8x128xf32>
    %133 = arith.negf %132 : vector<8x128xf32>
    %134 = math.exp %133 : vector<8x128xf32>
    %cst_42 = arith.constant 1.000000e+00 : f32
    %135 = vector.broadcast %cst_42 : f32 to vector<8x128xf32>
    %136 = arith.addf %135, %134 : vector<8x128xf32>
    %137 = arith.divf %135, %136 : vector<8x128xf32>
    %138 = arith.mulf %129, %106 : vector<8x128xf32>
    %139 = arith.mulf %123, %131 : vector<8x128xf32>
    %140 = arith.addf %138, %139 : vector<8x128xf32>
    %141 = math.tanh %140 : vector<8x128xf32>
    %142 = arith.mulf %137, %141 : vector<8x128xf32>
    %143 = arith.index_cast %112 : i32 to index
    %c0_43 = arith.constant 0 : index
    %144 = vector.load %arg14[%143, %c0_43] : memref<64x128xf32, #tpu.memory_space<vmem>>, vector<8x128xf32>
    tpu.vector_store %arg14[%143, %c0_43], %142 {strides = array<i32>} : memref<64x128xf32, #tpu.memory_space<vmem>>, vector<8x128xf32>,
    %c4_i32 = arith.constant 4 : i32
    %c8_i32_44 = arith.constant 8 : i32
    %145 = arith.muli %c4_i32, %c8_i32_44 : i32
    %146 = tpu.assume_multiple %145, 8 : i32
    %147 = arith.index_cast %146 : i32 to index
    %c0_45 = arith.constant 0 : index
    %148 = vector.load %arg13[%147, %c0_45] : memref<64x512xf32, #tpu.memory_space<vmem>>, vector<8x512xf32>
    %c0_46 = arith.constant 0 : index
    %c0_47 = arith.constant 0 : index
    %149 = vector.load %arg2[%c0_46, %c0_47] : memref<128x512xf32, #tpu.memory_space<vmem>>, vector<128x512xf32>
    %cst_48 = arith.constant dense<0.000000e+00> : vector<8x512xf32>
    %150 = tpu.matmul %142, %149, %cst_48 {dimension_numbers = #tpu.dot_dimension_numbers<[1], [0], [0], [1], [0, 0, 1, 1], [], []>} : vector<8x128xf32>, vector<128x512xf32>, vector<8x512xf32> -> vector<8x512xf32>
    %151 = arith.addf %148, %150 : vector<8x512xf32>
    %152 = vector.extract_strided_slice %151 {offsets = [0, 0], sizes = [8, 128], strides = [1, 1]} : vector<8x512xf32> to vector<8x128xf32>
    %153 = arith.negf %152 : vector<8x128xf32>
    %154 = math.exp %153 : vector<8x128xf32>
    %cst_49 = arith.constant 1.000000e+00 : f32
    %155 = vector.broadcast %cst_49 : f32 to vector<8x128xf32>
    %156 = arith.addf %155, %154 : vector<8x128xf32>
    %157 = arith.divf %155, %156 : vector<8x128xf32>
    %158 = vector.extract_strided_slice %151 {offsets = [0, 128], sizes = [8, 128], strides = [1, 1]} : vector<8x512xf32> to vector<8x128xf32>
    %159 = arith.negf %158 : vector<8x128xf32>
    %160 = math.exp %159 : vector<8x128xf32>
    %cst_50 = arith.constant 1.000000e+00 : f32
    %161 = vector.broadcast %cst_50 : f32 to vector<8x128xf32>
    %162 = arith.addf %161, %160 : vector<8x128xf32>
    %163 = arith.divf %161, %162 : vector<8x128xf32>
    %164 = vector.extract_strided_slice %151 {offsets = [0, 256], sizes = [8, 128], strides = [1, 1]} : vector<8x512xf32> to vector<8x128xf32>
    %165 = math.tanh %164 : vector<8x128xf32>
    %166 = vector.extract_strided_slice %151 {offsets = [0, 384], sizes = [8, 128], strides = [1, 1]} : vector<8x512xf32> to vector<8x128xf32>
    %167 = arith.negf %166 : vector<8x128xf32>
    %168 = math.exp %167 : vector<8x128xf32>
    %cst_51 = arith.constant 1.000000e+00 : f32
    %169 = vector.broadcast %cst_51 : f32 to vector<8x128xf32>
    %170 = arith.addf %169, %168 : vector<8x128xf32>
    %171 = arith.divf %169, %170 : vector<8x128xf32>
    %172 = arith.mulf %163, %140 : vector<8x128xf32>
    %173 = arith.mulf %157, %165 : vector<8x128xf32>
    %174 = arith.addf %172, %173 : vector<8x128xf32>
    %175 = math.tanh %174 : vector<8x128xf32>
    %176 = arith.mulf %171, %175 : vector<8x128xf32>
    %177 = arith.index_cast %146 : i32 to index
    %c0_52 = arith.constant 0 : index
    %178 = vector.load %arg14[%177, %c0_52] : memref<64x128xf32, #tpu.memory_space<vmem>>, vector<8x128xf32>
    tpu.vector_store %arg14[%177, %c0_52], %176 {strides = array<i32>} : memref<64x128xf32, #tpu.memory_space<vmem>>, vector<8x128xf32>,
    %c5_i32 = arith.constant 5 : i32
    %c8_i32_53 = arith.constant 8 : i32
    %179 = arith.muli %c5_i32, %c8_i32_53 : i32
    %180 = tpu.assume_multiple %179, 8 : i32
    %181 = arith.index_cast %180 : i32 to index
    %c0_54 = arith.constant 0 : index
    %182 = vector.load %arg13[%181, %c0_54] : memref<64x512xf32, #tpu.memory_space<vmem>>, vector<8x512xf32>
    %c0_55 = arith.constant 0 : index
    %c0_56 = arith.constant 0 : index
    %183 = vector.load %arg2[%c0_55, %c0_56] : memref<128x512xf32, #tpu.memory_space<vmem>>, vector<128x512xf32>
    %cst_57 = arith.constant dense<0.000000e+00> : vector<8x512xf32>
    %184 = tpu.matmul %176, %183, %cst_57 {dimension_numbers = #tpu.dot_dimension_numbers<[1], [0], [0], [1], [0, 0, 1, 1], [], []>} : vector<8x128xf32>, vector<128x512xf32>, vector<8x512xf32> -> vector<8x512xf32>
    %185 = arith.addf %182, %184 : vector<8x512xf32>
    %186 = vector.extract_strided_slice %185 {offsets = [0, 0], sizes = [8, 128], strides = [1, 1]} : vector<8x512xf32> to vector<8x128xf32>
    %187 = arith.negf %186 : vector<8x128xf32>
    %188 = math.exp %187 : vector<8x128xf32>
    %cst_58 = arith.constant 1.000000e+00 : f32
    %189 = vector.broadcast %cst_58 : f32 to vector<8x128xf32>
    %190 = arith.addf %189, %188 : vector<8x128xf32>
    %191 = arith.divf %189, %190 : vector<8x128xf32>
    %192 = vector.extract_strided_slice %185 {offsets = [0, 128], sizes = [8, 128], strides = [1, 1]} : vector<8x512xf32> to vector<8x128xf32>
    %193 = arith.negf %192 : vector<8x128xf32>
    %194 = math.exp %193 : vector<8x128xf32>
    %cst_59 = arith.constant 1.000000e+00 : f32
    %195 = vector.broadcast %cst_59 : f32 to vector<8x128xf32>
    %196 = arith.addf %195, %194 : vector<8x128xf32>
    %197 = arith.divf %195, %196 : vector<8x128xf32>
    %198 = vector.extract_strided_slice %185 {offsets = [0, 256], sizes = [8, 128], strides = [1, 1]} : vector<8x512xf32> to vector<8x128xf32>
    %199 = math.tanh %198 : vector<8x128xf32>
    %200 = vector.extract_strided_slice %185 {offsets = [0, 384], sizes = [8, 128], strides = [1, 1]} : vector<8x512xf32> to vector<8x128xf32>
    %201 = arith.negf %200 : vector<8x128xf32>
    %202 = math.exp %201 : vector<8x128xf32>
    %cst_60 = arith.constant 1.000000e+00 : f32
    %203 = vector.broadcast %cst_60 : f32 to vector<8x128xf32>
    %204 = arith.addf %203, %202 : vector<8x128xf32>
    %205 = arith.divf %203, %204 : vector<8x128xf32>
    %206 = arith.mulf %197, %174 : vector<8x128xf32>
    %207 = arith.mulf %191, %199 : vector<8x128xf32>
    %208 = arith.addf %206, %207 : vector<8x128xf32>
    %209 = math.tanh %208 : vector<8x128xf32>
    %210 = arith.mulf %205, %209 : vector<8x128xf32>
    %211 = arith.index_cast %180 : i32 to index
    %c0_61 = arith.constant 0 : index
    %212 = vector.load %arg14[%211, %c0_61] : memref<64x128xf32, #tpu.memory_space<vmem>>, vector<8x128xf32>
    tpu.vector_store %arg14[%211, %c0_61], %210 {strides = array<i32>} : memref<64x128xf32, #tpu.memory_space<vmem>>, vector<8x128xf32>,
    %c6_i32 = arith.constant 6 : i32
    %c8_i32_62 = arith.constant 8 : i32
    %213 = arith.muli %c6_i32, %c8_i32_62 : i32
    %214 = tpu.assume_multiple %213, 8 : i32
    %215 = arith.index_cast %214 : i32 to index
    %c0_63 = arith.constant 0 : index
    %216 = vector.load %arg13[%215, %c0_63] : memref<64x512xf32, #tpu.memory_space<vmem>>, vector<8x512xf32>
    %c0_64 = arith.constant 0 : index
    %c0_65 = arith.constant 0 : index
    %217 = vector.load %arg2[%c0_64, %c0_65] : memref<128x512xf32, #tpu.memory_space<vmem>>, vector<128x512xf32>
    %cst_66 = arith.constant dense<0.000000e+00> : vector<8x512xf32>
    %218 = tpu.matmul %210, %217, %cst_66 {dimension_numbers = #tpu.dot_dimension_numbers<[1], [0], [0], [1], [0, 0, 1, 1], [], []>} : vector<8x128xf32>, vector<128x512xf32>, vector<8x512xf32> -> vector<8x512xf32>
    %219 = arith.addf %216, %218 : vector<8x512xf32>
    %220 = vector.extract_strided_slice %219 {offsets = [0, 0], sizes = [8, 128], strides = [1, 1]} : vector<8x512xf32> to vector<8x128xf32>
    %221 = arith.negf %220 : vector<8x128xf32>
    %222 = math.exp %221 : vector<8x128xf32>
    %cst_67 = arith.constant 1.000000e+00 : f32
    %223 = vector.broadcast %cst_67 : f32 to vector<8x128xf32>
    %224 = arith.addf %223, %222 : vector<8x128xf32>
    %225 = arith.divf %223, %224 : vector<8x128xf32>
    %226 = vector.extract_strided_slice %219 {offsets = [0, 128], sizes = [8, 128], strides = [1, 1]} : vector<8x512xf32> to vector<8x128xf32>
    %227 = arith.negf %226 : vector<8x128xf32>
    %228 = math.exp %227 : vector<8x128xf32>
    %cst_68 = arith.constant 1.000000e+00 : f32
    %229 = vector.broadcast %cst_68 : f32 to vector<8x128xf32>
    %230 = arith.addf %229, %228 : vector<8x128xf32>
    %231 = arith.divf %229, %230 : vector<8x128xf32>
    %232 = vector.extract_strided_slice %219 {offsets = [0, 256], sizes = [8, 128], strides = [1, 1]} : vector<8x512xf32> to vector<8x128xf32>
    %233 = math.tanh %232 : vector<8x128xf32>
    %234 = vector.extract_strided_slice %219 {offsets = [0, 384], sizes = [8, 128], strides = [1, 1]} : vector<8x512xf32> to vector<8x128xf32>
    %235 = arith.negf %234 : vector<8x128xf32>
    %236 = math.exp %235 : vector<8x128xf32>
    %cst_69 = arith.constant 1.000000e+00 : f32
    %237 = vector.broadcast %cst_69 : f32 to vector<8x128xf32>
    %238 = arith.addf %237, %236 : vector<8x128xf32>
    %239 = arith.divf %237, %238 : vector<8x128xf32>
    %240 = arith.mulf %231, %208 : vector<8x128xf32>
    %241 = arith.mulf %225, %233 : vector<8x128xf32>
    %242 = arith.addf %240, %241 : vector<8x128xf32>
    %243 = math.tanh %242 : vector<8x128xf32>
    %244 = arith.mulf %239, %243 : vector<8x128xf32>
    %245 = arith.index_cast %214 : i32 to index
    %c0_70 = arith.constant 0 : index
    %246 = vector.load %arg14[%245, %c0_70] : memref<64x128xf32, #tpu.memory_space<vmem>>, vector<8x128xf32>
    tpu.vector_store %arg14[%245, %c0_70], %244 {strides = array<i32>} : memref<64x128xf32, #tpu.memory_space<vmem>>, vector<8x128xf32>,
    %c7_i32 = arith.constant 7 : i32
    %c8_i32_71 = arith.constant 8 : i32
    %247 = arith.muli %c7_i32, %c8_i32_71 : i32
    %248 = tpu.assume_multiple %247, 8 : i32
    %249 = arith.index_cast %248 : i32 to index
    %c0_72 = arith.constant 0 : index
    %250 = vector.load %arg13[%249, %c0_72] : memref<64x512xf32, #tpu.memory_space<vmem>>, vector<8x512xf32>
    %c0_73 = arith.constant 0 : index
    %c0_74 = arith.constant 0 : index
    %251 = vector.load %arg2[%c0_73, %c0_74] : memref<128x512xf32, #tpu.memory_space<vmem>>, vector<128x512xf32>
    %cst_75 = arith.constant dense<0.000000e+00> : vector<8x512xf32>
    %252 = tpu.matmul %244, %251, %cst_75 {dimension_numbers = #tpu.dot_dimension_numbers<[1], [0], [0], [1], [0, 0, 1, 1], [], []>} : vector<8x128xf32>, vector<128x512xf32>, vector<8x512xf32> -> vector<8x512xf32>
    %253 = arith.addf %250, %252 : vector<8x512xf32>
    %254 = vector.extract_strided_slice %253 {offsets = [0, 0], sizes = [8, 128], strides = [1, 1]} : vector<8x512xf32> to vector<8x128xf32>
    %255 = arith.negf %254 : vector<8x128xf32>
    %256 = math.exp %255 : vector<8x128xf32>
    %cst_76 = arith.constant 1.000000e+00 : f32
    %257 = vector.broadcast %cst_76 : f32 to vector<8x128xf32>
    %258 = arith.addf %257, %256 : vector<8x128xf32>
    %259 = arith.divf %257, %258 : vector<8x128xf32>
    %260 = vector.extract_strided_slice %253 {offsets = [0, 128], sizes = [8, 128], strides = [1, 1]} : vector<8x512xf32> to vector<8x128xf32>
    %261 = arith.negf %260 : vector<8x128xf32>
    %262 = math.exp %261 : vector<8x128xf32>
    %cst_77 = arith.constant 1.000000e+00 : f32
    %263 = vector.broadcast %cst_77 : f32 to vector<8x128xf32>
    %264 = arith.addf %263, %262 : vector<8x128xf32>
    %265 = arith.divf %263, %264 : vector<8x128xf32>
    %266 = vector.extract_strided_slice %253 {offsets = [0, 256], sizes = [8, 128], strides = [1, 1]} : vector<8x512xf32> to vector<8x128xf32>
    %267 = math.tanh %266 : vector<8x128xf32>
    %268 = vector.extract_strided_slice %253 {offsets = [0, 384], sizes = [8, 128], strides = [1, 1]} : vector<8x512xf32> to vector<8x128xf32>
    %269 = arith.negf %268 : vector<8x128xf32>
    %270 = math.exp %269 : vector<8x128xf32>
    %cst_78 = arith.constant 1.000000e+00 : f32
    %271 = vector.broadcast %cst_78 : f32 to vector<8x128xf32>
    %272 = arith.addf %271, %270 : vector<8x128xf32>
    %273 = arith.divf %271, %272 : vector<8x128xf32>
    %274 = arith.mulf %265, %242 : vector<8x128xf32>
    %275 = arith.mulf %259, %267 : vector<8x128xf32>
    %276 = arith.addf %274, %275 : vector<8x128xf32>
    %277 = math.tanh %276 : vector<8x128xf32>
    %278 = arith.mulf %273, %277 : vector<8x128xf32>
    %279 = arith.index_cast %248 : i32 to index
    %c0_79 = arith.constant 0 : index
    %280 = vector.load %arg14[%279, %c0_79] : memref<64x128xf32, #tpu.memory_space<vmem>>, vector<8x128xf32>
    tpu.vector_store %arg14[%279, %c0_79], %278 {strides = array<i32>} : memref<64x128xf32, #tpu.memory_space<vmem>>, vector<8x128xf32>,
    %c8_i32_80 = arith.constant 8 : i32
    %c0_81 = arith.constant 0 : index
    %c0_82 = arith.constant 0 : index
    %281 = vector.load %arg14[%c0_81, %c0_82] : memref<64x128xf32, #tpu.memory_space<vmem>>, vector<64x128xf32>
    %c0_83 = arith.constant 0 : index
    %c0_84 = arith.constant 0 : index
    %282 = vector.load %arg4[%c0_83, %c0_84] : memref<128x512xf32, #tpu.memory_space<vmem>>, vector<128x512xf32>
    %cst_85 = arith.constant dense<0.000000e+00> : vector<64x512xf32>
    %283 = tpu.matmul %281, %282, %cst_85 {dimension_numbers = #tpu.dot_dimension_numbers<[1], [0], [0], [1], [0, 0, 1, 1], [], []>} : vector<64x128xf32>, vector<128x512xf32>, vector<64x512xf32> -> vector<64x512xf32>
    %c0_86 = arith.constant 0 : index
    %c0_87 = arith.constant 0 : index
    %284 = vector.load %arg6[%c0_86, %c0_87] : memref<1x512xf32, #tpu.memory_space<vmem>>, vector<1x512xf32>
    %285 = vector.broadcast %284 : vector<1x512xf32> to vector<64x512xf32>
    %286 = arith.addf %283, %285 : vector<64x512xf32>
    %c0_88 = arith.constant 0 : index
    %c0_89 = arith.constant 0 : index
    %287 = vector.load %arg13[%c0_88, %c0_89] : memref<64x512xf32, #tpu.memory_space<vmem>>, vector<64x512xf32>
    tpu.vector_store %arg13[%c0_88, %c0_89], %286 {strides = array<i32>} : memref<64x512xf32, #tpu.memory_space<vmem>>, vector<64x512xf32>,
    %cst_90 = arith.constant 0.000000e+00 : f32
    %288 = vector.broadcast %cst_90 : f32 to vector<8x128xf32>
    %cst_91 = arith.constant 0.000000e+00 : f32
    %289 = vector.broadcast %cst_91 : f32 to vector<8x128xf32>
    %c0_i32_92 = arith.constant 0 : i32
    %c8_i32_93 = arith.constant 8 : i32
    %290 = arith.muli %c0_i32_92, %c8_i32_93 : i32
    %291 = tpu.assume_multiple %290, 8 : i32
    %292 = arith.index_cast %291 : i32 to index
    %c0_94 = arith.constant 0 : index
    %293 = vector.load %arg13[%292, %c0_94] : memref<64x512xf32, #tpu.memory_space<vmem>>, vector<8x512xf32>
    %c0_95 = arith.constant 0 : index
    %c0_96 = arith.constant 0 : index
    %294 = vector.load %arg5[%c0_95, %c0_96] : memref<128x512xf32, #tpu.memory_space<vmem>>, vector<128x512xf32>
    %cst_97 = arith.constant dense<0.000000e+00> : vector<8x512xf32>
    %295 = tpu.matmul %288, %294, %cst_97 {dimension_numbers = #tpu.dot_dimension_numbers<[1], [0], [0], [1], [0, 0, 1, 1], [], []>} : vector<8x128xf32>, vector<128x512xf32>, vector<8x512xf32> -> vector<8x512xf32>
    %296 = arith.addf %293, %295 : vector<8x512xf32>
    %297 = vector.extract_strided_slice %296 {offsets = [0, 0], sizes = [8, 128], strides = [1, 1]} : vector<8x512xf32> to vector<8x128xf32>
    %298 = arith.negf %297 : vector<8x128xf32>
    %299 = math.exp %298 : vector<8x128xf32>
    %cst_98 = arith.constant 1.000000e+00 : f32
    %300 = vector.broadcast %cst_98 : f32 to vector<8x128xf32>
    %301 = arith.addf %300, %299 : vector<8x128xf32>
    %302 = arith.divf %300, %301 : vector<8x128xf32>
    %303 = vector.extract_strided_slice %296 {offsets = [0, 128], sizes = [8, 128], strides = [1, 1]} : vector<8x512xf32> to vector<8x128xf32>
    %304 = arith.negf %303 : vector<8x128xf32>
    %305 = math.exp %304 : vector<8x128xf32>
    %cst_99 = arith.constant 1.000000e+00 : f32
    %306 = vector.broadcast %cst_99 : f32 to vector<8x128xf32>
    %307 = arith.addf %306, %305 : vector<8x128xf32>
    %308 = arith.divf %306, %307 : vector<8x128xf32>
    %309 = vector.extract_strided_slice %296 {offsets = [0, 256], sizes = [8, 128], strides = [1, 1]} : vector<8x512xf32> to vector<8x128xf32>
    %310 = math.tanh %309 : vector<8x128xf32>
    %311 = vector.extract_strided_slice %296 {offsets = [0, 384], sizes = [8, 128], strides = [1, 1]} : vector<8x512xf32> to vector<8x128xf32>
    %312 = arith.negf %311 : vector<8x128xf32>
    %313 = math.exp %312 : vector<8x128xf32>
    %cst_100 = arith.constant 1.000000e+00 : f32
    %314 = vector.broadcast %cst_100 : f32 to vector<8x128xf32>
    %315 = arith.addf %314, %313 : vector<8x128xf32>
    %316 = arith.divf %314, %315 : vector<8x128xf32>
    %317 = arith.mulf %308, %289 : vector<8x128xf32>
    %318 = arith.mulf %302, %310 : vector<8x128xf32>
    %319 = arith.addf %317, %318 : vector<8x128xf32>
    %320 = math.tanh %319 : vector<8x128xf32>
    %321 = arith.mulf %316, %320 : vector<8x128xf32>
    %322 = arith.index_cast %291 : i32 to index
    %c0_101 = arith.constant 0 : index
    %323 = vector.load %arg14[%322, %c0_101] : memref<64x128xf32, #tpu.memory_space<vmem>>, vector<8x128xf32>
    tpu.vector_store %arg14[%322, %c0_101], %321 {strides = array<i32>} : memref<64x128xf32, #tpu.memory_space<vmem>>, vector<8x128xf32>,
    %c1_i32_102 = arith.constant 1 : i32
    %c8_i32_103 = arith.constant 8 : i32
    %324 = arith.muli %c1_i32_102, %c8_i32_103 : i32
    %325 = tpu.assume_multiple %324, 8 : i32
    %326 = arith.index_cast %325 : i32 to index
    %c0_104 = arith.constant 0 : index
    %327 = vector.load %arg13[%326, %c0_104] : memref<64x512xf32, #tpu.memory_space<vmem>>, vector<8x512xf32>
    %c0_105 = arith.constant 0 : index
    %c0_106 = arith.constant 0 : index
    %328 = vector.load %arg5[%c0_105, %c0_106] : memref<128x512xf32, #tpu.memory_space<vmem>>, vector<128x512xf32>
    %cst_107 = arith.constant dense<0.000000e+00> : vector<8x512xf32>
    %329 = tpu.matmul %321, %328, %cst_107 {dimension_numbers = #tpu.dot_dimension_numbers<[1], [0], [0], [1], [0, 0, 1, 1], [], []>} : vector<8x128xf32>, vector<128x512xf32>, vector<8x512xf32> -> vector<8x512xf32>
    %330 = arith.addf %327, %329 : vector<8x512xf32>
    %331 = vector.extract_strided_slice %330 {offsets = [0, 0], sizes = [8, 128], strides = [1, 1]} : vector<8x512xf32> to vector<8x128xf32>
    %332 = arith.negf %331 : vector<8x128xf32>
    %333 = math.exp %332 : vector<8x128xf32>
    %cst_108 = arith.constant 1.000000e+00 : f32
    %334 = vector.broadcast %cst_108 : f32 to vector<8x128xf32>
    %335 = arith.addf %334, %333 : vector<8x128xf32>
    %336 = arith.divf %334, %335 : vector<8x128xf32>
    %337 = vector.extract_strided_slice %330 {offsets = [0, 128], sizes = [8, 128], strides = [1, 1]} : vector<8x512xf32> to vector<8x128xf32>
    %338 = arith.negf %337 : vector<8x128xf32>
    %339 = math.exp %338 : vector<8x128xf32>
    %cst_109 = arith.constant 1.000000e+00 : f32
    %340 = vector.broadcast %cst_109 : f32 to vector<8x128xf32>
    %341 = arith.addf %340, %339 : vector<8x128xf32>
    %342 = arith.divf %340, %341 : vector<8x128xf32>
    %343 = vector.extract_strided_slice %330 {offsets = [0, 256], sizes = [8, 128], strides = [1, 1]} : vector<8x512xf32> to vector<8x128xf32>
    %344 = math.tanh %343 : vector<8x128xf32>
    %345 = vector.extract_strided_slice %330 {offsets = [0, 384], sizes = [8, 128], strides = [1, 1]} : vector<8x512xf32> to vector<8x128xf32>
    %346 = arith.negf %345 : vector<8x128xf32>
    %347 = math.exp %346 : vector<8x128xf32>
    %cst_110 = arith.constant 1.000000e+00 : f32
    %348 = vector.broadcast %cst_110 : f32 to vector<8x128xf32>
    %349 = arith.addf %348, %347 : vector<8x128xf32>
    %350 = arith.divf %348, %349 : vector<8x128xf32>
    %351 = arith.mulf %342, %319 : vector<8x128xf32>
    %352 = arith.mulf %336, %344 : vector<8x128xf32>
    %353 = arith.addf %351, %352 : vector<8x128xf32>
    %354 = math.tanh %353 : vector<8x128xf32>
    %355 = arith.mulf %350, %354 : vector<8x128xf32>
    %356 = arith.index_cast %325 : i32 to index
    %c0_111 = arith.constant 0 : index
    %357 = vector.load %arg14[%356, %c0_111] : memref<64x128xf32, #tpu.memory_space<vmem>>, vector<8x128xf32>
    tpu.vector_store %arg14[%356, %c0_111], %355 {strides = array<i32>} : memref<64x128xf32, #tpu.memory_space<vmem>>, vector<8x128xf32>,
    %c2_i32_112 = arith.constant 2 : i32
    %c8_i32_113 = arith.constant 8 : i32
    %358 = arith.muli %c2_i32_112, %c8_i32_113 : i32
    %359 = tpu.assume_multiple %358, 8 : i32
    %360 = arith.index_cast %359 : i32 to index
    %c0_114 = arith.constant 0 : index
    %361 = vector.load %arg13[%360, %c0_114] : memref<64x512xf32, #tpu.memory_space<vmem>>, vector<8x512xf32>
    %c0_115 = arith.constant 0 : index
    %c0_116 = arith.constant 0 : index
    %362 = vector.load %arg5[%c0_115, %c0_116] : memref<128x512xf32, #tpu.memory_space<vmem>>, vector<128x512xf32>
    %cst_117 = arith.constant dense<0.000000e+00> : vector<8x512xf32>
    %363 = tpu.matmul %355, %362, %cst_117 {dimension_numbers = #tpu.dot_dimension_numbers<[1], [0], [0], [1], [0, 0, 1, 1], [], []>} : vector<8x128xf32>, vector<128x512xf32>, vector<8x512xf32> -> vector<8x512xf32>
    %364 = arith.addf %361, %363 : vector<8x512xf32>
    %365 = vector.extract_strided_slice %364 {offsets = [0, 0], sizes = [8, 128], strides = [1, 1]} : vector<8x512xf32> to vector<8x128xf32>
    %366 = arith.negf %365 : vector<8x128xf32>
    %367 = math.exp %366 : vector<8x128xf32>
    %cst_118 = arith.constant 1.000000e+00 : f32
    %368 = vector.broadcast %cst_118 : f32 to vector<8x128xf32>
    %369 = arith.addf %368, %367 : vector<8x128xf32>
    %370 = arith.divf %368, %369 : vector<8x128xf32>
    %371 = vector.extract_strided_slice %364 {offsets = [0, 128], sizes = [8, 128], strides = [1, 1]} : vector<8x512xf32> to vector<8x128xf32>
    %372 = arith.negf %371 : vector<8x128xf32>
    %373 = math.exp %372 : vector<8x128xf32>
    %cst_119 = arith.constant 1.000000e+00 : f32
    %374 = vector.broadcast %cst_119 : f32 to vector<8x128xf32>
    %375 = arith.addf %374, %373 : vector<8x128xf32>
    %376 = arith.divf %374, %375 : vector<8x128xf32>
    %377 = vector.extract_strided_slice %364 {offsets = [0, 256], sizes = [8, 128], strides = [1, 1]} : vector<8x512xf32> to vector<8x128xf32>
    %378 = math.tanh %377 : vector<8x128xf32>
    %379 = vector.extract_strided_slice %364 {offsets = [0, 384], sizes = [8, 128], strides = [1, 1]} : vector<8x512xf32> to vector<8x128xf32>
    %380 = arith.negf %379 : vector<8x128xf32>
    %381 = math.exp %380 : vector<8x128xf32>
    %cst_120 = arith.constant 1.000000e+00 : f32
    %382 = vector.broadcast %cst_120 : f32 to vector<8x128xf32>
    %383 = arith.addf %382, %381 : vector<8x128xf32>
    %384 = arith.divf %382, %383 : vector<8x128xf32>
    %385 = arith.mulf %376, %353 : vector<8x128xf32>
    %386 = arith.mulf %370, %378 : vector<8x128xf32>
    %387 = arith.addf %385, %386 : vector<8x128xf32>
    %388 = math.tanh %387 : vector<8x128xf32>
    %389 = arith.mulf %384, %388 : vector<8x128xf32>
    %390 = arith.index_cast %359 : i32 to index
    %c0_121 = arith.constant 0 : index
    %391 = vector.load %arg14[%390, %c0_121] : memref<64x128xf32, #tpu.memory_space<vmem>>, vector<8x128xf32>
    tpu.vector_store %arg14[%390, %c0_121], %389 {strides = array<i32>} : memref<64x128xf32, #tpu.memory_space<vmem>>, vector<8x128xf32>,
    %c3_i32_122 = arith.constant 3 : i32
    %c8_i32_123 = arith.constant 8 : i32
    %392 = arith.muli %c3_i32_122, %c8_i32_123 : i32
    %393 = tpu.assume_multiple %392, 8 : i32
    %394 = arith.index_cast %393 : i32 to index
    %c0_124 = arith.constant 0 : index
    %395 = vector.load %arg13[%394, %c0_124] : memref<64x512xf32, #tpu.memory_space<vmem>>, vector<8x512xf32>
    %c0_125 = arith.constant 0 : index
    %c0_126 = arith.constant 0 : index
    %396 = vector.load %arg5[%c0_125, %c0_126] : memref<128x512xf32, #tpu.memory_space<vmem>>, vector<128x512xf32>
    %cst_127 = arith.constant dense<0.000000e+00> : vector<8x512xf32>
    %397 = tpu.matmul %389, %396, %cst_127 {dimension_numbers = #tpu.dot_dimension_numbers<[1], [0], [0], [1], [0, 0, 1, 1], [], []>} : vector<8x128xf32>, vector<128x512xf32>, vector<8x512xf32> -> vector<8x512xf32>
    %398 = arith.addf %395, %397 : vector<8x512xf32>
    %399 = vector.extract_strided_slice %398 {offsets = [0, 0], sizes = [8, 128], strides = [1, 1]} : vector<8x512xf32> to vector<8x128xf32>
    %400 = arith.negf %399 : vector<8x128xf32>
    %401 = math.exp %400 : vector<8x128xf32>
    %cst_128 = arith.constant 1.000000e+00 : f32
    %402 = vector.broadcast %cst_128 : f32 to vector<8x128xf32>
    %403 = arith.addf %402, %401 : vector<8x128xf32>
    %404 = arith.divf %402, %403 : vector<8x128xf32>
    %405 = vector.extract_strided_slice %398 {offsets = [0, 128], sizes = [8, 128], strides = [1, 1]} : vector<8x512xf32> to vector<8x128xf32>
    %406 = arith.negf %405 : vector<8x128xf32>
    %407 = math.exp %406 : vector<8x128xf32>
    %cst_129 = arith.constant 1.000000e+00 : f32
    %408 = vector.broadcast %cst_129 : f32 to vector<8x128xf32>
    %409 = arith.addf %408, %407 : vector<8x128xf32>
    %410 = arith.divf %408, %409 : vector<8x128xf32>
    %411 = vector.extract_strided_slice %398 {offsets = [0, 256], sizes = [8, 128], strides = [1, 1]} : vector<8x512xf32> to vector<8x128xf32>
    %412 = math.tanh %411 : vector<8x128xf32>
    %413 = vector.extract_strided_slice %398 {offsets = [0, 384], sizes = [8, 128], strides = [1, 1]} : vector<8x512xf32> to vector<8x128xf32>
    %414 = arith.negf %413 : vector<8x128xf32>
    %415 = math.exp %414 : vector<8x128xf32>
    %cst_130 = arith.constant 1.000000e+00 : f32
    %416 = vector.broadcast %cst_130 : f32 to vector<8x128xf32>
    %417 = arith.addf %416, %415 : vector<8x128xf32>
    %418 = arith.divf %416, %417 : vector<8x128xf32>
    %419 = arith.mulf %410, %387 : vector<8x128xf32>
    %420 = arith.mulf %404, %412 : vector<8x128xf32>
    %421 = arith.addf %419, %420 : vector<8x128xf32>
    %422 = math.tanh %421 : vector<8x128xf32>
    %423 = arith.mulf %418, %422 : vector<8x128xf32>
    %424 = arith.index_cast %393 : i32 to index
    %c0_131 = arith.constant 0 : index
    %425 = vector.load %arg14[%424, %c0_131] : memref<64x128xf32, #tpu.memory_space<vmem>>, vector<8x128xf32>
    tpu.vector_store %arg14[%424, %c0_131], %423 {strides = array<i32>} : memref<64x128xf32, #tpu.memory_space<vmem>>, vector<8x128xf32>,
    %c4_i32_132 = arith.constant 4 : i32
    %c8_i32_133 = arith.constant 8 : i32
    %426 = arith.muli %c4_i32_132, %c8_i32_133 : i32
    %427 = tpu.assume_multiple %426, 8 : i32
    %428 = arith.index_cast %427 : i32 to index
    %c0_134 = arith.constant 0 : index
    %429 = vector.load %arg13[%428, %c0_134] : memref<64x512xf32, #tpu.memory_space<vmem>>, vector<8x512xf32>
    %c0_135 = arith.constant 0 : index
    %c0_136 = arith.constant 0 : index
    %430 = vector.load %arg5[%c0_135, %c0_136] : memref<128x512xf32, #tpu.memory_space<vmem>>, vector<128x512xf32>
    %cst_137 = arith.constant dense<0.000000e+00> : vector<8x512xf32>
    %431 = tpu.matmul %423, %430, %cst_137 {dimension_numbers = #tpu.dot_dimension_numbers<[1], [0], [0], [1], [0, 0, 1, 1], [], []>} : vector<8x128xf32>, vector<128x512xf32>, vector<8x512xf32> -> vector<8x512xf32>
    %432 = arith.addf %429, %431 : vector<8x512xf32>
    %433 = vector.extract_strided_slice %432 {offsets = [0, 0], sizes = [8, 128], strides = [1, 1]} : vector<8x512xf32> to vector<8x128xf32>
    %434 = arith.negf %433 : vector<8x128xf32>
    %435 = math.exp %434 : vector<8x128xf32>
    %cst_138 = arith.constant 1.000000e+00 : f32
    %436 = vector.broadcast %cst_138 : f32 to vector<8x128xf32>
    %437 = arith.addf %436, %435 : vector<8x128xf32>
    %438 = arith.divf %436, %437 : vector<8x128xf32>
    %439 = vector.extract_strided_slice %432 {offsets = [0, 128], sizes = [8, 128], strides = [1, 1]} : vector<8x512xf32> to vector<8x128xf32>
    %440 = arith.negf %439 : vector<8x128xf32>
    %441 = math.exp %440 : vector<8x128xf32>
    %cst_139 = arith.constant 1.000000e+00 : f32
    %442 = vector.broadcast %cst_139 : f32 to vector<8x128xf32>
    %443 = arith.addf %442, %441 : vector<8x128xf32>
    %444 = arith.divf %442, %443 : vector<8x128xf32>
    %445 = vector.extract_strided_slice %432 {offsets = [0, 256], sizes = [8, 128], strides = [1, 1]} : vector<8x512xf32> to vector<8x128xf32>
    %446 = math.tanh %445 : vector<8x128xf32>
    %447 = vector.extract_strided_slice %432 {offsets = [0, 384], sizes = [8, 128], strides = [1, 1]} : vector<8x512xf32> to vector<8x128xf32>
    %448 = arith.negf %447 : vector<8x128xf32>
    %449 = math.exp %448 : vector<8x128xf32>
    %cst_140 = arith.constant 1.000000e+00 : f32
    %450 = vector.broadcast %cst_140 : f32 to vector<8x128xf32>
    %451 = arith.addf %450, %449 : vector<8x128xf32>
    %452 = arith.divf %450, %451 : vector<8x128xf32>
    %453 = arith.mulf %444, %421 : vector<8x128xf32>
    %454 = arith.mulf %438, %446 : vector<8x128xf32>
    %455 = arith.addf %453, %454 : vector<8x128xf32>
    %456 = math.tanh %455 : vector<8x128xf32>
    %457 = arith.mulf %452, %456 : vector<8x128xf32>
    %458 = arith.index_cast %427 : i32 to index
    %c0_141 = arith.constant 0 : index
    %459 = vector.load %arg14[%458, %c0_141] : memref<64x128xf32, #tpu.memory_space<vmem>>, vector<8x128xf32>
    tpu.vector_store %arg14[%458, %c0_141], %457 {strides = array<i32>} : memref<64x128xf32, #tpu.memory_space<vmem>>, vector<8x128xf32>,
    %c5_i32_142 = arith.constant 5 : i32
    %c8_i32_143 = arith.constant 8 : i32
    %460 = arith.muli %c5_i32_142, %c8_i32_143 : i32
    %461 = tpu.assume_multiple %460, 8 : i32
    %462 = arith.index_cast %461 : i32 to index
    %c0_144 = arith.constant 0 : index
    %463 = vector.load %arg13[%462, %c0_144] : memref<64x512xf32, #tpu.memory_space<vmem>>, vector<8x512xf32>
    %c0_145 = arith.constant 0 : index
    %c0_146 = arith.constant 0 : index
    %464 = vector.load %arg5[%c0_145, %c0_146] : memref<128x512xf32, #tpu.memory_space<vmem>>, vector<128x512xf32>
    %cst_147 = arith.constant dense<0.000000e+00> : vector<8x512xf32>
    %465 = tpu.matmul %457, %464, %cst_147 {dimension_numbers = #tpu.dot_dimension_numbers<[1], [0], [0], [1], [0, 0, 1, 1], [], []>} : vector<8x128xf32>, vector<128x512xf32>, vector<8x512xf32> -> vector<8x512xf32>
    %466 = arith.addf %463, %465 : vector<8x512xf32>
    %467 = vector.extract_strided_slice %466 {offsets = [0, 0], sizes = [8, 128], strides = [1, 1]} : vector<8x512xf32> to vector<8x128xf32>
    %468 = arith.negf %467 : vector<8x128xf32>
    %469 = math.exp %468 : vector<8x128xf32>
    %cst_148 = arith.constant 1.000000e+00 : f32
    %470 = vector.broadcast %cst_148 : f32 to vector<8x128xf32>
    %471 = arith.addf %470, %469 : vector<8x128xf32>
    %472 = arith.divf %470, %471 : vector<8x128xf32>
    %473 = vector.extract_strided_slice %466 {offsets = [0, 128], sizes = [8, 128], strides = [1, 1]} : vector<8x512xf32> to vector<8x128xf32>
    %474 = arith.negf %473 : vector<8x128xf32>
    %475 = math.exp %474 : vector<8x128xf32>
    %cst_149 = arith.constant 1.000000e+00 : f32
    %476 = vector.broadcast %cst_149 : f32 to vector<8x128xf32>
    %477 = arith.addf %476, %475 : vector<8x128xf32>
    %478 = arith.divf %476, %477 : vector<8x128xf32>
    %479 = vector.extract_strided_slice %466 {offsets = [0, 256], sizes = [8, 128], strides = [1, 1]} : vector<8x512xf32> to vector<8x128xf32>
    %480 = math.tanh %479 : vector<8x128xf32>
    %481 = vector.extract_strided_slice %466 {offsets = [0, 384], sizes = [8, 128], strides = [1, 1]} : vector<8x512xf32> to vector<8x128xf32>
    %482 = arith.negf %481 : vector<8x128xf32>
    %483 = math.exp %482 : vector<8x128xf32>
    %cst_150 = arith.constant 1.000000e+00 : f32
    %484 = vector.broadcast %cst_150 : f32 to vector<8x128xf32>
    %485 = arith.addf %484, %483 : vector<8x128xf32>
    %486 = arith.divf %484, %485 : vector<8x128xf32>
    %487 = arith.mulf %478, %455 : vector<8x128xf32>
    %488 = arith.mulf %472, %480 : vector<8x128xf32>
    %489 = arith.addf %487, %488 : vector<8x128xf32>
    %490 = math.tanh %489 : vector<8x128xf32>
    %491 = arith.mulf %486, %490 : vector<8x128xf32>
    %492 = arith.index_cast %461 : i32 to index
    %c0_151 = arith.constant 0 : index
    %493 = vector.load %arg14[%492, %c0_151] : memref<64x128xf32, #tpu.memory_space<vmem>>, vector<8x128xf32>
    tpu.vector_store %arg14[%492, %c0_151], %491 {strides = array<i32>} : memref<64x128xf32, #tpu.memory_space<vmem>>, vector<8x128xf32>,
    %c6_i32_152 = arith.constant 6 : i32
    %c8_i32_153 = arith.constant 8 : i32
    %494 = arith.muli %c6_i32_152, %c8_i32_153 : i32
    %495 = tpu.assume_multiple %494, 8 : i32
    %496 = arith.index_cast %495 : i32 to index
    %c0_154 = arith.constant 0 : index
    %497 = vector.load %arg13[%496, %c0_154] : memref<64x512xf32, #tpu.memory_space<vmem>>, vector<8x512xf32>
    %c0_155 = arith.constant 0 : index
    %c0_156 = arith.constant 0 : index
    %498 = vector.load %arg5[%c0_155, %c0_156] : memref<128x512xf32, #tpu.memory_space<vmem>>, vector<128x512xf32>
    %cst_157 = arith.constant dense<0.000000e+00> : vector<8x512xf32>
    %499 = tpu.matmul %491, %498, %cst_157 {dimension_numbers = #tpu.dot_dimension_numbers<[1], [0], [0], [1], [0, 0, 1, 1], [], []>} : vector<8x128xf32>, vector<128x512xf32>, vector<8x512xf32> -> vector<8x512xf32>
    %500 = arith.addf %497, %499 : vector<8x512xf32>
    %501 = vector.extract_strided_slice %500 {offsets = [0, 0], sizes = [8, 128], strides = [1, 1]} : vector<8x512xf32> to vector<8x128xf32>
    %502 = arith.negf %501 : vector<8x128xf32>
    %503 = math.exp %502 : vector<8x128xf32>
    %cst_158 = arith.constant 1.000000e+00 : f32
    %504 = vector.broadcast %cst_158 : f32 to vector<8x128xf32>
    %505 = arith.addf %504, %503 : vector<8x128xf32>
    %506 = arith.divf %504, %505 : vector<8x128xf32>
    %507 = vector.extract_strided_slice %500 {offsets = [0, 128], sizes = [8, 128], strides = [1, 1]} : vector<8x512xf32> to vector<8x128xf32>
    %508 = arith.negf %507 : vector<8x128xf32>
    %509 = math.exp %508 : vector<8x128xf32>
    %cst_159 = arith.constant 1.000000e+00 : f32
    %510 = vector.broadcast %cst_159 : f32 to vector<8x128xf32>
    %511 = arith.addf %510, %509 : vector<8x128xf32>
    %512 = arith.divf %510, %511 : vector<8x128xf32>
    %513 = vector.extract_strided_slice %500 {offsets = [0, 256], sizes = [8, 128], strides = [1, 1]} : vector<8x512xf32> to vector<8x128xf32>
    %514 = math.tanh %513 : vector<8x128xf32>
    %515 = vector.extract_strided_slice %500 {offsets = [0, 384], sizes = [8, 128], strides = [1, 1]} : vector<8x512xf32> to vector<8x128xf32>
    %516 = arith.negf %515 : vector<8x128xf32>
    %517 = math.exp %516 : vector<8x128xf32>
    %cst_160 = arith.constant 1.000000e+00 : f32
    %518 = vector.broadcast %cst_160 : f32 to vector<8x128xf32>
    %519 = arith.addf %518, %517 : vector<8x128xf32>
    %520 = arith.divf %518, %519 : vector<8x128xf32>
    %521 = arith.mulf %512, %489 : vector<8x128xf32>
    %522 = arith.mulf %506, %514 : vector<8x128xf32>
    %523 = arith.addf %521, %522 : vector<8x128xf32>
    %524 = math.tanh %523 : vector<8x128xf32>
    %525 = arith.mulf %520, %524 : vector<8x128xf32>
    %526 = arith.index_cast %495 : i32 to index
    %c0_161 = arith.constant 0 : index
    %527 = vector.load %arg14[%526, %c0_161] : memref<64x128xf32, #tpu.memory_space<vmem>>, vector<8x128xf32>
    tpu.vector_store %arg14[%526, %c0_161], %525 {strides = array<i32>} : memref<64x128xf32, #tpu.memory_space<vmem>>, vector<8x128xf32>,
    %c7_i32_162 = arith.constant 7 : i32
    %c8_i32_163 = arith.constant 8 : i32
    %528 = arith.muli %c7_i32_162, %c8_i32_163 : i32
    %529 = tpu.assume_multiple %528, 8 : i32
    %530 = arith.index_cast %529 : i32 to index
    %c0_164 = arith.constant 0 : index
    %531 = vector.load %arg13[%530, %c0_164] : memref<64x512xf32, #tpu.memory_space<vmem>>, vector<8x512xf32>
    %c0_165 = arith.constant 0 : index
    %c0_166 = arith.constant 0 : index
    %532 = vector.load %arg5[%c0_165, %c0_166] : memref<128x512xf32, #tpu.memory_space<vmem>>, vector<128x512xf32>
    %cst_167 = arith.constant dense<0.000000e+00> : vector<8x512xf32>
    %533 = tpu.matmul %525, %532, %cst_167 {dimension_numbers = #tpu.dot_dimension_numbers<[1], [0], [0], [1], [0, 0, 1, 1], [], []>} : vector<8x128xf32>, vector<128x512xf32>, vector<8x512xf32> -> vector<8x512xf32>
    %534 = arith.addf %531, %533 : vector<8x512xf32>
    %535 = vector.extract_strided_slice %534 {offsets = [0, 0], sizes = [8, 128], strides = [1, 1]} : vector<8x512xf32> to vector<8x128xf32>
    %536 = arith.negf %535 : vector<8x128xf32>
    %537 = math.exp %536 : vector<8x128xf32>
    %cst_168 = arith.constant 1.000000e+00 : f32
    %538 = vector.broadcast %cst_168 : f32 to vector<8x128xf32>
    %539 = arith.addf %538, %537 : vector<8x128xf32>
    %540 = arith.divf %538, %539 : vector<8x128xf32>
    %541 = vector.extract_strided_slice %534 {offsets = [0, 128], sizes = [8, 128], strides = [1, 1]} : vector<8x512xf32> to vector<8x128xf32>
    %542 = arith.negf %541 : vector<8x128xf32>
    %543 = math.exp %542 : vector<8x128xf32>
    %cst_169 = arith.constant 1.000000e+00 : f32
    %544 = vector.broadcast %cst_169 : f32 to vector<8x128xf32>
    %545 = arith.addf %544, %543 : vector<8x128xf32>
    %546 = arith.divf %544, %545 : vector<8x128xf32>
    %547 = vector.extract_strided_slice %534 {offsets = [0, 256], sizes = [8, 128], strides = [1, 1]} : vector<8x512xf32> to vector<8x128xf32>
    %548 = math.tanh %547 : vector<8x128xf32>
    %549 = vector.extract_strided_slice %534 {offsets = [0, 384], sizes = [8, 128], strides = [1, 1]} : vector<8x512xf32> to vector<8x128xf32>
    %550 = arith.negf %549 : vector<8x128xf32>
    %551 = math.exp %550 : vector<8x128xf32>
    %cst_170 = arith.constant 1.000000e+00 : f32
    %552 = vector.broadcast %cst_170 : f32 to vector<8x128xf32>
    %553 = arith.addf %552, %551 : vector<8x128xf32>
    %554 = arith.divf %552, %553 : vector<8x128xf32>
    %555 = arith.mulf %546, %523 : vector<8x128xf32>
    %556 = arith.mulf %540, %548 : vector<8x128xf32>
    %557 = arith.addf %555, %556 : vector<8x128xf32>
    %558 = math.tanh %557 : vector<8x128xf32>
    %559 = arith.mulf %554, %558 : vector<8x128xf32>
    %560 = arith.index_cast %529 : i32 to index
    %c0_171 = arith.constant 0 : index
    %561 = vector.load %arg14[%560, %c0_171] : memref<64x128xf32, #tpu.memory_space<vmem>>, vector<8x128xf32>
    tpu.vector_store %arg14[%560, %c0_171], %559 {strides = array<i32>} : memref<64x128xf32, #tpu.memory_space<vmem>>, vector<8x128xf32>,
    %c8_i32_172 = arith.constant 8 : i32
    %c0_173 = arith.constant 0 : index
    %c0_174 = arith.constant 0 : index
    %562 = vector.load %arg14[%c0_173, %c0_174] : memref<64x128xf32, #tpu.memory_space<vmem>>, vector<64x128xf32>
    %c0_175 = arith.constant 0 : index
    %c0_176 = arith.constant 0 : index
    %563 = vector.load %arg7[%c0_175, %c0_176] : memref<128x512xf32, #tpu.memory_space<vmem>>, vector<128x512xf32>
    %cst_177 = arith.constant dense<0.000000e+00> : vector<64x512xf32>
    %564 = tpu.matmul %562, %563, %cst_177 {dimension_numbers = #tpu.dot_dimension_numbers<[1], [0], [0], [1], [0, 0, 1, 1], [], []>} : vector<64x128xf32>, vector<128x512xf32>, vector<64x512xf32> -> vector<64x512xf32>
    %c0_178 = arith.constant 0 : index
    %c0_179 = arith.constant 0 : index
    %565 = vector.load %arg9[%c0_178, %c0_179] : memref<1x512xf32, #tpu.memory_space<vmem>>, vector<1x512xf32>
    %566 = vector.broadcast %565 : vector<1x512xf32> to vector<64x512xf32>
    %567 = arith.addf %564, %566 : vector<64x512xf32>
    %c0_180 = arith.constant 0 : index
    %c0_181 = arith.constant 0 : index
    %568 = vector.load %arg13[%c0_180, %c0_181] : memref<64x512xf32, #tpu.memory_space<vmem>>, vector<64x512xf32>
    tpu.vector_store %arg13[%c0_180, %c0_181], %567 {strides = array<i32>} : memref<64x512xf32, #tpu.memory_space<vmem>>, vector<64x512xf32>,
    %cst_182 = arith.constant 0.000000e+00 : f32
    %569 = vector.broadcast %cst_182 : f32 to vector<8x128xf32>
    %cst_183 = arith.constant 0.000000e+00 : f32
    %570 = vector.broadcast %cst_183 : f32 to vector<8x128xf32>
    %c0_i32_184 = arith.constant 0 : i32
    %c8_i32_185 = arith.constant 8 : i32
    %571 = arith.muli %c0_i32_184, %c8_i32_185 : i32
    %572 = tpu.assume_multiple %571, 8 : i32
    %573 = arith.index_cast %572 : i32 to index
    %c0_186 = arith.constant 0 : index
    %574 = vector.load %arg13[%573, %c0_186] : memref<64x512xf32, #tpu.memory_space<vmem>>, vector<8x512xf32>
    %c0_187 = arith.constant 0 : index
    %c0_188 = arith.constant 0 : index
    %575 = vector.load %arg8[%c0_187, %c0_188] : memref<128x512xf32, #tpu.memory_space<vmem>>, vector<128x512xf32>
    %cst_189 = arith.constant dense<0.000000e+00> : vector<8x512xf32>
    %576 = tpu.matmul %569, %575, %cst_189 {dimension_numbers = #tpu.dot_dimension_numbers<[1], [0], [0], [1], [0, 0, 1, 1], [], []>} : vector<8x128xf32>, vector<128x512xf32>, vector<8x512xf32> -> vector<8x512xf32>
    %577 = arith.addf %574, %576 : vector<8x512xf32>
    %578 = vector.extract_strided_slice %577 {offsets = [0, 0], sizes = [8, 128], strides = [1, 1]} : vector<8x512xf32> to vector<8x128xf32>
    %579 = arith.negf %578 : vector<8x128xf32>
    %580 = math.exp %579 : vector<8x128xf32>
    %cst_190 = arith.constant 1.000000e+00 : f32
    %581 = vector.broadcast %cst_190 : f32 to vector<8x128xf32>
    %582 = arith.addf %581, %580 : vector<8x128xf32>
    %583 = arith.divf %581, %582 : vector<8x128xf32>
    %584 = vector.extract_strided_slice %577 {offsets = [0, 128], sizes = [8, 128], strides = [1, 1]} : vector<8x512xf32> to vector<8x128xf32>
    %585 = arith.negf %584 : vector<8x128xf32>
    %586 = math.exp %585 : vector<8x128xf32>
    %cst_191 = arith.constant 1.000000e+00 : f32
    %587 = vector.broadcast %cst_191 : f32 to vector<8x128xf32>
    %588 = arith.addf %587, %586 : vector<8x128xf32>
    %589 = arith.divf %587, %588 : vector<8x128xf32>
    %590 = vector.extract_strided_slice %577 {offsets = [0, 256], sizes = [8, 128], strides = [1, 1]} : vector<8x512xf32> to vector<8x128xf32>
    %591 = math.tanh %590 : vector<8x128xf32>
    %592 = vector.extract_strided_slice %577 {offsets = [0, 384], sizes = [8, 128], strides = [1, 1]} : vector<8x512xf32> to vector<8x128xf32>
    %593 = arith.negf %592 : vector<8x128xf32>
    %594 = math.exp %593 : vector<8x128xf32>
    %cst_192 = arith.constant 1.000000e+00 : f32
    %595 = vector.broadcast %cst_192 : f32 to vector<8x128xf32>
    %596 = arith.addf %595, %594 : vector<8x128xf32>
    %597 = arith.divf %595, %596 : vector<8x128xf32>
    %598 = arith.mulf %589, %570 : vector<8x128xf32>
    %599 = arith.mulf %583, %591 : vector<8x128xf32>
    %600 = arith.addf %598, %599 : vector<8x128xf32>
    %601 = math.tanh %600 : vector<8x128xf32>
    %602 = arith.mulf %597, %601 : vector<8x128xf32>
    %c1_i32_193 = arith.constant 1 : i32
    %c8_i32_194 = arith.constant 8 : i32
    %603 = arith.muli %c1_i32_193, %c8_i32_194 : i32
    %604 = tpu.assume_multiple %603, 8 : i32
    %605 = arith.index_cast %604 : i32 to index
    %c0_195 = arith.constant 0 : index
    %606 = vector.load %arg13[%605, %c0_195] : memref<64x512xf32, #tpu.memory_space<vmem>>, vector<8x512xf32>
    %c0_196 = arith.constant 0 : index
    %c0_197 = arith.constant 0 : index
    %607 = vector.load %arg8[%c0_196, %c0_197] : memref<128x512xf32, #tpu.memory_space<vmem>>, vector<128x512xf32>
    %cst_198 = arith.constant dense<0.000000e+00> : vector<8x512xf32>
    %608 = tpu.matmul %602, %607, %cst_198 {dimension_numbers = #tpu.dot_dimension_numbers<[1], [0], [0], [1], [0, 0, 1, 1], [], []>} : vector<8x128xf32>, vector<128x512xf32>, vector<8x512xf32> -> vector<8x512xf32>
    %609 = arith.addf %606, %608 : vector<8x512xf32>
    %610 = vector.extract_strided_slice %609 {offsets = [0, 0], sizes = [8, 128], strides = [1, 1]} : vector<8x512xf32> to vector<8x128xf32>
    %611 = arith.negf %610 : vector<8x128xf32>
    %612 = math.exp %611 : vector<8x128xf32>
    %cst_199 = arith.constant 1.000000e+00 : f32
    %613 = vector.broadcast %cst_199 : f32 to vector<8x128xf32>
    %614 = arith.addf %613, %612 : vector<8x128xf32>
    %615 = arith.divf %613, %614 : vector<8x128xf32>
    %616 = vector.extract_strided_slice %609 {offsets = [0, 128], sizes = [8, 128], strides = [1, 1]} : vector<8x512xf32> to vector<8x128xf32>
    %617 = arith.negf %616 : vector<8x128xf32>
    %618 = math.exp %617 : vector<8x128xf32>
    %cst_200 = arith.constant 1.000000e+00 : f32
    %619 = vector.broadcast %cst_200 : f32 to vector<8x128xf32>
    %620 = arith.addf %619, %618 : vector<8x128xf32>
    %621 = arith.divf %619, %620 : vector<8x128xf32>
    %622 = vector.extract_strided_slice %609 {offsets = [0, 256], sizes = [8, 128], strides = [1, 1]} : vector<8x512xf32> to vector<8x128xf32>
    %623 = math.tanh %622 : vector<8x128xf32>
    %624 = vector.extract_strided_slice %609 {offsets = [0, 384], sizes = [8, 128], strides = [1, 1]} : vector<8x512xf32> to vector<8x128xf32>
    %625 = arith.negf %624 : vector<8x128xf32>
    %626 = math.exp %625 : vector<8x128xf32>
    %cst_201 = arith.constant 1.000000e+00 : f32
    %627 = vector.broadcast %cst_201 : f32 to vector<8x128xf32>
    %628 = arith.addf %627, %626 : vector<8x128xf32>
    %629 = arith.divf %627, %628 : vector<8x128xf32>
    %630 = arith.mulf %621, %600 : vector<8x128xf32>
    %631 = arith.mulf %615, %623 : vector<8x128xf32>
    %632 = arith.addf %630, %631 : vector<8x128xf32>
    %633 = math.tanh %632 : vector<8x128xf32>
    %634 = arith.mulf %629, %633 : vector<8x128xf32>
    %c2_i32_202 = arith.constant 2 : i32
    %c8_i32_203 = arith.constant 8 : i32
    %635 = arith.muli %c2_i32_202, %c8_i32_203 : i32
    %636 = tpu.assume_multiple %635, 8 : i32
    %637 = arith.index_cast %636 : i32 to index
    %c0_204 = arith.constant 0 : index
    %638 = vector.load %arg13[%637, %c0_204] : memref<64x512xf32, #tpu.memory_space<vmem>>, vector<8x512xf32>
    %c0_205 = arith.constant 0 : index
    %c0_206 = arith.constant 0 : index
    %639 = vector.load %arg8[%c0_205, %c0_206] : memref<128x512xf32, #tpu.memory_space<vmem>>, vector<128x512xf32>
    %cst_207 = arith.constant dense<0.000000e+00> : vector<8x512xf32>
    %640 = tpu.matmul %634, %639, %cst_207 {dimension_numbers = #tpu.dot_dimension_numbers<[1], [0], [0], [1], [0, 0, 1, 1], [], []>} : vector<8x128xf32>, vector<128x512xf32>, vector<8x512xf32> -> vector<8x512xf32>
    %641 = arith.addf %638, %640 : vector<8x512xf32>
    %642 = vector.extract_strided_slice %641 {offsets = [0, 0], sizes = [8, 128], strides = [1, 1]} : vector<8x512xf32> to vector<8x128xf32>
    %643 = arith.negf %642 : vector<8x128xf32>
    %644 = math.exp %643 : vector<8x128xf32>
    %cst_208 = arith.constant 1.000000e+00 : f32
    %645 = vector.broadcast %cst_208 : f32 to vector<8x128xf32>
    %646 = arith.addf %645, %644 : vector<8x128xf32>
    %647 = arith.divf %645, %646 : vector<8x128xf32>
    %648 = vector.extract_strided_slice %641 {offsets = [0, 128], sizes = [8, 128], strides = [1, 1]} : vector<8x512xf32> to vector<8x128xf32>
    %649 = arith.negf %648 : vector<8x128xf32>
    %650 = math.exp %649 : vector<8x128xf32>
    %cst_209 = arith.constant 1.000000e+00 : f32
    %651 = vector.broadcast %cst_209 : f32 to vector<8x128xf32>
    %652 = arith.addf %651, %650 : vector<8x128xf32>
    %653 = arith.divf %651, %652 : vector<8x128xf32>
    %654 = vector.extract_strided_slice %641 {offsets = [0, 256], sizes = [8, 128], strides = [1, 1]} : vector<8x512xf32> to vector<8x128xf32>
    %655 = math.tanh %654 : vector<8x128xf32>
    %656 = vector.extract_strided_slice %641 {offsets = [0, 384], sizes = [8, 128], strides = [1, 1]} : vector<8x512xf32> to vector<8x128xf32>
    %657 = arith.negf %656 : vector<8x128xf32>
    %658 = math.exp %657 : vector<8x128xf32>
    %cst_210 = arith.constant 1.000000e+00 : f32
    %659 = vector.broadcast %cst_210 : f32 to vector<8x128xf32>
    %660 = arith.addf %659, %658 : vector<8x128xf32>
    %661 = arith.divf %659, %660 : vector<8x128xf32>
    %662 = arith.mulf %653, %632 : vector<8x128xf32>
    %663 = arith.mulf %647, %655 : vector<8x128xf32>
    %664 = arith.addf %662, %663 : vector<8x128xf32>
    %665 = math.tanh %664 : vector<8x128xf32>
    %666 = arith.mulf %661, %665 : vector<8x128xf32>
    %c3_i32_211 = arith.constant 3 : i32
    %c8_i32_212 = arith.constant 8 : i32
    %667 = arith.muli %c3_i32_211, %c8_i32_212 : i32
    %668 = tpu.assume_multiple %667, 8 : i32
    %669 = arith.index_cast %668 : i32 to index
    %c0_213 = arith.constant 0 : index
    %670 = vector.load %arg13[%669, %c0_213] : memref<64x512xf32, #tpu.memory_space<vmem>>, vector<8x512xf32>
    %c0_214 = arith.constant 0 : index
    %c0_215 = arith.constant 0 : index
    %671 = vector.load %arg8[%c0_214, %c0_215] : memref<128x512xf32, #tpu.memory_space<vmem>>, vector<128x512xf32>
    %cst_216 = arith.constant dense<0.000000e+00> : vector<8x512xf32>
    %672 = tpu.matmul %666, %671, %cst_216 {dimension_numbers = #tpu.dot_dimension_numbers<[1], [0], [0], [1], [0, 0, 1, 1], [], []>} : vector<8x128xf32>, vector<128x512xf32>, vector<8x512xf32> -> vector<8x512xf32>
    %673 = arith.addf %670, %672 : vector<8x512xf32>
    %674 = vector.extract_strided_slice %673 {offsets = [0, 0], sizes = [8, 128], strides = [1, 1]} : vector<8x512xf32> to vector<8x128xf32>
    %675 = arith.negf %674 : vector<8x128xf32>
    %676 = math.exp %675 : vector<8x128xf32>
    %cst_217 = arith.constant 1.000000e+00 : f32
    %677 = vector.broadcast %cst_217 : f32 to vector<8x128xf32>
    %678 = arith.addf %677, %676 : vector<8x128xf32>
    %679 = arith.divf %677, %678 : vector<8x128xf32>
    %680 = vector.extract_strided_slice %673 {offsets = [0, 128], sizes = [8, 128], strides = [1, 1]} : vector<8x512xf32> to vector<8x128xf32>
    %681 = arith.negf %680 : vector<8x128xf32>
    %682 = math.exp %681 : vector<8x128xf32>
    %cst_218 = arith.constant 1.000000e+00 : f32
    %683 = vector.broadcast %cst_218 : f32 to vector<8x128xf32>
    %684 = arith.addf %683, %682 : vector<8x128xf32>
    %685 = arith.divf %683, %684 : vector<8x128xf32>
    %686 = vector.extract_strided_slice %673 {offsets = [0, 256], sizes = [8, 128], strides = [1, 1]} : vector<8x512xf32> to vector<8x128xf32>
    %687 = math.tanh %686 : vector<8x128xf32>
    %688 = vector.extract_strided_slice %673 {offsets = [0, 384], sizes = [8, 128], strides = [1, 1]} : vector<8x512xf32> to vector<8x128xf32>
    %689 = arith.negf %688 : vector<8x128xf32>
    %690 = math.exp %689 : vector<8x128xf32>
    %cst_219 = arith.constant 1.000000e+00 : f32
    %691 = vector.broadcast %cst_219 : f32 to vector<8x128xf32>
    %692 = arith.addf %691, %690 : vector<8x128xf32>
    %693 = arith.divf %691, %692 : vector<8x128xf32>
    %694 = arith.mulf %685, %664 : vector<8x128xf32>
    %695 = arith.mulf %679, %687 : vector<8x128xf32>
    %696 = arith.addf %694, %695 : vector<8x128xf32>
    %697 = math.tanh %696 : vector<8x128xf32>
    %698 = arith.mulf %693, %697 : vector<8x128xf32>
    %c4_i32_220 = arith.constant 4 : i32
    %c8_i32_221 = arith.constant 8 : i32
    %699 = arith.muli %c4_i32_220, %c8_i32_221 : i32
    %700 = tpu.assume_multiple %699, 8 : i32
    %701 = arith.index_cast %700 : i32 to index
    %c0_222 = arith.constant 0 : index
    %702 = vector.load %arg13[%701, %c0_222] : memref<64x512xf32, #tpu.memory_space<vmem>>, vector<8x512xf32>
    %c0_223 = arith.constant 0 : index
    %c0_224 = arith.constant 0 : index
    %703 = vector.load %arg8[%c0_223, %c0_224] : memref<128x512xf32, #tpu.memory_space<vmem>>, vector<128x512xf32>
    %cst_225 = arith.constant dense<0.000000e+00> : vector<8x512xf32>
    %704 = tpu.matmul %698, %703, %cst_225 {dimension_numbers = #tpu.dot_dimension_numbers<[1], [0], [0], [1], [0, 0, 1, 1], [], []>} : vector<8x128xf32>, vector<128x512xf32>, vector<8x512xf32> -> vector<8x512xf32>
    %705 = arith.addf %702, %704 : vector<8x512xf32>
    %706 = vector.extract_strided_slice %705 {offsets = [0, 0], sizes = [8, 128], strides = [1, 1]} : vector<8x512xf32> to vector<8x128xf32>
    %707 = arith.negf %706 : vector<8x128xf32>
    %708 = math.exp %707 : vector<8x128xf32>
    %cst_226 = arith.constant 1.000000e+00 : f32
    %709 = vector.broadcast %cst_226 : f32 to vector<8x128xf32>
    %710 = arith.addf %709, %708 : vector<8x128xf32>
    %711 = arith.divf %709, %710 : vector<8x128xf32>
    %712 = vector.extract_strided_slice %705 {offsets = [0, 128], sizes = [8, 128], strides = [1, 1]} : vector<8x512xf32> to vector<8x128xf32>
    %713 = arith.negf %712 : vector<8x128xf32>
    %714 = math.exp %713 : vector<8x128xf32>
    %cst_227 = arith.constant 1.000000e+00 : f32
    %715 = vector.broadcast %cst_227 : f32 to vector<8x128xf32>
    %716 = arith.addf %715, %714 : vector<8x128xf32>
    %717 = arith.divf %715, %716 : vector<8x128xf32>
    %718 = vector.extract_strided_slice %705 {offsets = [0, 256], sizes = [8, 128], strides = [1, 1]} : vector<8x512xf32> to vector<8x128xf32>
    %719 = math.tanh %718 : vector<8x128xf32>
    %720 = vector.extract_strided_slice %705 {offsets = [0, 384], sizes = [8, 128], strides = [1, 1]} : vector<8x512xf32> to vector<8x128xf32>
    %721 = arith.negf %720 : vector<8x128xf32>
    %722 = math.exp %721 : vector<8x128xf32>
    %cst_228 = arith.constant 1.000000e+00 : f32
    %723 = vector.broadcast %cst_228 : f32 to vector<8x128xf32>
    %724 = arith.addf %723, %722 : vector<8x128xf32>
    %725 = arith.divf %723, %724 : vector<8x128xf32>
    %726 = arith.mulf %717, %696 : vector<8x128xf32>
    %727 = arith.mulf %711, %719 : vector<8x128xf32>
    %728 = arith.addf %726, %727 : vector<8x128xf32>
    %729 = math.tanh %728 : vector<8x128xf32>
    %730 = arith.mulf %725, %729 : vector<8x128xf32>
    %c5_i32_229 = arith.constant 5 : i32
    %c8_i32_230 = arith.constant 8 : i32
    %731 = arith.muli %c5_i32_229, %c8_i32_230 : i32
    %732 = tpu.assume_multiple %731, 8 : i32
    %733 = arith.index_cast %732 : i32 to index
    %c0_231 = arith.constant 0 : index
    %734 = vector.load %arg13[%733, %c0_231] : memref<64x512xf32, #tpu.memory_space<vmem>>, vector<8x512xf32>
    %c0_232 = arith.constant 0 : index
    %c0_233 = arith.constant 0 : index
    %735 = vector.load %arg8[%c0_232, %c0_233] : memref<128x512xf32, #tpu.memory_space<vmem>>, vector<128x512xf32>
    %cst_234 = arith.constant dense<0.000000e+00> : vector<8x512xf32>
    %736 = tpu.matmul %730, %735, %cst_234 {dimension_numbers = #tpu.dot_dimension_numbers<[1], [0], [0], [1], [0, 0, 1, 1], [], []>} : vector<8x128xf32>, vector<128x512xf32>, vector<8x512xf32> -> vector<8x512xf32>
    %737 = arith.addf %734, %736 : vector<8x512xf32>
    %738 = vector.extract_strided_slice %737 {offsets = [0, 0], sizes = [8, 128], strides = [1, 1]} : vector<8x512xf32> to vector<8x128xf32>
    %739 = arith.negf %738 : vector<8x128xf32>
    %740 = math.exp %739 : vector<8x128xf32>
    %cst_235 = arith.constant 1.000000e+00 : f32
    %741 = vector.broadcast %cst_235 : f32 to vector<8x128xf32>
    %742 = arith.addf %741, %740 : vector<8x128xf32>
    %743 = arith.divf %741, %742 : vector<8x128xf32>
    %744 = vector.extract_strided_slice %737 {offsets = [0, 128], sizes = [8, 128], strides = [1, 1]} : vector<8x512xf32> to vector<8x128xf32>
    %745 = arith.negf %744 : vector<8x128xf32>
    %746 = math.exp %745 : vector<8x128xf32>
    %cst_236 = arith.constant 1.000000e+00 : f32
    %747 = vector.broadcast %cst_236 : f32 to vector<8x128xf32>
    %748 = arith.addf %747, %746 : vector<8x128xf32>
    %749 = arith.divf %747, %748 : vector<8x128xf32>
    %750 = vector.extract_strided_slice %737 {offsets = [0, 256], sizes = [8, 128], strides = [1, 1]} : vector<8x512xf32> to vector<8x128xf32>
    %751 = math.tanh %750 : vector<8x128xf32>
    %752 = vector.extract_strided_slice %737 {offsets = [0, 384], sizes = [8, 128], strides = [1, 1]} : vector<8x512xf32> to vector<8x128xf32>
    %753 = arith.negf %752 : vector<8x128xf32>
    %754 = math.exp %753 : vector<8x128xf32>
    %cst_237 = arith.constant 1.000000e+00 : f32
    %755 = vector.broadcast %cst_237 : f32 to vector<8x128xf32>
    %756 = arith.addf %755, %754 : vector<8x128xf32>
    %757 = arith.divf %755, %756 : vector<8x128xf32>
    %758 = arith.mulf %749, %728 : vector<8x128xf32>
    %759 = arith.mulf %743, %751 : vector<8x128xf32>
    %760 = arith.addf %758, %759 : vector<8x128xf32>
    %761 = math.tanh %760 : vector<8x128xf32>
    %762 = arith.mulf %757, %761 : vector<8x128xf32>
    %c6_i32_238 = arith.constant 6 : i32
    %c8_i32_239 = arith.constant 8 : i32
    %763 = arith.muli %c6_i32_238, %c8_i32_239 : i32
    %764 = tpu.assume_multiple %763, 8 : i32
    %765 = arith.index_cast %764 : i32 to index
    %c0_240 = arith.constant 0 : index
    %766 = vector.load %arg13[%765, %c0_240] : memref<64x512xf32, #tpu.memory_space<vmem>>, vector<8x512xf32>
    %c0_241 = arith.constant 0 : index
    %c0_242 = arith.constant 0 : index
    %767 = vector.load %arg8[%c0_241, %c0_242] : memref<128x512xf32, #tpu.memory_space<vmem>>, vector<128x512xf32>
    %cst_243 = arith.constant dense<0.000000e+00> : vector<8x512xf32>
    %768 = tpu.matmul %762, %767, %cst_243 {dimension_numbers = #tpu.dot_dimension_numbers<[1], [0], [0], [1], [0, 0, 1, 1], [], []>} : vector<8x128xf32>, vector<128x512xf32>, vector<8x512xf32> -> vector<8x512xf32>
    %769 = arith.addf %766, %768 : vector<8x512xf32>
    %770 = vector.extract_strided_slice %769 {offsets = [0, 0], sizes = [8, 128], strides = [1, 1]} : vector<8x512xf32> to vector<8x128xf32>
    %771 = arith.negf %770 : vector<8x128xf32>
    %772 = math.exp %771 : vector<8x128xf32>
    %cst_244 = arith.constant 1.000000e+00 : f32
    %773 = vector.broadcast %cst_244 : f32 to vector<8x128xf32>
    %774 = arith.addf %773, %772 : vector<8x128xf32>
    %775 = arith.divf %773, %774 : vector<8x128xf32>
    %776 = vector.extract_strided_slice %769 {offsets = [0, 128], sizes = [8, 128], strides = [1, 1]} : vector<8x512xf32> to vector<8x128xf32>
    %777 = arith.negf %776 : vector<8x128xf32>
    %778 = math.exp %777 : vector<8x128xf32>
    %cst_245 = arith.constant 1.000000e+00 : f32
    %779 = vector.broadcast %cst_245 : f32 to vector<8x128xf32>
    %780 = arith.addf %779, %778 : vector<8x128xf32>
    %781 = arith.divf %779, %780 : vector<8x128xf32>
    %782 = vector.extract_strided_slice %769 {offsets = [0, 256], sizes = [8, 128], strides = [1, 1]} : vector<8x512xf32> to vector<8x128xf32>
    %783 = math.tanh %782 : vector<8x128xf32>
    %784 = vector.extract_strided_slice %769 {offsets = [0, 384], sizes = [8, 128], strides = [1, 1]} : vector<8x512xf32> to vector<8x128xf32>
    %785 = arith.negf %784 : vector<8x128xf32>
    %786 = math.exp %785 : vector<8x128xf32>
    %cst_246 = arith.constant 1.000000e+00 : f32
    %787 = vector.broadcast %cst_246 : f32 to vector<8x128xf32>
    %788 = arith.addf %787, %786 : vector<8x128xf32>
    %789 = arith.divf %787, %788 : vector<8x128xf32>
    %790 = arith.mulf %781, %760 : vector<8x128xf32>
    %791 = arith.mulf %775, %783 : vector<8x128xf32>
    %792 = arith.addf %790, %791 : vector<8x128xf32>
    %793 = math.tanh %792 : vector<8x128xf32>
    %794 = arith.mulf %789, %793 : vector<8x128xf32>
    %c7_i32_247 = arith.constant 7 : i32
    %c8_i32_248 = arith.constant 8 : i32
    %795 = arith.muli %c7_i32_247, %c8_i32_248 : i32
    %796 = tpu.assume_multiple %795, 8 : i32
    %797 = arith.index_cast %796 : i32 to index
    %c0_249 = arith.constant 0 : index
    %798 = vector.load %arg13[%797, %c0_249] : memref<64x512xf32, #tpu.memory_space<vmem>>, vector<8x512xf32>
    %c0_250 = arith.constant 0 : index
    %c0_251 = arith.constant 0 : index
    %799 = vector.load %arg8[%c0_250, %c0_251] : memref<128x512xf32, #tpu.memory_space<vmem>>, vector<128x512xf32>
    %cst_252 = arith.constant dense<0.000000e+00> : vector<8x512xf32>
    %800 = tpu.matmul %794, %799, %cst_252 {dimension_numbers = #tpu.dot_dimension_numbers<[1], [0], [0], [1], [0, 0, 1, 1], [], []>} : vector<8x128xf32>, vector<128x512xf32>, vector<8x512xf32> -> vector<8x512xf32>
    %801 = arith.addf %798, %800 : vector<8x512xf32>
    %802 = vector.extract_strided_slice %801 {offsets = [0, 0], sizes = [8, 128], strides = [1, 1]} : vector<8x512xf32> to vector<8x128xf32>
    %803 = arith.negf %802 : vector<8x128xf32>
    %804 = math.exp %803 : vector<8x128xf32>
    %cst_253 = arith.constant 1.000000e+00 : f32
    %805 = vector.broadcast %cst_253 : f32 to vector<8x128xf32>
    %806 = arith.addf %805, %804 : vector<8x128xf32>
    %807 = arith.divf %805, %806 : vector<8x128xf32>
    %808 = vector.extract_strided_slice %801 {offsets = [0, 128], sizes = [8, 128], strides = [1, 1]} : vector<8x512xf32> to vector<8x128xf32>
    %809 = arith.negf %808 : vector<8x128xf32>
    %810 = math.exp %809 : vector<8x128xf32>
    %cst_254 = arith.constant 1.000000e+00 : f32
    %811 = vector.broadcast %cst_254 : f32 to vector<8x128xf32>
    %812 = arith.addf %811, %810 : vector<8x128xf32>
    %813 = arith.divf %811, %812 : vector<8x128xf32>
    %814 = vector.extract_strided_slice %801 {offsets = [0, 256], sizes = [8, 128], strides = [1, 1]} : vector<8x512xf32> to vector<8x128xf32>
    %815 = math.tanh %814 : vector<8x128xf32>
    %816 = vector.extract_strided_slice %801 {offsets = [0, 384], sizes = [8, 128], strides = [1, 1]} : vector<8x512xf32> to vector<8x128xf32>
    %817 = arith.negf %816 : vector<8x128xf32>
    %818 = math.exp %817 : vector<8x128xf32>
    %cst_255 = arith.constant 1.000000e+00 : f32
    %819 = vector.broadcast %cst_255 : f32 to vector<8x128xf32>
    %820 = arith.addf %819, %818 : vector<8x128xf32>
    %821 = arith.divf %819, %820 : vector<8x128xf32>
    %822 = arith.mulf %813, %792 : vector<8x128xf32>
    %823 = arith.mulf %807, %815 : vector<8x128xf32>
    %824 = arith.addf %822, %823 : vector<8x128xf32>
    %825 = math.tanh %824 : vector<8x128xf32>
    %826 = arith.mulf %821, %825 : vector<8x128xf32>
    %c8_i32_256 = arith.constant 8 : i32
    %c0_257 = arith.constant 0 : index
    %c0_258 = arith.constant 0 : index
    %827 = vector.load %arg10[%c0_257, %c0_258] : memref<128x4xf32, #tpu.memory_space<vmem>>, vector<128x4xf32>
    %cst_259 = arith.constant dense<0.000000e+00> : vector<8x4xf32>
    %828 = tpu.matmul %826, %827, %cst_259 {dimension_numbers = #tpu.dot_dimension_numbers<[1], [0], [0], [1], [0, 0, 1, 1], [], []>} : vector<8x128xf32>, vector<128x4xf32>, vector<8x4xf32> -> vector<8x4xf32>
    %c0_260 = arith.constant 0 : index
    %c0_261 = arith.constant 0 : index
    %829 = vector.load %arg11[%c0_260, %c0_261] : memref<1x4xf32, #tpu.memory_space<vmem>>, vector<1x4xf32>
    %830 = vector.broadcast %829 : vector<1x4xf32> to vector<8x4xf32>
    %831 = arith.addf %828, %830 : vector<8x4xf32>
    %832 = arith.negf %831 : vector<8x4xf32>
    %833 = math.exp %832 : vector<8x4xf32>
    %cst_262 = arith.constant 1.000000e+00 : f32
    %834 = vector.broadcast %cst_262 : f32 to vector<8x4xf32>
    %835 = arith.addf %834, %833 : vector<8x4xf32>
    %836 = arith.divf %834, %835 : vector<8x4xf32>
    %c0_263 = arith.constant 0 : index
    %c0_264 = arith.constant 0 : index
    %837 = vector.load %arg12[%c0_263, %c0_264] : memref<8x4xf32, #tpu.memory_space<vmem>>, vector<8x4xf32>
    tpu.vector_store %arg12[%c0_263, %c0_264], %836 {strides = array<i32>} : memref<8x4xf32, #tpu.memory_space<vmem>>, vector<8x4xf32>,
    return
  }
}

</mosaic_0001>

<llo_original>
// kernel: time_series_classifier_forward.1
$region0: #{time_series_classifier_forward.1}
  #allocation0 [shape = 'u32[]', space=smem, size = 0x4, offset = 0x4, fixed_abs, tag = 'smem constant byte address 0x4 - core index']
  #allocation1 [shape = 'u32[144,128]{1,0:T(1,128)}', space=vmem, size = 0x12000, scoped, tag = 'internal scratch']
  #allocation2 [shape = 'f32[64,512]{1,0:T(8,128)}', space=vmem, size = 0x20000, scoped, tag = 'scratch operand']
  #allocation3 [shape = 'f32[64,128]{1,0:T(8,128)}', space=vmem, size = 0x8000, scoped, tag = 'scratch operand']
  %s0 = inlined_call_operand.vmem [shape: f32[64,8], index: 0, kind: input, shape index: {}]
  %s1 = inlined_call_operand.vmem [shape: f32[8,512], index: 1, kind: input, shape index: {}]
  %s2 = inlined_call_operand.hbm [shape: f32[128,512], index: 2, kind: input, shape index: {}]
  %s3 = inlined_call_operand.vmem [shape: f32[1,512], index: 3, kind: input, shape index: {}]
  %s4 = inlined_call_operand.hbm [shape: f32[128,512], index: 4, kind: input, shape index: {}]
  %s5 = inlined_call_operand.hbm [shape: f32[128,512], index: 5, kind: input, shape index: {}]
  %s6 = inlined_call_operand.vmem [shape: f32[1,512], index: 6, kind: input, shape index: {}]
  %s7 = inlined_call_operand.hbm [shape: f32[128,512], index: 7, kind: input, shape index: {}]
  %s8 = inlined_call_operand.hbm [shape: f32[128,512], index: 8, kind: input, shape index: {}]
  %s9 = inlined_call_operand.vmem [shape: f32[1,512], index: 9, kind: input, shape index: {}]
  %s10 = inlined_call_operand.vmem [shape: f32[128,4], index: 10, kind: input, shape index: {}]
  %s11 = inlined_call_operand.vmem [shape: f32[1,4], index: 11, kind: input, shape index: {}]
  %s12 = inlined_call_operand.vmem [shape: f32[8,4], index: 12, kind: output, shape index: {}]
  %s13 = sld [smem:[#allocation0]]
  $region78: #{time_series_classifier_forward.1} parent=0
    _
  %s15 = ssub.s32 1, %s13
  %s16 = scalar_select 0, %s15, %s13
  $region1: #{time_series_classifier_forward.1} parent=0
    #allocation4 [shape = 'u8[262144]{0}', space=vmem, size = 0x40000, scoped, tag = 'input window, operand 2, single buffered']
    #allocation5 [shape = 's32[1]{0}', space=sflag, size = 0x4, scoped, tag = 'scoped memory for time_series_classifier_forward.1']
    #allocation6 [shape = 'u8[262144]{0}', space=vmem, size = 0x40000, scoped, tag = 'input window, operand 4, single buffered']
    #allocation7 [shape = 's32[1]{0}', space=sflag, size = 0x4, scoped, tag = 'scoped memory for time_series_classifier_forward.1']
    #allocation8 [shape = 'u8[262144]{0}', space=vmem, size = 0x40000, scoped, tag = 'input window, operand 5, single buffered']
    #allocation9 [shape = 'u8[262144]{0}', space=vmem, size = 0x40000, scoped, tag = 'input window, operand 7, single buffered']
    #allocation10 [shape = 's32[1]{0}', space=sflag, size = 0x4, scoped, tag = 'scoped memory for time_series_classifier_forward.1']
    #allocation11 [shape = 'u8[262144]{0}', space=vmem, size = 0x40000, scoped, tag = 'input window, operand 8, single buffered']
    %17 = vsyncpa [#allocation5], 0
    %18 = vsyncpa [#allocation7], 0
    %19 = vsyncpa [#allocation10], 0
    // Predicated region
    $region2: #{time_series_classifier_forward.1} parent=1 // pred_check
      _
    $region3: #{time_series_classifier_forward.1} parent=1 // pred_check_branch
      %21 = sbr.rel (0) target = $region5
    $region4: #{time_series_classifier_forward.1} parent=1 // pred_region
      _
    $region5: #{time_series_classifier_forward.1} parent=1 // pred_fallthru
      _
    // Predicated region
    $region6: #{time_series_classifier_forward.1} parent=1 // pred_check
      _
    $region7: #{time_series_classifier_forward.1} parent=1 // pred_check_branch
      %23 = sbr.rel (0) target = $region9
    $region8: #{time_series_classifier_forward.1} parent=1 // pred_region
      _
    $region9: #{time_series_classifier_forward.1} parent=1 // pred_fallthru
      _
    // Predicated region
    $region10: #{time_series_classifier_forward.1} parent=1 // pred_check
      _
    $region11: #{time_series_classifier_forward.1} parent=1 // pred_check_branch
      %25 = sbr.rel (0) target = $region13
    $region12: #{time_series_classifier_forward.1} parent=1 // pred_region
      %s27 = ssub.s32 8192, 8192
      %28 = vsyncadd [#allocation5], %s27
      %s29 = sshll.u32 [#allocation4], 4
      %s30 = int_to_ptr.vmem [resolvable:$true] %s29
      %35 = dma.hbm_to_vmem [thread:$0]  %s2, 8192, %s30, [#allocation5], 512, 512, 32
    $region13: #{time_series_classifier_forward.1} parent=1 // pred_fallthru
      _
    // Predicated region
    $region14: #{time_series_classifier_forward.1} parent=1 // pred_check
      _
    $region15: #{time_series_classifier_forward.1} parent=1 // pred_check_branch
      %37 = sbr.rel (0) target = $region17
    $region16: #{time_series_classifier_forward.1} parent=1 // pred_region
      _
    $region17: #{time_series_classifier_forward.1} parent=1 // pred_fallthru
      _
    // Predicated region
    $region18: #{time_series_classifier_forward.1} parent=1 // pred_check
      _
    $region19: #{time_series_classifier_forward.1} parent=1 // pred_check_branch
      %39 = sbr.rel (0) target = $region21
    $region20: #{time_series_classifier_forward.1} parent=1 // pred_region
      %s41 = ssub.s32 8192, 8192
      %42 = vsyncadd [#allocation7], %s41
      %s43 = sshll.u32 [#allocation6], 4
      %s44 = int_to_ptr.vmem [resolvable:$true] %s43
      %49 = dma.hbm_to_vmem [thread:$0]  %s4, 8192, %s44, [#allocation7], 512, 512, 32
    $region21: #{time_series_classifier_forward.1} parent=1 // pred_fallthru
      _
    // Predicated region
    $region22: #{time_series_classifier_forward.1} parent=1 // pred_check
      _
    $region23: #{time_series_classifier_forward.1} parent=1 // pred_check_branch
      %51 = sbr.rel (0) target = $region25
    $region24: #{time_series_classifier_forward.1} parent=1 // pred_region
      %s53 = ssub.s32 8192, 8192
      %54 = vsyncadd [#allocation7], %s53
      %s55 = sshll.u32 [#allocation8], 4
      %s56 = int_to_ptr.vmem [resolvable:$true] %s55
      %61 = dma.hbm_to_vmem [thread:$0]  %s5, 8192, %s56, [#allocation7], 512, 512, 32
    $region25: #{time_series_classifier_forward.1} parent=1 // pred_fallthru
      _
    // Predicated region
    $region26: #{time_series_classifier_forward.1} parent=1 // pred_check
      _
    $region27: #{time_series_classifier_forward.1} parent=1 // pred_check_branch
      %63 = sbr.rel (0) target = $region29
    $region28: #{time_series_classifier_forward.1} parent=1 // pred_region
      _
    $region29: #{time_series_classifier_forward.1} parent=1 // pred_fallthru
      _
    // Predicated region
    $region30: #{time_series_classifier_forward.1} parent=1 // pred_check
      _
    $region31: #{time_series_classifier_forward.1} parent=1 // pred_check_branch
      %65 = sbr.rel (0) target = $region33
    $region32: #{time_series_classifier_forward.1} parent=1 // pred_region
      %s67 = ssub.s32 8192, 8192
      %68 = vsyncadd [#allocation10], %s67
      %s69 = sshll.u32 [#allocation9], 4
      %s70 = int_to_ptr.vmem [resolvable:$true] %s69
      %75 = dma.hbm_to_vmem [thread:$0]  %s7, 8192, %s70, [#allocation10], 512, 512, 32
    $region33: #{time_series_classifier_forward.1} parent=1 // pred_fallthru
      _
    // Predicated region
    $region34: #{time_series_classifier_forward.1} parent=1 // pred_check
      _
    $region35: #{time_series_classifier_forward.1} parent=1 // pred_check_branch
      %77 = sbr.rel (0) target = $region37
    $region36: #{time_series_classifier_forward.1} parent=1 // pred_region
      %s79 = ssub.s32 8192, 8192
      %80 = vsyncadd [#allocation10], %s79
      %s81 = sshll.u32 [#allocation11], 4
      %s82 = int_to_ptr.vmem [resolvable:$true] %s81
      %87 = dma.hbm_to_vmem [thread:$0]  %s8, 8192, %s82, [#allocation10], 512, 512, 32
    $region37: #{time_series_classifier_forward.1} parent=1 // pred_fallthru
      _
    // Predicated region
    $region38: #{time_series_classifier_forward.1} parent=1 // pred_check
      _
    $region39: #{time_series_classifier_forward.1} parent=1 // pred_check_branch
      %89 = sbr.rel (0) target = $region41
    $region40: #{time_series_classifier_forward.1} parent=1 // pred_region
      _
    $region41: #{time_series_classifier_forward.1} parent=1 // pred_fallthru
      _
    // Predicated region
    $region42: #{time_series_classifier_forward.1} parent=1 // pred_check
      _
    $region43: #{time_series_classifier_forward.1} parent=1 // pred_check_branch
      %91 = sbr.rel (0) target = $region45
    $region44: #{time_series_classifier_forward.1} parent=1 // pred_region
      _
    $region45: #{time_series_classifier_forward.1} parent=1 // pred_fallthru
      _
    // Predicated region
    $region46: #{time_series_classifier_forward.1} parent=1 // pred_check
      _
    $region47: #{time_series_classifier_forward.1} parent=1 // pred_check_branch
      %93 = sbr.rel (0) target = $region49
    $region48: #{time_series_classifier_forward.1} parent=1 // pred_region
      _
    $region49: #{time_series_classifier_forward.1} parent=1 // pred_fallthru
      _
    // Predicated region
    $region50: #{time_series_classifier_forward.1} parent=1 // pred_check
      _
    $region51: #{time_series_classifier_forward.1} parent=1 // pred_check_branch
      %95 = sbr.rel (0) target = $region53
    $region52: #{time_series_classifier_forward.1} parent=1 // pred_region
      %96 = dma.done [#allocation5], 8192
    $region53: #{time_series_classifier_forward.1} parent=1 // pred_fallthru
      _
    // Predicated region
    $region54: #{time_series_classifier_forward.1} parent=1 // pred_check
      _
    $region55: #{time_series_classifier_forward.1} parent=1 // pred_check_branch
      %98 = sbr.rel (0) target = $region57
    $region56: #{time_series_classifier_forward.1} parent=1 // pred_region
      %99 = dma.done [#allocation7], 8192
    $region57: #{time_series_classifier_forward.1} parent=1 // pred_fallthru
      _
    // Predicated region
    $region58: #{time_series_classifier_forward.1} parent=1 // pred_check
      _
    $region59: #{time_series_classifier_forward.1} parent=1 // pred_check_branch
      %101 = sbr.rel (0) target = $region61
    $region60: #{time_series_classifier_forward.1} parent=1 // pred_region
      %102 = dma.done [#allocation7], 8192
    $region61: #{time_series_classifier_forward.1} parent=1 // pred_fallthru
      _
    // Predicated region
    $region62: #{time_series_classifier_forward.1} parent=1 // pred_check
      _
    $region63: #{time_series_classifier_forward.1} parent=1 // pred_check_branch
      %104 = sbr.rel (0) target = $region65
    $region64: #{time_series_classifier_forward.1} parent=1 // pred_region
      %105 = dma.done [#allocation10], 8192
    $region65: #{time_series_classifier_forward.1} parent=1 // pred_fallthru
      _
    // Predicated region
    $region66: #{time_series_classifier_forward.1} parent=1 // pred_check
      _
    $region67: #{time_series_classifier_forward.1} parent=1 // pred_check_branch
      %107 = sbr.rel (0) target = $region69
    $region68: #{time_series_classifier_forward.1} parent=1 // pred_region
      %108 = dma.done [#allocation10], 8192
    $region69: #{time_series_classifier_forward.1} parent=1 // pred_fallthru
      _
    %v109 = vld [vmem:[%s0] sm:$0xff]
    %v110 = vld [vmem:[%s0 + $0x8] sm:$0xff]
    %v111 = vld [vmem:[%s0 + $0x10] sm:$0xff]
    %v112 = vld [vmem:[%s0 + $0x18] sm:$0xff]
    %v113 = vld [vmem:[%s0 + $0x20] sm:$0xff]
    %v114 = vld [vmem:[%s0 + $0x28] sm:$0xff]
    %v115 = vld [vmem:[%s0 + $0x30] sm:$0xff]
    %v116 = vld [vmem:[%s0 + $0x38] sm:$0xff]
    %v117 = vld [vmem:[%s1] sm:$0xff]
    %v118 = vld [vmem:[%s1 + $0x8] sm:$0xff]
    %v119 = vld [vmem:[%s1 + $0x10] sm:$0xff]
    %v120 = vld [vmem:[%s1 + $0x18] sm:$0xff]
    %v121 = vld [vmem:[%s3] sm:$0xf]
    %v123 = vlaneseq
    %v124 = vshrl.u32 %v123, 7
    %v125 = vsub.s32 0, %v124
    %v126 = vrot.slane %v121, %v125
    %v127 = vlaneseq
    %v128 = vshrl.u32 %v127, 7
    %v129 = vsub.s32 1, %v128
    %v130 = vrot.slane %v121, %v129
    %v131 = vlaneseq
    %v132 = vshrl.u32 %v131, 7
    %v133 = vsub.s32 2, %v132
    %v134 = vrot.slane %v121, %v133
    %v135 = vlaneseq
    %v136 = vshrl.u32 %v135, 7
    %v137 = vsub.s32 3, %v136
    %v138 = vrot.slane %v121, %v137
    %vm143 = vcmask 64512
    %v145 = vsel %vm143, %v109, 0
    %v148 = vsel %vm143, %v110, 0
    %v151 = vsel %vm143, %v111, 0
    %v154 = vsel %vm143, %v112, 0
    %v157 = vsel %vm143, %v113, 0
    %v160 = vsel %vm143, %v114, 0
    %v163 = vsel %vm143, %v115, 0
    %v166 = vsel %vm143, %v116, 0
    %168 = vmatprep.subr.mxu0 0.0
    %169 = vmatpush1.msra.mxu0 0.0
    %170 = vmatprep.subr.mxu0 0.0
    %171 = vmatpush1.msra.mxu0 0.0
    %172 = vmatprep.subr.mxu0 0.0
    %173 = vmatpush1.msra.mxu0 0.0
    %174 = vmatprep.subr.mxu0 0.0
    %175 = vmatpush1.msra.mxu0 0.0
    %176 = vmatprep.subr.mxu0 0.0
    %177 = vmatpush1.msra.mxu0 0.0
    %178 = vmatprep.subr.mxu0 0.0
    %179 = vmatpush1.msra.mxu0 0.0
    %180 = vmatprep.subr.mxu0 0.0
    %181 = vmatpush1.msra.mxu0 0.0
    %182 = vmatprep.subr.mxu0 0.0
    %183 = vmatpush1.msra.mxu0 0.0
    %184 = vmatprep.subr.mxu0 0.0
    %185 = vmatpush1.msra.mxu0 0.0
    %186 = vmatprep.subr.mxu0 0.0
    %187 = vmatpush1.msra.mxu0 0.0
    %188 = vmatprep.subr.mxu0 0.0
    %189 = vmatpush1.msra.mxu0 0.0
    %190 = vmatprep.subr.mxu0 0.0
    %191 = vmatpush1.msra.mxu0 0.0
    %192 = vmatprep.subr.mxu0 0.0
    %193 = vmatpush1.msra.mxu0 0.0
    %194 = vmatprep.subr.mxu0 0.0
    %195 = vmatpush1.msra.mxu0 0.0
    %196 = vmatprep.subr.mxu0 0.0
    %197 = vmatpush1.msra.mxu0 0.0
    %198 = vmatprep.subr.mxu0 %v118
    %199 = vmatpush1.msra.mxu0 %v117
    %200 = vmatprep.subr.mxu0 0.0
    %201 = vmatpush2.msra.mxu0 0.0
    %202 = vmatprep.subr.mxu0 0.0
    %203 = vmatpush2.msra.mxu0 0.0
    %204 = vmatprep.subr.mxu0 0.0
    %205 = vmatpush2.msra.mxu0 0.0
    %206 = vmatprep.subr.mxu0 0.0
    %207 = vmatpush2.msra.mxu0 0.0
    %208 = vmatprep.subr.mxu0 0.0
    %209 = vmatpush2.msra.mxu0 0.0
    %210 = vmatprep.subr.mxu0 0.0
    %211 = vmatpush2.msra.mxu0 0.0
    %212 = vmatprep.subr.mxu0 0.0
    %213 = vmatpush2.msra.mxu0 0.0
    %214 = vmatprep.subr.mxu0 0.0
    %215 = vmatpush2.msra.mxu0 0.0
    %216 = vmatprep.subr.mxu0 0.0
    %217 = vmatpush2.msra.mxu0 0.0
    %218 = vmatprep.subr.mxu0 0.0
    %219 = vmatpush2.msra.mxu0 0.0
    %220 = vmatprep.subr.mxu0 0.0
    %221 = vmatpush2.msra.mxu0 0.0
    %222 = vmatprep.subr.mxu0 0.0
    %223 = vmatpush2.msra.mxu0 0.0
    %224 = vmatprep.subr.mxu0 0.0
    %225 = vmatpush2.msra.mxu0 0.0
    %226 = vmatprep.subr.mxu0 0.0
    %227 = vmatpush2.msra.mxu0 0.0
    %228 = vmatprep.subr.mxu0 0.0
    %229 = vmatpush2.msra.mxu0 0.0
    %230 = vmatprep.subr.mxu0 0.0
    %231 = vmatpush2.msra.mxu0 0.0
    %232 = vmatprep.mubr.f32.mxu0 0.0
    %233 = vmatmul.mubr.f32.gmra.mxu0 %v145
    %v234 = vpop.f32.mrf.mxu0
    %v235 = vadd.f32 %v126, %v234
    %v236 = vpop.f32.mrf.mxu0
    %v237 = vadd.f32 %v130, %v236
    %238 = vmatprep.mubr.f32.mxu0 0.0
    %239 = vmatmul.mubr.f32.gmra.mxu0 %v148
    %v240 = vpop.f32.mrf.mxu0
    %v241 = vadd.f32 %v126, %v240
    %v242 = vpop.f32.mrf.mxu0
    %v243 = vadd.f32 %v130, %v242
    %244 = vmatprep.mubr.f32.mxu0 0.0
    %245 = vmatmul.mubr.f32.gmra.mxu0 %v151
    %v246 = vpop.f32.mrf.mxu0
    %v247 = vadd.f32 %v126, %v246
    %v248 = vpop.f32.mrf.mxu0
    %v249 = vadd.f32 %v130, %v248
    %250 = vmatprep.mubr.f32.mxu0 0.0
    %251 = vmatmul.mubr.f32.gmra.mxu0 %v154
    %v252 = vpop.f32.mrf.mxu0
    %v253 = vadd.f32 %v126, %v252
    %v254 = vpop.f32.mrf.mxu0
    %v255 = vadd.f32 %v130, %v254
    %256 = vmatprep.mubr.f32.mxu0 0.0
    %257 = vmatmul.mubr.f32.gmra.mxu0 %v157
    %v258 = vpop.f32.mrf.mxu0
    %v259 = vadd.f32 %v126, %v258
    %v260 = vpop.f32.mrf.mxu0
    %v261 = vadd.f32 %v130, %v260
    %262 = vmatprep.mubr.f32.mxu0 0.0
    %263 = vmatmul.mubr.f32.gmra.mxu0 %v160
    %v264 = vpop.f32.mrf.mxu0
    %v265 = vadd.f32 %v126, %v264
    %v266 = vpop.f32.mrf.mxu0
    %v267 = vadd.f32 %v130, %v266
    %268 = vmatprep.mubr.f32.mxu0 0.0
    %269 = vmatmul.mubr.f32.gmra.mxu0 %v163
    %v270 = vpop.f32.mrf.mxu0
    %v271 = vadd.f32 %v126, %v270
    %v272 = vpop.f32.mrf.mxu0
    %v273 = vadd.f32 %v130, %v272
    %274 = vmatprep.mubr.f32.mxu0 0.0
    %275 = vmatmul.mubr.f32.gmra.mxu0 %v166
    %v276 = vpop.f32.mrf.mxu0
    %v277 = vadd.f32 %v126, %v276
    %v278 = vpop.f32.mrf.mxu0
    %v279 = vadd.f32 %v130, %v278
    %280 = vdwg.mxu0
    %281 = vmatprep.subr.mxu0 0.0
    %282 = vmatpush1.msra.mxu0 0.0
    %283 = vmatprep.subr.mxu0 0.0
    %284 = vmatpush1.msra.mxu0 0.0
    %285 = vmatprep.subr.mxu0 0.0
    %286 = vmatpush1.msra.mxu0 0.0
    %287 = vmatprep.subr.mxu0 0.0
    %288 = vmatpush1.msra.mxu0 0.0
    %289 = vmatprep.subr.mxu0 0.0
    %290 = vmatpush1.msra.mxu0 0.0
    %291 = vmatprep.subr.mxu0 0.0
    %292 = vmatpush1.msra.mxu0 0.0
    %293 = vmatprep.subr.mxu0 0.0
    %294 = vmatpush1.msra.mxu0 0.0
    %295 = vmatprep.subr.mxu0 0.0
    %296 = vmatpush1.msra.mxu0 0.0
    %297 = vmatprep.subr.mxu0 0.0
    %298 = vmatpush1.msra.mxu0 0.0
    %299 = vmatprep.subr.mxu0 0.0
    %300 = vmatpush1.msra.mxu0 0.0
    %301 = vmatprep.subr.mxu0 0.0
    %302 = vmatpush1.msra.mxu0 0.0
    %303 = vmatprep.subr.mxu0 0.0
    %304 = vmatpush1.msra.mxu0 0.0
    %305 = vmatprep.subr.mxu0 0.0
    %306 = vmatpush1.msra.mxu0 0.0
    %307 = vmatprep.subr.mxu0 0.0
    %308 = vmatpush1.msra.mxu0 0.0
    %309 = vmatprep.subr.mxu0 0.0
    %310 = vmatpush1.msra.mxu0 0.0
    %311 = vmatprep.subr.mxu0 %v120
    %312 = vmatpush1.msra.mxu0 %v119
    %313 = vmatprep.subr.mxu0 0.0
    %314 = vmatpush2.msra.mxu0 0.0
    %315 = vmatprep.subr.mxu0 0.0
    %316 = vmatpush2.msra.mxu0 0.0
    %317 = vmatprep.subr.mxu0 0.0
    %318 = vmatpush2.msra.mxu0 0.0
    %319 = vmatprep.subr.mxu0 0.0
    %320 = vmatpush2.msra.mxu0 0.0
    %321 = vmatprep.subr.mxu0 0.0
    %322 = vmatpush2.msra.mxu0 0.0
    %323 = vmatprep.subr.mxu0 0.0
    %324 = vmatpush2.msra.mxu0 0.0
    %325 = vmatprep.subr.mxu0 0.0
    %326 = vmatpush2.msra.mxu0 0.0
    %327 = vmatprep.subr.mxu0 0.0
    %328 = vmatpush2.msra.mxu0 0.0
    %329 = vmatprep.subr.mxu0 0.0
    %330 = vmatpush2.msra.mxu0 0.0
    %331 = vmatprep.subr.mxu0 0.0
    %332 = vmatpush2.msra.mxu0 0.0
    %333 = vmatprep.subr.mxu0 0.0
    %334 = vmatpush2.msra.mxu0 0.0
    %335 = vmatprep.subr.mxu0 0.0
    %336 = vmatpush2.msra.mxu0 0.0
    %337 = vmatprep.subr.mxu0 0.0
    %338 = vmatpush2.msra.mxu0 0.0
    %339 = vmatprep.subr.mxu0 0.0
    %340 = vmatpush2.msra.mxu0 0.0
    %341 = vmatprep.subr.mxu0 0.0
    %342 = vmatpush2.msra.mxu0 0.0
    %343 = vmatprep.subr.mxu0 0.0
    %344 = vmatpush2.msra.mxu0 0.0
    %345 = vmatprep.mubr.f32.mxu0 0.0
    %346 = vmatmul.mubr.f32.gmra.mxu0 %v145
    %v347 = vpop.f32.mrf.mxu0
    %v348 = vadd.f32 %v134, %v347
    %v349 = vpop.f32.mrf.mxu0
    %v350 = vadd.f32 %v138, %v349
    %351 = vmatprep.mubr.f32.mxu0 0.0
    %352 = vmatmul.mubr.f32.gmra.mxu0 %v148
    %v353 = vpop.f32.mrf.mxu0
    %v354 = vadd.f32 %v134, %v353
    %v355 = vpop.f32.mrf.mxu0
    %v356 = vadd.f32 %v138, %v355
    %357 = vmatprep.mubr.f32.mxu0 0.0
    %358 = vmatmul.mubr.f32.gmra.mxu0 %v151
    %v359 = vpop.f32.mrf.mxu0
    %v360 = vadd.f32 %v134, %v359
    %v361 = vpop.f32.mrf.mxu0
    %v362 = vadd.f32 %v138, %v361
    %363 = vmatprep.mubr.f32.mxu0 0.0
    %364 = vmatmul.mubr.f32.gmra.mxu0 %v154
    %v365 = vpop.f32.mrf.mxu0
    %v366 = vadd.f32 %v134, %v365
    %v367 = vpop.f32.mrf.mxu0
    %v368 = vadd.f32 %v138, %v367
    %369 = vmatprep.mubr.f32.mxu0 0.0
    %370 = vmatmul.mubr.f32.gmra.mxu0 %v157
    %v371 = vpop.f32.mrf.mxu0
    %v372 = vadd.f32 %v134, %v371
    %v373 = vpop.f32.mrf.mxu0
    %v374 = vadd.f32 %v138, %v373
    %375 = vmatprep.mubr.f32.mxu0 0.0
    %376 = vmatmul.mubr.f32.gmra.mxu0 %v160
    %v377 = vpop.f32.mrf.mxu0
    %v378 = vadd.f32 %v134, %v377
    %v379 = vpop.f32.mrf.mxu0
    %v380 = vadd.f32 %v138, %v379
    %381 = vmatprep.mubr.f32.mxu0 0.0
    %382 = vmatmul.mubr.f32.gmra.mxu0 %v163
    %v383 = vpop.f32.mrf.mxu0
    %v384 = vadd.f32 %v134, %v383
    %v385 = vpop.f32.mrf.mxu0
    %v386 = vadd.f32 %v138, %v385
    %387 = vmatprep.mubr.f32.mxu0 0.0
    %388 = vmatmul.mubr.f32.gmra.mxu0 %v166
    %v389 = vpop.f32.mrf.mxu0
    %v390 = vadd.f32 %v134, %v389
    %v391 = vpop.f32.mrf.mxu0
    %v392 = vadd.f32 %v138, %v391
    %393 = vdwg.mxu0
    %394 = vst [vmem:[#allocation2] sm:$0xff] %v235
    %395 = vst [vmem:[#allocation2 + $0x8] sm:$0xff] %v237
    %396 = vst [vmem:[#allocation2 + $0x10] sm:$0xff] %v348
    %397 = vst [vmem:[#allocation2 + $0x18] sm:$0xff] %v350
    %398 = vst [vmem:[#allocation2 + $0x20] sm:$0xff] %v241
    %399 = vst [vmem:[#allocation2 + $0x28] sm:$0xff] %v243
    %400 = vst [vmem:[#allocation2 + $0x30] sm:$0xff] %v354
    %401 = vst [vmem:[#allocation2 + $0x38] sm:$0xff] %v356
    %402 = vst [vmem:[#allocation2 + $0x40] sm:$0xff] %v247
    %403 = vst [vmem:[#allocation2 + $0x48] sm:$0xff] %v249
    %404 = vst [vmem:[#allocation2 + $0x50] sm:$0xff] %v360
    %405 = vst [vmem:[#allocation2 + $0x58] sm:$0xff] %v362
    %406 = vst [vmem:[#allocation2 + $0x60] sm:$0xff] %v253
    %407 = vst [vmem:[#allocation2 + $0x68] sm:$0xff] %v255
    %408 = vst [vmem:[#allocation2 + $0x70] sm:$0xff] %v366
    %409 = vst [vmem:[#allocation2 + $0x78] sm:$0xff] %v368
    %410 = vst [vmem:[#allocation2 + $0x80] sm:$0xff] %v259
    %411 = vst [vmem:[#allocation2 + $0x88] sm:$0xff] %v261
    %412 = vst [vmem:[#allocation2 + $0x90] sm:$0xff] %v372
    %413 = vst [vmem:[#allocation2 + $0x98] sm:$0xff] %v374
    %414 = vst [vmem:[#allocation2 + $0xa0] sm:$0xff] %v265
    %415 = vst [vmem:[#allocation2 + $0xa8] sm:$0xff] %v267
    %416 = vst [vmem:[#allocation2 + $0xb0] sm:$0xff] %v378
    %417 = vst [vmem:[#allocation2 + $0xb8] sm:$0xff] %v380
    %418 = vst [vmem:[#allocation2 + $0xc0] sm:$0xff] %v271
    %419 = vst [vmem:[#allocation2 + $0xc8] sm:$0xff] %v273
    %420 = vst [vmem:[#allocation2 + $0xd0] sm:$0xff] %v384
    %421 = vst [vmem:[#allocation2 + $0xd8] sm:$0xff] %v386
    %422 = vst [vmem:[#allocation2 + $0xe0] sm:$0xff] %v277
    %423 = vst [vmem:[#allocation2 + $0xe8] sm:$0xff] %v279
    %424 = vst [vmem:[#allocation2 + $0xf0] sm:$0xff] %v390
    %425 = vst [vmem:[#allocation2 + $0xf8] sm:$0xff] %v392
    %s426 = smul.u32 0, 4
    %s427 = smul.addr %s426, 8
    %s428 = scalar_lea.vmem [#allocation2], %s427
    %v429 = vld [vmem:[%s428] sm:$0xff]
    %v430 = vld [vmem:[%s428 + $0x8] sm:$0xff]
    %v431 = vld [vmem:[%s428 + $0x10] sm:$0xff]
    %v432 = vld [vmem:[%s428 + $0x18] sm:$0xff]
    %v433 = vld [vmem:[#allocation4] sm:$0xff]
    %v434 = vld [vmem:[#allocation4 + $0x8] sm:$0xff]
    %v435 = vld [vmem:[#allocation4 + $0x10] sm:$0xff]
    %v436 = vld [vmem:[#allocation4 + $0x18] sm:$0xff]
    %v437 = vld [vmem:[#allocation4 + $0x20] sm:$0xff]
    %v438 = vld [vmem:[#allocation4 + $0x28] sm:$0xff]
    %v439 = vld [vmem:[#allocation4 + $0x30] sm:$0xff]
    %v440 = vld [vmem:[#allocation4 + $0x38] sm:$0xff]
    %v441 = vld [vmem:[#allocation4 + $0x40] sm:$0xff]
    %v442 = vld [vmem:[#allocation4 + $0x48] sm:$0xff]
    %v443 = vld [vmem:[#allocation4 + $0x50] sm:$0xff]
    %v444 = vld [vmem:[#allocation4 + $0x58] sm:$0xff]
    %v445 = vld [vmem:[#allocation4 + $0x60] sm:$0xff]
    %v446 = vld [vmem:[#allocation4 + $0x68] sm:$0xff]
    %v447 = vld [vmem:[#allocation4 + $0x70] sm:$0xff]
    %v448 = vld [vmem:[#allocation4 + $0x78] sm:$0xff]
    %v449 = vld [vmem:[#allocation4 + $0x80] sm:$0xff]
    %v450 = vld [vmem:[#allocation4 + $0x88] sm:$0xff]
    %v451 = vld [vmem:[#allocation4 + $0x90] sm:$0xff]
    %v452 = vld [vmem:[#allocation4 + $0x98] sm:$0xff]
    %v453 = vld [vmem:[#allocation4 + $0xa0] sm:$0xff]
    %v454 = vld [vmem:[#allocation4 + $0xa8] sm:$0xff]
    %v455 = vld [vmem:[#allocation4 + $0xb0] sm:$0xff]
    %v456 = vld [vmem:[#allocation4 + $0xb8] sm:$0xff]
    %v457 = vld [vmem:[#allocation4 + $0xc0] sm:$0xff]
    %v458 = vld [vmem:[#allocation4 + $0xc8] sm:$0xff]
    %v459 = vld [vmem:[#allocation4 + $0xd0] sm:$0xff]
    %v460 = vld [vmem:[#allocation4 + $0xd8] sm:$0xff]
    %v461 = vld [vmem:[#allocation4 + $0xe0] sm:$0xff]
    %v462 = vld [vmem:[#allocation4 + $0xe8] sm:$0xff]
    %v463 = vld [vmem:[#allocation4 + $0xf0] sm:$0xff]
    %v464 = vld [vmem:[#allocation4 + $0xf8] sm:$0xff]
    %v465 = vld [vmem:[#allocation4 + $0x100] sm:$0xff]
    %v466 = vld [vmem:[#allocation4 + $0x108] sm:$0xff]
    %v467 = vld [vmem:[#allocation4 + $0x110] sm:$0xff]
    %v468 = vld [vmem:[#allocation4 + $0x118] sm:$0xff]
    %v469 = vld [vmem:[#allocation4 + $0x120] sm:$0xff]
    %v470 = vld [vmem:[#allocation4 + $0x128] sm:$0xff]
    %v471 = vld [vmem:[#allocation4 + $0x130] sm:$0xff]
    %v472 = vld [vmem:[#allocation4 + $0x138] sm:$0xff]
    %v473 = vld [vmem:[#allocation4 + $0x140] sm:$0xff]
    %v474 = vld [vmem:[#allocation4 + $0x148] sm:$0xff]
    %v475 = vld [vmem:[#allocation4 + $0x150] sm:$0xff]
    %v476 = vld [vmem:[#allocation4 + $0x158] sm:$0xff]
    %v477 = vld [vmem:[#allocation4 + $0x160] sm:$0xff]
    %v478 = vld [vmem:[#allocation4 + $0x168] sm:$0xff]
    %v479 = vld [vmem:[#allocation4 + $0x170] sm:$0xff]
    %v480 = vld [vmem:[#allocation4 + $0x178] sm:$0xff]
    %v481 = vld [vmem:[#allocation4 + $0x180] sm:$0xff]
    %v482 = vld [vmem:[#allocation4 + $0x188] sm:$0xff]
    %v483 = vld [vmem:[#allocation4 + $0x190] sm:$0xff]
    %v484 = vld [vmem:[#allocation4 + $0x198] sm:$0xff]
    %v485 = vld [vmem:[#allocation4 + $0x1a0] sm:$0xff]
    %v486 = vld [vmem:[#allocation4 + $0x1a8] sm:$0xff]
    %v487 = vld [vmem:[#allocation4 + $0x1b0] sm:$0xff]
    %v488 = vld [vmem:[#allocation4 + $0x1b8] sm:$0xff]
    %v489 = vld [vmem:[#allocation4 + $0x1c0] sm:$0xff]
    %v490 = vld [vmem:[#allocation4 + $0x1c8] sm:$0xff]
    %v491 = vld [vmem:[#allocation4 + $0x1d0] sm:$0xff]
    %v492 = vld [vmem:[#allocation4 + $0x1d8] sm:$0xff]
    %v493 = vld [vmem:[#allocation4 + $0x1e0] sm:$0xff]
    %v494 = vld [vmem:[#allocation4 + $0x1e8] sm:$0xff]
    %v495 = vld [vmem:[#allocation4 + $0x1f0] sm:$0xff]
    %v496 = vld [vmem:[#allocation4 + $0x1f8] sm:$0xff]
    %497 = vmatprep.subr.mxu0 %v494
    %498 = vmatpush1.msra.mxu0 %v493
    %499 = vmatprep.subr.mxu0 %v490
    %500 = vmatpush1.msra.mxu0 %v489
    %501 = vmatprep.subr.mxu0 %v486
    %502 = vmatpush1.msra.mxu0 %v485
    %503 = vmatprep.subr.mxu0 %v482
    %504 = vmatpush1.msra.mxu0 %v481
    %505 = vmatprep.subr.mxu0 %v478
    %506 = vmatpush1.msra.mxu0 %v477
    %507 = vmatprep.subr.mxu0 %v474
    %508 = vmatpush1.msra.mxu0 %v473
    %509 = vmatprep.subr.mxu0 %v470
    %510 = vmatpush1.msra.mxu0 %v469
    %511 = vmatprep.subr.mxu0 %v466
    %512 = vmatpush1.msra.mxu0 %v465
    %513 = vmatprep.subr.mxu0 %v462
    %514 = vmatpush1.msra.mxu0 %v461
    %515 = vmatprep.subr.mxu0 %v458
    %516 = vmatpush1.msra.mxu0 %v457
    %517 = vmatprep.subr.mxu0 %v454
    %518 = vmatpush1.msra.mxu0 %v453
    %519 = vmatprep.subr.mxu0 %v450
    %520 = vmatpush1.msra.mxu0 %v449
    %521 = vmatprep.subr.mxu0 %v446
    %522 = vmatpush1.msra.mxu0 %v445
    %523 = vmatprep.subr.mxu0 %v442
    %524 = vmatpush1.msra.mxu0 %v441
    %525 = vmatprep.subr.mxu0 %v438
    %526 = vmatpush1.msra.mxu0 %v437
    %527 = vmatprep.subr.mxu0 %v434
    %528 = vmatpush1.msra.mxu0 %v433
    %529 = vmatprep.subr.mxu0 0.0
    %530 = vmatpush2.msra.mxu0 0.0
    %531 = vmatprep.subr.mxu0 0.0
    %532 = vmatpush2.msra.mxu0 0.0
    %533 = vmatprep.subr.mxu0 0.0
    %534 = vmatpush2.msra.mxu0 0.0
    %535 = vmatprep.subr.mxu0 0.0
    %536 = vmatpush2.msra.mxu0 0.0
    %537 = vmatprep.subr.mxu0 0.0
    %538 = vmatpush2.msra.mxu0 0.0
    %539 = vmatprep.subr.mxu0 0.0
    %540 = vmatpush2.msra.mxu0 0.0
    %541 = vmatprep.subr.mxu0 0.0
    %542 = vmatpush2.msra.mxu0 0.0
    %543 = vmatprep.subr.mxu0 0.0
    %544 = vmatpush2.msra.mxu0 0.0
    %545 = vmatprep.subr.mxu0 0.0
    %546 = vmatpush2.msra.mxu0 0.0
    %547 = vmatprep.subr.mxu0 0.0
    %548 = vmatpush2.msra.mxu0 0.0
    %549 = vmatprep.subr.mxu0 0.0
    %550 = vmatpush2.msra.mxu0 0.0
    %551 = vmatprep.subr.mxu0 0.0
    %552 = vmatpush2.msra.mxu0 0.0
    %553 = vmatprep.subr.mxu0 0.0
    %554 = vmatpush2.msra.mxu0 0.0
    %555 = vmatprep.subr.mxu0 0.0
    %556 = vmatpush2.msra.mxu0 0.0
    %557 = vmatprep.subr.mxu0 0.0
    %558 = vmatpush2.msra.mxu0 0.0
    %559 = vmatprep.subr.mxu0 0.0
    %560 = vmatpush2.msra.mxu0 0.0
    %561 = vmatprep.mubr.f32.mxu0 0.0
    %562 = vmatmul.mubr.f32.gmra.mxu0 0.0
    %v563 = vpop.f32.mrf.mxu0
    %v564 = vadd.f32 0.0, %v563
    %v565 = vpop.f32.mrf.mxu0
    %v566 = vadd.f32 0.0, %v565
    %567 = vdwg.mxu0
    %568 = vmatprep.subr.mxu0 %v496
    %569 = vmatpush1.msra.mxu0 %v495
    %570 = vmatprep.subr.mxu0 %v492
    %571 = vmatpush1.msra.mxu0 %v491
    %572 = vmatprep.subr.mxu0 %v488
    %573 = vmatpush1.msra.mxu0 %v487
    %574 = vmatprep.subr.mxu0 %v484
    %575 = vmatpush1.msra.mxu0 %v483
    %576 = vmatprep.subr.mxu0 %v480
    %577 = vmatpush1.msra.mxu0 %v479
    %578 = vmatprep.subr.mxu0 %v476
    %579 = vmatpush1.msra.mxu0 %v475
    %580 = vmatprep.subr.mxu0 %v472
    %581 = vmatpush1.msra.mxu0 %v471
    %582 = vmatprep.subr.mxu0 %v468
    %583 = vmatpush1.msra.mxu0 %v467
    %584 = vmatprep.subr.mxu0 %v464
    %585 = vmatpush1.msra.mxu0 %v463
    %586 = vmatprep.subr.mxu0 %v460
    %587 = vmatpush1.msra.mxu0 %v459
    %588 = vmatprep.subr.mxu0 %v456
    %589 = vmatpush1.msra.mxu0 %v455
    %590 = vmatprep.subr.mxu0 %v452
    %591 = vmatpush1.msra.mxu0 %v451
    %592 = vmatprep.subr.mxu0 %v448
    %593 = vmatpush1.msra.mxu0 %v447
    %594 = vmatprep.subr.mxu0 %v444
    %595 = vmatpush1.msra.mxu0 %v443
    %596 = vmatprep.subr.mxu0 %v440
    %597 = vmatpush1.msra.mxu0 %v439
    %598 = vmatprep.subr.mxu0 %v436
    %599 = vmatpush1.msra.mxu0 %v435
    %600 = vmatprep.subr.mxu0 0.0
    %601 = vmatpush2.msra.mxu0 0.0
    %602 = vmatprep.subr.mxu0 0.0
    %603 = vmatpush2.msra.mxu0 0.0
    %604 = vmatprep.subr.mxu0 0.0
    %605 = vmatpush2.msra.mxu0 0.0
    %606 = vmatprep.subr.mxu0 0.0
    %607 = vmatpush2.msra.mxu0 0.0
    %608 = vmatprep.subr.mxu0 0.0
    %609 = vmatpush2.msra.mxu0 0.0
    %610 = vmatprep.subr.mxu0 0.0
    %611 = vmatpush2.msra.mxu0 0.0
    %612 = vmatprep.subr.mxu0 0.0
    %613 = vmatpush2.msra.mxu0 0.0
    %614 = vmatprep.subr.mxu0 0.0
    %615 = vmatpush2.msra.mxu0 0.0
    %616 = vmatprep.subr.mxu0 0.0
    %617 = vmatpush2.msra.mxu0 0.0
    %618 = vmatprep.subr.mxu0 0.0
    %619 = vmatpush2.msra.mxu0 0.0
    %620 = vmatprep.subr.mxu0 0.0
    %621 = vmatpush2.msra.mxu0 0.0
    %622 = vmatprep.subr.mxu0 0.0
    %623 = vmatpush2.msra.mxu0 0.0
    %624 = vmatprep.subr.mxu0 0.0
    %625 = vmatpush2.msra.mxu0 0.0
    %626 = vmatprep.subr.mxu0 0.0
    %627 = vmatpush2.msra.mxu0 0.0
    %628 = vmatprep.subr.mxu0 0.0
    %629 = vmatpush2.msra.mxu0 0.0
    %630 = vmatprep.subr.mxu0 0.0
    %631 = vmatpush2.msra.mxu0 0.0
    %632 = vmatprep.mubr.f32.mxu0 0.0
    %633 = vmatmul.mubr.f32.gmra.mxu0 0.0
    %v634 = vpop.f32.mrf.mxu0
    %v635 = vadd.f32 0.0, %v634
    %v636 = vpop.f32.mrf.mxu0
    %v637 = vadd.f32 0.0, %v636
    %638 = vdwg.mxu0
    %v639 = vadd.f32 %v429, %v564
    %v640 = vadd.f32 %v430, %v566
    %v641 = vadd.f32 %v431, %v635
    %v642 = vadd.f32 %v432, %v637
    %v643 = vxor.u32 %v639, 2147483648
    %v644 = vmul.f32 %v643, 1.442695
    %v645 = vpow.pop %v644
    %v646 = vadd.f32 %v645, 1.0
    %v647 = vrcp.pop %v646
    %v648 = vmul.f32 1.0, %v647
    %v649 = vxor.u32 %v640, 2147483648
    %v650 = vmul.f32 %v649, 1.442695
    %v651 = vpow.pop %v650
    %v652 = vadd.f32 %v651, 1.0
    %v653 = vrcp.pop %v652
    %v654 = vmul.f32 1.0, %v653
    %v655 = vtanh.pop %v641
    %v656 = vxor.u32 %v642, 2147483648
    %v657 = vmul.f32 %v656, 1.442695
    %v658 = vpow.pop %v657
    %v659 = vadd.f32 %v658, 1.0
    %v660 = vrcp.pop %v659
    %v661 = vmul.f32 1.0, %v660
    %v662 = vmul.f32 %v654, 0.0
    %v663 = vmul.f32 %v648, %v655
    %v664 = vadd.f32 %v662, %v663
    %v665 = vtanh.pop %v664
    %v666 = vmul.f32 %v661, %v665
    %667 = vst [vmem:[#allocation3] sm:$0xff] %v666
    %s668 = smul.u32 1, 4
    %s669 = smul.addr %s668, 8
    %s670 = scalar_lea.vmem [#allocation2], %s669
    %v671 = vld [vmem:[%s670] sm:$0xff]
    %v672 = vld [vmem:[%s670 + $0x8] sm:$0xff]
    %v673 = vld [vmem:[%s670 + $0x10] sm:$0xff]
    %v674 = vld [vmem:[%s670 + $0x18] sm:$0xff]
    %v675 = vld [vmem:[#allocation4] sm:$0xff]
    %v676 = vld [vmem:[#allocation4 + $0x8] sm:$0xff]
    %v677 = vld [vmem:[#allocation4 + $0x10] sm:$0xff]
    %v678 = vld [vmem:[#allocation4 + $0x18] sm:$0xff]
    %v679 = vld [vmem:[#allocation4 + $0x20] sm:$0xff]
    %v680 = vld [vmem:[#allocation4 + $0x28] sm:$0xff]
    %v681 = vld [vmem:[#allocation4 + $0x30] sm:$0xff]
    %v682 = vld [vmem:[#allocation4 + $0x38] sm:$0xff]
    %v683 = vld [vmem:[#allocation4 + $0x40] sm:$0xff]
    %v684 = vld [vmem:[#allocation4 + $0x48] sm:$0xff]
    %v685 = vld [vmem:[#allocation4 + $0x50] sm:$0xff]
    %v686 = vld [vmem:[#allocation4 + $0x58] sm:$0xff]
    %v687 = vld [vmem:[#allocation4 + $0x60] sm:$0xff]
    %v688 = vld [vmem:[#allocation4 + $0x68] sm:$0xff]
    %v689 = vld [vmem:[#allocation4 + $0x70] sm:$0xff]
    %v690 = vld [vmem:[#allocation4 + $0x78] sm:$0xff]
    %v691 = vld [vmem:[#allocation4 + $0x80] sm:$0xff]
    %v692 = vld [vmem:[#allocation4 + $0x88] sm:$0xff]
    %v693 = vld [vmem:[#allocation4 + $0x90] sm:$0xff]
    %v694 = vld [vmem:[#allocation4 + $0x98] sm:$0xff]
    %v695 = vld [vmem:[#allocation4 + $0xa0] sm:$0xff]
    %v696 = vld [vmem:[#allocation4 + $0xa8] sm:$0xff]
    %v697 = vld [vmem:[#allocation4 + $0xb0] sm:$0xff]
    %v698 = vld [vmem:[#allocation4 + $0xb8] sm:$0xff]
    %v699 = vld [vmem:[#allocation4 + $0xc0] sm:$0xff]
    %v700 = vld [vmem:[#allocation4 + $0xc8] sm:$0xff]
    %v701 = vld [vmem:[#allocation4 + $0xd0] sm:$0xff]
    %v702 = vld [vmem:[#allocation4 + $0xd8] sm:$0xff]
    %v703 = vld [vmem:[#allocation4 + $0xe0] sm:$0xff]
    %v704 = vld [vmem:[#allocation4 + $0xe8] sm:$0xff]
    %v705 = vld [vmem:[#allocation4 + $0xf0] sm:$0xff]
    %v706 = vld [vmem:[#allocation4 + $0xf8] sm:$0xff]
    %v707 = vld [vmem:[#allocation4 + $0x100] sm:$0xff]
    %v708 = vld [vmem:[#allocation4 + $0x108] sm:$0xff]
    %v709 = vld [vmem:[#allocation4 + $0x110] sm:$0xff]
    %v710 = vld [vmem:[#allocation4 + $0x118] sm:$0xff]
    %v711 = vld [vmem:[#allocation4 + $0x120] sm:$0xff]
    %v712 = vld [vmem:[#allocation4 + $0x128] sm:$0xff]
    %v713 = vld [vmem:[#allocation4 + $0x130] sm:$0xff]
    %v714 = vld [vmem:[#allocation4 + $0x138] sm:$0xff]
    %v715 = vld [vmem:[#allocation4 + $0x140] sm:$0xff]
    %v716 = vld [vmem:[#allocation4 + $0x148] sm:$0xff]
    %v717 = vld [vmem:[#allocation4 + $0x150] sm:$0xff]
    %v718 = vld [vmem:[#allocation4 + $0x158] sm:$0xff]
    %v719 = vld [vmem:[#allocation4 + $0x160] sm:$0xff]
    %v720 = vld [vmem:[#allocation4 + $0x168] sm:$0xff]
    %v721 = vld [vmem:[#allocation4 + $0x170] sm:$0xff]
    %v722 = vld [vmem:[#allocation4 + $0x178] sm:$0xff]
    %v723 = vld [vmem:[#allocation4 + $0x180] sm:$0xff]
    %v724 = vld [vmem:[#allocation4 + $0x188] sm:$0xff]
    %v725 = vld [vmem:[#allocation4 + $0x190] sm:$0xff]
    %v726 = vld [vmem:[#allocation4 + $0x198] sm:$0xff]
    %v727 = vld [vmem:[#allocation4 + $0x1a0] sm:$0xff]
    %v728 = vld [vmem:[#allocation4 + $0x1a8] sm:$0xff]
    %v729 = vld [vmem:[#allocation4 + $0x1b0] sm:$0xff]
    %v730 = vld [vmem:[#allocation4 + $0x1b8] sm:$0xff]
    %v731 = vld [vmem:[#allocation4 + $0x1c0] sm:$0xff]
    %v732 = vld [vmem:[#allocation4 + $0x1c8] sm:$0xff]
    %v733 = vld [vmem:[#allocation4 + $0x1d0] sm:$0xff]
    %v734 = vld [vmem:[#allocation4 + $0x1d8] sm:$0xff]
    %v735 = vld [vmem:[#allocation4 + $0x1e0] sm:$0xff]
    %v736 = vld [vmem:[#allocation4 + $0x1e8] sm:$0xff]
    %v737 = vld [vmem:[#allocation4 + $0x1f0] sm:$0xff]
    %v738 = vld [vmem:[#allocation4 + $0x1f8] sm:$0xff]
    %739 = vmatprep.subr.mxu0 %v736
    %740 = vmatpush1.msra.mxu0 %v735
    %741 = vmatprep.subr.mxu0 %v732
    %742 = vmatpush1.msra.mxu0 %v731
    %743 = vmatprep.subr.mxu0 %v728
    %744 = vmatpush1.msra.mxu0 %v727
    %745 = vmatprep.subr.mxu0 %v724
    %746 = vmatpush1.msra.mxu0 %v723
    %747 = vmatprep.subr.mxu0 %v720
    %748 = vmatpush1.msra.mxu0 %v719
    %749 = vmatprep.subr.mxu0 %v716
    %750 = vmatpush1.msra.mxu0 %v715
    %751 = vmatprep.subr.mxu0 %v712
    %752 = vmatpush1.msra.mxu0 %v711
    %753 = vmatprep.subr.mxu0 %v708
    %754 = vmatpush1.msra.mxu0 %v707
    %755 = vmatprep.subr.mxu0 %v704
    %756 = vmatpush1.msra.mxu0 %v703
    %757 = vmatprep.subr.mxu0 %v700
    %758 = vmatpush1.msra.mxu0 %v699
    %759 = vmatprep.subr.mxu0 %v696
    %760 = vmatpush1.msra.mxu0 %v695
    %761 = vmatprep.subr.mxu0 %v692
    %762 = vmatpush1.msra.mxu0 %v691
    %763 = vmatprep.subr.mxu0 %v688
    %764 = vmatpush1.msra.mxu0 %v687
    %765 = vmatprep.subr.mxu0 %v684
    %766 = vmatpush1.msra.mxu0 %v683
    %767 = vmatprep.subr.mxu0 %v680
    %768 = vmatpush1.msra.mxu0 %v679
    %769 = vmatprep.subr.mxu0 %v676
    %770 = vmatpush1.msra.mxu0 %v675
    %771 = vmatprep.subr.mxu0 0.0
    %772 = vmatpush2.msra.mxu0 0.0
    %773 = vmatprep.subr.mxu0 0.0
    %774 = vmatpush2.msra.mxu0 0.0
    %775 = vmatprep.subr.mxu0 0.0
    %776 = vmatpush2.msra.mxu0 0.0
    %777 = vmatprep.subr.mxu0 0.0
    %778 = vmatpush2.msra.mxu0 0.0
    %779 = vmatprep.subr.mxu0 0.0
    %780 = vmatpush2.msra.mxu0 0.0
    %781 = vmatprep.subr.mxu0 0.0
    %782 = vmatpush2.msra.mxu0 0.0
    %783 = vmatprep.subr.mxu0 0.0
    %784 = vmatpush2.msra.mxu0 0.0
    %785 = vmatprep.subr.mxu0 0.0
    %786 = vmatpush2.msra.mxu0 0.0
    %787 = vmatprep.subr.mxu0 0.0
    %788 = vmatpush2.msra.mxu0 0.0
    %789 = vmatprep.subr.mxu0 0.0
    %790 = vmatpush2.msra.mxu0 0.0
    %791 = vmatprep.subr.mxu0 0.0
    %792 = vmatpush2.msra.mxu0 0.0
    %793 = vmatprep.subr.mxu0 0.0
    %794 = vmatpush2.msra.mxu0 0.0
    %795 = vmatprep.subr.mxu0 0.0
    %796 = vmatpush2.msra.mxu0 0.0
    %797 = vmatprep.subr.mxu0 0.0
    %798 = vmatpush2.msra.mxu0 0.0
    %799 = vmatprep.subr.mxu0 0.0
    %800 = vmatpush2.msra.mxu0 0.0
    %801 = vmatprep.subr.mxu0 0.0
    %802 = vmatpush2.msra.mxu0 0.0
    %803 = vmatprep.mubr.f32.mxu0 0.0
    %804 = vmatmul.mubr.f32.gmra.mxu0 %v666
    %v805 = vpop.f32.mrf.mxu0
    %v806 = vadd.f32 0.0, %v805
    %v807 = vpop.f32.mrf.mxu0
    %v808 = vadd.f32 0.0, %v807
    %809 = vdwg.mxu0
    %810 = vmatprep.subr.mxu0 %v738
    %811 = vmatpush1.msra.mxu0 %v737
    %812 = vmatprep.subr.mxu0 %v734
    %813 = vmatpush1.msra.mxu0 %v733
    %814 = vmatprep.subr.mxu0 %v730
    %815 = vmatpush1.msra.mxu0 %v729
    %816 = vmatprep.subr.mxu0 %v726
    %817 = vmatpush1.msra.mxu0 %v725
    %818 = vmatprep.subr.mxu0 %v722
    %819 = vmatpush1.msra.mxu0 %v721
    %820 = vmatprep.subr.mxu0 %v718
    %821 = vmatpush1.msra.mxu0 %v717
    %822 = vmatprep.subr.mxu0 %v714
    %823 = vmatpush1.msra.mxu0 %v713
    %824 = vmatprep.subr.mxu0 %v710
    %825 = vmatpush1.msra.mxu0 %v709
    %826 = vmatprep.subr.mxu0 %v706
    %827 = vmatpush1.msra.mxu0 %v705
    %828 = vmatprep.subr.mxu0 %v702
    %829 = vmatpush1.msra.mxu0 %v701
    %830 = vmatprep.subr.mxu0 %v698
    %831 = vmatpush1.msra.mxu0 %v697
    %832 = vmatprep.subr.mxu0 %v694
    %833 = vmatpush1.msra.mxu0 %v693
    %834 = vmatprep.subr.mxu0 %v690
    %835 = vmatpush1.msra.mxu0 %v689
    %836 = vmatprep.subr.mxu0 %v686
    %837 = vmatpush1.msra.mxu0 %v685
    %838 = vmatprep.subr.mxu0 %v682
    %839 = vmatpush1.msra.mxu0 %v681
    %840 = vmatprep.subr.mxu0 %v678
    %841 = vmatpush1.msra.mxu0 %v677
    %842 = vmatprep.subr.mxu0 0.0
    %843 = vmatpush2.msra.mxu0 0.0
    %844 = vmatprep.subr.mxu0 0.0
    %845 = vmatpush2.msra.mxu0 0.0
    %846 = vmatprep.subr.mxu0 0.0
    %847 = vmatpush2.msra.mxu0 0.0
    %848 = vmatprep.subr.mxu0 0.0
    %849 = vmatpush2.msra.mxu0 0.0
    %850 = vmatprep.subr.mxu0 0.0
    %851 = vmatpush2.msra.mxu0 0.0
    %852 = vmatprep.subr.mxu0 0.0
    %853 = vmatpush2.msra.mxu0 0.0
    %854 = vmatprep.subr.mxu0 0.0
    %855 = vmatpush2.msra.mxu0 0.0
    %856 = vmatprep.subr.mxu0 0.0
    %857 = vmatpush2.msra.mxu0 0.0
    %858 = vmatprep.subr.mxu0 0.0
    %859 = vmatpush2.msra.mxu0 0.0
    %860 = vmatprep.subr.mxu0 0.0
    %861 = vmatpush2.msra.mxu0 0.0
    %862 = vmatprep.subr.mxu0 0.0
    %863 = vmatpush2.msra.mxu0 0.0
    %864 = vmatprep.subr.mxu0 0.0
    %865 = vmatpush2.msra.mxu0 0.0
    %866 = vmatprep.subr.mxu0 0.0
    %867 = vmatpush2.msra.mxu0 0.0
    %868 = vmatprep.subr.mxu0 0.0
    %869 = vmatpush2.msra.mxu0 0.0
    %870 = vmatprep.subr.mxu0 0.0
    %871 = vmatpush2.msra.mxu0 0.0
    %872 = vmatprep.subr.mxu0 0.0
    %873 = vmatpush2.msra.mxu0 0.0
    %874 = vmatprep.mubr.f32.mxu0 0.0
    %875 = vmatmul.mubr.f32.gmra.mxu0 %v666
    %v876 = vpop.f32.mrf.mxu0
    %v877 = vadd.f32 0.0, %v876
    %v878 = vpop.f32.mrf.mxu0
    %v879 = vadd.f32 0.0, %v878
    %880 = vdwg.mxu0
    %v881 = vadd.f32 %v671, %v806
    %v882 = vadd.f32 %v672, %v808
    %v883 = vadd.f32 %v673, %v877
    %v884 = vadd.f32 %v674, %v879
    %v885 = vxor.u32 %v881, 2147483648
    %v886 = vmul.f32 %v885, 1.442695
    %v887 = vpow.pop %v886
    %v888 = vadd.f32 %v887, 1.0
    %v889 = vrcp.pop %v888
    %v890 = vmul.f32 1.0, %v889
    %v891 = vxor.u32 %v882, 2147483648
    %v892 = vmul.f32 %v891, 1.442695
    %v893 = vpow.pop %v892
    %v894 = vadd.f32 %v893, 1.0
    %v895 = vrcp.pop %v894
    %v896 = vmul.f32 1.0, %v895
    %v897 = vtanh.pop %v883
    %v898 = vxor.u32 %v884, 2147483648
    %v899 = vmul.f32 %v898, 1.442695
    %v900 = vpow.pop %v899
    %v901 = vadd.f32 %v900, 1.0
    %v902 = vrcp.pop %v901
    %v903 = vmul.f32 1.0, %v902
    %v904 = vmul.f32 %v896, %v664
    %v905 = vmul.f32 %v890, %v897
    %v906 = vadd.f32 %v904, %v905
    %v907 = vtanh.pop %v906
    %v908 = vmul.f32 %v903, %v907
    %s909 = scalar_lea.vmem [#allocation3], 8
    %910 = vst [vmem:[%s909] sm:$0xff] %v908
    %s911 = smul.u32 2, 4
    %s912 = smul.addr %s911, 8
    %s913 = scalar_lea.vmem [#allocation2], %s912
    %v914 = vld [vmem:[%s913] sm:$0xff]
    %v915 = vld [vmem:[%s913 + $0x8] sm:$0xff]
    %v916 = vld [vmem:[%s913 + $0x10] sm:$0xff]
    %v917 = vld [vmem:[%s913 + $0x18] sm:$0xff]
    %v918 = vld [vmem:[#allocation4] sm:$0xff]
    %v919 = vld [vmem:[#allocation4 + $0x8] sm:$0xff]
    %v920 = vld [vmem:[#allocation4 + $0x10] sm:$0xff]
    %v921 = vld [vmem:[#allocation4 + $0x18] sm:$0xff]
    %v922 = vld [vmem:[#allocation4 + $0x20] sm:$0xff]
    %v923 = vld [vmem:[#allocation4 + $0x28] sm:$0xff]
    %v924 = vld [vmem:[#allocation4 + $0x30] sm:$0xff]
    %v925 = vld [vmem:[#allocation4 + $0x38] sm:$0xff]
    %v926 = vld [vmem:[#allocation4 + $0x40] sm:$0xff]
    %v927 = vld [vmem:[#allocation4 + $0x48] sm:$0xff]
    %v928 = vld [vmem:[#allocation4 + $0x50] sm:$0xff]
    %v929 = vld [vmem:[#allocation4 + $0x58] sm:$0xff]
    %v930 = vld [vmem:[#allocation4 + $0x60] sm:$0xff]
    %v931 = vld [vmem:[#allocation4 + $0x68] sm:$0xff]
    %v932 = vld [vmem:[#allocation4 + $0x70] sm:$0xff]
    %v933 = vld [vmem:[#allocation4 + $0x78] sm:$0xff]
    %v934 = vld [vmem:[#allocation4 + $0x80] sm:$0xff]
    %v935 = vld [vmem:[#allocation4 + $0x88] sm:$0xff]
    %v936 = vld [vmem:[#allocation4 + $0x90] sm:$0xff]
    %v937 = vld [vmem:[#allocation4 + $0x98] sm:$0xff]
    %v938 = vld [vmem:[#allocation4 + $0xa0] sm:$0xff]
    %v939 = vld [vmem:[#allocation4 + $0xa8] sm:$0xff]
    %v940 = vld [vmem:[#allocation4 + $0xb0] sm:$0xff]
    %v941 = vld [vmem:[#allocation4 + $0xb8] sm:$0xff]
    %v942 = vld [vmem:[#allocation4 + $0xc0] sm:$0xff]
    %v943 = vld [vmem:[#allocation4 + $0xc8] sm:$0xff]
    %v944 = vld [vmem:[#allocation4 + $0xd0] sm:$0xff]
    %v945 = vld [vmem:[#allocation4 + $0xd8] sm:$0xff]
    %v946 = vld [vmem:[#allocation4 + $0xe0] sm:$0xff]
    %v947 = vld [vmem:[#allocation4 + $0xe8] sm:$0xff]
    %v948 = vld [vmem:[#allocation4 + $0xf0] sm:$0xff]
    %v949 = vld [vmem:[#allocation4 + $0xf8] sm:$0xff]
    %v950 = vld [vmem:[#allocation4 + $0x100] sm:$0xff]
    %v951 = vld [vmem:[#allocation4 + $0x108] sm:$0xff]
    %v952 = vld [vmem:[#allocation4 + $0x110] sm:$0xff]
    %v953 = vld [vmem:[#allocation4 + $0x118] sm:$0xff]
    %v954 = vld [vmem:[#allocation4 + $0x120] sm:$0xff]
    %v955 = vld [vmem:[#allocation4 + $0x128] sm:$0xff]
    %v956 = vld [vmem:[#allocation4 + $0x130] sm:$0xff]
    %v957 = vld [vmem:[#allocation4 + $0x138] sm:$0xff]
    %v958 = vld [vmem:[#allocation4 + $0x140] sm:$0xff]
    %v959 = vld [vmem:[#allocation4 + $0x148] sm:$0xff]
    %v960 = vld [vmem:[#allocation4 + $0x150] sm:$0xff]
    %v961 = vld [vmem:[#allocation4 + $0x158] sm:$0xff]
    %v962 = vld [vmem:[#allocation4 + $0x160] sm:$0xff]
    %v963 = vld [vmem:[#allocation4 + $0x168] sm:$0xff]
    %v964 = vld [vmem:[#allocation4 + $0x170] sm:$0xff]
    %v965 = vld [vmem:[#allocation4 + $0x178] sm:$0xff]
    %v966 = vld [vmem:[#allocation4 + $0x180] sm:$0xff]
    %v967 = vld [vmem:[#allocation4 + $0x188] sm:$0xff]
    %v968 = vld [vmem:[#allocation4 + $0x190] sm:$0xff]
    %v969 = vld [vmem:[#allocation4 + $0x198] sm:$0xff]
    %v970 = vld [vmem:[#allocation4 + $0x1a0] sm:$0xff]
    %v971 = vld [vmem:[#allocation4 + $0x1a8] sm:$0xff]
    %v972 = vld [vmem:[#allocation4 + $0x1b0] sm:$0xff]
    %v973 = vld [vmem:[#allocation4 + $0x1b8] sm:$0xff]
    %v974 = vld [vmem:[#allocation4 + $0x1c0] sm:$0xff]
    %v975 = vld [vmem:[#allocation4 + $0x1c8] sm:$0xff]
    %v976 = vld [vmem:[#allocation4 + $0x1d0] sm:$0xff]
    %v977 = vld [vmem:[#allocation4 + $0x1d8] sm:$0xff]
    %v978 = vld [vmem:[#allocation4 + $0x1e0] sm:$0xff]
    %v979 = vld [vmem:[#allocation4 + $0x1e8] sm:$0xff]
    %v980 = vld [vmem:[#allocation4 + $0x1f0] sm:$0xff]
    %v981 = vld [vmem:[#allocation4 + $0x1f8] sm:$0xff]
    %982 = vmatprep.subr.mxu0 %v979
    %983 = vmatpush1.msra.mxu0 %v978
    %984 = vmatprep.subr.mxu0 %v975
    %985 = vmatpush1.msra.mxu0 %v974
    %986 = vmatprep.subr.mxu0 %v971
    %987 = vmatpush1.msra.mxu0 %v970
    %988 = vmatprep.subr.mxu0 %v967
    %989 = vmatpush1.msra.mxu0 %v966
    %990 = vmatprep.subr.mxu0 %v963
    %991 = vmatpush1.msra.mxu0 %v962
    %992 = vmatprep.subr.mxu0 %v959
    %993 = vmatpush1.msra.mxu0 %v958
    %994 = vmatprep.subr.mxu0 %v955
    %995 = vmatpush1.msra.mxu0 %v954
    %996 = vmatprep.subr.mxu0 %v951
    %997 = vmatpush1.msra.mxu0 %v950
    %998 = vmatprep.subr.mxu0 %v947
    %999 = vmatpush1.msra.mxu0 %v946
    %1000 = vmatprep.subr.mxu0 %v943
    %1001 = vmatpush1.msra.mxu0 %v942
    %1002 = vmatprep.subr.mxu0 %v939
    %1003 = vmatpush1.msra.mxu0 %v938
    %1004 = vmatprep.subr.mxu0 %v935
    %1005 = vmatpush1.msra.mxu0 %v934
    %1006 = vmatprep.subr.mxu0 %v931
    %1007 = vmatpush1.msra.mxu0 %v930
    %1008 = vmatprep.subr.mxu0 %v927
    %1009 = vmatpush1.msra.mxu0 %v926
    %1010 = vmatprep.subr.mxu0 %v923
    %1011 = vmatpush1.msra.mxu0 %v922
    %1012 = vmatprep.subr.mxu0 %v919
    %1013 = vmatpush1.msra.mxu0 %v918
    %1014 = vmatprep.subr.mxu0 0.0
    %1015 = vmatpush2.msra.mxu0 0.0
    %1016 = vmatprep.subr.mxu0 0.0
    %1017 = vmatpush2.msra.mxu0 0.0
    %1018 = vmatprep.subr.mxu0 0.0
    %1019 = vmatpush2.msra.mxu0 0.0
    %1020 = vmatprep.subr.mxu0 0.0
    %1021 = vmatpush2.msra.mxu0 0.0
    %1022 = vmatprep.subr.mxu0 0.0
    %1023 = vmatpush2.msra.mxu0 0.0
    %1024 = vmatprep.subr.mxu0 0.0
    %1025 = vmatpush2.msra.mxu0 0.0
    %1026 = vmatprep.subr.mxu0 0.0
    %1027 = vmatpush2.msra.mxu0 0.0
    %1028 = vmatprep.subr.mxu0 0.0
    %1029 = vmatpush2.msra.mxu0 0.0
    %1030 = vmatprep.subr.mxu0 0.0
    %1031 = vmatpush2.msra.mxu0 0.0
    %1032 = vmatprep.subr.mxu0 0.0
    %1033 = vmatpush2.msra.mxu0 0.0
    %1034 = vmatprep.subr.mxu0 0.0
    %1035 = vmatpush2.msra.mxu0 0.0
    %1036 = vmatprep.subr.mxu0 0.0
    %1037 = vmatpush2.msra.mxu0 0.0
    %1038 = vmatprep.subr.mxu0 0.0
    %1039 = vmatpush2.msra.mxu0 0.0
    %1040 = vmatprep.subr.mxu0 0.0
    %1041 = vmatpush2.msra.mxu0 0.0
    %1042 = vmatprep.subr.mxu0 0.0
    %1043 = vmatpush2.msra.mxu0 0.0
    %1044 = vmatprep.subr.mxu0 0.0
    %1045 = vmatpush2.msra.mxu0 0.0
    %1046 = vmatprep.mubr.f32.mxu0 0.0
    %1047 = vmatmul.mubr.f32.gmra.mxu0 %v908
    %v1048 = vpop.f32.mrf.mxu0
    %v1049 = vadd.f32 0.0, %v1048
    %v1050 = vpop.f32.mrf.mxu0
    %v1051 = vadd.f32 0.0, %v1050
    %1052 = vdwg.mxu0
    %1053 = vmatprep.subr.mxu0 %v981
    %1054 = vmatpush1.msra.mxu0 %v980
    %1055 = vmatprep.subr.mxu0 %v977
    %1056 = vmatpush1.msra.mxu0 %v976
    %1057 = vmatprep.subr.mxu0 %v973
    %1058 = vmatpush1.msra.mxu0 %v972
    %1059 = vmatprep.subr.mxu0 %v969
    %1060 = vmatpush1.msra.mxu0 %v968
    %1061 = vmatprep.subr.mxu0 %v965
    %1062 = vmatpush1.msra.mxu0 %v964
    %1063 = vmatprep.subr.mxu0 %v961
    %1064 = vmatpush1.msra.mxu0 %v960
    %1065 = vmatprep.subr.mxu0 %v957
    %1066 = vmatpush1.msra.mxu0 %v956
    %1067 = vmatprep.subr.mxu0 %v953
    %1068 = vmatpush1.msra.mxu0 %v952
    %1069 = vmatprep.subr.mxu0 %v949
    %1070 = vmatpush1.msra.mxu0 %v948
    %1071 = vmatprep.subr.mxu0 %v945
    %1072 = vmatpush1.msra.mxu0 %v944
    %1073 = vmatprep.subr.mxu0 %v941
    %1074 = vmatpush1.msra.mxu0 %v940
    %1075 = vmatprep.subr.mxu0 %v937
    %1076 = vmatpush1.msra.mxu0 %v936
    %1077 = vmatprep.subr.mxu0 %v933
    %1078 = vmatpush1.msra.mxu0 %v932
    %1079 = vmatprep.subr.mxu0 %v929
    %1080 = vmatpush1.msra.mxu0 %v928
    %1081 = vmatprep.subr.mxu0 %v925
    %1082 = vmatpush1.msra.mxu0 %v924
    %1083 = vmatprep.subr.mxu0 %v921
    %1084 = vmatpush1.msra.mxu0 %v920
    %1085 = vmatprep.subr.mxu0 0.0
    %1086 = vmatpush2.msra.mxu0 0.0
    %1087 = vmatprep.subr.mxu0 0.0
    %1088 = vmatpush2.msra.mxu0 0.0
    %1089 = vmatprep.subr.mxu0 0.0
    %1090 = vmatpush2.msra.mxu0 0.0
    %1091 = vmatprep.subr.mxu0 0.0
    %1092 = vmatpush2.msra.mxu0 0.0
    %1093 = vmatprep.subr.mxu0 0.0
    %1094 = vmatpush2.msra.mxu0 0.0
    %1095 = vmatprep.subr.mxu0 0.0
    %1096 = vmatpush2.msra.mxu0 0.0
    %1097 = vmatprep.subr.mxu0 0.0
    %1098 = vmatpush2.msra.mxu0 0.0
    %1099 = vmatprep.subr.mxu0 0.0
    %1100 = vmatpush2.msra.mxu0 0.0
    %1101 = vmatprep.subr.mxu0 0.0
    %1102 = vmatpush2.msra.mxu0 0.0
    %1103 = vmatprep.subr.mxu0 0.0
    %1104 = vmatpush2.msra.mxu0 0.0
    %1105 = vmatprep.subr.mxu0 0.0
    %1106 = vmatpush2.msra.mxu0 0.0
    %1107 = vmatprep.subr.mxu0 0.0
    %1108 = vmatpush2.msra.mxu0 0.0
    %1109 = vmatprep.subr.mxu0 0.0
    %1110 = vmatpush2.msra.mxu0 0.0
    %1111 = vmatprep.subr.mxu0 0.0
    %1112 = vmatpush2.msra.mxu0 0.0
    %1113 = vmatprep.subr.mxu0 0.0
    %1114 = vmatpush2.msra.mxu0 0.0
    %1115 = vmatprep.subr.mxu0 0.0
    %1116 = vmatpush2.msra.mxu0 0.0
    %1117 = vmatprep.mubr.f32.mxu0 0.0
    %1118 = vmatmul.mubr.f32.gmra.mxu0 %v908
    %v1119 = vpop.f32.mrf.mxu0
    %v1120 = vadd.f32 0.0, %v1119
    %v1121 = vpop.f32.mrf.mxu0
    %v1122 = vadd.f32 0.0, %v1121
    %1123 = vdwg.mxu0
    %v1124 = vadd.f32 %v914, %v1049
    %v1125 = vadd.f32 %v915, %v1051
    %v1126 = vadd.f32 %v916, %v1120
    %v1127 = vadd.f32 %v917, %v1122
    %v1128 = vxor.u32 %v1124, 2147483648
    %v1129 = vmul.f32 %v1128, 1.442695
    %v1130 = vpow.pop %v1129
    %v1131 = vadd.f32 %v1130, 1.0
    %v1132 = vrcp.pop %v1131
    %v1133 = vmul.f32 1.0, %v1132
    %v1134 = vxor.u32 %v1125, 2147483648
    %v1135 = vmul.f32 %v1134, 1.442695
    %v1136 = vpow.pop %v1135
    %v1137 = vadd.f32 %v1136, 1.0
    %v1138 = vrcp.pop %v1137
    %v1139 = vmul.f32 1.0, %v1138
    %v1140 = vtanh.pop %v1126
    %v1141 = vxor.u32 %v1127, 2147483648
    %v1142 = vmul.f32 %v1141, 1.442695
    %v1143 = vpow.pop %v1142
    %v1144 = vadd.f32 %v1143, 1.0
    %v1145 = vrcp.pop %v1144
    %v1146 = vmul.f32 1.0, %v1145
    %v1147 = vmul.f32 %v1139, %v906
    %v1148 = vmul.f32 %v1133, %v1140
    %v1149 = vadd.f32 %v1147, %v1148
    %v1150 = vtanh.pop %v1149
    %v1151 = vmul.f32 %v1146, %v1150
    %s1152 = scalar_lea.vmem [#allocation3], 16
    %1153 = vst [vmem:[%s1152] sm:$0xff] %v1151
    %s1154 = smul.u32 3, 4
    %s1155 = smul.addr %s1154, 8
    %s1156 = scalar_lea.vmem [#allocation2], %s1155
    %v1157 = vld [vmem:[%s1156] sm:$0xff]
    %v1158 = vld [vmem:[%s1156 + $0x8] sm:$0xff]
    %v1159 = vld [vmem:[%s1156 + $0x10] sm:$0xff]
    %v1160 = vld [vmem:[%s1156 + $0x18] sm:$0xff]
    %v1161 = vld [vmem:[#allocation4] sm:$0xff]
    %v1162 = vld [vmem:[#allocation4 + $0x8] sm:$0xff]
    %v1163 = vld [vmem:[#allocation4 + $0x10] sm:$0xff]
    %v1164 = vld [vmem:[#allocation4 + $0x18] sm:$0xff]
    %v1165 = vld [vmem:[#allocation4 + $0x20] sm:$0xff]
    %v1166 = vld [vmem:[#allocation4 + $0x28] sm:$0xff]
    %v1167 = vld [vmem:[#allocation4 + $0x30] sm:$0xff]
    %v1168 = vld [vmem:[#allocation4 + $0x38] sm:$0xff]
    %v1169 = vld [vmem:[#allocation4 + $0x40] sm:$0xff]
    %v1170 = vld [vmem:[#allocation4 + $0x48] sm:$0xff]
    %v1171 = vld [vmem:[#allocation4 + $0x50] sm:$0xff]
    %v1172 = vld [vmem:[#allocation4 + $0x58] sm:$0xff]
    %v1173 = vld [vmem:[#allocation4 + $0x60] sm:$0xff]
    %v1174 = vld [vmem:[#allocation4 + $0x68] sm:$0xff]
    %v1175 = vld [vmem:[#allocation4 + $0x70] sm:$0xff]
    %v1176 = vld [vmem:[#allocation4 + $0x78] sm:$0xff]
    %v1177 = vld [vmem:[#allocation4 + $0x80] sm:$0xff]
    %v1178 = vld [vmem:[#allocation4 + $0x88] sm:$0xff]
    %v1179 = vld [vmem:[#allocation4 + $0x90] sm:$0xff]
    %v1180 = vld [vmem:[#allocation4 + $0x98] sm:$0xff]
    %v1181 = vld [vmem:[#allocation4 + $0xa0] sm:$0xff]
    %v1182 = vld [vmem:[#allocation4 + $0xa8] sm:$0xff]
    %v1183 = vld [vmem:[#allocation4 + $0xb0] sm:$0xff]
    %v1184 = vld [vmem:[#allocation4 + $0xb8] sm:$0xff]
    %v1185 = vld [vmem:[#allocation4 + $0xc0] sm:$0xff]
    %v1186 = vld [vmem:[#allocation4 + $0xc8] sm:$0xff]
    %v1187 = vld [vmem:[#allocation4 + $0xd0] sm:$0xff]
    %v1188 = vld [vmem:[#allocation4 + $0xd8] sm:$0xff]
    %v1189 = vld [vmem:[#allocation4 + $0xe0] sm:$0xff]
    %v1190 = vld [vmem:[#allocation4 + $0xe8] sm:$0xff]
    %v1191 = vld [vmem:[#allocation4 + $0xf0] sm:$0xff]
    %v1192 = vld [vmem:[#allocation4 + $0xf8] sm:$0xff]
    %v1193 = vld [vmem:[#allocation4 + $0x100] sm:$0xff]
    %v1194 = vld [vmem:[#allocation4 + $0x108] sm:$0xff]
    %v1195 = vld [vmem:[#allocation4 + $0x110] sm:$0xff]
    %v1196 = vld [vmem:[#allocation4 + $0x118] sm:$0xff]
    %v1197 = vld [vmem:[#allocation4 + $0x120] sm:$0xff]
    %v1198 = vld [vmem:[#allocation4 + $0x128] sm:$0xff]
    %v1199 = vld [vmem:[#allocation4 + $0x130] sm:$0xff]
    %v1200 = vld [vmem:[#allocation4 + $0x138] sm:$0xff]
    %v1201 = vld [vmem:[#allocation4 + $0x140] sm:$0xff]
    %v1202 = vld [vmem:[#allocation4 + $0x148] sm:$0xff]
    %v1203 = vld [vmem:[#allocation4 + $0x150] sm:$0xff]
    %v1204 = vld [vmem:[#allocation4 + $0x158] sm:$0xff]
    %v1205 = vld [vmem:[#allocation4 + $0x160] sm:$0xff]
    %v1206 = vld [vmem:[#allocation4 + $0x168] sm:$0xff]
    %v1207 = vld [vmem:[#allocation4 + $0x170] sm:$0xff]
    %v1208 = vld [vmem:[#allocation4 + $0x178] sm:$0xff]
    %v1209 = vld [vmem:[#allocation4 + $0x180] sm:$0xff]
    %v1210 = vld [vmem:[#allocation4 + $0x188] sm:$0xff]
    %v1211 = vld [vmem:[#allocation4 + $0x190] sm:$0xff]
    %v1212 = vld [vmem:[#allocation4 + $0x198] sm:$0xff]
    %v1213 = vld [vmem:[#allocation4 + $0x1a0] sm:$0xff]
    %v1214 = vld [vmem:[#allocation4 + $0x1a8] sm:$0xff]
    %v1215 = vld [vmem:[#allocation4 + $0x1b0] sm:$0xff]
    %v1216 = vld [vmem:[#allocation4 + $0x1b8] sm:$0xff]
    %v1217 = vld [vmem:[#allocation4 + $0x1c0] sm:$0xff]
    %v1218 = vld [vmem:[#allocation4 + $0x1c8] sm:$0xff]
    %v1219 = vld [vmem:[#allocation4 + $0x1d0] sm:$0xff]
    %v1220 = vld [vmem:[#allocation4 + $0x1d8] sm:$0xff]
    %v1221 = vld [vmem:[#allocation4 + $0x1e0] sm:$0xff]
    %v1222 = vld [vmem:[#allocation4 + $0x1e8] sm:$0xff]
    %v1223 = vld [vmem:[#allocation4 + $0x1f0] sm:$0xff]
    %v1224 = vld [vmem:[#allocation4 + $0x1f8] sm:$0xff]
    %1225 = vmatprep.subr.mxu0 %v1222
    %1226 = vmatpush1.msra.mxu0 %v1221
    %1227 = vmatprep.subr.mxu0 %v1218
    %1228 = vmatpush1.msra.mxu0 %v1217
    %1229 = vmatprep.subr.mxu0 %v1214
    %1230 = vmatpush1.msra.mxu0 %v1213
    %1231 = vmatprep.subr.mxu0 %v1210
    %1232 = vmatpush1.msra.mxu0 %v1209
    %1233 = vmatprep.subr.mxu0 %v1206
    %1234 = vmatpush1.msra.mxu0 %v1205
    %1235 = vmatprep.subr.mxu0 %v1202
    %1236 = vmatpush1.msra.mxu0 %v1201
    %1237 = vmatprep.subr.mxu0 %v1198
    %1238 = vmatpush1.msra.mxu0 %v1197
    %1239 = vmatprep.subr.mxu0 %v1194
    %1240 = vmatpush1.msra.mxu0 %v1193
    %1241 = vmatprep.subr.mxu0 %v1190
    %1242 = vmatpush1.msra.mxu0 %v1189
    %1243 = vmatprep.subr.mxu0 %v1186
    %1244 = vmatpush1.msra.mxu0 %v1185
    %1245 = vmatprep.subr.mxu0 %v1182
    %1246 = vmatpush1.msra.mxu0 %v1181
    %1247 = vmatprep.subr.mxu0 %v1178
    %1248 = vmatpush1.msra.mxu0 %v1177
    %1249 = vmatprep.subr.mxu0 %v1174
    %1250 = vmatpush1.msra.mxu0 %v1173
    %1251 = vmatprep.subr.mxu0 %v1170
    %1252 = vmatpush1.msra.mxu0 %v1169
    %1253 = vmatprep.subr.mxu0 %v1166
    %1254 = vmatpush1.msra.mxu0 %v1165
    %1255 = vmatprep.subr.mxu0 %v1162
    %1256 = vmatpush1.msra.mxu0 %v1161
    %1257 = vmatprep.subr.mxu0 0.0
    %1258 = vmatpush2.msra.mxu0 0.0
    %1259 = vmatprep.subr.mxu0 0.0
    %1260 = vmatpush2.msra.mxu0 0.0
    %1261 = vmatprep.subr.mxu0 0.0
    %1262 = vmatpush2.msra.mxu0 0.0
    %1263 = vmatprep.subr.mxu0 0.0
    %1264 = vmatpush2.msra.mxu0 0.0
    %1265 = vmatprep.subr.mxu0 0.0
    %1266 = vmatpush2.msra.mxu0 0.0
    %1267 = vmatprep.subr.mxu0 0.0
    %1268 = vmatpush2.msra.mxu0 0.0
    %1269 = vmatprep.subr.mxu0 0.0
    %1270 = vmatpush2.msra.mxu0 0.0
    %1271 = vmatprep.subr.mxu0 0.0
    %1272 = vmatpush2.msra.mxu0 0.0
    %1273 = vmatprep.subr.mxu0 0.0
    %1274 = vmatpush2.msra.mxu0 0.0
    %1275 = vmatprep.subr.mxu0 0.0
    %1276 = vmatpush2.msra.mxu0 0.0
    %1277 = vmatprep.subr.mxu0 0.0
    %1278 = vmatpush2.msra.mxu0 0.0
    %1279 = vmatprep.subr.mxu0 0.0
    %1280 = vmatpush2.msra.mxu0 0.0
    %1281 = vmatprep.subr.mxu0 0.0
    %1282 = vmatpush2.msra.mxu0 0.0
    %1283 = vmatprep.subr.mxu0 0.0
    %1284 = vmatpush2.msra.mxu0 0.0
    %1285 = vmatprep.subr.mxu0 0.0
    %1286 = vmatpush2.msra.mxu0 0.0
    %1287 = vmatprep.subr.mxu0 0.0
    %1288 = vmatpush2.msra.mxu0 0.0
    %1289 = vmatprep.mubr.f32.mxu0 0.0
    %1290 = vmatmul.mubr.f32.gmra.mxu0 %v1151
    %v1291 = vpop.f32.mrf.mxu0
    %v1292 = vadd.f32 0.0, %v1291
    %v1293 = vpop.f32.mrf.mxu0
    %v1294 = vadd.f32 0.0, %v1293
    %1295 = vdwg.mxu0
    %1296 = vmatprep.subr.mxu0 %v1224
    %1297 = vmatpush1.msra.mxu0 %v1223
    %1298 = vmatprep.subr.mxu0 %v1220
    %1299 = vmatpush1.msra.mxu0 %v1219
    %1300 = vmatprep.subr.mxu0 %v1216
    %1301 = vmatpush1.msra.mxu0 %v1215
    %1302 = vmatprep.subr.mxu0 %v1212
    %1303 = vmatpush1.msra.mxu0 %v1211
    %1304 = vmatprep.subr.mxu0 %v1208
    %1305 = vmatpush1.msra.mxu0 %v1207
    %1306 = vmatprep.subr.mxu0 %v1204
    %1307 = vmatpush1.msra.mxu0 %v1203
    %1308 = vmatprep.subr.mxu0 %v1200
    %1309 = vmatpush1.msra.mxu0 %v1199
    %1310 = vmatprep.subr.mxu0 %v1196
    %1311 = vmatpush1.msra.mxu0 %v1195
    %1312 = vmatprep.subr.mxu0 %v1192
    %1313 = vmatpush1.msra.mxu0 %v1191
    %1314 = vmatprep.subr.mxu0 %v1188
    %1315 = vmatpush1.msra.mxu0 %v1187
    %1316 = vmatprep.subr.mxu0 %v1184
    %1317 = vmatpush1.msra.mxu0 %v1183
    %1318 = vmatprep.subr.mxu0 %v1180
    %1319 = vmatpush1.msra.mxu0 %v1179
    %1320 = vmatprep.subr.mxu0 %v1176
    %1321 = vmatpush1.msra.mxu0 %v1175
    %1322 = vmatprep.subr.mxu0 %v1172
    %1323 = vmatpush1.msra.mxu0 %v1171
    %1324 = vmatprep.subr.mxu0 %v1168
    %1325 = vmatpush1.msra.mxu0 %v1167
    %1326 = vmatprep.subr.mxu0 %v1164
    %1327 = vmatpush1.msra.mxu0 %v1163
    %1328 = vmatprep.subr.mxu0 0.0
    %1329 = vmatpush2.msra.mxu0 0.0
    %1330 = vmatprep.subr.mxu0 0.0
    %1331 = vmatpush2.msra.mxu0 0.0
    %1332 = vmatprep.subr.mxu0 0.0
    %1333 = vmatpush2.msra.mxu0 0.0
    %1334 = vmatprep.subr.mxu0 0.0
    %1335 = vmatpush2.msra.mxu0 0.0
    %1336 = vmatprep.subr.mxu0 0.0
    %1337 = vmatpush2.msra.mxu0 0.0
    %1338 = vmatprep.subr.mxu0 0.0
    %1339 = vmatpush2.msra.mxu0 0.0
    %1340 = vmatprep.subr.mxu0 0.0
    %1341 = vmatpush2.msra.mxu0 0.0
    %1342 = vmatprep.subr.mxu0 0.0
    %1343 = vmatpush2.msra.mxu0 0.0
    %1344 = vmatprep.subr.mxu0 0.0
    %1345 = vmatpush2.msra.mxu0 0.0
    %1346 = vmatprep.subr.mxu0 0.0
    %1347 = vmatpush2.msra.mxu0 0.0
    %1348 = vmatprep.subr.mxu0 0.0
    %1349 = vmatpush2.msra.mxu0 0.0
    %1350 = vmatprep.subr.mxu0 0.0
    %1351 = vmatpush2.msra.mxu0 0.0
    %1352 = vmatprep.subr.mxu0 0.0
    %1353 = vmatpush2.msra.mxu0 0.0
    %1354 = vmatprep.subr.mxu0 0.0
    %1355 = vmatpush2.msra.mxu0 0.0
    %1356 = vmatprep.subr.mxu0 0.0
    %1357 = vmatpush2.msra.mxu0 0.0
    %1358 = vmatprep.subr.mxu0 0.0
    %1359 = vmatpush2.msra.mxu0 0.0
    %1360 = vmatprep.mubr.f32.mxu0 0.0
    %1361 = vmatmul.mubr.f32.gmra.mxu0 %v1151
    %v1362 = vpop.f32.mrf.mxu0
    %v1363 = vadd.f32 0.0, %v1362
    %v1364 = vpop.f32.mrf.mxu0
    %v1365 = vadd.f32 0.0, %v1364
    %1366 = vdwg.mxu0
    %v1367 = vadd.f32 %v1157, %v1292
    %v1368 = vadd.f32 %v1158, %v1294
    %v1369 = vadd.f32 %v1159, %v1363
    %v1370 = vadd.f32 %v1160, %v1365
    %v1371 = vxor.u32 %v1367, 2147483648
    %v1372 = vmul.f32 %v1371, 1.442695
    %v1373 = vpow.pop %v1372
    %v1374 = vadd.f32 %v1373, 1.0
    %v1375 = vrcp.pop %v1374
    %v1376 = vmul.f32 1.0, %v1375
    %v1377 = vxor.u32 %v1368, 2147483648
    %v1378 = vmul.f32 %v1377, 1.442695
    %v1379 = vpow.pop %v1378
    %v1380 = vadd.f32 %v1379, 1.0
    %v1381 = vrcp.pop %v1380
    %v1382 = vmul.f32 1.0, %v1381
    %v1383 = vtanh.pop %v1369
    %v1384 = vxor.u32 %v1370, 2147483648
    %v1385 = vmul.f32 %v1384, 1.442695
    %v1386 = vpow.pop %v1385
    %v1387 = vadd.f32 %v1386, 1.0
    %v1388 = vrcp.pop %v1387
    %v1389 = vmul.f32 1.0, %v1388
    %v1390 = vmul.f32 %v1382, %v1149
    %v1391 = vmul.f32 %v1376, %v1383
    %v1392 = vadd.f32 %v1390, %v1391
    %v1393 = vtanh.pop %v1392
    %v1394 = vmul.f32 %v1389, %v1393
    %s1395 = scalar_lea.vmem [#allocation3], 24
    %1396 = vst [vmem:[%s1395] sm:$0xff] %v1394
    %s1397 = smul.u32 4, 4
    %s1398 = smul.addr %s1397, 8
    %s1399 = scalar_lea.vmem [#allocation2], %s1398
    %v1400 = vld [vmem:[%s1399] sm:$0xff]
    %v1401 = vld [vmem:[%s1399 + $0x8] sm:$0xff]
    %v1402 = vld [vmem:[%s1399 + $0x10] sm:$0xff]
    %v1403 = vld [vmem:[%s1399 + $0x18] sm:$0xff]
    %v1404 = vld [vmem:[#allocation4] sm:$0xff]
    %v1405 = vld [vmem:[#allocation4 + $0x8] sm:$0xff]
    %v1406 = vld [vmem:[#allocation4 + $0x10] sm:$0xff]
    %v1407 = vld [vmem:[#allocation4 + $0x18] sm:$0xff]
    %v1408 = vld [vmem:[#allocation4 + $0x20] sm:$0xff]
    %v1409 = vld [vmem:[#allocation4 + $0x28] sm:$0xff]
    %v1410 = vld [vmem:[#allocation4 + $0x30] sm:$0xff]
    %v1411 = vld [vmem:[#allocation4 + $0x38] sm:$0xff]
    %v1412 = vld [vmem:[#allocation4 + $0x40] sm:$0xff]
    %v1413 = vld [vmem:[#allocation4 + $0x48] sm:$0xff]
    %v1414 = vld [vmem:[#allocation4 + $0x50] sm:$0xff]
    %v1415 = vld [vmem:[#allocation4 + $0x58] sm:$0xff]
    %v1416 = vld [vmem:[#allocation4 + $0x60] sm:$0xff]
    %v1417 = vld [vmem:[#allocation4 + $0x68] sm:$0xff]
    %v1418 = vld [vmem:[#allocation4 + $0x70] sm:$0xff]
    %v1419 = vld [vmem:[#allocation4 + $0x78] sm:$0xff]
    %v1420 = vld [vmem:[#allocation4 + $0x80] sm:$0xff]
    %v1421 = vld [vmem:[#allocation4 + $0x88] sm:$0xff]
    %v1422 = vld [vmem:[#allocation4 + $0x90] sm:$0xff]
    %v1423 = vld [vmem:[#allocation4 + $0x98] sm:$0xff]
    %v1424 = vld [vmem:[#allocation4 + $0xa0] sm:$0xff]
    %v1425 = vld [vmem:[#allocation4 + $0xa8] sm:$0xff]
    %v1426 = vld [vmem:[#allocation4 + $0xb0] sm:$0xff]
    %v1427 = vld [vmem:[#allocation4 + $0xb8] sm:$0xff]
    %v1428 = vld [vmem:[#allocation4 + $0xc0] sm:$0xff]
    %v1429 = vld [vmem:[#allocation4 + $0xc8] sm:$0xff]
    %v1430 = vld [vmem:[#allocation4 + $0xd0] sm:$0xff]
    %v1431 = vld [vmem:[#allocation4 + $0xd8] sm:$0xff]
    %v1432 = vld [vmem:[#allocation4 + $0xe0] sm:$0xff]
    %v1433 = vld [vmem:[#allocation4 + $0xe8] sm:$0xff]
    %v1434 = vld [vmem:[#allocation4 + $0xf0] sm:$0xff]
    %v1435 = vld [vmem:[#allocation4 + $0xf8] sm:$0xff]
    %v1436 = vld [vmem:[#allocation4 + $0x100] sm:$0xff]
    %v1437 = vld [vmem:[#allocation4 + $0x108] sm:$0xff]
    %v1438 = vld [vmem:[#allocation4 + $0x110] sm:$0xff]
    %v1439 = vld [vmem:[#allocation4 + $0x118] sm:$0xff]
    %v1440 = vld [vmem:[#allocation4 + $0x120] sm:$0xff]
    %v1441 = vld [vmem:[#allocation4 + $0x128] sm:$0xff]
    %v1442 = vld [vmem:[#allocation4 + $0x130] sm:$0xff]
    %v1443 = vld [vmem:[#allocation4 + $0x138] sm:$0xff]
    %v1444 = vld [vmem:[#allocation4 + $0x140] sm:$0xff]
    %v1445 = vld [vmem:[#allocation4 + $0x148] sm:$0xff]
    %v1446 = vld [vmem:[#allocation4 + $0x150] sm:$0xff]
    %v1447 = vld [vmem:[#allocation4 + $0x158] sm:$0xff]
    %v1448 = vld [vmem:[#allocation4 + $0x160] sm:$0xff]
    %v1449 = vld [vmem:[#allocation4 + $0x168] sm:$0xff]
    %v1450 = vld [vmem:[#allocation4 + $0x170] sm:$0xff]
    %v1451 = vld [vmem:[#allocation4 + $0x178] sm:$0xff]
    %v1452 = vld [vmem:[#allocation4 + $0x180] sm:$0xff]
    %v1453 = vld [vmem:[#allocation4 + $0x188] sm:$0xff]
    %v1454 = vld [vmem:[#allocation4 + $0x190] sm:$0xff]
    %v1455 = vld [vmem:[#allocation4 + $0x198] sm:$0xff]
    %v1456 = vld [vmem:[#allocation4 + $0x1a0] sm:$0xff]
    %v1457 = vld [vmem:[#allocation4 + $0x1a8] sm:$0xff]
    %v1458 = vld [vmem:[#allocation4 + $0x1b0] sm:$0xff]
    %v1459 = vld [vmem:[#allocation4 + $0x1b8] sm:$0xff]
    %v1460 = vld [vmem:[#allocation4 + $0x1c0] sm:$0xff]
    %v1461 = vld [vmem:[#allocation4 + $0x1c8] sm:$0xff]
    %v1462 = vld [vmem:[#allocation4 + $0x1d0] sm:$0xff]
    %v1463 = vld [vmem:[#allocation4 + $0x1d8] sm:$0xff]
    %v1464 = vld [vmem:[#allocation4 + $0x1e0] sm:$0xff]
    %v1465 = vld [vmem:[#allocation4 + $0x1e8] sm:$0xff]
    %v1466 = vld [vmem:[#allocation4 + $0x1f0] sm:$0xff]
    %v1467 = vld [vmem:[#allocation4 + $0x1f8] sm:$0xff]
    %1468 = vmatprep.subr.mxu0 %v1465
    %1469 = vmatpush1.msra.mxu0 %v1464
    %1470 = vmatprep.subr.mxu0 %v1461
    %1471 = vmatpush1.msra.mxu0 %v1460
    %1472 = vmatprep.subr.mxu0 %v1457
    %1473 = vmatpush1.msra.mxu0 %v1456
    %1474 = vmatprep.subr.mxu0 %v1453
    %1475 = vmatpush1.msra.mxu0 %v1452
    %1476 = vmatprep.subr.mxu0 %v1449
    %1477 = vmatpush1.msra.mxu0 %v1448
    %1478 = vmatprep.subr.mxu0 %v1445
    %1479 = vmatpush1.msra.mxu0 %v1444
    %1480 = vmatprep.subr.mxu0 %v1441
    %1481 = vmatpush1.msra.mxu0 %v1440
    %1482 = vmatprep.subr.mxu0 %v1437
    %1483 = vmatpush1.msra.mxu0 %v1436
    %1484 = vmatprep.subr.mxu0 %v1433
    %1485 = vmatpush1.msra.mxu0 %v1432
    %1486 = vmatprep.subr.mxu0 %v1429
    %1487 = vmatpush1.msra.mxu0 %v1428
    %1488 = vmatprep.subr.mxu0 %v1425
    %1489 = vmatpush1.msra.mxu0 %v1424
    %1490 = vmatprep.subr.mxu0 %v1421
    %1491 = vmatpush1.msra.mxu0 %v1420
    %1492 = vmatprep.subr.mxu0 %v1417
    %1493 = vmatpush1.msra.mxu0 %v1416
    %1494 = vmatprep.subr.mxu0 %v1413
    %1495 = vmatpush1.msra.mxu0 %v1412
    %1496 = vmatprep.subr.mxu0 %v1409
    %1497 = vmatpush1.msra.mxu0 %v1408
    %1498 = vmatprep.subr.mxu0 %v1405
    %1499 = vmatpush1.msra.mxu0 %v1404
    %1500 = vmatprep.subr.mxu0 0.0
    %1501 = vmatpush2.msra.mxu0 0.0
    %1502 = vmatprep.subr.mxu0 0.0
    %1503 = vmatpush2.msra.mxu0 0.0
    %1504 = vmatprep.subr.mxu0 0.0
    %1505 = vmatpush2.msra.mxu0 0.0
    %1506 = vmatprep.subr.mxu0 0.0
    %1507 = vmatpush2.msra.mxu0 0.0
    %1508 = vmatprep.subr.mxu0 0.0
    %1509 = vmatpush2.msra.mxu0 0.0
    %1510 = vmatprep.subr.mxu0 0.0
    %1511 = vmatpush2.msra.mxu0 0.0
    %1512 = vmatprep.subr.mxu0 0.0
    %1513 = vmatpush2.msra.mxu0 0.0
    %1514 = vmatprep.subr.mxu0 0.0
    %1515 = vmatpush2.msra.mxu0 0.0
    %1516 = vmatprep.subr.mxu0 0.0
    %1517 = vmatpush2.msra.mxu0 0.0
    %1518 = vmatprep.subr.mxu0 0.0
    %1519 = vmatpush2.msra.mxu0 0.0
    %1520 = vmatprep.subr.mxu0 0.0
    %1521 = vmatpush2.msra.mxu0 0.0
    %1522 = vmatprep.subr.mxu0 0.0
    %1523 = vmatpush2.msra.mxu0 0.0
    %1524 = vmatprep.subr.mxu0 0.0
    %1525 = vmatpush2.msra.mxu0 0.0
    %1526 = vmatprep.subr.mxu0 0.0
    %1527 = vmatpush2.msra.mxu0 0.0
    %1528 = vmatprep.subr.mxu0 0.0
    %1529 = vmatpush2.msra.mxu0 0.0
    %1530 = vmatprep.subr.mxu0 0.0
    %1531 = vmatpush2.msra.mxu0 0.0
    %1532 = vmatprep.mubr.f32.mxu0 0.0
    %1533 = vmatmul.mubr.f32.gmra.mxu0 %v1394
    %v1534 = vpop.f32.mrf.mxu0
    %v1535 = vadd.f32 0.0, %v1534
    %v1536 = vpop.f32.mrf.mxu0
    %v1537 = vadd.f32 0.0, %v1536
    %1538 = vdwg.mxu0
    %1539 = vmatprep.subr.mxu0 %v1467
    %1540 = vmatpush1.msra.mxu0 %v1466
    %1541 = vmatprep.subr.mxu0 %v1463
    %1542 = vmatpush1.msra.mxu0 %v1462
    %1543 = vmatprep.subr.mxu0 %v1459
    %1544 = vmatpush1.msra.mxu0 %v1458
    %1545 = vmatprep.subr.mxu0 %v1455
    %1546 = vmatpush1.msra.mxu0 %v1454
    %1547 = vmatprep.subr.mxu0 %v1451
    %1548 = vmatpush1.msra.mxu0 %v1450
    %1549 = vmatprep.subr.mxu0 %v1447
    %1550 = vmatpush1.msra.mxu0 %v1446
    %1551 = vmatprep.subr.mxu0 %v1443
    %1552 = vmatpush1.msra.mxu0 %v1442
    %1553 = vmatprep.subr.mxu0 %v1439
    %1554 = vmatpush1.msra.mxu0 %v1438
    %1555 = vmatprep.subr.mxu0 %v1435
    %1556 = vmatpush1.msra.mxu0 %v1434
    %1557 = vmatprep.subr.mxu0 %v1431
    %1558 = vmatpush1.msra.mxu0 %v1430
    %1559 = vmatprep.subr.mxu0 %v1427
    %1560 = vmatpush1.msra.mxu0 %v1426
    %1561 = vmatprep.subr.mxu0 %v1423
    %1562 = vmatpush1.msra.mxu0 %v1422
    %1563 = vmatprep.subr.mxu0 %v1419
    %1564 = vmatpush1.msra.mxu0 %v1418
    %1565 = vmatprep.subr.mxu0 %v1415
    %1566 = vmatpush1.msra.mxu0 %v1414
    %1567 = vmatprep.subr.mxu0 %v1411
    %1568 = vmatpush1.msra.mxu0 %v1410
    %1569 = vmatprep.subr.mxu0 %v1407
    %1570 = vmatpush1.msra.mxu0 %v1406
    %1571 = vmatprep.subr.mxu0 0.0
    %1572 = vmatpush2.msra.mxu0 0.0
    %1573 = vmatprep.subr.mxu0 0.0
    %1574 = vmatpush2.msra.mxu0 0.0
    %1575 = vmatprep.subr.mxu0 0.0
    %1576 = vmatpush2.msra.mxu0 0.0
    %1577 = vmatprep.subr.mxu0 0.0
    %1578 = vmatpush2.msra.mxu0 0.0
    %1579 = vmatprep.subr.mxu0 0.0
    %1580 = vmatpush2.msra.mxu0 0.0
    %1581 = vmatprep.subr.mxu0 0.0
    %1582 = vmatpush2.msra.mxu0 0.0
    %1583 = vmatprep.subr.mxu0 0.0
    %1584 = vmatpush2.msra.mxu0 0.0
    %1585 = vmatprep.subr.mxu0 0.0
    %1586 = vmatpush2.msra.mxu0 0.0
    %1587 = vmatprep.subr.mxu0 0.0
    %1588 = vmatpush2.msra.mxu0 0.0
    %1589 = vmatprep.subr.mxu0 0.0
    %1590 = vmatpush2.msra.mxu0 0.0
    %1591 = vmatprep.subr.mxu0 0.0
    %1592 = vmatpush2.msra.mxu0 0.0
    %1593 = vmatprep.subr.mxu0 0.0
    %1594 = vmatpush2.msra.mxu0 0.0
    %1595 = vmatprep.subr.mxu0 0.0
    %1596 = vmatpush2.msra.mxu0 0.0
    %1597 = vmatprep.subr.mxu0 0.0
    %1598 = vmatpush2.msra.mxu0 0.0
    %1599 = vmatprep.subr.mxu0 0.0
    %1600 = vmatpush2.msra.mxu0 0.0
    %1601 = vmatprep.subr.mxu0 0.0
    %1602 = vmatpush2.msra.mxu0 0.0
    %1603 = vmatprep.mubr.f32.mxu0 0.0
    %1604 = vmatmul.mubr.f32.gmra.mxu0 %v1394
    %v1605 = vpop.f32.mrf.mxu0
    %v1606 = vadd.f32 0.0, %v1605
    %v1607 = vpop.f32.mrf.mxu0
    %v1608 = vadd.f32 0.0, %v1607
    %1609 = vdwg.mxu0
    %v1610 = vadd.f32 %v1400, %v1535
    %v1611 = vadd.f32 %v1401, %v1537
    %v1612 = vadd.f32 %v1402, %v1606
    %v1613 = vadd.f32 %v1403, %v1608
    %v1614 = vxor.u32 %v1610, 2147483648
    %v1615 = vmul.f32 %v1614, 1.442695
    %v1616 = vpow.pop %v1615
    %v1617 = vadd.f32 %v1616, 1.0
    %v1618 = vrcp.pop %v1617
    %v1619 = vmul.f32 1.0, %v1618
    %v1620 = vxor.u32 %v1611, 2147483648
    %v1621 = vmul.f32 %v1620, 1.442695
    %v1622 = vpow.pop %v1621
    %v1623 = vadd.f32 %v1622, 1.0
    %v1624 = vrcp.pop %v1623
    %v1625 = vmul.f32 1.0, %v1624
    %v1626 = vtanh.pop %v1612
    %v1627 = vxor.u32 %v1613, 2147483648
    %v1628 = vmul.f32 %v1627, 1.442695
    %v1629 = vpow.pop %v1628
    %v1630 = vadd.f32 %v1629, 1.0
    %v1631 = vrcp.pop %v1630
    %v1632 = vmul.f32 1.0, %v1631
    %v1633 = vmul.f32 %v1625, %v1392
    %v1634 = vmul.f32 %v1619, %v1626
    %v1635 = vadd.f32 %v1633, %v1634
    %v1636 = vtanh.pop %v1635
    %v1637 = vmul.f32 %v1632, %v1636
    %s1638 = scalar_lea.vmem [#allocation3], 32
    %1639 = vst [vmem:[%s1638] sm:$0xff] %v1637
    %s1640 = smul.u32 5, 4
    %s1641 = smul.addr %s1640, 8
    %s1642 = scalar_lea.vmem [#allocation2], %s1641
    %v1643 = vld [vmem:[%s1642] sm:$0xff]
    %v1644 = vld [vmem:[%s1642 + $0x8] sm:$0xff]
    %v1645 = vld [vmem:[%s1642 + $0x10] sm:$0xff]
    %v1646 = vld [vmem:[%s1642 + $0x18] sm:$0xff]
    %v1647 = vld [vmem:[#allocation4] sm:$0xff]
    %v1648 = vld [vmem:[#allocation4 + $0x8] sm:$0xff]
    %v1649 = vld [vmem:[#allocation4 + $0x10] sm:$0xff]
    %v1650 = vld [vmem:[#allocation4 + $0x18] sm:$0xff]
    %v1651 = vld [vmem:[#allocation4 + $0x20] sm:$0xff]
    %v1652 = vld [vmem:[#allocation4 + $0x28] sm:$0xff]
    %v1653 = vld [vmem:[#allocation4 + $0x30] sm:$0xff]
    %v1654 = vld [vmem:[#allocation4 + $0x38] sm:$0xff]
    %v1655 = vld [vmem:[#allocation4 + $0x40] sm:$0xff]
    %v1656 = vld [vmem:[#allocation4 + $0x48] sm:$0xff]
    %v1657 = vld [vmem:[#allocation4 + $0x50] sm:$0xff]
    %v1658 = vld [vmem:[#allocation4 + $0x58] sm:$0xff]
    %v1659 = vld [vmem:[#allocation4 + $0x60] sm:$0xff]
    %v1660 = vld [vmem:[#allocation4 + $0x68] sm:$0xff]
    %v1661 = vld [vmem:[#allocation4 + $0x70] sm:$0xff]
    %v1662 = vld [vmem:[#allocation4 + $0x78] sm:$0xff]
    %v1663 = vld [vmem:[#allocation4 + $0x80] sm:$0xff]
    %v1664 = vld [vmem:[#allocation4 + $0x88] sm:$0xff]
    %v1665 = vld [vmem:[#allocation4 + $0x90] sm:$0xff]
    %v1666 = vld [vmem:[#allocation4 + $0x98] sm:$0xff]
    %v1667 = vld [vmem:[#allocation4 + $0xa0] sm:$0xff]
    %v1668 = vld [vmem:[#allocation4 + $0xa8] sm:$0xff]
    %v1669 = vld [vmem:[#allocation4 + $0xb0] sm:$0xff]
    %v1670 = vld [vmem:[#allocation4 + $0xb8] sm:$0xff]
    %v1671 = vld [vmem:[#allocation4 + $0xc0] sm:$0xff]
    %v1672 = vld [vmem:[#allocation4 + $0xc8] sm:$0xff]
    %v1673 = vld [vmem:[#allocation4 + $0xd0] sm:$0xff]
    %v1674 = vld [vmem:[#allocation4 + $0xd8] sm:$0xff]
    %v1675 = vld [vmem:[#allocation4 + $0xe0] sm:$0xff]
    %v1676 = vld [vmem:[#allocation4 + $0xe8] sm:$0xff]
    %v1677 = vld [vmem:[#allocation4 + $0xf0] sm:$0xff]
    %v1678 = vld [vmem:[#allocation4 + $0xf8] sm:$0xff]
    %v1679 = vld [vmem:[#allocation4 + $0x100] sm:$0xff]
    %v1680 = vld [vmem:[#allocation4 + $0x108] sm:$0xff]
    %v1681 = vld [vmem:[#allocation4 + $0x110] sm:$0xff]
    %v1682 = vld [vmem:[#allocation4 + $0x118] sm:$0xff]
    %v1683 = vld [vmem:[#allocation4 + $0x120] sm:$0xff]
    %v1684 = vld [vmem:[#allocation4 + $0x128] sm:$0xff]
    %v1685 = vld [vmem:[#allocation4 + $0x130] sm:$0xff]
    %v1686 = vld [vmem:[#allocation4 + $0x138] sm:$0xff]
    %v1687 = vld [vmem:[#allocation4 + $0x140] sm:$0xff]
    %v1688 = vld [vmem:[#allocation4 + $0x148] sm:$0xff]
    %v1689 = vld [vmem:[#allocation4 + $0x150] sm:$0xff]
    %v1690 = vld [vmem:[#allocation4 + $0x158] sm:$0xff]
    %v1691 = vld [vmem:[#allocation4 + $0x160] sm:$0xff]
    %v1692 = vld [vmem:[#allocation4 + $0x168] sm:$0xff]
    %v1693 = vld [vmem:[#allocation4 + $0x170] sm:$0xff]
    %v1694 = vld [vmem:[#allocation4 + $0x178] sm:$0xff]
    %v1695 = vld [vmem:[#allocation4 + $0x180] sm:$0xff]
    %v1696 = vld [vmem:[#allocation4 + $0x188] sm:$0xff]
    %v1697 = vld [vmem:[#allocation4 + $0x190] sm:$0xff]
    %v1698 = vld [vmem:[#allocation4 + $0x198] sm:$0xff]
    %v1699 = vld [vmem:[#allocation4 + $0x1a0] sm:$0xff]
    %v1700 = vld [vmem:[#allocation4 + $0x1a8] sm:$0xff]
    %v1701 = vld [vmem:[#allocation4 + $0x1b0] sm:$0xff]
    %v1702 = vld [vmem:[#allocation4 + $0x1b8] sm:$0xff]
    %v1703 = vld [vmem:[#allocation4 + $0x1c0] sm:$0xff]
    %v1704 = vld [vmem:[#allocation4 + $0x1c8] sm:$0xff]
    %v1705 = vld [vmem:[#allocation4 + $0x1d0] sm:$0xff]
    %v1706 = vld [vmem:[#allocation4 + $0x1d8] sm:$0xff]
    %v1707 = vld [vmem:[#allocation4 + $0x1e0] sm:$0xff]
    %v1708 = vld [vmem:[#allocation4 + $0x1e8] sm:$0xff]
    %v1709 = vld [vmem:[#allocation4 + $0x1f0] sm:$0xff]
    %v1710 = vld [vmem:[#allocation4 + $0x1f8] sm:$0xff]
    %1711 = vmatprep.subr.mxu0 %v1708
    %1712 = vmatpush1.msra.mxu0 %v1707
    %1713 = vmatprep.subr.mxu0 %v1704
    %1714 = vmatpush1.msra.mxu0 %v1703
    %1715 = vmatprep.subr.mxu0 %v1700
    %1716 = vmatpush1.msra.mxu0 %v1699
    %1717 = vmatprep.subr.mxu0 %v1696
    %1718 = vmatpush1.msra.mxu0 %v1695
    %1719 = vmatprep.subr.mxu0 %v1692
    %1720 = vmatpush1.msra.mxu0 %v1691
    %1721 = vmatprep.subr.mxu0 %v1688
    %1722 = vmatpush1.msra.mxu0 %v1687
    %1723 = vmatprep.subr.mxu0 %v1684
    %1724 = vmatpush1.msra.mxu0 %v1683
    %1725 = vmatprep.subr.mxu0 %v1680
    %1726 = vmatpush1.msra.mxu0 %v1679
    %1727 = vmatprep.subr.mxu0 %v1676
    %1728 = vmatpush1.msra.mxu0 %v1675
    %1729 = vmatprep.subr.mxu0 %v1672
    %1730 = vmatpush1.msra.mxu0 %v1671
    %1731 = vmatprep.subr.mxu0 %v1668
    %1732 = vmatpush1.msra.mxu0 %v1667
    %1733 = vmatprep.subr.mxu0 %v1664
    %1734 = vmatpush1.msra.mxu0 %v1663
    %1735 = vmatprep.subr.mxu0 %v1660
    %1736 = vmatpush1.msra.mxu0 %v1659
    %1737 = vmatprep.subr.mxu0 %v1656
    %1738 = vmatpush1.msra.mxu0 %v1655
    %1739 = vmatprep.subr.mxu0 %v1652
    %1740 = vmatpush1.msra.mxu0 %v1651
    %1741 = vmatprep.subr.mxu0 %v1648
    %1742 = vmatpush1.msra.mxu0 %v1647
    %1743 = vmatprep.subr.mxu0 0.0
    %1744 = vmatpush2.msra.mxu0 0.0
    %1745 = vmatprep.subr.mxu0 0.0
    %1746 = vmatpush2.msra.mxu0 0.0
    %1747 = vmatprep.subr.mxu0 0.0
    %1748 = vmatpush2.msra.mxu0 0.0
    %1749 = vmatprep.subr.mxu0 0.0
    %1750 = vmatpush2.msra.mxu0 0.0
    %1751 = vmatprep.subr.mxu0 0.0
    %1752 = vmatpush2.msra.mxu0 0.0
    %1753 = vmatprep.subr.mxu0 0.0
    %1754 = vmatpush2.msra.mxu0 0.0
    %1755 = vmatprep.subr.mxu0 0.0
    %1756 = vmatpush2.msra.mxu0 0.0
    %1757 = vmatprep.subr.mxu0 0.0
    %1758 = vmatpush2.msra.mxu0 0.0
    %1759 = vmatprep.subr.mxu0 0.0
    %1760 = vmatpush2.msra.mxu0 0.0
    %1761 = vmatprep.subr.mxu0 0.0
    %1762 = vmatpush2.msra.mxu0 0.0
    %1763 = vmatprep.subr.mxu0 0.0
    %1764 = vmatpush2.msra.mxu0 0.0
    %1765 = vmatprep.subr.mxu0 0.0
    %1766 = vmatpush2.msra.mxu0 0.0
    %1767 = vmatprep.subr.mxu0 0.0
    %1768 = vmatpush2.msra.mxu0 0.0
    %1769 = vmatprep.subr.mxu0 0.0
    %1770 = vmatpush2.msra.mxu0 0.0
    %1771 = vmatprep.subr.mxu0 0.0
    %1772 = vmatpush2.msra.mxu0 0.0
    %1773 = vmatprep.subr.mxu0 0.0
    %1774 = vmatpush2.msra.mxu0 0.0
    %1775 = vmatprep.mubr.f32.mxu0 0.0
    %1776 = vmatmul.mubr.f32.gmra.mxu0 %v1637
    %v1777 = vpop.f32.mrf.mxu0
    %v1778 = vadd.f32 0.0, %v1777
    %v1779 = vpop.f32.mrf.mxu0
    %v1780 = vadd.f32 0.0, %v1779
    %1781 = vdwg.mxu0
    %1782 = vmatprep.subr.mxu0 %v1710
    %1783 = vmatpush1.msra.mxu0 %v1709
    %1784 = vmatprep.subr.mxu0 %v1706
    %1785 = vmatpush1.msra.mxu0 %v1705
    %1786 = vmatprep.subr.mxu0 %v1702
    %1787 = vmatpush1.msra.mxu0 %v1701
    %1788 = vmatprep.subr.mxu0 %v1698
    %1789 = vmatpush1.msra.mxu0 %v1697
    %1790 = vmatprep.subr.mxu0 %v1694
    %1791 = vmatpush1.msra.mxu0 %v1693
    %1792 = vmatprep.subr.mxu0 %v1690
    %1793 = vmatpush1.msra.mxu0 %v1689
    %1794 = vmatprep.subr.mxu0 %v1686
    %1795 = vmatpush1.msra.mxu0 %v1685
    %1796 = vmatprep.subr.mxu0 %v1682
    %1797 = vmatpush1.msra.mxu0 %v1681
    %1798 = vmatprep.subr.mxu0 %v1678
    %1799 = vmatpush1.msra.mxu0 %v1677
    %1800 = vmatprep.subr.mxu0 %v1674
    %1801 = vmatpush1.msra.mxu0 %v1673
    %1802 = vmatprep.subr.mxu0 %v1670
    %1803 = vmatpush1.msra.mxu0 %v1669
    %1804 = vmatprep.subr.mxu0 %v1666
    %1805 = vmatpush1.msra.mxu0 %v1665
    %1806 = vmatprep.subr.mxu0 %v1662
    %1807 = vmatpush1.msra.mxu0 %v1661
    %1808 = vmatprep.subr.mxu0 %v1658
    %1809 = vmatpush1.msra.mxu0 %v1657
    %1810 = vmatprep.subr.mxu0 %v1654
    %1811 = vmatpush1.msra.mxu0 %v1653
    %1812 = vmatprep.subr.mxu0 %v1650
    %1813 = vmatpush1.msra.mxu0 %v1649
    %1814 = vmatprep.subr.mxu0 0.0
    %1815 = vmatpush2.msra.mxu0 0.0
    %1816 = vmatprep.subr.mxu0 0.0
    %1817 = vmatpush2.msra.mxu0 0.0
    %1818 = vmatprep.subr.mxu0 0.0
    %1819 = vmatpush2.msra.mxu0 0.0
    %1820 = vmatprep.subr.mxu0 0.0
    %1821 = vmatpush2.msra.mxu0 0.0
    %1822 = vmatprep.subr.mxu0 0.0
    %1823 = vmatpush2.msra.mxu0 0.0
    %1824 = vmatprep.subr.mxu0 0.0
    %1825 = vmatpush2.msra.mxu0 0.0
    %1826 = vmatprep.subr.mxu0 0.0
    %1827 = vmatpush2.msra.mxu0 0.0
    %1828 = vmatprep.subr.mxu0 0.0
    %1829 = vmatpush2.msra.mxu0 0.0
    %1830 = vmatprep.subr.mxu0 0.0
    %1831 = vmatpush2.msra.mxu0 0.0
    %1832 = vmatprep.subr.mxu0 0.0
    %1833 = vmatpush2.msra.mxu0 0.0
    %1834 = vmatprep.subr.mxu0 0.0
    %1835 = vmatpush2.msra.mxu0 0.0
    %1836 = vmatprep.subr.mxu0 0.0
    %1837 = vmatpush2.msra.mxu0 0.0
    %1838 = vmatprep.subr.mxu0 0.0
    %1839 = vmatpush2.msra.mxu0 0.0
    %1840 = vmatprep.subr.mxu0 0.0
    %1841 = vmatpush2.msra.mxu0 0.0
    %1842 = vmatprep.subr.mxu0 0.0
    %1843 = vmatpush2.msra.mxu0 0.0
    %1844 = vmatprep.subr.mxu0 0.0
    %1845 = vmatpush2.msra.mxu0 0.0
    %1846 = vmatprep.mubr.f32.mxu0 0.0
    %1847 = vmatmul.mubr.f32.gmra.mxu0 %v1637
    %v1848 = vpop.f32.mrf.mxu0
    %v1849 = vadd.f32 0.0, %v1848
    %v1850 = vpop.f32.mrf.mxu0
    %v1851 = vadd.f32 0.0, %v1850
    %1852 = vdwg.mxu0
    %v1853 = vadd.f32 %v1643, %v1778
    %v1854 = vadd.f32 %v1644, %v1780
    %v1855 = vadd.f32 %v1645, %v1849
    %v1856 = vadd.f32 %v1646, %v1851
    %v1857 = vxor.u32 %v1853, 2147483648
    %v1858 = vmul.f32 %v1857, 1.442695
    %v1859 = vpow.pop %v1858
    %v1860 = vadd.f32 %v1859, 1.0
    %v1861 = vrcp.pop %v1860
    %v1862 = vmul.f32 1.0, %v1861
    %v1863 = vxor.u32 %v1854, 2147483648
    %v1864 = vmul.f32 %v1863, 1.442695
    %v1865 = vpow.pop %v1864
    %v1866 = vadd.f32 %v1865, 1.0
    %v1867 = vrcp.pop %v1866
    %v1868 = vmul.f32 1.0, %v1867
    %v1869 = vtanh.pop %v1855
    %v1870 = vxor.u32 %v1856, 2147483648
    %v1871 = vmul.f32 %v1870, 1.442695
    %v1872 = vpow.pop %v1871
    %v1873 = vadd.f32 %v1872, 1.0
    %v1874 = vrcp.pop %v1873
    %v1875 = vmul.f32 1.0, %v1874
    %v1876 = vmul.f32 %v1868, %v1635
    %v1877 = vmul.f32 %v1862, %v1869
    %v1878 = vadd.f32 %v1876, %v1877
    %v1879 = vtanh.pop %v1878
    %v1880 = vmul.f32 %v1875, %v1879
    %s1881 = scalar_lea.vmem [#allocation3], 40
    %1882 = vst [vmem:[%s1881] sm:$0xff] %v1880
    %s1883 = smul.u32 6, 4
    %s1884 = smul.addr %s1883, 8
    %s1885 = scalar_lea.vmem [#allocation2], %s1884
    %v1886 = vld [vmem:[%s1885] sm:$0xff]
    %v1887 = vld [vmem:[%s1885 + $0x8] sm:$0xff]
    %v1888 = vld [vmem:[%s1885 + $0x10] sm:$0xff]
    %v1889 = vld [vmem:[%s1885 + $0x18] sm:$0xff]
    %v1890 = vld [vmem:[#allocation4] sm:$0xff]
    %v1891 = vld [vmem:[#allocation4 + $0x8] sm:$0xff]
    %v1892 = vld [vmem:[#allocation4 + $0x10] sm:$0xff]
    %v1893 = vld [vmem:[#allocation4 + $0x18] sm:$0xff]
    %v1894 = vld [vmem:[#allocation4 + $0x20] sm:$0xff]
    %v1895 = vld [vmem:[#allocation4 + $0x28] sm:$0xff]
    %v1896 = vld [vmem:[#allocation4 + $0x30] sm:$0xff]
    %v1897 = vld [vmem:[#allocation4 + $0x38] sm:$0xff]
    %v1898 = vld [vmem:[#allocation4 + $0x40] sm:$0xff]
    %v1899 = vld [vmem:[#allocation4 + $0x48] sm:$0xff]
    %v1900 = vld [vmem:[#allocation4 + $0x50] sm:$0xff]
    %v1901 = vld [vmem:[#allocation4 + $0x58] sm:$0xff]
    %v1902 = vld [vmem:[#allocation4 + $0x60] sm:$0xff]
    %v1903 = vld [vmem:[#allocation4 + $0x68] sm:$0xff]
    %v1904 = vld [vmem:[#allocation4 + $0x70] sm:$0xff]
    %v1905 = vld [vmem:[#allocation4 + $0x78] sm:$0xff]
    %v1906 = vld [vmem:[#allocation4 + $0x80] sm:$0xff]
    %v1907 = vld [vmem:[#allocation4 + $0x88] sm:$0xff]
    %v1908 = vld [vmem:[#allocation4 + $0x90] sm:$0xff]
    %v1909 = vld [vmem:[#allocation4 + $0x98] sm:$0xff]
    %v1910 = vld [vmem:[#allocation4 + $0xa0] sm:$0xff]
    %v1911 = vld [vmem:[#allocation4 + $0xa8] sm:$0xff]
    %v1912 = vld [vmem:[#allocation4 + $0xb0] sm:$0xff]
    %v1913 = vld [vmem:[#allocation4 + $0xb8] sm:$0xff]
    %v1914 = vld [vmem:[#allocation4 + $0xc0] sm:$0xff]
    %v1915 = vld [vmem:[#allocation4 + $0xc8] sm:$0xff]
    %v1916 = vld [vmem:[#allocation4 + $0xd0] sm:$0xff]
    %v1917 = vld [vmem:[#allocation4 + $0xd8] sm:$0xff]
    %v1918 = vld [vmem:[#allocation4 + $0xe0] sm:$0xff]
    %v1919 = vld [vmem:[#allocation4 + $0xe8] sm:$0xff]
    %v1920 = vld [vmem:[#allocation4 + $0xf0] sm:$0xff]
    %v1921 = vld [vmem:[#allocation4 + $0xf8] sm:$0xff]
    %v1922 = vld [vmem:[#allocation4 + $0x100] sm:$0xff]
    %v1923 = vld [vmem:[#allocation4 + $0x108] sm:$0xff]
    %v1924 = vld [vmem:[#allocation4 + $0x110] sm:$0xff]
    %v1925 = vld [vmem:[#allocation4 + $0x118] sm:$0xff]
    %v1926 = vld [vmem:[#allocation4 + $0x120] sm:$0xff]
    %v1927 = vld [vmem:[#allocation4 + $0x128] sm:$0xff]
    %v1928 = vld [vmem:[#allocation4 + $0x130] sm:$0xff]
    %v1929 = vld [vmem:[#allocation4 + $0x138] sm:$0xff]
    %v1930 = vld [vmem:[#allocation4 + $0x140] sm:$0xff]
    %v1931 = vld [vmem:[#allocation4 + $0x148] sm:$0xff]
    %v1932 = vld [vmem:[#allocation4 + $0x150] sm:$0xff]
    %v1933 = vld [vmem:[#allocation4 + $0x158] sm:$0xff]
    %v1934 = vld [vmem:[#allocation4 + $0x160] sm:$0xff]
    %v1935 = vld [vmem:[#allocation4 + $0x168] sm:$0xff]
    %v1936 = vld [vmem:[#allocation4 + $0x170] sm:$0xff]
    %v1937 = vld [vmem:[#allocation4 + $0x178] sm:$0xff]
    %v1938 = vld [vmem:[#allocation4 + $0x180] sm:$0xff]
    %v1939 = vld [vmem:[#allocation4 + $0x188] sm:$0xff]
    %v1940 = vld [vmem:[#allocation4 + $0x190] sm:$0xff]
    %v1941 = vld [vmem:[#allocation4 + $0x198] sm:$0xff]
    %v1942 = vld [vmem:[#allocation4 + $0x1a0] sm:$0xff]
    %v1943 = vld [vmem:[#allocation4 + $0x1a8] sm:$0xff]
    %v1944 = vld [vmem:[#allocation4 + $0x1b0] sm:$0xff]
    %v1945 = vld [vmem:[#allocation4 + $0x1b8] sm:$0xff]
    %v1946 = vld [vmem:[#allocation4 + $0x1c0] sm:$0xff]
    %v1947 = vld [vmem:[#allocation4 + $0x1c8] sm:$0xff]
    %v1948 = vld [vmem:[#allocation4 + $0x1d0] sm:$0xff]
    %v1949 = vld [vmem:[#allocation4 + $0x1d8] sm:$0xff]
    %v1950 = vld [vmem:[#allocation4 + $0x1e0] sm:$0xff]
    %v1951 = vld [vmem:[#allocation4 + $0x1e8] sm:$0xff]
    %v1952 = vld [vmem:[#allocation4 + $0x1f0] sm:$0xff]
    %v1953 = vld [vmem:[#allocation4 + $0x1f8] sm:$0xff]
    %1954 = vmatprep.subr.mxu0 %v1951
    %1955 = vmatpush1.msra.mxu0 %v1950
    %1956 = vmatprep.subr.mxu0 %v1947
    %1957 = vmatpush1.msra.mxu0 %v1946
    %1958 = vmatprep.subr.mxu0 %v1943
    %1959 = vmatpush1.msra.mxu0 %v1942
    %1960 = vmatprep.subr.mxu0 %v1939
    %1961 = vmatpush1.msra.mxu0 %v1938
    %1962 = vmatprep.subr.mxu0 %v1935
    %1963 = vmatpush1.msra.mxu0 %v1934
    %1964 = vmatprep.subr.mxu0 %v1931
    %1965 = vmatpush1.msra.mxu0 %v1930
    %1966 = vmatprep.subr.mxu0 %v1927
    %1967 = vmatpush1.msra.mxu0 %v1926
    %1968 = vmatprep.subr.mxu0 %v1923
    %1969 = vmatpush1.msra.mxu0 %v1922
    %1970 = vmatprep.subr.mxu0 %v1919
    %1971 = vmatpush1.msra.mxu0 %v1918
    %1972 = vmatprep.subr.mxu0 %v1915
    %1973 = vmatpush1.msra.mxu0 %v1914
    %1974 = vmatprep.subr.mxu0 %v1911
    %1975 = vmatpush1.msra.mxu0 %v1910
    %1976 = vmatprep.subr.mxu0 %v1907
    %1977 = vmatpush1.msra.mxu0 %v1906
    %1978 = vmatprep.subr.mxu0 %v1903
    %1979 = vmatpush1.msra.mxu0 %v1902
    %1980 = vmatprep.subr.mxu0 %v1899
    %1981 = vmatpush1.msra.mxu0 %v1898
    %1982 = vmatprep.subr.mxu0 %v1895
    %1983 = vmatpush1.msra.mxu0 %v1894
    %1984 = vmatprep.subr.mxu0 %v1891
    %1985 = vmatpush1.msra.mxu0 %v1890
    %1986 = vmatprep.subr.mxu0 0.0
    %1987 = vmatpush2.msra.mxu0 0.0
    %1988 = vmatprep.subr.mxu0 0.0
    %1989 = vmatpush2.msra.mxu0 0.0
    %1990 = vmatprep.subr.mxu0 0.0
    %1991 = vmatpush2.msra.mxu0 0.0
    %1992 = vmatprep.subr.mxu0 0.0
    %1993 = vmatpush2.msra.mxu0 0.0
    %1994 = vmatprep.subr.mxu0 0.0
    %1995 = vmatpush2.msra.mxu0 0.0
    %1996 = vmatprep.subr.mxu0 0.0
    %1997 = vmatpush2.msra.mxu0 0.0
    %1998 = vmatprep.subr.mxu0 0.0
    %1999 = vmatpush2.msra.mxu0 0.0
    %2000 = vmatprep.subr.mxu0 0.0
    %2001 = vmatpush2.msra.mxu0 0.0
    %2002 = vmatprep.subr.mxu0 0.0
    %2003 = vmatpush2.msra.mxu0 0.0
    %2004 = vmatprep.subr.mxu0 0.0
    %2005 = vmatpush2.msra.mxu0 0.0
    %2006 = vmatprep.subr.mxu0 0.0
    %2007 = vmatpush2.msra.mxu0 0.0
    %2008 = vmatprep.subr.mxu0 0.0
    %2009 = vmatpush2.msra.mxu0 0.0
    %2010 = vmatprep.subr.mxu0 0.0
    %2011 = vmatpush2.msra.mxu0 0.0
    %2012 = vmatprep.subr.mxu0 0.0
    %2013 = vmatpush2.msra.mxu0 0.0
    %2014 = vmatprep.subr.mxu0 0.0
    %2015 = vmatpush2.msra.mxu0 0.0
    %2016 = vmatprep.subr.mxu0 0.0
    %2017 = vmatpush2.msra.mxu0 0.0
    %2018 = vmatprep.mubr.f32.mxu0 0.0
    %2019 = vmatmul.mubr.f32.gmra.mxu0 %v1880
    %v2020 = vpop.f32.mrf.mxu0
    %v2021 = vadd.f32 0.0, %v2020
    %v2022 = vpop.f32.mrf.mxu0
    %v2023 = vadd.f32 0.0, %v2022
    %2024 = vdwg.mxu0
    %2025 = vmatprep.subr.mxu0 %v1953
    %2026 = vmatpush1.msra.mxu0 %v1952
    %2027 = vmatprep.subr.mxu0 %v1949
    %2028 = vmatpush1.msra.mxu0 %v1948
    %2029 = vmatprep.subr.mxu0 %v1945
    %2030 = vmatpush1.msra.mxu0 %v1944
    %2031 = vmatprep.subr.mxu0 %v1941
    %2032 = vmatpush1.msra.mxu0 %v1940
    %2033 = vmatprep.subr.mxu0 %v1937
    %2034 = vmatpush1.msra.mxu0 %v1936
    %2035 = vmatprep.subr.mxu0 %v1933
    %2036 = vmatpush1.msra.mxu0 %v1932
    %2037 = vmatprep.subr.mxu0 %v1929
    %2038 = vmatpush1.msra.mxu0 %v1928
    %2039 = vmatprep.subr.mxu0 %v1925
    %2040 = vmatpush1.msra.mxu0 %v1924
    %2041 = vmatprep.subr.mxu0 %v1921
    %2042 = vmatpush1.msra.mxu0 %v1920
    %2043 = vmatprep.subr.mxu0 %v1917
    %2044 = vmatpush1.msra.mxu0 %v1916
    %2045 = vmatprep.subr.mxu0 %v1913
    %2046 = vmatpush1.msra.mxu0 %v1912
    %2047 = vmatprep.subr.mxu0 %v1909
    %2048 = vmatpush1.msra.mxu0 %v1908
    %2049 = vmatprep.subr.mxu0 %v1905
    %2050 = vmatpush1.msra.mxu0 %v1904
    %2051 = vmatprep.subr.mxu0 %v1901
    %2052 = vmatpush1.msra.mxu0 %v1900
    %2053 = vmatprep.subr.mxu0 %v1897
    %2054 = vmatpush1.msra.mxu0 %v1896
    %2055 = vmatprep.subr.mxu0 %v1893
    %2056 = vmatpush1.msra.mxu0 %v1892
    %2057 = vmatprep.subr.mxu0 0.0
    %2058 = vmatpush2.msra.mxu0 0.0
    %2059 = vmatprep.subr.mxu0 0.0
    %2060 = vmatpush2.msra.mxu0 0.0
    %2061 = vmatprep.subr.mxu0 0.0
    %2062 = vmatpush2.msra.mxu0 0.0
    %2063 = vmatprep.subr.mxu0 0.0
    %2064 = vmatpush2.msra.mxu0 0.0
    %2065 = vmatprep.subr.mxu0 0.0
    %2066 = vmatpush2.msra.mxu0 0.0
    %2067 = vmatprep.subr.mxu0 0.0
    %2068 = vmatpush2.msra.mxu0 0.0
    %2069 = vmatprep.subr.mxu0 0.0
    %2070 = vmatpush2.msra.mxu0 0.0
    %2071 = vmatprep.subr.mxu0 0.0
    %2072 = vmatpush2.msra.mxu0 0.0
    %2073 = vmatprep.subr.mxu0 0.0
    %2074 = vmatpush2.msra.mxu0 0.0
    %2075 = vmatprep.subr.mxu0 0.0
    %2076 = vmatpush2.msra.mxu0 0.0
    %2077 = vmatprep.subr.mxu0 0.0
    %2078 = vmatpush2.msra.mxu0 0.0
    %2079 = vmatprep.subr.mxu0 0.0
    %2080 = vmatpush2.msra.mxu0 0.0
    %2081 = vmatprep.subr.mxu0 0.0
    %2082 = vmatpush2.msra.mxu0 0.0
    %2083 = vmatprep.subr.mxu0 0.0
    %2084 = vmatpush2.msra.mxu0 0.0
    %2085 = vmatprep.subr.mxu0 0.0
    %2086 = vmatpush2.msra.mxu0 0.0
    %2087 = vmatprep.subr.mxu0 0.0
    %2088 = vmatpush2.msra.mxu0 0.0
    %2089 = vmatprep.mubr.f32.mxu0 0.0
    %2090 = vmatmul.mubr.f32.gmra.mxu0 %v1880
    %v2091 = vpop.f32.mrf.mxu0
    %v2092 = vadd.f32 0.0, %v2091
    %v2093 = vpop.f32.mrf.mxu0
    %v2094 = vadd.f32 0.0, %v2093
    %2095 = vdwg.mxu0
    %v2096 = vadd.f32 %v1886, %v2021
    %v2097 = vadd.f32 %v1887, %v2023
    %v2098 = vadd.f32 %v1888, %v2092
    %v2099 = vadd.f32 %v1889, %v2094
    %v2100 = vxor.u32 %v2096, 2147483648
    %v2101 = vmul.f32 %v2100, 1.442695
    %v2102 = vpow.pop %v2101
    %v2103 = vadd.f32 %v2102, 1.0
    %v2104 = vrcp.pop %v2103
    %v2105 = vmul.f32 1.0, %v2104
    %v2106 = vxor.u32 %v2097, 2147483648
    %v2107 = vmul.f32 %v2106, 1.442695
    %v2108 = vpow.pop %v2107
    %v2109 = vadd.f32 %v2108, 1.0
    %v2110 = vrcp.pop %v2109
    %v2111 = vmul.f32 1.0, %v2110
    %v2112 = vtanh.pop %v2098
    %v2113 = vxor.u32 %v2099, 2147483648
    %v2114 = vmul.f32 %v2113, 1.442695
    %v2115 = vpow.pop %v2114
    %v2116 = vadd.f32 %v2115, 1.0
    %v2117 = vrcp.pop %v2116
    %v2118 = vmul.f32 1.0, %v2117
    %v2119 = vmul.f32 %v2111, %v1878
    %v2120 = vmul.f32 %v2105, %v2112
    %v2121 = vadd.f32 %v2119, %v2120
    %v2122 = vtanh.pop %v2121
    %v2123 = vmul.f32 %v2118, %v2122
    %s2124 = scalar_lea.vmem [#allocation3], 48
    %2125 = vst [vmem:[%s2124] sm:$0xff] %v2123
    %s2126 = smul.u32 7, 4
    %s2127 = smul.addr %s2126, 8
    %s2128 = scalar_lea.vmem [#allocation2], %s2127
    %v2129 = vld [vmem:[%s2128] sm:$0xff]
    %v2130 = vld [vmem:[%s2128 + $0x8] sm:$0xff]
    %v2131 = vld [vmem:[%s2128 + $0x10] sm:$0xff]
    %v2132 = vld [vmem:[%s2128 + $0x18] sm:$0xff]
    %v2133 = vld [vmem:[#allocation4] sm:$0xff]
    %v2134 = vld [vmem:[#allocation4 + $0x8] sm:$0xff]
    %v2135 = vld [vmem:[#allocation4 + $0x10] sm:$0xff]
    %v2136 = vld [vmem:[#allocation4 + $0x18] sm:$0xff]
    %v2137 = vld [vmem:[#allocation4 + $0x20] sm:$0xff]
    %v2138 = vld [vmem:[#allocation4 + $0x28] sm:$0xff]
    %v2139 = vld [vmem:[#allocation4 + $0x30] sm:$0xff]
    %v2140 = vld [vmem:[#allocation4 + $0x38] sm:$0xff]
    %v2141 = vld [vmem:[#allocation4 + $0x40] sm:$0xff]
    %v2142 = vld [vmem:[#allocation4 + $0x48] sm:$0xff]
    %v2143 = vld [vmem:[#allocation4 + $0x50] sm:$0xff]
    %v2144 = vld [vmem:[#allocation4 + $0x58] sm:$0xff]
    %v2145 = vld [vmem:[#allocation4 + $0x60] sm:$0xff]
    %v2146 = vld [vmem:[#allocation4 + $0x68] sm:$0xff]
    %v2147 = vld [vmem:[#allocation4 + $0x70] sm:$0xff]
    %v2148 = vld [vmem:[#allocation4 + $0x78] sm:$0xff]
    %v2149 = vld [vmem:[#allocation4 + $0x80] sm:$0xff]
    %v2150 = vld [vmem:[#allocation4 + $0x88] sm:$0xff]
    %v2151 = vld [vmem:[#allocation4 + $0x90] sm:$0xff]
    %v2152 = vld [vmem:[#allocation4 + $0x98] sm:$0xff]
    %v2153 = vld [vmem:[#allocation4 + $0xa0] sm:$0xff]
    %v2154 = vld [vmem:[#allocation4 + $0xa8] sm:$0xff]
    %v2155 = vld [vmem:[#allocation4 + $0xb0] sm:$0xff]
    %v2156 = vld [vmem:[#allocation4 + $0xb8] sm:$0xff]
    %v2157 = vld [vmem:[#allocation4 + $0xc0] sm:$0xff]
    %v2158 = vld [vmem:[#allocation4 + $0xc8] sm:$0xff]
    %v2159 = vld [vmem:[#allocation4 + $0xd0] sm:$0xff]
    %v2160 = vld [vmem:[#allocation4 + $0xd8] sm:$0xff]
    %v2161 = vld [vmem:[#allocation4 + $0xe0] sm:$0xff]
    %v2162 = vld [vmem:[#allocation4 + $0xe8] sm:$0xff]
    %v2163 = vld [vmem:[#allocation4 + $0xf0] sm:$0xff]
    %v2164 = vld [vmem:[#allocation4 + $0xf8] sm:$0xff]
    %v2165 = vld [vmem:[#allocation4 + $0x100] sm:$0xff]
    %v2166 = vld [vmem:[#allocation4 + $0x108] sm:$0xff]
    %v2167 = vld [vmem:[#allocation4 + $0x110] sm:$0xff]
    %v2168 = vld [vmem:[#allocation4 + $0x118] sm:$0xff]
    %v2169 = vld [vmem:[#allocation4 + $0x120] sm:$0xff]
    %v2170 = vld [vmem:[#allocation4 + $0x128] sm:$0xff]
    %v2171 = vld [vmem:[#allocation4 + $0x130] sm:$0xff]
    %v2172 = vld [vmem:[#allocation4 + $0x138] sm:$0xff]
    %v2173 = vld [vmem:[#allocation4 + $0x140] sm:$0xff]
    %v2174 = vld [vmem:[#allocation4 + $0x148] sm:$0xff]
    %v2175 = vld [vmem:[#allocation4 + $0x150] sm:$0xff]
    %v2176 = vld [vmem:[#allocation4 + $0x158] sm:$0xff]
    %v2177 = vld [vmem:[#allocation4 + $0x160] sm:$0xff]
    %v2178 = vld [vmem:[#allocation4 + $0x168] sm:$0xff]
    %v2179 = vld [vmem:[#allocation4 + $0x170] sm:$0xff]
    %v2180 = vld [vmem:[#allocation4 + $0x178] sm:$0xff]
    %v2181 = vld [vmem:[#allocation4 + $0x180] sm:$0xff]
    %v2182 = vld [vmem:[#allocation4 + $0x188] sm:$0xff]
    %v2183 = vld [vmem:[#allocation4 + $0x190] sm:$0xff]
    %v2184 = vld [vmem:[#allocation4 + $0x198] sm:$0xff]
    %v2185 = vld [vmem:[#allocation4 + $0x1a0] sm:$0xff]
    %v2186 = vld [vmem:[#allocation4 + $0x1a8] sm:$0xff]
    %v2187 = vld [vmem:[#allocation4 + $0x1b0] sm:$0xff]
    %v2188 = vld [vmem:[#allocation4 + $0x1b8] sm:$0xff]
    %v2189 = vld [vmem:[#allocation4 + $0x1c0] sm:$0xff]
    %v2190 = vld [vmem:[#allocation4 + $0x1c8] sm:$0xff]
    %v2191 = vld [vmem:[#allocation4 + $0x1d0] sm:$0xff]
    %v2192 = vld [vmem:[#allocation4 + $0x1d8] sm:$0xff]
    %v2193 = vld [vmem:[#allocation4 + $0x1e0] sm:$0xff]
    %v2194 = vld [vmem:[#allocation4 + $0x1e8] sm:$0xff]
    %v2195 = vld [vmem:[#allocation4 + $0x1f0] sm:$0xff]
    %v2196 = vld [vmem:[#allocation4 + $0x1f8] sm:$0xff]
    %2197 = vmatprep.subr.mxu0 %v2194
    %2198 = vmatpush1.msra.mxu0 %v2193
    %2199 = vmatprep.subr.mxu0 %v2190
    %2200 = vmatpush1.msra.mxu0 %v2189
    %2201 = vmatprep.subr.mxu0 %v2186
    %2202 = vmatpush1.msra.mxu0 %v2185
    %2203 = vmatprep.subr.mxu0 %v2182
    %2204 = vmatpush1.msra.mxu0 %v2181
    %2205 = vmatprep.subr.mxu0 %v2178
    %2206 = vmatpush1.msra.mxu0 %v2177
    %2207 = vmatprep.subr.mxu0 %v2174
    %2208 = vmatpush1.msra.mxu0 %v2173
    %2209 = vmatprep.subr.mxu0 %v2170
    %2210 = vmatpush1.msra.mxu0 %v2169
    %2211 = vmatprep.subr.mxu0 %v2166
    %2212 = vmatpush1.msra.mxu0 %v2165
    %2213 = vmatprep.subr.mxu0 %v2162
    %2214 = vmatpush1.msra.mxu0 %v2161
    %2215 = vmatprep.subr.mxu0 %v2158
    %2216 = vmatpush1.msra.mxu0 %v2157
    %2217 = vmatprep.subr.mxu0 %v2154
    %2218 = vmatpush1.msra.mxu0 %v2153
    %2219 = vmatprep.subr.mxu0 %v2150
    %2220 = vmatpush1.msra.mxu0 %v2149
    %2221 = vmatprep.subr.mxu0 %v2146
    %2222 = vmatpush1.msra.mxu0 %v2145
    %2223 = vmatprep.subr.mxu0 %v2142
    %2224 = vmatpush1.msra.mxu0 %v2141
    %2225 = vmatprep.subr.mxu0 %v2138
    %2226 = vmatpush1.msra.mxu0 %v2137
    %2227 = vmatprep.subr.mxu0 %v2134
    %2228 = vmatpush1.msra.mxu0 %v2133
    %2229 = vmatprep.subr.mxu0 0.0
    %2230 = vmatpush2.msra.mxu0 0.0
    %2231 = vmatprep.subr.mxu0 0.0
    %2232 = vmatpush2.msra.mxu0 0.0
    %2233 = vmatprep.subr.mxu0 0.0
    %2234 = vmatpush2.msra.mxu0 0.0
    %2235 = vmatprep.subr.mxu0 0.0
    %2236 = vmatpush2.msra.mxu0 0.0
    %2237 = vmatprep.subr.mxu0 0.0
    %2238 = vmatpush2.msra.mxu0 0.0
    %2239 = vmatprep.subr.mxu0 0.0
    %2240 = vmatpush2.msra.mxu0 0.0
    %2241 = vmatprep.subr.mxu0 0.0
    %2242 = vmatpush2.msra.mxu0 0.0
    %2243 = vmatprep.subr.mxu0 0.0
    %2244 = vmatpush2.msra.mxu0 0.0
    %2245 = vmatprep.subr.mxu0 0.0
    %2246 = vmatpush2.msra.mxu0 0.0
    %2247 = vmatprep.subr.mxu0 0.0
    %2248 = vmatpush2.msra.mxu0 0.0
    %2249 = vmatprep.subr.mxu0 0.0
    %2250 = vmatpush2.msra.mxu0 0.0
    %2251 = vmatprep.subr.mxu0 0.0
    %2252 = vmatpush2.msra.mxu0 0.0
    %2253 = vmatprep.subr.mxu0 0.0
    %2254 = vmatpush2.msra.mxu0 0.0
    %2255 = vmatprep.subr.mxu0 0.0
    %2256 = vmatpush2.msra.mxu0 0.0
    %2257 = vmatprep.subr.mxu0 0.0
    %2258 = vmatpush2.msra.mxu0 0.0
    %2259 = vmatprep.subr.mxu0 0.0
    %2260 = vmatpush2.msra.mxu0 0.0
    %2261 = vmatprep.mubr.f32.mxu0 0.0
    %2262 = vmatmul.mubr.f32.gmra.mxu0 %v2123
    %v2263 = vpop.f32.mrf.mxu0
    %v2264 = vadd.f32 0.0, %v2263
    %v2265 = vpop.f32.mrf.mxu0
    %v2266 = vadd.f32 0.0, %v2265
    %2267 = vdwg.mxu0
    %2268 = vmatprep.subr.mxu0 %v2196
    %2269 = vmatpush1.msra.mxu0 %v2195
    %2270 = vmatprep.subr.mxu0 %v2192
    %2271 = vmatpush1.msra.mxu0 %v2191
    %2272 = vmatprep.subr.mxu0 %v2188
    %2273 = vmatpush1.msra.mxu0 %v2187
    %2274 = vmatprep.subr.mxu0 %v2184
    %2275 = vmatpush1.msra.mxu0 %v2183
    %2276 = vmatprep.subr.mxu0 %v2180
    %2277 = vmatpush1.msra.mxu0 %v2179
    %2278 = vmatprep.subr.mxu0 %v2176
    %2279 = vmatpush1.msra.mxu0 %v2175
    %2280 = vmatprep.subr.mxu0 %v2172
    %2281 = vmatpush1.msra.mxu0 %v2171
    %2282 = vmatprep.subr.mxu0 %v2168
    %2283 = vmatpush1.msra.mxu0 %v2167
    %2284 = vmatprep.subr.mxu0 %v2164
    %2285 = vmatpush1.msra.mxu0 %v2163
    %2286 = vmatprep.subr.mxu0 %v2160
    %2287 = vmatpush1.msra.mxu0 %v2159
    %2288 = vmatprep.subr.mxu0 %v2156
    %2289 = vmatpush1.msra.mxu0 %v2155
    %2290 = vmatprep.subr.mxu0 %v2152
    %2291 = vmatpush1.msra.mxu0 %v2151
    %2292 = vmatprep.subr.mxu0 %v2148
    %2293 = vmatpush1.msra.mxu0 %v2147
    %2294 = vmatprep.subr.mxu0 %v2144
    %2295 = vmatpush1.msra.mxu0 %v2143
    %2296 = vmatprep.subr.mxu0 %v2140
    %2297 = vmatpush1.msra.mxu0 %v2139
    %2298 = vmatprep.subr.mxu0 %v2136
    %2299 = vmatpush1.msra.mxu0 %v2135
    %2300 = vmatprep.subr.mxu0 0.0
    %2301 = vmatpush2.msra.mxu0 0.0
    %2302 = vmatprep.subr.mxu0 0.0
    %2303 = vmatpush2.msra.mxu0 0.0
    %2304 = vmatprep.subr.mxu0 0.0
    %2305 = vmatpush2.msra.mxu0 0.0
    %2306 = vmatprep.subr.mxu0 0.0
    %2307 = vmatpush2.msra.mxu0 0.0
    %2308 = vmatprep.subr.mxu0 0.0
    %2309 = vmatpush2.msra.mxu0 0.0
    %2310 = vmatprep.subr.mxu0 0.0
    %2311 = vmatpush2.msra.mxu0 0.0
    %2312 = vmatprep.subr.mxu0 0.0
    %2313 = vmatpush2.msra.mxu0 0.0
    %2314 = vmatprep.subr.mxu0 0.0
    %2315 = vmatpush2.msra.mxu0 0.0
    %2316 = vmatprep.subr.mxu0 0.0
    %2317 = vmatpush2.msra.mxu0 0.0
    %2318 = vmatprep.subr.mxu0 0.0
    %2319 = vmatpush2.msra.mxu0 0.0
    %2320 = vmatprep.subr.mxu0 0.0
    %2321 = vmatpush2.msra.mxu0 0.0
    %2322 = vmatprep.subr.mxu0 0.0
    %2323 = vmatpush2.msra.mxu0 0.0
    %2324 = vmatprep.subr.mxu0 0.0
    %2325 = vmatpush2.msra.mxu0 0.0
    %2326 = vmatprep.subr.mxu0 0.0
    %2327 = vmatpush2.msra.mxu0 0.0
    %2328 = vmatprep.subr.mxu0 0.0
    %2329 = vmatpush2.msra.mxu0 0.0
    %2330 = vmatprep.subr.mxu0 0.0
    %2331 = vmatpush2.msra.mxu0 0.0
    %2332 = vmatprep.mubr.f32.mxu0 0.0
    %2333 = vmatmul.mubr.f32.gmra.mxu0 %v2123
    %v2334 = vpop.f32.mrf.mxu0
    %v2335 = vadd.f32 0.0, %v2334
    %v2336 = vpop.f32.mrf.mxu0
    %v2337 = vadd.f32 0.0, %v2336
    %2338 = vdwg.mxu0
    %v2339 = vadd.f32 %v2129, %v2264
    %v2340 = vadd.f32 %v2130, %v2266
    %v2341 = vadd.f32 %v2131, %v2335
    %v2342 = vadd.f32 %v2132, %v2337
    %v2343 = vxor.u32 %v2339, 2147483648
    %v2344 = vmul.f32 %v2343, 1.442695
    %v2345 = vpow.pop %v2344
    %v2346 = vadd.f32 %v2345, 1.0
    %v2347 = vrcp.pop %v2346
    %v2348 = vmul.f32 1.0, %v2347
    %v2349 = vxor.u32 %v2340, 2147483648
    %v2350 = vmul.f32 %v2349, 1.442695
    %v2351 = vpow.pop %v2350
    %v2352 = vadd.f32 %v2351, 1.0
    %v2353 = vrcp.pop %v2352
    %v2354 = vmul.f32 1.0, %v2353
    %v2355 = vtanh.pop %v2341
    %v2356 = vxor.u32 %v2342, 2147483648
    %v2357 = vmul.f32 %v2356, 1.442695
    %v2358 = vpow.pop %v2357
    %v2359 = vadd.f32 %v2358, 1.0
    %v2360 = vrcp.pop %v2359
    %v2361 = vmul.f32 1.0, %v2360
    %v2362 = vmul.f32 %v2354, %v2121
    %v2363 = vmul.f32 %v2348, %v2355
    %v2364 = vadd.f32 %v2362, %v2363
    %v2365 = vtanh.pop %v2364
    %v2366 = vmul.f32 %v2361, %v2365
    %s2367 = scalar_lea.vmem [#allocation3], 56
    %2368 = vst [vmem:[%s2367] sm:$0xff] %v2366
    %v2369 = vld [vmem:[#allocation3] sm:$0xff]
    %v2370 = vld [vmem:[#allocation3 + $0x8] sm:$0xff]
    %v2371 = vld [vmem:[#allocation3 + $0x10] sm:$0xff]
    %v2372 = vld [vmem:[#allocation3 + $0x18] sm:$0xff]
    %v2373 = vld [vmem:[#allocation3 + $0x20] sm:$0xff]
    %v2374 = vld [vmem:[#allocation3 + $0x28] sm:$0xff]
    %v2375 = vld [vmem:[#allocation3 + $0x30] sm:$0xff]
    %v2376 = vld [vmem:[#allocation3 + $0x38] sm:$0xff]
    %v2377 = vld [vmem:[#allocation6] sm:$0xff]
    %v2378 = vld [vmem:[#allocation6 + $0x8] sm:$0xff]
    %v2379 = vld [vmem:[#allocation6 + $0x10] sm:$0xff]
    %v2380 = vld [vmem:[#allocation6 + $0x18] sm:$0xff]
    %v2381 = vld [vmem:[#allocation6 + $0x20] sm:$0xff]
    %v2382 = vld [vmem:[#allocation6 + $0x28] sm:$0xff]
    %v2383 = vld [vmem:[#allocation6 + $0x30] sm:$0xff]
    %v2384 = vld [vmem:[#allocation6 + $0x38] sm:$0xff]
    %v2385 = vld [vmem:[#allocation6 + $0x40] sm:$0xff]
    %v2386 = vld [vmem:[#allocation6 + $0x48] sm:$0xff]
    %v2387 = vld [vmem:[#allocation6 + $0x50] sm:$0xff]
    %v2388 = vld [vmem:[#allocation6 + $0x58] sm:$0xff]
    %v2389 = vld [vmem:[#allocation6 + $0x60] sm:$0xff]
    %v2390 = vld [vmem:[#allocation6 + $0x68] sm:$0xff]
    %v2391 = vld [vmem:[#allocation6 + $0x70] sm:$0xff]
    %v2392 = vld [vmem:[#allocation6 + $0x78] sm:$0xff]
    %v2393 = vld [vmem:[#allocation6 + $0x80] sm:$0xff]
    %v2394 = vld [vmem:[#allocation6 + $0x88] sm:$0xff]
    %v2395 = vld [vmem:[#allocation6 + $0x90] sm:$0xff]
    %v2396 = vld [vmem:[#allocation6 + $0x98] sm:$0xff]
    %v2397 = vld [vmem:[#allocation6 + $0xa0] sm:$0xff]
    %v2398 = vld [vmem:[#allocation6 + $0xa8] sm:$0xff]
    %v2399 = vld [vmem:[#allocation6 + $0xb0] sm:$0xff]
    %v2400 = vld [vmem:[#allocation6 + $0xb8] sm:$0xff]
    %v2401 = vld [vmem:[#allocation6 + $0xc0] sm:$0xff]
    %v2402 = vld [vmem:[#allocation6 + $0xc8] sm:$0xff]
    %v2403 = vld [vmem:[#allocation6 + $0xd0] sm:$0xff]
    %v2404 = vld [vmem:[#allocation6 + $0xd8] sm:$0xff]
    %v2405 = vld [vmem:[#allocation6 + $0xe0] sm:$0xff]
    %v2406 = vld [vmem:[#allocation6 + $0xe8] sm:$0xff]
    %v2407 = vld [vmem:[#allocation6 + $0xf0] sm:$0xff]
    %v2408 = vld [vmem:[#allocation6 + $0xf8] sm:$0xff]
    %v2409 = vld [vmem:[#allocation6 + $0x100] sm:$0xff]
    %v2410 = vld [vmem:[#allocation6 + $0x108] sm:$0xff]
    %v2411 = vld [vmem:[#allocation6 + $0x110] sm:$0xff]
    %v2412 = vld [vmem:[#allocation6 + $0x118] sm:$0xff]
    %v2413 = vld [vmem:[#allocation6 + $0x120] sm:$0xff]
    %v2414 = vld [vmem:[#allocation6 + $0x128] sm:$0xff]
    %v2415 = vld [vmem:[#allocation6 + $0x130] sm:$0xff]
    %v2416 = vld [vmem:[#allocation6 + $0x138] sm:$0xff]
    %v2417 = vld [vmem:[#allocation6 + $0x140] sm:$0xff]
    %v2418 = vld [vmem:[#allocation6 + $0x148] sm:$0xff]
    %v2419 = vld [vmem:[#allocation6 + $0x150] sm:$0xff]
    %v2420 = vld [vmem:[#allocation6 + $0x158] sm:$0xff]
    %v2421 = vld [vmem:[#allocation6 + $0x160] sm:$0xff]
    %v2422 = vld [vmem:[#allocation6 + $0x168] sm:$0xff]
    %v2423 = vld [vmem:[#allocation6 + $0x170] sm:$0xff]
    %v2424 = vld [vmem:[#allocation6 + $0x178] sm:$0xff]
    %v2425 = vld [vmem:[#allocation6 + $0x180] sm:$0xff]
    %v2426 = vld [vmem:[#allocation6 + $0x188] sm:$0xff]
    %v2427 = vld [vmem:[#allocation6 + $0x190] sm:$0xff]
    %v2428 = vld [vmem:[#allocation6 + $0x198] sm:$0xff]
    %v2429 = vld [vmem:[#allocation6 + $0x1a0] sm:$0xff]
    %v2430 = vld [vmem:[#allocation6 + $0x1a8] sm:$0xff]
    %v2431 = vld [vmem:[#allocation6 + $0x1b0] sm:$0xff]
    %v2432 = vld [vmem:[#allocation6 + $0x1b8] sm:$0xff]
    %v2433 = vld [vmem:[#allocation6 + $0x1c0] sm:$0xff]
    %v2434 = vld [vmem:[#allocation6 + $0x1c8] sm:$0xff]
    %v2435 = vld [vmem:[#allocation6 + $0x1d0] sm:$0xff]
    %v2436 = vld [vmem:[#allocation6 + $0x1d8] sm:$0xff]
    %v2437 = vld [vmem:[#allocation6 + $0x1e0] sm:$0xff]
    %v2438 = vld [vmem:[#allocation6 + $0x1e8] sm:$0xff]
    %v2439 = vld [vmem:[#allocation6 + $0x1f0] sm:$0xff]
    %v2440 = vld [vmem:[#allocation6 + $0x1f8] sm:$0xff]
    %v2441 = vld [vmem:[%s6] sm:$0xf]
    %v2443 = vlaneseq
    %v2444 = vshrl.u32 %v2443, 7
    %v2445 = vsub.s32 0, %v2444
    %v2446 = vrot.slane %v2441, %v2445
    %v2447 = vlaneseq
    %v2448 = vshrl.u32 %v2447, 7
    %v2449 = vsub.s32 1, %v2448
    %v2450 = vrot.slane %v2441, %v2449
    %v2451 = vlaneseq
    %v2452 = vshrl.u32 %v2451, 7
    %v2453 = vsub.s32 2, %v2452
    %v2454 = vrot.slane %v2441, %v2453
    %v2455 = vlaneseq
    %v2456 = vshrl.u32 %v2455, 7
    %v2457 = vsub.s32 3, %v2456
    %v2458 = vrot.slane %v2441, %v2457
    %2463 = vmatprep.subr.mxu0 %v2438
    %2464 = vmatpush1.msra.mxu0 %v2437
    %2465 = vmatprep.subr.mxu0 %v2434
    %2466 = vmatpush1.msra.mxu0 %v2433
    %2467 = vmatprep.subr.mxu0 %v2430
    %2468 = vmatpush1.msra.mxu0 %v2429
    %2469 = vmatprep.subr.mxu0 %v2426
    %2470 = vmatpush1.msra.mxu0 %v2425
    %2471 = vmatprep.subr.mxu0 %v2422
    %2472 = vmatpush1.msra.mxu0 %v2421
    %2473 = vmatprep.subr.mxu0 %v2418
    %2474 = vmatpush1.msra.mxu0 %v2417
    %2475 = vmatprep.subr.mxu0 %v2414
    %2476 = vmatpush1.msra.mxu0 %v2413
    %2477 = vmatprep.subr.mxu0 %v2410
    %2478 = vmatpush1.msra.mxu0 %v2409
    %2479 = vmatprep.subr.mxu0 %v2406
    %2480 = vmatpush1.msra.mxu0 %v2405
    %2481 = vmatprep.subr.mxu0 %v2402
    %2482 = vmatpush1.msra.mxu0 %v2401
    %2483 = vmatprep.subr.mxu0 %v2398
    %2484 = vmatpush1.msra.mxu0 %v2397
    %2485 = vmatprep.subr.mxu0 %v2394
    %2486 = vmatpush1.msra.mxu0 %v2393
    %2487 = vmatprep.subr.mxu0 %v2390
    %2488 = vmatpush1.msra.mxu0 %v2389
    %2489 = vmatprep.subr.mxu0 %v2386
    %2490 = vmatpush1.msra.mxu0 %v2385
    %2491 = vmatprep.subr.mxu0 %v2382
    %2492 = vmatpush1.msra.mxu0 %v2381
    %2493 = vmatprep.subr.mxu0 %v2378
    %2494 = vmatpush1.msra.mxu0 %v2377
    %2495 = vmatprep.subr.mxu0 0.0
    %2496 = vmatpush2.msra.mxu0 0.0
    %2497 = vmatprep.subr.mxu0 0.0
    %2498 = vmatpush2.msra.mxu0 0.0
    %2499 = vmatprep.subr.mxu0 0.0
    %2500 = vmatpush2.msra.mxu0 0.0
    %2501 = vmatprep.subr.mxu0 0.0
    %2502 = vmatpush2.msra.mxu0 0.0
    %2503 = vmatprep.subr.mxu0 0.0
    %2504 = vmatpush2.msra.mxu0 0.0
    %2505 = vmatprep.subr.mxu0 0.0
    %2506 = vmatpush2.msra.mxu0 0.0
    %2507 = vmatprep.subr.mxu0 0.0
    %2508 = vmatpush2.msra.mxu0 0.0
    %2509 = vmatprep.subr.mxu0 0.0
    %2510 = vmatpush2.msra.mxu0 0.0
    %2511 = vmatprep.subr.mxu0 0.0
    %2512 = vmatpush2.msra.mxu0 0.0
    %2513 = vmatprep.subr.mxu0 0.0
    %2514 = vmatpush2.msra.mxu0 0.0
    %2515 = vmatprep.subr.mxu0 0.0
    %2516 = vmatpush2.msra.mxu0 0.0
    %2517 = vmatprep.subr.mxu0 0.0
    %2518 = vmatpush2.msra.mxu0 0.0
    %2519 = vmatprep.subr.mxu0 0.0
    %2520 = vmatpush2.msra.mxu0 0.0
    %2521 = vmatprep.subr.mxu0 0.0
    %2522 = vmatpush2.msra.mxu0 0.0
    %2523 = vmatprep.subr.mxu0 0.0
    %2524 = vmatpush2.msra.mxu0 0.0
    %2525 = vmatprep.subr.mxu0 0.0
    %2526 = vmatpush2.msra.mxu0 0.0
    %2527 = vmatprep.mubr.f32.mxu0 0.0
    %2528 = vmatmul.mubr.f32.gmra.mxu0 %v2369
    %v2529 = vpop.f32.mrf.mxu0
    %v2530 = vadd.f32 %v2446, %v2529
    %v2531 = vpop.f32.mrf.mxu0
    %v2532 = vadd.f32 %v2450, %v2531
    %2533 = vmatprep.mubr.f32.mxu0 0.0
    %2534 = vmatmul.mubr.f32.gmra.mxu0 %v2370
    %v2535 = vpop.f32.mrf.mxu0
    %v2536 = vadd.f32 %v2446, %v2535
    %v2537 = vpop.f32.mrf.mxu0
    %v2538 = vadd.f32 %v2450, %v2537
    %2539 = vmatprep.mubr.f32.mxu0 0.0
    %2540 = vmatmul.mubr.f32.gmra.mxu0 %v2371
    %v2541 = vpop.f32.mrf.mxu0
    %v2542 = vadd.f32 %v2446, %v2541
    %v2543 = vpop.f32.mrf.mxu0
    %v2544 = vadd.f32 %v2450, %v2543
    %2545 = vmatprep.mubr.f32.mxu0 0.0
    %2546 = vmatmul.mubr.f32.gmra.mxu0 %v2372
    %v2547 = vpop.f32.mrf.mxu0
    %v2548 = vadd.f32 %v2446, %v2547
    %v2549 = vpop.f32.mrf.mxu0
    %v2550 = vadd.f32 %v2450, %v2549
    %2551 = vmatprep.mubr.f32.mxu0 0.0
    %2552 = vmatmul.mubr.f32.gmra.mxu0 %v2373
    %v2553 = vpop.f32.mrf.mxu0
    %v2554 = vadd.f32 %v2446, %v2553
    %v2555 = vpop.f32.mrf.mxu0
    %v2556 = vadd.f32 %v2450, %v2555
    %2557 = vmatprep.mubr.f32.mxu0 0.0
    %2558 = vmatmul.mubr.f32.gmra.mxu0 %v2374
    %v2559 = vpop.f32.mrf.mxu0
    %v2560 = vadd.f32 %v2446, %v2559
    %v2561 = vpop.f32.mrf.mxu0
    %v2562 = vadd.f32 %v2450, %v2561
    %2563 = vmatprep.mubr.f32.mxu0 0.0
    %2564 = vmatmul.mubr.f32.gmra.mxu0 %v2375
    %v2565 = vpop.f32.mrf.mxu0
    %v2566 = vadd.f32 %v2446, %v2565
    %v2567 = vpop.f32.mrf.mxu0
    %v2568 = vadd.f32 %v2450, %v2567
    %2569 = vmatprep.mubr.f32.mxu0 0.0
    %2570 = vmatmul.mubr.f32.gmra.mxu0 %v2376
    %v2571 = vpop.f32.mrf.mxu0
    %v2572 = vadd.f32 %v2446, %v2571
    %v2573 = vpop.f32.mrf.mxu0
    %v2574 = vadd.f32 %v2450, %v2573
    %2575 = vdwg.mxu0
    %2576 = vmatprep.subr.mxu0 %v2440
    %2577 = vmatpush1.msra.mxu0 %v2439
    %2578 = vmatprep.subr.mxu0 %v2436
    %2579 = vmatpush1.msra.mxu0 %v2435
    %2580 = vmatprep.subr.mxu0 %v2432
    %2581 = vmatpush1.msra.mxu0 %v2431
    %2582 = vmatprep.subr.mxu0 %v2428
    %2583 = vmatpush1.msra.mxu0 %v2427
    %2584 = vmatprep.subr.mxu0 %v2424
    %2585 = vmatpush1.msra.mxu0 %v2423
    %2586 = vmatprep.subr.mxu0 %v2420
    %2587 = vmatpush1.msra.mxu0 %v2419
    %2588 = vmatprep.subr.mxu0 %v2416
    %2589 = vmatpush1.msra.mxu0 %v2415
    %2590 = vmatprep.subr.mxu0 %v2412
    %2591 = vmatpush1.msra.mxu0 %v2411
    %2592 = vmatprep.subr.mxu0 %v2408
    %2593 = vmatpush1.msra.mxu0 %v2407
    %2594 = vmatprep.subr.mxu0 %v2404
    %2595 = vmatpush1.msra.mxu0 %v2403
    %2596 = vmatprep.subr.mxu0 %v2400
    %2597 = vmatpush1.msra.mxu0 %v2399
    %2598 = vmatprep.subr.mxu0 %v2396
    %2599 = vmatpush1.msra.mxu0 %v2395
    %2600 = vmatprep.subr.mxu0 %v2392
    %2601 = vmatpush1.msra.mxu0 %v2391
    %2602 = vmatprep.subr.mxu0 %v2388
    %2603 = vmatpush1.msra.mxu0 %v2387
    %2604 = vmatprep.subr.mxu0 %v2384
    %2605 = vmatpush1.msra.mxu0 %v2383
    %2606 = vmatprep.subr.mxu0 %v2380
    %2607 = vmatpush1.msra.mxu0 %v2379
    %2608 = vmatprep.subr.mxu0 0.0
    %2609 = vmatpush2.msra.mxu0 0.0
    %2610 = vmatprep.subr.mxu0 0.0
    %2611 = vmatpush2.msra.mxu0 0.0
    %2612 = vmatprep.subr.mxu0 0.0
    %2613 = vmatpush2.msra.mxu0 0.0
    %2614 = vmatprep.subr.mxu0 0.0
    %2615 = vmatpush2.msra.mxu0 0.0
    %2616 = vmatprep.subr.mxu0 0.0
    %2617 = vmatpush2.msra.mxu0 0.0
    %2618 = vmatprep.subr.mxu0 0.0
    %2619 = vmatpush2.msra.mxu0 0.0
    %2620 = vmatprep.subr.mxu0 0.0
    %2621 = vmatpush2.msra.mxu0 0.0
    %2622 = vmatprep.subr.mxu0 0.0
    %2623 = vmatpush2.msra.mxu0 0.0
    %2624 = vmatprep.subr.mxu0 0.0
    %2625 = vmatpush2.msra.mxu0 0.0
    %2626 = vmatprep.subr.mxu0 0.0
    %2627 = vmatpush2.msra.mxu0 0.0
    %2628 = vmatprep.subr.mxu0 0.0
    %2629 = vmatpush2.msra.mxu0 0.0
    %2630 = vmatprep.subr.mxu0 0.0
    %2631 = vmatpush2.msra.mxu0 0.0
    %2632 = vmatprep.subr.mxu0 0.0
    %2633 = vmatpush2.msra.mxu0 0.0
    %2634 = vmatprep.subr.mxu0 0.0
    %2635 = vmatpush2.msra.mxu0 0.0
    %2636 = vmatprep.subr.mxu0 0.0
    %2637 = vmatpush2.msra.mxu0 0.0
    %2638 = vmatprep.subr.mxu0 0.0
    %2639 = vmatpush2.msra.mxu0 0.0
    %2640 = vmatprep.mubr.f32.mxu0 0.0
    %2641 = vmatmul.mubr.f32.gmra.mxu0 %v2369
    %v2642 = vpop.f32.mrf.mxu0
    %v2643 = vadd.f32 %v2454, %v2642
    %v2644 = vpop.f32.mrf.mxu0
    %v2645 = vadd.f32 %v2458, %v2644
    %2646 = vmatprep.mubr.f32.mxu0 0.0
    %2647 = vmatmul.mubr.f32.gmra.mxu0 %v2370
    %v2648 = vpop.f32.mrf.mxu0
    %v2649 = vadd.f32 %v2454, %v2648
    %v2650 = vpop.f32.mrf.mxu0
    %v2651 = vadd.f32 %v2458, %v2650
    %2652 = vmatprep.mubr.f32.mxu0 0.0
    %2653 = vmatmul.mubr.f32.gmra.mxu0 %v2371
    %v2654 = vpop.f32.mrf.mxu0
    %v2655 = vadd.f32 %v2454, %v2654
    %v2656 = vpop.f32.mrf.mxu0
    %v2657 = vadd.f32 %v2458, %v2656
    %2658 = vmatprep.mubr.f32.mxu0 0.0
    %2659 = vmatmul.mubr.f32.gmra.mxu0 %v2372
    %v2660 = vpop.f32.mrf.mxu0
    %v2661 = vadd.f32 %v2454, %v2660
    %v2662 = vpop.f32.mrf.mxu0
    %v2663 = vadd.f32 %v2458, %v2662
    %2664 = vmatprep.mubr.f32.mxu0 0.0
    %2665 = vmatmul.mubr.f32.gmra.mxu0 %v2373
    %v2666 = vpop.f32.mrf.mxu0
    %v2667 = vadd.f32 %v2454, %v2666
    %v2668 = vpop.f32.mrf.mxu0
    %v2669 = vadd.f32 %v2458, %v2668
    %2670 = vmatprep.mubr.f32.mxu0 0.0
    %2671 = vmatmul.mubr.f32.gmra.mxu0 %v2374
    %v2672 = vpop.f32.mrf.mxu0
    %v2673 = vadd.f32 %v2454, %v2672
    %v2674 = vpop.f32.mrf.mxu0
    %v2675 = vadd.f32 %v2458, %v2674
    %2676 = vmatprep.mubr.f32.mxu0 0.0
    %2677 = vmatmul.mubr.f32.gmra.mxu0 %v2375
    %v2678 = vpop.f32.mrf.mxu0
    %v2679 = vadd.f32 %v2454, %v2678
    %v2680 = vpop.f32.mrf.mxu0
    %v2681 = vadd.f32 %v2458, %v2680
    %2682 = vmatprep.mubr.f32.mxu0 0.0
    %2683 = vmatmul.mubr.f32.gmra.mxu0 %v2376
    %v2684 = vpop.f32.mrf.mxu0
    %v2685 = vadd.f32 %v2454, %v2684
    %v2686 = vpop.f32.mrf.mxu0
    %v2687 = vadd.f32 %v2458, %v2686
    %2688 = vdwg.mxu0
    %2689 = vst [vmem:[#allocation2] sm:$0xff] %v2530
    %2690 = vst [vmem:[#allocation2 + $0x8] sm:$0xff] %v2532
    %2691 = vst [vmem:[#allocation2 + $0x10] sm:$0xff] %v2643
    %2692 = vst [vmem:[#allocation2 + $0x18] sm:$0xff] %v2645
    %2693 = vst [vmem:[#allocation2 + $0x20] sm:$0xff] %v2536
    %2694 = vst [vmem:[#allocation2 + $0x28] sm:$0xff] %v2538
    %2695 = vst [vmem:[#allocation2 + $0x30] sm:$0xff] %v2649
    %2696 = vst [vmem:[#allocation2 + $0x38] sm:$0xff] %v2651
    %2697 = vst [vmem:[#allocation2 + $0x40] sm:$0xff] %v2542
    %2698 = vst [vmem:[#allocation2 + $0x48] sm:$0xff] %v2544
    %2699 = vst [vmem:[#allocation2 + $0x50] sm:$0xff] %v2655
    %2700 = vst [vmem:[#allocation2 + $0x58] sm:$0xff] %v2657
    %2701 = vst [vmem:[#allocation2 + $0x60] sm:$0xff] %v2548
    %2702 = vst [vmem:[#allocation2 + $0x68] sm:$0xff] %v2550
    %2703 = vst [vmem:[#allocation2 + $0x70] sm:$0xff] %v2661
    %2704 = vst [vmem:[#allocation2 + $0x78] sm:$0xff] %v2663
    %2705 = vst [vmem:[#allocation2 + $0x80] sm:$0xff] %v2554
    %2706 = vst [vmem:[#allocation2 + $0x88] sm:$0xff] %v2556
    %2707 = vst [vmem:[#allocation2 + $0x90] sm:$0xff] %v2667
    %2708 = vst [vmem:[#allocation2 + $0x98] sm:$0xff] %v2669
    %2709 = vst [vmem:[#allocation2 + $0xa0] sm:$0xff] %v2560
    %2710 = vst [vmem:[#allocation2 + $0xa8] sm:$0xff] %v2562
    %2711 = vst [vmem:[#allocation2 + $0xb0] sm:$0xff] %v2673
    %2712 = vst [vmem:[#allocation2 + $0xb8] sm:$0xff] %v2675
    %2713 = vst [vmem:[#allocation2 + $0xc0] sm:$0xff] %v2566
    %2714 = vst [vmem:[#allocation2 + $0xc8] sm:$0xff] %v2568
    %2715 = vst [vmem:[#allocation2 + $0xd0] sm:$0xff] %v2679
    %2716 = vst [vmem:[#allocation2 + $0xd8] sm:$0xff] %v2681
    %2717 = vst [vmem:[#allocation2 + $0xe0] sm:$0xff] %v2572
    %2718 = vst [vmem:[#allocation2 + $0xe8] sm:$0xff] %v2574
    %2719 = vst [vmem:[#allocation2 + $0xf0] sm:$0xff] %v2685
    %2720 = vst [vmem:[#allocation2 + $0xf8] sm:$0xff] %v2687
    %v2721 = vld [vmem:[%s428] sm:$0xff]
    %v2722 = vld [vmem:[%s428 + $0x8] sm:$0xff]
    %v2723 = vld [vmem:[%s428 + $0x10] sm:$0xff]
    %v2724 = vld [vmem:[%s428 + $0x18] sm:$0xff]
    %v2725 = vld [vmem:[#allocation8] sm:$0xff]
    %v2726 = vld [vmem:[#allocation8 + $0x8] sm:$0xff]
    %v2727 = vld [vmem:[#allocation8 + $0x10] sm:$0xff]
    %v2728 = vld [vmem:[#allocation8 + $0x18] sm:$0xff]
    %v2729 = vld [vmem:[#allocation8 + $0x20] sm:$0xff]
    %v2730 = vld [vmem:[#allocation8 + $0x28] sm:$0xff]
    %v2731 = vld [vmem:[#allocation8 + $0x30] sm:$0xff]
    %v2732 = vld [vmem:[#allocation8 + $0x38] sm:$0xff]
    %v2733 = vld [vmem:[#allocation8 + $0x40] sm:$0xff]
    %v2734 = vld [vmem:[#allocation8 + $0x48] sm:$0xff]
    %v2735 = vld [vmem:[#allocation8 + $0x50] sm:$0xff]
    %v2736 = vld [vmem:[#allocation8 + $0x58] sm:$0xff]
    %v2737 = vld [vmem:[#allocation8 + $0x60] sm:$0xff]
    %v2738 = vld [vmem:[#allocation8 + $0x68] sm:$0xff]
    %v2739 = vld [vmem:[#allocation8 + $0x70] sm:$0xff]
    %v2740 = vld [vmem:[#allocation8 + $0x78] sm:$0xff]
    %v2741 = vld [vmem:[#allocation8 + $0x80] sm:$0xff]
    %v2742 = vld [vmem:[#allocation8 + $0x88] sm:$0xff]
    %v2743 = vld [vmem:[#allocation8 + $0x90] sm:$0xff]
    %v2744 = vld [vmem:[#allocation8 + $0x98] sm:$0xff]
    %v2745 = vld [vmem:[#allocation8 + $0xa0] sm:$0xff]
    %v2746 = vld [vmem:[#allocation8 + $0xa8] sm:$0xff]
    %v2747 = vld [vmem:[#allocation8 + $0xb0] sm:$0xff]
    %v2748 = vld [vmem:[#allocation8 + $0xb8] sm:$0xff]
    %v2749 = vld [vmem:[#allocation8 + $0xc0] sm:$0xff]
    %v2750 = vld [vmem:[#allocation8 + $0xc8] sm:$0xff]
    %v2751 = vld [vmem:[#allocation8 + $0xd0] sm:$0xff]
    %v2752 = vld [vmem:[#allocation8 + $0xd8] sm:$0xff]
    %v2753 = vld [vmem:[#allocation8 + $0xe0] sm:$0xff]
    %v2754 = vld [vmem:[#allocation8 + $0xe8] sm:$0xff]
    %v2755 = vld [vmem:[#allocation8 + $0xf0] sm:$0xff]
    %v2756 = vld [vmem:[#allocation8 + $0xf8] sm:$0xff]
    %v2757 = vld [vmem:[#allocation8 + $0x100] sm:$0xff]
    %v2758 = vld [vmem:[#allocation8 + $0x108] sm:$0xff]
    %v2759 = vld [vmem:[#allocation8 + $0x110] sm:$0xff]
    %v2760 = vld [vmem:[#allocation8 + $0x118] sm:$0xff]
    %v2761 = vld [vmem:[#allocation8 + $0x120] sm:$0xff]
    %v2762 = vld [vmem:[#allocation8 + $0x128] sm:$0xff]
    %v2763 = vld [vmem:[#allocation8 + $0x130] sm:$0xff]
    %v2764 = vld [vmem:[#allocation8 + $0x138] sm:$0xff]
    %v2765 = vld [vmem:[#allocation8 + $0x140] sm:$0xff]
    %v2766 = vld [vmem:[#allocation8 + $0x148] sm:$0xff]
    %v2767 = vld [vmem:[#allocation8 + $0x150] sm:$0xff]
    %v2768 = vld [vmem:[#allocation8 + $0x158] sm:$0xff]
    %v2769 = vld [vmem:[#allocation8 + $0x160] sm:$0xff]
    %v2770 = vld [vmem:[#allocation8 + $0x168] sm:$0xff]
    %v2771 = vld [vmem:[#allocation8 + $0x170] sm:$0xff]
    %v2772 = vld [vmem:[#allocation8 + $0x178] sm:$0xff]
    %v2773 = vld [vmem:[#allocation8 + $0x180] sm:$0xff]
    %v2774 = vld [vmem:[#allocation8 + $0x188] sm:$0xff]
    %v2775 = vld [vmem:[#allocation8 + $0x190] sm:$0xff]
    %v2776 = vld [vmem:[#allocation8 + $0x198] sm:$0xff]
    %v2777 = vld [vmem:[#allocation8 + $0x1a0] sm:$0xff]
    %v2778 = vld [vmem:[#allocation8 + $0x1a8] sm:$0xff]
    %v2779 = vld [vmem:[#allocation8 + $0x1b0] sm:$0xff]
    %v2780 = vld [vmem:[#allocation8 + $0x1b8] sm:$0xff]
    %v2781 = vld [vmem:[#allocation8 + $0x1c0] sm:$0xff]
    %v2782 = vld [vmem:[#allocation8 + $0x1c8] sm:$0xff]
    %v2783 = vld [vmem:[#allocation8 + $0x1d0] sm:$0xff]
    %v2784 = vld [vmem:[#allocation8 + $0x1d8] sm:$0xff]
    %v2785 = vld [vmem:[#allocation8 + $0x1e0] sm:$0xff]
    %v2786 = vld [vmem:[#allocation8 + $0x1e8] sm:$0xff]
    %v2787 = vld [vmem:[#allocation8 + $0x1f0] sm:$0xff]
    %v2788 = vld [vmem:[#allocation8 + $0x1f8] sm:$0xff]
    %2789 = vmatprep.subr.mxu0 %v2786
    %2790 = vmatpush1.msra.mxu0 %v2785
    %2791 = vmatprep.subr.mxu0 %v2782
    %2792 = vmatpush1.msra.mxu0 %v2781
    %2793 = vmatprep.subr.mxu0 %v2778
    %2794 = vmatpush1.msra.mxu0 %v2777
    %2795 = vmatprep.subr.mxu0 %v2774
    %2796 = vmatpush1.msra.mxu0 %v2773
    %2797 = vmatprep.subr.mxu0 %v2770
    %2798 = vmatpush1.msra.mxu0 %v2769
    %2799 = vmatprep.subr.mxu0 %v2766
    %2800 = vmatpush1.msra.mxu0 %v2765
    %2801 = vmatprep.subr.mxu0 %v2762
    %2802 = vmatpush1.msra.mxu0 %v2761
    %2803 = vmatprep.subr.mxu0 %v2758
    %2804 = vmatpush1.msra.mxu0 %v2757
    %2805 = vmatprep.subr.mxu0 %v2754
    %2806 = vmatpush1.msra.mxu0 %v2753
    %2807 = vmatprep.subr.mxu0 %v2750
    %2808 = vmatpush1.msra.mxu0 %v2749
    %2809 = vmatprep.subr.mxu0 %v2746
    %2810 = vmatpush1.msra.mxu0 %v2745
    %2811 = vmatprep.subr.mxu0 %v2742
    %2812 = vmatpush1.msra.mxu0 %v2741
    %2813 = vmatprep.subr.mxu0 %v2738
    %2814 = vmatpush1.msra.mxu0 %v2737
    %2815 = vmatprep.subr.mxu0 %v2734
    %2816 = vmatpush1.msra.mxu0 %v2733
    %2817 = vmatprep.subr.mxu0 %v2730
    %2818 = vmatpush1.msra.mxu0 %v2729
    %2819 = vmatprep.subr.mxu0 %v2726
    %2820 = vmatpush1.msra.mxu0 %v2725
    %2821 = vmatprep.subr.mxu0 0.0
    %2822 = vmatpush2.msra.mxu0 0.0
    %2823 = vmatprep.subr.mxu0 0.0
    %2824 = vmatpush2.msra.mxu0 0.0
    %2825 = vmatprep.subr.mxu0 0.0
    %2826 = vmatpush2.msra.mxu0 0.0
    %2827 = vmatprep.subr.mxu0 0.0
    %2828 = vmatpush2.msra.mxu0 0.0
    %2829 = vmatprep.subr.mxu0 0.0
    %2830 = vmatpush2.msra.mxu0 0.0
    %2831 = vmatprep.subr.mxu0 0.0
    %2832 = vmatpush2.msra.mxu0 0.0
    %2833 = vmatprep.subr.mxu0 0.0
    %2834 = vmatpush2.msra.mxu0 0.0
    %2835 = vmatprep.subr.mxu0 0.0
    %2836 = vmatpush2.msra.mxu0 0.0
    %2837 = vmatprep.subr.mxu0 0.0
    %2838 = vmatpush2.msra.mxu0 0.0
    %2839 = vmatprep.subr.mxu0 0.0
    %2840 = vmatpush2.msra.mxu0 0.0
    %2841 = vmatprep.subr.mxu0 0.0
    %2842 = vmatpush2.msra.mxu0 0.0
    %2843 = vmatprep.subr.mxu0 0.0
    %2844 = vmatpush2.msra.mxu0 0.0
    %2845 = vmatprep.subr.mxu0 0.0
    %2846 = vmatpush2.msra.mxu0 0.0
    %2847 = vmatprep.subr.mxu0 0.0
    %2848 = vmatpush2.msra.mxu0 0.0
    %2849 = vmatprep.subr.mxu0 0.0
    %2850 = vmatpush2.msra.mxu0 0.0
    %2851 = vmatprep.subr.mxu0 0.0
    %2852 = vmatpush2.msra.mxu0 0.0
    %2853 = vmatprep.mubr.f32.mxu0 0.0
    %2854 = vmatmul.mubr.f32.gmra.mxu0 0.0
    %v2855 = vpop.f32.mrf.mxu0
    %v2856 = vadd.f32 0.0, %v2855
    %v2857 = vpop.f32.mrf.mxu0
    %v2858 = vadd.f32 0.0, %v2857
    %2859 = vdwg.mxu0
    %2860 = vmatprep.subr.mxu0 %v2788
    %2861 = vmatpush1.msra.mxu0 %v2787
    %2862 = vmatprep.subr.mxu0 %v2784
    %2863 = vmatpush1.msra.mxu0 %v2783
    %2864 = vmatprep.subr.mxu0 %v2780
    %2865 = vmatpush1.msra.mxu0 %v2779
    %2866 = vmatprep.subr.mxu0 %v2776
    %2867 = vmatpush1.msra.mxu0 %v2775
    %2868 = vmatprep.subr.mxu0 %v2772
    %2869 = vmatpush1.msra.mxu0 %v2771
    %2870 = vmatprep.subr.mxu0 %v2768
    %2871 = vmatpush1.msra.mxu0 %v2767
    %2872 = vmatprep.subr.mxu0 %v2764
    %2873 = vmatpush1.msra.mxu0 %v2763
    %2874 = vmatprep.subr.mxu0 %v2760
    %2875 = vmatpush1.msra.mxu0 %v2759
    %2876 = vmatprep.subr.mxu0 %v2756
    %2877 = vmatpush1.msra.mxu0 %v2755
    %2878 = vmatprep.subr.mxu0 %v2752
    %2879 = vmatpush1.msra.mxu0 %v2751
    %2880 = vmatprep.subr.mxu0 %v2748
    %2881 = vmatpush1.msra.mxu0 %v2747
    %2882 = vmatprep.subr.mxu0 %v2744
    %2883 = vmatpush1.msra.mxu0 %v2743
    %2884 = vmatprep.subr.mxu0 %v2740
    %2885 = vmatpush1.msra.mxu0 %v2739
    %2886 = vmatprep.subr.mxu0 %v2736
    %2887 = vmatpush1.msra.mxu0 %v2735
    %2888 = vmatprep.subr.mxu0 %v2732
    %2889 = vmatpush1.msra.mxu0 %v2731
    %2890 = vmatprep.subr.mxu0 %v2728
    %2891 = vmatpush1.msra.mxu0 %v2727
    %2892 = vmatprep.subr.mxu0 0.0
    %2893 = vmatpush2.msra.mxu0 0.0
    %2894 = vmatprep.subr.mxu0 0.0
    %2895 = vmatpush2.msra.mxu0 0.0
    %2896 = vmatprep.subr.mxu0 0.0
    %2897 = vmatpush2.msra.mxu0 0.0
    %2898 = vmatprep.subr.mxu0 0.0
    %2899 = vmatpush2.msra.mxu0 0.0
    %2900 = vmatprep.subr.mxu0 0.0
    %2901 = vmatpush2.msra.mxu0 0.0
    %2902 = vmatprep.subr.mxu0 0.0
    %2903 = vmatpush2.msra.mxu0 0.0
    %2904 = vmatprep.subr.mxu0 0.0
    %2905 = vmatpush2.msra.mxu0 0.0
    %2906 = vmatprep.subr.mxu0 0.0
    %2907 = vmatpush2.msra.mxu0 0.0
    %2908 = vmatprep.subr.mxu0 0.0
    %2909 = vmatpush2.msra.mxu0 0.0
    %2910 = vmatprep.subr.mxu0 0.0
    %2911 = vmatpush2.msra.mxu0 0.0
    %2912 = vmatprep.subr.mxu0 0.0
    %2913 = vmatpush2.msra.mxu0 0.0
    %2914 = vmatprep.subr.mxu0 0.0
    %2915 = vmatpush2.msra.mxu0 0.0
    %2916 = vmatprep.subr.mxu0 0.0
    %2917 = vmatpush2.msra.mxu0 0.0
    %2918 = vmatprep.subr.mxu0 0.0
    %2919 = vmatpush2.msra.mxu0 0.0
    %2920 = vmatprep.subr.mxu0 0.0
    %2921 = vmatpush2.msra.mxu0 0.0
    %2922 = vmatprep.subr.mxu0 0.0
    %2923 = vmatpush2.msra.mxu0 0.0
    %2924 = vmatprep.mubr.f32.mxu0 0.0
    %2925 = vmatmul.mubr.f32.gmra.mxu0 0.0
    %v2926 = vpop.f32.mrf.mxu0
    %v2927 = vadd.f32 0.0, %v2926
    %v2928 = vpop.f32.mrf.mxu0
    %v2929 = vadd.f32 0.0, %v2928
    %2930 = vdwg.mxu0
    %v2931 = vadd.f32 %v2721, %v2856
    %v2932 = vadd.f32 %v2722, %v2858
    %v2933 = vadd.f32 %v2723, %v2927
    %v2934 = vadd.f32 %v2724, %v2929
    %v2935 = vxor.u32 %v2931, 2147483648
    %v2936 = vmul.f32 %v2935, 1.442695
    %v2937 = vpow.pop %v2936
    %v2938 = vadd.f32 %v2937, 1.0
    %v2939 = vrcp.pop %v2938
    %v2940 = vmul.f32 1.0, %v2939
    %v2941 = vxor.u32 %v2932, 2147483648
    %v2942 = vmul.f32 %v2941, 1.442695
    %v2943 = vpow.pop %v2942
    %v2944 = vadd.f32 %v2943, 1.0
    %v2945 = vrcp.pop %v2944
    %v2946 = vmul.f32 1.0, %v2945
    %v2947 = vtanh.pop %v2933
    %v2948 = vxor.u32 %v2934, 2147483648
    %v2949 = vmul.f32 %v2948, 1.442695
    %v2950 = vpow.pop %v2949
    %v2951 = vadd.f32 %v2950, 1.0
    %v2952 = vrcp.pop %v2951
    %v2953 = vmul.f32 1.0, %v2952
    %v2954 = vmul.f32 %v2946, 0.0
    %v2955 = vmul.f32 %v2940, %v2947
    %v2956 = vadd.f32 %v2954, %v2955
    %v2957 = vtanh.pop %v2956
    %v2958 = vmul.f32 %v2953, %v2957
    %2959 = vst [vmem:[#allocation3] sm:$0xff] %v2958
    %v2960 = vld [vmem:[%s670] sm:$0xff]
    %v2961 = vld [vmem:[%s670 + $0x8] sm:$0xff]
    %v2962 = vld [vmem:[%s670 + $0x10] sm:$0xff]
    %v2963 = vld [vmem:[%s670 + $0x18] sm:$0xff]
    %v2964 = vld [vmem:[#allocation8] sm:$0xff]
    %v2965 = vld [vmem:[#allocation8 + $0x8] sm:$0xff]
    %v2966 = vld [vmem:[#allocation8 + $0x10] sm:$0xff]
    %v2967 = vld [vmem:[#allocation8 + $0x18] sm:$0xff]
    %v2968 = vld [vmem:[#allocation8 + $0x20] sm:$0xff]
    %v2969 = vld [vmem:[#allocation8 + $0x28] sm:$0xff]
    %v2970 = vld [vmem:[#allocation8 + $0x30] sm:$0xff]
    %v2971 = vld [vmem:[#allocation8 + $0x38] sm:$0xff]
    %v2972 = vld [vmem:[#allocation8 + $0x40] sm:$0xff]
    %v2973 = vld [vmem:[#allocation8 + $0x48] sm:$0xff]
    %v2974 = vld [vmem:[#allocation8 + $0x50] sm:$0xff]
    %v2975 = vld [vmem:[#allocation8 + $0x58] sm:$0xff]
    %v2976 = vld [vmem:[#allocation8 + $0x60] sm:$0xff]
    %v2977 = vld [vmem:[#allocation8 + $0x68] sm:$0xff]
    %v2978 = vld [vmem:[#allocation8 + $0x70] sm:$0xff]
    %v2979 = vld [vmem:[#allocation8 + $0x78] sm:$0xff]
    %v2980 = vld [vmem:[#allocation8 + $0x80] sm:$0xff]
    %v2981 = vld [vmem:[#allocation8 + $0x88] sm:$0xff]
    %v2982 = vld [vmem:[#allocation8 + $0x90] sm:$0xff]
    %v2983 = vld [vmem:[#allocation8 + $0x98] sm:$0xff]
    %v2984 = vld [vmem:[#allocation8 + $0xa0] sm:$0xff]
    %v2985 = vld [vmem:[#allocation8 + $0xa8] sm:$0xff]
    %v2986 = vld [vmem:[#allocation8 + $0xb0] sm:$0xff]
    %v2987 = vld [vmem:[#allocation8 + $0xb8] sm:$0xff]
    %v2988 = vld [vmem:[#allocation8 + $0xc0] sm:$0xff]
    %v2989 = vld [vmem:[#allocation8 + $0xc8] sm:$0xff]
    %v2990 = vld [vmem:[#allocation8 + $0xd0] sm:$0xff]
    %v2991 = vld [vmem:[#allocation8 + $0xd8] sm:$0xff]
    %v2992 = vld [vmem:[#allocation8 + $0xe0] sm:$0xff]
    %v2993 = vld [vmem:[#allocation8 + $0xe8] sm:$0xff]
    %v2994 = vld [vmem:[#allocation8 + $0xf0] sm:$0xff]
    %v2995 = vld [vmem:[#allocation8 + $0xf8] sm:$0xff]
    %v2996 = vld [vmem:[#allocation8 + $0x100] sm:$0xff]
    %v2997 = vld [vmem:[#allocation8 + $0x108] sm:$0xff]
    %v2998 = vld [vmem:[#allocation8 + $0x110] sm:$0xff]
    %v2999 = vld [vmem:[#allocation8 + $0x118] sm:$0xff]
    %v3000 = vld [vmem:[#allocation8 + $0x120] sm:$0xff]
    %v3001 = vld [vmem:[#allocation8 + $0x128] sm:$0xff]
    %v3002 = vld [vmem:[#allocation8 + $0x130] sm:$0xff]
    %v3003 = vld [vmem:[#allocation8 + $0x138] sm:$0xff]
    %v3004 = vld [vmem:[#allocation8 + $0x140] sm:$0xff]
    %v3005 = vld [vmem:[#allocation8 + $0x148] sm:$0xff]
    %v3006 = vld [vmem:[#allocation8 + $0x150] sm:$0xff]
    %v3007 = vld [vmem:[#allocation8 + $0x158] sm:$0xff]
    %v3008 = vld [vmem:[#allocation8 + $0x160] sm:$0xff]
    %v3009 = vld [vmem:[#allocation8 + $0x168] sm:$0xff]
    %v3010 = vld [vmem:[#allocation8 + $0x170] sm:$0xff]
    %v3011 = vld [vmem:[#allocation8 + $0x178] sm:$0xff]
    %v3012 = vld [vmem:[#allocation8 + $0x180] sm:$0xff]
    %v3013 = vld [vmem:[#allocation8 + $0x188] sm:$0xff]
    %v3014 = vld [vmem:[#allocation8 + $0x190] sm:$0xff]
    %v3015 = vld [vmem:[#allocation8 + $0x198] sm:$0xff]
    %v3016 = vld [vmem:[#allocation8 + $0x1a0] sm:$0xff]
    %v3017 = vld [vmem:[#allocation8 + $0x1a8] sm:$0xff]
    %v3018 = vld [vmem:[#allocation8 + $0x1b0] sm:$0xff]
    %v3019 = vld [vmem:[#allocation8 + $0x1b8] sm:$0xff]
    %v3020 = vld [vmem:[#allocation8 + $0x1c0] sm:$0xff]
    %v3021 = vld [vmem:[#allocation8 + $0x1c8] sm:$0xff]
    %v3022 = vld [vmem:[#allocation8 + $0x1d0] sm:$0xff]
    %v3023 = vld [vmem:[#allocation8 + $0x1d8] sm:$0xff]
    %v3024 = vld [vmem:[#allocation8 + $0x1e0] sm:$0xff]
    %v3025 = vld [vmem:[#allocation8 + $0x1e8] sm:$0xff]
    %v3026 = vld [vmem:[#allocation8 + $0x1f0] sm:$0xff]
    %v3027 = vld [vmem:[#allocation8 + $0x1f8] sm:$0xff]
    %3028 = vmatprep.subr.mxu0 %v3025
    %3029 = vmatpush1.msra.mxu0 %v3024
    %3030 = vmatprep.subr.mxu0 %v3021
    %3031 = vmatpush1.msra.mxu0 %v3020
    %3032 = vmatprep.subr.mxu0 %v3017
    %3033 = vmatpush1.msra.mxu0 %v3016
    %3034 = vmatprep.subr.mxu0 %v3013
    %3035 = vmatpush1.msra.mxu0 %v3012
    %3036 = vmatprep.subr.mxu0 %v3009
    %3037 = vmatpush1.msra.mxu0 %v3008
    %3038 = vmatprep.subr.mxu0 %v3005
    %3039 = vmatpush1.msra.mxu0 %v3004
    %3040 = vmatprep.subr.mxu0 %v3001
    %3041 = vmatpush1.msra.mxu0 %v3000
    %3042 = vmatprep.subr.mxu0 %v2997
    %3043 = vmatpush1.msra.mxu0 %v2996
    %3044 = vmatprep.subr.mxu0 %v2993
    %3045 = vmatpush1.msra.mxu0 %v2992
    %3046 = vmatprep.subr.mxu0 %v2989
    %3047 = vmatpush1.msra.mxu0 %v2988
    %3048 = vmatprep.subr.mxu0 %v2985
    %3049 = vmatpush1.msra.mxu0 %v2984
    %3050 = vmatprep.subr.mxu0 %v2981
    %3051 = vmatpush1.msra.mxu0 %v2980
    %3052 = vmatprep.subr.mxu0 %v2977
    %3053 = vmatpush1.msra.mxu0 %v2976
    %3054 = vmatprep.subr.mxu0 %v2973
    %3055 = vmatpush1.msra.mxu0 %v2972
    %3056 = vmatprep.subr.mxu0 %v2969
    %3057 = vmatpush1.msra.mxu0 %v2968
    %3058 = vmatprep.subr.mxu0 %v2965
    %3059 = vmatpush1.msra.mxu0 %v2964
    %3060 = vmatprep.subr.mxu0 0.0
    %3061 = vmatpush2.msra.mxu0 0.0
    %3062 = vmatprep.subr.mxu0 0.0
    %3063 = vmatpush2.msra.mxu0 0.0
    %3064 = vmatprep.subr.mxu0 0.0
    %3065 = vmatpush2.msra.mxu0 0.0
    %3066 = vmatprep.subr.mxu0 0.0
    %3067 = vmatpush2.msra.mxu0 0.0
    %3068 = vmatprep.subr.mxu0 0.0
    %3069 = vmatpush2.msra.mxu0 0.0
    %3070 = vmatprep.subr.mxu0 0.0
    %3071 = vmatpush2.msra.mxu0 0.0
    %3072 = vmatprep.subr.mxu0 0.0
    %3073 = vmatpush2.msra.mxu0 0.0
    %3074 = vmatprep.subr.mxu0 0.0
    %3075 = vmatpush2.msra.mxu0 0.0
    %3076 = vmatprep.subr.mxu0 0.0
    %3077 = vmatpush2.msra.mxu0 0.0
    %3078 = vmatprep.subr.mxu0 0.0
    %3079 = vmatpush2.msra.mxu0 0.0
    %3080 = vmatprep.subr.mxu0 0.0
    %3081 = vmatpush2.msra.mxu0 0.0
    %3082 = vmatprep.subr.mxu0 0.0
    %3083 = vmatpush2.msra.mxu0 0.0
    %3084 = vmatprep.subr.mxu0 0.0
    %3085 = vmatpush2.msra.mxu0 0.0
    %3086 = vmatprep.subr.mxu0 0.0
    %3087 = vmatpush2.msra.mxu0 0.0
    %3088 = vmatprep.subr.mxu0 0.0
    %3089 = vmatpush2.msra.mxu0 0.0
    %3090 = vmatprep.subr.mxu0 0.0
    %3091 = vmatpush2.msra.mxu0 0.0
    %3092 = vmatprep.mubr.f32.mxu0 0.0
    %3093 = vmatmul.mubr.f32.gmra.mxu0 %v2958
    %v3094 = vpop.f32.mrf.mxu0
    %v3095 = vadd.f32 0.0, %v3094
    %v3096 = vpop.f32.mrf.mxu0
    %v3097 = vadd.f32 0.0, %v3096
    %3098 = vdwg.mxu0
    %3099 = vmatprep.subr.mxu0 %v3027
    %3100 = vmatpush1.msra.mxu0 %v3026
    %3101 = vmatprep.subr.mxu0 %v3023
    %3102 = vmatpush1.msra.mxu0 %v3022
    %3103 = vmatprep.subr.mxu0 %v3019
    %3104 = vmatpush1.msra.mxu0 %v3018
    %3105 = vmatprep.subr.mxu0 %v3015
    %3106 = vmatpush1.msra.mxu0 %v3014
    %3107 = vmatprep.subr.mxu0 %v3011
    %3108 = vmatpush1.msra.mxu0 %v3010
    %3109 = vmatprep.subr.mxu0 %v3007
    %3110 = vmatpush1.msra.mxu0 %v3006
    %3111 = vmatprep.subr.mxu0 %v3003
    %3112 = vmatpush1.msra.mxu0 %v3002
    %3113 = vmatprep.subr.mxu0 %v2999
    %3114 = vmatpush1.msra.mxu0 %v2998
    %3115 = vmatprep.subr.mxu0 %v2995
    %3116 = vmatpush1.msra.mxu0 %v2994
    %3117 = vmatprep.subr.mxu0 %v2991
    %3118 = vmatpush1.msra.mxu0 %v2990
    %3119 = vmatprep.subr.mxu0 %v2987
    %3120 = vmatpush1.msra.mxu0 %v2986
    %3121 = vmatprep.subr.mxu0 %v2983
    %3122 = vmatpush1.msra.mxu0 %v2982
    %3123 = vmatprep.subr.mxu0 %v2979
    %3124 = vmatpush1.msra.mxu0 %v2978
    %3125 = vmatprep.subr.mxu0 %v2975
    %3126 = vmatpush1.msra.mxu0 %v2974
    %3127 = vmatprep.subr.mxu0 %v2971
    %3128 = vmatpush1.msra.mxu0 %v2970
    %3129 = vmatprep.subr.mxu0 %v2967
    %3130 = vmatpush1.msra.mxu0 %v2966
    %3131 = vmatprep.subr.mxu0 0.0
    %3132 = vmatpush2.msra.mxu0 0.0
    %3133 = vmatprep.subr.mxu0 0.0
    %3134 = vmatpush2.msra.mxu0 0.0
    %3135 = vmatprep.subr.mxu0 0.0
    %3136 = vmatpush2.msra.mxu0 0.0
    %3137 = vmatprep.subr.mxu0 0.0
    %3138 = vmatpush2.msra.mxu0 0.0
    %3139 = vmatprep.subr.mxu0 0.0
    %3140 = vmatpush2.msra.mxu0 0.0
    %3141 = vmatprep.subr.mxu0 0.0
    %3142 = vmatpush2.msra.mxu0 0.0
    %3143 = vmatprep.subr.mxu0 0.0
    %3144 = vmatpush2.msra.mxu0 0.0
    %3145 = vmatprep.subr.mxu0 0.0
    %3146 = vmatpush2.msra.mxu0 0.0
    %3147 = vmatprep.subr.mxu0 0.0
    %3148 = vmatpush2.msra.mxu0 0.0
    %3149 = vmatprep.subr.mxu0 0.0
    %3150 = vmatpush2.msra.mxu0 0.0
    %3151 = vmatprep.subr.mxu0 0.0
    %3152 = vmatpush2.msra.mxu0 0.0
    %3153 = vmatprep.subr.mxu0 0.0
    %3154 = vmatpush2.msra.mxu0 0.0
    %3155 = vmatprep.subr.mxu0 0.0
    %3156 = vmatpush2.msra.mxu0 0.0
    %3157 = vmatprep.subr.mxu0 0.0
    %3158 = vmatpush2.msra.mxu0 0.0
    %3159 = vmatprep.subr.mxu0 0.0
    %3160 = vmatpush2.msra.mxu0 0.0
    %3161 = vmatprep.subr.mxu0 0.0
    %3162 = vmatpush2.msra.mxu0 0.0
    %3163 = vmatprep.mubr.f32.mxu0 0.0
    %3164 = vmatmul.mubr.f32.gmra.mxu0 %v2958
    %v3165 = vpop.f32.mrf.mxu0
    %v3166 = vadd.f32 0.0, %v3165
    %v3167 = vpop.f32.mrf.mxu0
    %v3168 = vadd.f32 0.0, %v3167
    %3169 = vdwg.mxu0
    %v3170 = vadd.f32 %v2960, %v3095
    %v3171 = vadd.f32 %v2961, %v3097
    %v3172 = vadd.f32 %v2962, %v3166
    %v3173 = vadd.f32 %v2963, %v3168
    %v3174 = vxor.u32 %v3170, 2147483648
    %v3175 = vmul.f32 %v3174, 1.442695
    %v3176 = vpow.pop %v3175
    %v3177 = vadd.f32 %v3176, 1.0
    %v3178 = vrcp.pop %v3177
    %v3179 = vmul.f32 1.0, %v3178
    %v3180 = vxor.u32 %v3171, 2147483648
    %v3181 = vmul.f32 %v3180, 1.442695
    %v3182 = vpow.pop %v3181
    %v3183 = vadd.f32 %v3182, 1.0
    %v3184 = vrcp.pop %v3183
    %v3185 = vmul.f32 1.0, %v3184
    %v3186 = vtanh.pop %v3172
    %v3187 = vxor.u32 %v3173, 2147483648
    %v3188 = vmul.f32 %v3187, 1.442695
    %v3189 = vpow.pop %v3188
    %v3190 = vadd.f32 %v3189, 1.0
    %v3191 = vrcp.pop %v3190
    %v3192 = vmul.f32 1.0, %v3191
    %v3193 = vmul.f32 %v3185, %v2956
    %v3194 = vmul.f32 %v3179, %v3186
    %v3195 = vadd.f32 %v3193, %v3194
    %v3196 = vtanh.pop %v3195
    %v3197 = vmul.f32 %v3192, %v3196
    %3198 = vst [vmem:[%s909] sm:$0xff] %v3197
    %v3199 = vld [vmem:[%s913] sm:$0xff]
    %v3200 = vld [vmem:[%s913 + $0x8] sm:$0xff]
    %v3201 = vld [vmem:[%s913 + $0x10] sm:$0xff]
    %v3202 = vld [vmem:[%s913 + $0x18] sm:$0xff]
    %v3203 = vld [vmem:[#allocation8] sm:$0xff]
    %v3204 = vld [vmem:[#allocation8 + $0x8] sm:$0xff]
    %v3205 = vld [vmem:[#allocation8 + $0x10] sm:$0xff]
    %v3206 = vld [vmem:[#allocation8 + $0x18] sm:$0xff]
    %v3207 = vld [vmem:[#allocation8 + $0x20] sm:$0xff]
    %v3208 = vld [vmem:[#allocation8 + $0x28] sm:$0xff]
    %v3209 = vld [vmem:[#allocation8 + $0x30] sm:$0xff]
    %v3210 = vld [vmem:[#allocation8 + $0x38] sm:$0xff]
    %v3211 = vld [vmem:[#allocation8 + $0x40] sm:$0xff]
    %v3212 = vld [vmem:[#allocation8 + $0x48] sm:$0xff]
    %v3213 = vld [vmem:[#allocation8 + $0x50] sm:$0xff]
    %v3214 = vld [vmem:[#allocation8 + $0x58] sm:$0xff]
    %v3215 = vld [vmem:[#allocation8 + $0x60] sm:$0xff]
    %v3216 = vld [vmem:[#allocation8 + $0x68] sm:$0xff]
    %v3217 = vld [vmem:[#allocation8 + $0x70] sm:$0xff]
    %v3218 = vld [vmem:[#allocation8 + $0x78] sm:$0xff]
    %v3219 = vld [vmem:[#allocation8 + $0x80] sm:$0xff]
    %v3220 = vld [vmem:[#allocation8 + $0x88] sm:$0xff]
    %v3221 = vld [vmem:[#allocation8 + $0x90] sm:$0xff]
    %v3222 = vld [vmem:[#allocation8 + $0x98] sm:$0xff]
    %v3223 = vld [vmem:[#allocation8 + $0xa0] sm:$0xff]
    %v3224 = vld [vmem:[#allocation8 + $0xa8] sm:$0xff]
    %v3225 = vld [vmem:[#allocation8 + $0xb0] sm:$0xff]
    %v3226 = vld [vmem:[#allocation8 + $0xb8] sm:$0xff]
    %v3227 = vld [vmem:[#allocation8 + $0xc0] sm:$0xff]
    %v3228 = vld [vmem:[#allocation8 + $0xc8] sm:$0xff]
    %v3229 = vld [vmem:[#allocation8 + $0xd0] sm:$0xff]
    %v3230 = vld [vmem:[#allocation8 + $0xd8] sm:$0xff]
    %v3231 = vld [vmem:[#allocation8 + $0xe0] sm:$0xff]
    %v3232 = vld [vmem:[#allocation8 + $0xe8] sm:$0xff]
    %v3233 = vld [vmem:[#allocation8 + $0xf0] sm:$0xff]
    %v3234 = vld [vmem:[#allocation8 + $0xf8] sm:$0xff]
    %v3235 = vld [vmem:[#allocation8 + $0x100] sm:$0xff]
    %v3236 = vld [vmem:[#allocation8 + $0x108] sm:$0xff]
    %v3237 = vld [vmem:[#allocation8 + $0x110] sm:$0xff]
    %v3238 = vld [vmem:[#allocation8 + $0x118] sm:$0xff]
    %v3239 = vld [vmem:[#allocation8 + $0x120] sm:$0xff]
    %v3240 = vld [vmem:[#allocation8 + $0x128] sm:$0xff]
    %v3241 = vld [vmem:[#allocation8 + $0x130] sm:$0xff]
    %v3242 = vld [vmem:[#allocation8 + $0x138] sm:$0xff]
    %v3243 = vld [vmem:[#allocation8 + $0x140] sm:$0xff]
    %v3244 = vld [vmem:[#allocation8 + $0x148] sm:$0xff]
    %v3245 = vld [vmem:[#allocation8 + $0x150] sm:$0xff]
    %v3246 = vld [vmem:[#allocation8 + $0x158] sm:$0xff]
    %v3247 = vld [vmem:[#allocation8 + $0x160] sm:$0xff]
    %v3248 = vld [vmem:[#allocation8 + $0x168] sm:$0xff]
    %v3249 = vld [vmem:[#allocation8 + $0x170] sm:$0xff]
    %v3250 = vld [vmem:[#allocation8 + $0x178] sm:$0xff]
    %v3251 = vld [vmem:[#allocation8 + $0x180] sm:$0xff]
    %v3252 = vld [vmem:[#allocation8 + $0x188] sm:$0xff]
    %v3253 = vld [vmem:[#allocation8 + $0x190] sm:$0xff]
    %v3254 = vld [vmem:[#allocation8 + $0x198] sm:$0xff]
    %v3255 = vld [vmem:[#allocation8 + $0x1a0] sm:$0xff]
    %v3256 = vld [vmem:[#allocation8 + $0x1a8] sm:$0xff]
    %v3257 = vld [vmem:[#allocation8 + $0x1b0] sm:$0xff]
    %v3258 = vld [vmem:[#allocation8 + $0x1b8] sm:$0xff]
    %v3259 = vld [vmem:[#allocation8 + $0x1c0] sm:$0xff]
    %v3260 = vld [vmem:[#allocation8 + $0x1c8] sm:$0xff]
    %v3261 = vld [vmem:[#allocation8 + $0x1d0] sm:$0xff]
    %v3262 = vld [vmem:[#allocation8 + $0x1d8] sm:$0xff]
    %v3263 = vld [vmem:[#allocation8 + $0x1e0] sm:$0xff]
    %v3264 = vld [vmem:[#allocation8 + $0x1e8] sm:$0xff]
    %v3265 = vld [vmem:[#allocation8 + $0x1f0] sm:$0xff]
    %v3266 = vld [vmem:[#allocation8 + $0x1f8] sm:$0xff]
    %3267 = vmatprep.subr.mxu0 %v3264
    %3268 = vmatpush1.msra.mxu0 %v3263
    %3269 = vmatprep.subr.mxu0 %v3260
    %3270 = vmatpush1.msra.mxu0 %v3259
    %3271 = vmatprep.subr.mxu0 %v3256
    %3272 = vmatpush1.msra.mxu0 %v3255
    %3273 = vmatprep.subr.mxu0 %v3252
    %3274 = vmatpush1.msra.mxu0 %v3251
    %3275 = vmatprep.subr.mxu0 %v3248
    %3276 = vmatpush1.msra.mxu0 %v3247
    %3277 = vmatprep.subr.mxu0 %v3244
    %3278 = vmatpush1.msra.mxu0 %v3243
    %3279 = vmatprep.subr.mxu0 %v3240
    %3280 = vmatpush1.msra.mxu0 %v3239
    %3281 = vmatprep.subr.mxu0 %v3236
    %3282 = vmatpush1.msra.mxu0 %v3235
    %3283 = vmatprep.subr.mxu0 %v3232
    %3284 = vmatpush1.msra.mxu0 %v3231
    %3285 = vmatprep.subr.mxu0 %v3228
    %3286 = vmatpush1.msra.mxu0 %v3227
    %3287 = vmatprep.subr.mxu0 %v3224
    %3288 = vmatpush1.msra.mxu0 %v3223
    %3289 = vmatprep.subr.mxu0 %v3220
    %3290 = vmatpush1.msra.mxu0 %v3219
    %3291 = vmatprep.subr.mxu0 %v3216
    %3292 = vmatpush1.msra.mxu0 %v3215
    %3293 = vmatprep.subr.mxu0 %v3212
    %3294 = vmatpush1.msra.mxu0 %v3211
    %3295 = vmatprep.subr.mxu0 %v3208
    %3296 = vmatpush1.msra.mxu0 %v3207
    %3297 = vmatprep.subr.mxu0 %v3204
    %3298 = vmatpush1.msra.mxu0 %v3203
    %3299 = vmatprep.subr.mxu0 0.0
    %3300 = vmatpush2.msra.mxu0 0.0
    %3301 = vmatprep.subr.mxu0 0.0
    %3302 = vmatpush2.msra.mxu0 0.0
    %3303 = vmatprep.subr.mxu0 0.0
    %3304 = vmatpush2.msra.mxu0 0.0
    %3305 = vmatprep.subr.mxu0 0.0
    %3306 = vmatpush2.msra.mxu0 0.0
    %3307 = vmatprep.subr.mxu0 0.0
    %3308 = vmatpush2.msra.mxu0 0.0
    %3309 = vmatprep.subr.mxu0 0.0
    %3310 = vmatpush2.msra.mxu0 0.0
    %3311 = vmatprep.subr.mxu0 0.0
    %3312 = vmatpush2.msra.mxu0 0.0
    %3313 = vmatprep.subr.mxu0 0.0
    %3314 = vmatpush2.msra.mxu0 0.0
    %3315 = vmatprep.subr.mxu0 0.0
    %3316 = vmatpush2.msra.mxu0 0.0
    %3317 = vmatprep.subr.mxu0 0.0
    %3318 = vmatpush2.msra.mxu0 0.0
    %3319 = vmatprep.subr.mxu0 0.0
    %3320 = vmatpush2.msra.mxu0 0.0
    %3321 = vmatprep.subr.mxu0 0.0
    %3322 = vmatpush2.msra.mxu0 0.0
    %3323 = vmatprep.subr.mxu0 0.0
    %3324 = vmatpush2.msra.mxu0 0.0
    %3325 = vmatprep.subr.mxu0 0.0
    %3326 = vmatpush2.msra.mxu0 0.0
    %3327 = vmatprep.subr.mxu0 0.0
    %3328 = vmatpush2.msra.mxu0 0.0
    %3329 = vmatprep.subr.mxu0 0.0
    %3330 = vmatpush2.msra.mxu0 0.0
    %3331 = vmatprep.mubr.f32.mxu0 0.0
    %3332 = vmatmul.mubr.f32.gmra.mxu0 %v3197
    %v3333 = vpop.f32.mrf.mxu0
    %v3334 = vadd.f32 0.0, %v3333
    %v3335 = vpop.f32.mrf.mxu0
    %v3336 = vadd.f32 0.0, %v3335
    %3337 = vdwg.mxu0
    %3338 = vmatprep.subr.mxu0 %v3266
    %3339 = vmatpush1.msra.mxu0 %v3265
    %3340 = vmatprep.subr.mxu0 %v3262
    %3341 = vmatpush1.msra.mxu0 %v3261
    %3342 = vmatprep.subr.mxu0 %v3258
    %3343 = vmatpush1.msra.mxu0 %v3257
    %3344 = vmatprep.subr.mxu0 %v3254
    %3345 = vmatpush1.msra.mxu0 %v3253
    %3346 = vmatprep.subr.mxu0 %v3250
    %3347 = vmatpush1.msra.mxu0 %v3249
    %3348 = vmatprep.subr.mxu0 %v3246
    %3349 = vmatpush1.msra.mxu0 %v3245
    %3350 = vmatprep.subr.mxu0 %v3242
    %3351 = vmatpush1.msra.mxu0 %v3241
    %3352 = vmatprep.subr.mxu0 %v3238
    %3353 = vmatpush1.msra.mxu0 %v3237
    %3354 = vmatprep.subr.mxu0 %v3234
    %3355 = vmatpush1.msra.mxu0 %v3233
    %3356 = vmatprep.subr.mxu0 %v3230
    %3357 = vmatpush1.msra.mxu0 %v3229
    %3358 = vmatprep.subr.mxu0 %v3226
    %3359 = vmatpush1.msra.mxu0 %v3225
    %3360 = vmatprep.subr.mxu0 %v3222
    %3361 = vmatpush1.msra.mxu0 %v3221
    %3362 = vmatprep.subr.mxu0 %v3218
    %3363 = vmatpush1.msra.mxu0 %v3217
    %3364 = vmatprep.subr.mxu0 %v3214
    %3365 = vmatpush1.msra.mxu0 %v3213
    %3366 = vmatprep.subr.mxu0 %v3210
    %3367 = vmatpush1.msra.mxu0 %v3209
    %3368 = vmatprep.subr.mxu0 %v3206
    %3369 = vmatpush1.msra.mxu0 %v3205
    %3370 = vmatprep.subr.mxu0 0.0
    %3371 = vmatpush2.msra.mxu0 0.0
    %3372 = vmatprep.subr.mxu0 0.0
    %3373 = vmatpush2.msra.mxu0 0.0
    %3374 = vmatprep.subr.mxu0 0.0
    %3375 = vmatpush2.msra.mxu0 0.0
    %3376 = vmatprep.subr.mxu0 0.0
    %3377 = vmatpush2.msra.mxu0 0.0
    %3378 = vmatprep.subr.mxu0 0.0
    %3379 = vmatpush2.msra.mxu0 0.0
    %3380 = vmatprep.subr.mxu0 0.0
    %3381 = vmatpush2.msra.mxu0 0.0
    %3382 = vmatprep.subr.mxu0 0.0
    %3383 = vmatpush2.msra.mxu0 0.0
    %3384 = vmatprep.subr.mxu0 0.0
    %3385 = vmatpush2.msra.mxu0 0.0
    %3386 = vmatprep.subr.mxu0 0.0
    %3387 = vmatpush2.msra.mxu0 0.0
    %3388 = vmatprep.subr.mxu0 0.0
    %3389 = vmatpush2.msra.mxu0 0.0
    %3390 = vmatprep.subr.mxu0 0.0
    %3391 = vmatpush2.msra.mxu0 0.0
    %3392 = vmatprep.subr.mxu0 0.0
    %3393 = vmatpush2.msra.mxu0 0.0
    %3394 = vmatprep.subr.mxu0 0.0
    %3395 = vmatpush2.msra.mxu0 0.0
    %3396 = vmatprep.subr.mxu0 0.0
    %3397 = vmatpush2.msra.mxu0 0.0
    %3398 = vmatprep.subr.mxu0 0.0
    %3399 = vmatpush2.msra.mxu0 0.0
    %3400 = vmatprep.subr.mxu0 0.0
    %3401 = vmatpush2.msra.mxu0 0.0
    %3402 = vmatprep.mubr.f32.mxu0 0.0
    %3403 = vmatmul.mubr.f32.gmra.mxu0 %v3197
    %v3404 = vpop.f32.mrf.mxu0
    %v3405 = vadd.f32 0.0, %v3404
    %v3406 = vpop.f32.mrf.mxu0
    %v3407 = vadd.f32 0.0, %v3406
    %3408 = vdwg.mxu0
    %v3409 = vadd.f32 %v3199, %v3334
    %v3410 = vadd.f32 %v3200, %v3336
    %v3411 = vadd.f32 %v3201, %v3405
    %v3412 = vadd.f32 %v3202, %v3407
    %v3413 = vxor.u32 %v3409, 2147483648
    %v3414 = vmul.f32 %v3413, 1.442695
    %v3415 = vpow.pop %v3414
    %v3416 = vadd.f32 %v3415, 1.0
    %v3417 = vrcp.pop %v3416
    %v3418 = vmul.f32 1.0, %v3417
    %v3419 = vxor.u32 %v3410, 2147483648
    %v3420 = vmul.f32 %v3419, 1.442695
    %v3421 = vpow.pop %v3420
    %v3422 = vadd.f32 %v3421, 1.0
    %v3423 = vrcp.pop %v3422
    %v3424 = vmul.f32 1.0, %v3423
    %v3425 = vtanh.pop %v3411
    %v3426 = vxor.u32 %v3412, 2147483648
    %v3427 = vmul.f32 %v3426, 1.442695
    %v3428 = vpow.pop %v3427
    %v3429 = vadd.f32 %v3428, 1.0
    %v3430 = vrcp.pop %v3429
    %v3431 = vmul.f32 1.0, %v3430
    %v3432 = vmul.f32 %v3424, %v3195
    %v3433 = vmul.f32 %v3418, %v3425
    %v3434 = vadd.f32 %v3432, %v3433
    %v3435 = vtanh.pop %v3434
    %v3436 = vmul.f32 %v3431, %v3435
    %3437 = vst [vmem:[%s1152] sm:$0xff] %v3436
    %v3438 = vld [vmem:[%s1156] sm:$0xff]
    %v3439 = vld [vmem:[%s1156 + $0x8] sm:$0xff]
    %v3440 = vld [vmem:[%s1156 + $0x10] sm:$0xff]
    %v3441 = vld [vmem:[%s1156 + $0x18] sm:$0xff]
    %v3442 = vld [vmem:[#allocation8] sm:$0xff]
    %v3443 = vld [vmem:[#allocation8 + $0x8] sm:$0xff]
    %v3444 = vld [vmem:[#allocation8 + $0x10] sm:$0xff]
    %v3445 = vld [vmem:[#allocation8 + $0x18] sm:$0xff]
    %v3446 = vld [vmem:[#allocation8 + $0x20] sm:$0xff]
    %v3447 = vld [vmem:[#allocation8 + $0x28] sm:$0xff]
    %v3448 = vld [vmem:[#allocation8 + $0x30] sm:$0xff]
    %v3449 = vld [vmem:[#allocation8 + $0x38] sm:$0xff]
    %v3450 = vld [vmem:[#allocation8 + $0x40] sm:$0xff]
    %v3451 = vld [vmem:[#allocation8 + $0x48] sm:$0xff]
    %v3452 = vld [vmem:[#allocation8 + $0x50] sm:$0xff]
    %v3453 = vld [vmem:[#allocation8 + $0x58] sm:$0xff]
    %v3454 = vld [vmem:[#allocation8 + $0x60] sm:$0xff]
    %v3455 = vld [vmem:[#allocation8 + $0x68] sm:$0xff]
    %v3456 = vld [vmem:[#allocation8 + $0x70] sm:$0xff]
    %v3457 = vld [vmem:[#allocation8 + $0x78] sm:$0xff]
    %v3458 = vld [vmem:[#allocation8 + $0x80] sm:$0xff]
    %v3459 = vld [vmem:[#allocation8 + $0x88] sm:$0xff]
    %v3460 = vld [vmem:[#allocation8 + $0x90] sm:$0xff]
    %v3461 = vld [vmem:[#allocation8 + $0x98] sm:$0xff]
    %v3462 = vld [vmem:[#allocation8 + $0xa0] sm:$0xff]
    %v3463 = vld [vmem:[#allocation8 + $0xa8] sm:$0xff]
    %v3464 = vld [vmem:[#allocation8 + $0xb0] sm:$0xff]
    %v3465 = vld [vmem:[#allocation8 + $0xb8] sm:$0xff]
    %v3466 = vld [vmem:[#allocation8 + $0xc0] sm:$0xff]
    %v3467 = vld [vmem:[#allocation8 + $0xc8] sm:$0xff]
    %v3468 = vld [vmem:[#allocation8 + $0xd0] sm:$0xff]
    %v3469 = vld [vmem:[#allocation8 + $0xd8] sm:$0xff]
    %v3470 = vld [vmem:[#allocation8 + $0xe0] sm:$0xff]
    %v3471 = vld [vmem:[#allocation8 + $0xe8] sm:$0xff]
    %v3472 = vld [vmem:[#allocation8 + $0xf0] sm:$0xff]
    %v3473 = vld [vmem:[#allocation8 + $0xf8] sm:$0xff]
    %v3474 = vld [vmem:[#allocation8 + $0x100] sm:$0xff]
    %v3475 = vld [vmem:[#allocation8 + $0x108] sm:$0xff]
    %v3476 = vld [vmem:[#allocation8 + $0x110] sm:$0xff]
    %v3477 = vld [vmem:[#allocation8 + $0x118] sm:$0xff]
    %v3478 = vld [vmem:[#allocation8 + $0x120] sm:$0xff]
    %v3479 = vld [vmem:[#allocation8 + $0x128] sm:$0xff]
    %v3480 = vld [vmem:[#allocation8 + $0x130] sm:$0xff]
    %v3481 = vld [vmem:[#allocation8 + $0x138] sm:$0xff]
    %v3482 = vld [vmem:[#allocation8 + $0x140] sm:$0xff]
    %v3483 = vld [vmem:[#allocation8 + $0x148] sm:$0xff]
    %v3484 = vld [vmem:[#allocation8 + $0x150] sm:$0xff]
    %v3485 = vld [vmem:[#allocation8 + $0x158] sm:$0xff]
    %v3486 = vld [vmem:[#allocation8 + $0x160] sm:$0xff]
    %v3487 = vld [vmem:[#allocation8 + $0x168] sm:$0xff]
    %v3488 = vld [vmem:[#allocation8 + $0x170] sm:$0xff]
    %v3489 = vld [vmem:[#allocation8 + $0x178] sm:$0xff]
    %v3490 = vld [vmem:[#allocation8 + $0x180] sm:$0xff]
    %v3491 = vld [vmem:[#allocation8 + $0x188] sm:$0xff]
    %v3492 = vld [vmem:[#allocation8 + $0x190] sm:$0xff]
    %v3493 = vld [vmem:[#allocation8 + $0x198] sm:$0xff]
    %v3494 = vld [vmem:[#allocation8 + $0x1a0] sm:$0xff]
    %v3495 = vld [vmem:[#allocation8 + $0x1a8] sm:$0xff]
    %v3496 = vld [vmem:[#allocation8 + $0x1b0] sm:$0xff]
    %v3497 = vld [vmem:[#allocation8 + $0x1b8] sm:$0xff]
    %v3498 = vld [vmem:[#allocation8 + $0x1c0] sm:$0xff]
    %v3499 = vld [vmem:[#allocation8 + $0x1c8] sm:$0xff]
    %v3500 = vld [vmem:[#allocation8 + $0x1d0] sm:$0xff]
    %v3501 = vld [vmem:[#allocation8 + $0x1d8] sm:$0xff]
    %v3502 = vld [vmem:[#allocation8 + $0x1e0] sm:$0xff]
    %v3503 = vld [vmem:[#allocation8 + $0x1e8] sm:$0xff]
    %v3504 = vld [vmem:[#allocation8 + $0x1f0] sm:$0xff]
    %v3505 = vld [vmem:[#allocation8 + $0x1f8] sm:$0xff]
    %3506 = vmatprep.subr.mxu0 %v3503
    %3507 = vmatpush1.msra.mxu0 %v3502
    %3508 = vmatprep.subr.mxu0 %v3499
    %3509 = vmatpush1.msra.mxu0 %v3498
    %3510 = vmatprep.subr.mxu0 %v3495
    %3511 = vmatpush1.msra.mxu0 %v3494
    %3512 = vmatprep.subr.mxu0 %v3491
    %3513 = vmatpush1.msra.mxu0 %v3490
    %3514 = vmatprep.subr.mxu0 %v3487
    %3515 = vmatpush1.msra.mxu0 %v3486
    %3516 = vmatprep.subr.mxu0 %v3483
    %3517 = vmatpush1.msra.mxu0 %v3482
    %3518 = vmatprep.subr.mxu0 %v3479
    %3519 = vmatpush1.msra.mxu0 %v3478
    %3520 = vmatprep.subr.mxu0 %v3475
    %3521 = vmatpush1.msra.mxu0 %v3474
    %3522 = vmatprep.subr.mxu0 %v3471
    %3523 = vmatpush1.msra.mxu0 %v3470
    %3524 = vmatprep.subr.mxu0 %v3467
    %3525 = vmatpush1.msra.mxu0 %v3466
    %3526 = vmatprep.subr.mxu0 %v3463
    %3527 = vmatpush1.msra.mxu0 %v3462
    %3528 = vmatprep.subr.mxu0 %v3459
    %3529 = vmatpush1.msra.mxu0 %v3458
    %3530 = vmatprep.subr.mxu0 %v3455
    %3531 = vmatpush1.msra.mxu0 %v3454
    %3532 = vmatprep.subr.mxu0 %v3451
    %3533 = vmatpush1.msra.mxu0 %v3450
    %3534 = vmatprep.subr.mxu0 %v3447
    %3535 = vmatpush1.msra.mxu0 %v3446
    %3536 = vmatprep.subr.mxu0 %v3443
    %3537 = vmatpush1.msra.mxu0 %v3442
    %3538 = vmatprep.subr.mxu0 0.0
    %3539 = vmatpush2.msra.mxu0 0.0
    %3540 = vmatprep.subr.mxu0 0.0
    %3541 = vmatpush2.msra.mxu0 0.0
    %3542 = vmatprep.subr.mxu0 0.0
    %3543 = vmatpush2.msra.mxu0 0.0
    %3544 = vmatprep.subr.mxu0 0.0
    %3545 = vmatpush2.msra.mxu0 0.0
    %3546 = vmatprep.subr.mxu0 0.0
    %3547 = vmatpush2.msra.mxu0 0.0
    %3548 = vmatprep.subr.mxu0 0.0
    %3549 = vmatpush2.msra.mxu0 0.0
    %3550 = vmatprep.subr.mxu0 0.0
    %3551 = vmatpush2.msra.mxu0 0.0
    %3552 = vmatprep.subr.mxu0 0.0
    %3553 = vmatpush2.msra.mxu0 0.0
    %3554 = vmatprep.subr.mxu0 0.0
    %3555 = vmatpush2.msra.mxu0 0.0
    %3556 = vmatprep.subr.mxu0 0.0
    %3557 = vmatpush2.msra.mxu0 0.0
    %3558 = vmatprep.subr.mxu0 0.0
    %3559 = vmatpush2.msra.mxu0 0.0
    %3560 = vmatprep.subr.mxu0 0.0
    %3561 = vmatpush2.msra.mxu0 0.0
    %3562 = vmatprep.subr.mxu0 0.0
    %3563 = vmatpush2.msra.mxu0 0.0
    %3564 = vmatprep.subr.mxu0 0.0
    %3565 = vmatpush2.msra.mxu0 0.0
    %3566 = vmatprep.subr.mxu0 0.0
    %3567 = vmatpush2.msra.mxu0 0.0
    %3568 = vmatprep.subr.mxu0 0.0
    %3569 = vmatpush2.msra.mxu0 0.0
    %3570 = vmatprep.mubr.f32.mxu0 0.0
    %3571 = vmatmul.mubr.f32.gmra.mxu0 %v3436
    %v3572 = vpop.f32.mrf.mxu0
    %v3573 = vadd.f32 0.0, %v3572
    %v3574 = vpop.f32.mrf.mxu0
    %v3575 = vadd.f32 0.0, %v3574
    %3576 = vdwg.mxu0
    %3577 = vmatprep.subr.mxu0 %v3505
    %3578 = vmatpush1.msra.mxu0 %v3504
    %3579 = vmatprep.subr.mxu0 %v3501
    %3580 = vmatpush1.msra.mxu0 %v3500
    %3581 = vmatprep.subr.mxu0 %v3497
    %3582 = vmatpush1.msra.mxu0 %v3496
    %3583 = vmatprep.subr.mxu0 %v3493
    %3584 = vmatpush1.msra.mxu0 %v3492
    %3585 = vmatprep.subr.mxu0 %v3489
    %3586 = vmatpush1.msra.mxu0 %v3488
    %3587 = vmatprep.subr.mxu0 %v3485
    %3588 = vmatpush1.msra.mxu0 %v3484
    %3589 = vmatprep.subr.mxu0 %v3481
    %3590 = vmatpush1.msra.mxu0 %v3480
    %3591 = vmatprep.subr.mxu0 %v3477
    %3592 = vmatpush1.msra.mxu0 %v3476
    %3593 = vmatprep.subr.mxu0 %v3473
    %3594 = vmatpush1.msra.mxu0 %v3472
    %3595 = vmatprep.subr.mxu0 %v3469
    %3596 = vmatpush1.msra.mxu0 %v3468
    %3597 = vmatprep.subr.mxu0 %v3465
    %3598 = vmatpush1.msra.mxu0 %v3464
    %3599 = vmatprep.subr.mxu0 %v3461
    %3600 = vmatpush1.msra.mxu0 %v3460
    %3601 = vmatprep.subr.mxu0 %v3457
    %3602 = vmatpush1.msra.mxu0 %v3456
    %3603 = vmatprep.subr.mxu0 %v3453
    %3604 = vmatpush1.msra.mxu0 %v3452
    %3605 = vmatprep.subr.mxu0 %v3449
    %3606 = vmatpush1.msra.mxu0 %v3448
    %3607 = vmatprep.subr.mxu0 %v3445
    %3608 = vmatpush1.msra.mxu0 %v3444
    %3609 = vmatprep.subr.mxu0 0.0
    %3610 = vmatpush2.msra.mxu0 0.0
    %3611 = vmatprep.subr.mxu0 0.0
    %3612 = vmatpush2.msra.mxu0 0.0
    %3613 = vmatprep.subr.mxu0 0.0
    %3614 = vmatpush2.msra.mxu0 0.0
    %3615 = vmatprep.subr.mxu0 0.0
    %3616 = vmatpush2.msra.mxu0 0.0
    %3617 = vmatprep.subr.mxu0 0.0
    %3618 = vmatpush2.msra.mxu0 0.0
    %3619 = vmatprep.subr.mxu0 0.0
    %3620 = vmatpush2.msra.mxu0 0.0
    %3621 = vmatprep.subr.mxu0 0.0
    %3622 = vmatpush2.msra.mxu0 0.0
    %3623 = vmatprep.subr.mxu0 0.0
    %3624 = vmatpush2.msra.mxu0 0.0
    %3625 = vmatprep.subr.mxu0 0.0
    %3626 = vmatpush2.msra.mxu0 0.0
    %3627 = vmatprep.subr.mxu0 0.0
    %3628 = vmatpush2.msra.mxu0 0.0
    %3629 = vmatprep.subr.mxu0 0.0
    %3630 = vmatpush2.msra.mxu0 0.0
    %3631 = vmatprep.subr.mxu0 0.0
    %3632 = vmatpush2.msra.mxu0 0.0
    %3633 = vmatprep.subr.mxu0 0.0
    %3634 = vmatpush2.msra.mxu0 0.0
    %3635 = vmatprep.subr.mxu0 0.0
    %3636 = vmatpush2.msra.mxu0 0.0
    %3637 = vmatprep.subr.mxu0 0.0
    %3638 = vmatpush2.msra.mxu0 0.0
    %3639 = vmatprep.subr.mxu0 0.0
    %3640 = vmatpush2.msra.mxu0 0.0
    %3641 = vmatprep.mubr.f32.mxu0 0.0
    %3642 = vmatmul.mubr.f32.gmra.mxu0 %v3436
    %v3643 = vpop.f32.mrf.mxu0
    %v3644 = vadd.f32 0.0, %v3643
    %v3645 = vpop.f32.mrf.mxu0
    %v3646 = vadd.f32 0.0, %v3645
    %3647 = vdwg.mxu0
    %v3648 = vadd.f32 %v3438, %v3573
    %v3649 = vadd.f32 %v3439, %v3575
    %v3650 = vadd.f32 %v3440, %v3644
    %v3651 = vadd.f32 %v3441, %v3646
    %v3652 = vxor.u32 %v3648, 2147483648
    %v3653 = vmul.f32 %v3652, 1.442695
    %v3654 = vpow.pop %v3653
    %v3655 = vadd.f32 %v3654, 1.0
    %v3656 = vrcp.pop %v3655
    %v3657 = vmul.f32 1.0, %v3656
    %v3658 = vxor.u32 %v3649, 2147483648
    %v3659 = vmul.f32 %v3658, 1.442695
    %v3660 = vpow.pop %v3659
    %v3661 = vadd.f32 %v3660, 1.0
    %v3662 = vrcp.pop %v3661
    %v3663 = vmul.f32 1.0, %v3662
    %v3664 = vtanh.pop %v3650
    %v3665 = vxor.u32 %v3651, 2147483648
    %v3666 = vmul.f32 %v3665, 1.442695
    %v3667 = vpow.pop %v3666
    %v3668 = vadd.f32 %v3667, 1.0
    %v3669 = vrcp.pop %v3668
    %v3670 = vmul.f32 1.0, %v3669
    %v3671 = vmul.f32 %v3663, %v3434
    %v3672 = vmul.f32 %v3657, %v3664
    %v3673 = vadd.f32 %v3671, %v3672
    %v3674 = vtanh.pop %v3673
    %v3675 = vmul.f32 %v3670, %v3674
    %3676 = vst [vmem:[%s1395] sm:$0xff] %v3675
    %v3677 = vld [vmem:[%s1399] sm:$0xff]
    %v3678 = vld [vmem:[%s1399 + $0x8] sm:$0xff]
    %v3679 = vld [vmem:[%s1399 + $0x10] sm:$0xff]
    %v3680 = vld [vmem:[%s1399 + $0x18] sm:$0xff]
    %v3681 = vld [vmem:[#allocation8] sm:$0xff]
    %v3682 = vld [vmem:[#allocation8 + $0x8] sm:$0xff]
    %v3683 = vld [vmem:[#allocation8 + $0x10] sm:$0xff]
    %v3684 = vld [vmem:[#allocation8 + $0x18] sm:$0xff]
    %v3685 = vld [vmem:[#allocation8 + $0x20] sm:$0xff]
    %v3686 = vld [vmem:[#allocation8 + $0x28] sm:$0xff]
    %v3687 = vld [vmem:[#allocation8 + $0x30] sm:$0xff]
    %v3688 = vld [vmem:[#allocation8 + $0x38] sm:$0xff]
    %v3689 = vld [vmem:[#allocation8 + $0x40] sm:$0xff]
    %v3690 = vld [vmem:[#allocation8 + $0x48] sm:$0xff]
    %v3691 = vld [vmem:[#allocation8 + $0x50] sm:$0xff]
    %v3692 = vld [vmem:[#allocation8 + $0x58] sm:$0xff]
    %v3693 = vld [vmem:[#allocation8 + $0x60] sm:$0xff]
    %v3694 = vld [vmem:[#allocation8 + $0x68] sm:$0xff]
    %v3695 = vld [vmem:[#allocation8 + $0x70] sm:$0xff]
    %v3696 = vld [vmem:[#allocation8 + $0x78] sm:$0xff]
    %v3697 = vld [vmem:[#allocation8 + $0x80] sm:$0xff]
    %v3698 = vld [vmem:[#allocation8 + $0x88] sm:$0xff]
    %v3699 = vld [vmem:[#allocation8 + $0x90] sm:$0xff]
    %v3700 = vld [vmem:[#allocation8 + $0x98] sm:$0xff]
    %v3701 = vld [vmem:[#allocation8 + $0xa0] sm:$0xff]
    %v3702 = vld [vmem:[#allocation8 + $0xa8] sm:$0xff]
    %v3703 = vld [vmem:[#allocation8 + $0xb0] sm:$0xff]
    %v3704 = vld [vmem:[#allocation8 + $0xb8] sm:$0xff]
    %v3705 = vld [vmem:[#allocation8 + $0xc0] sm:$0xff]
    %v3706 = vld [vmem:[#allocation8 + $0xc8] sm:$0xff]
    %v3707 = vld [vmem:[#allocation8 + $0xd0] sm:$0xff]
    %v3708 = vld [vmem:[#allocation8 + $0xd8] sm:$0xff]
    %v3709 = vld [vmem:[#allocation8 + $0xe0] sm:$0xff]
    %v3710 = vld [vmem:[#allocation8 + $0xe8] sm:$0xff]
    %v3711 = vld [vmem:[#allocation8 + $0xf0] sm:$0xff]
    %v3712 = vld [vmem:[#allocation8 + $0xf8] sm:$0xff]
    %v3713 = vld [vmem:[#allocation8 + $0x100] sm:$0xff]
    %v3714 = vld [vmem:[#allocation8 + $0x108] sm:$0xff]
    %v3715 = vld [vmem:[#allocation8 + $0x110] sm:$0xff]
    %v3716 = vld [vmem:[#allocation8 + $0x118] sm:$0xff]
    %v3717 = vld [vmem:[#allocation8 + $0x120] sm:$0xff]
    %v3718 = vld [vmem:[#allocation8 + $0x128] sm:$0xff]
    %v3719 = vld [vmem:[#allocation8 + $0x130] sm:$0xff]
    %v3720 = vld [vmem:[#allocation8 + $0x138] sm:$0xff]
    %v3721 = vld [vmem:[#allocation8 + $0x140] sm:$0xff]
    %v3722 = vld [vmem:[#allocation8 + $0x148] sm:$0xff]
    %v3723 = vld [vmem:[#allocation8 + $0x150] sm:$0xff]
    %v3724 = vld [vmem:[#allocation8 + $0x158] sm:$0xff]
    %v3725 = vld [vmem:[#allocation8 + $0x160] sm:$0xff]
    %v3726 = vld [vmem:[#allocation8 + $0x168] sm:$0xff]
    %v3727 = vld [vmem:[#allocation8 + $0x170] sm:$0xff]
    %v3728 = vld [vmem:[#allocation8 + $0x178] sm:$0xff]
    %v3729 = vld [vmem:[#allocation8 + $0x180] sm:$0xff]
    %v3730 = vld [vmem:[#allocation8 + $0x188] sm:$0xff]
    %v3731 = vld [vmem:[#allocation8 + $0x190] sm:$0xff]
    %v3732 = vld [vmem:[#allocation8 + $0x198] sm:$0xff]
    %v3733 = vld [vmem:[#allocation8 + $0x1a0] sm:$0xff]
    %v3734 = vld [vmem:[#allocation8 + $0x1a8] sm:$0xff]
    %v3735 = vld [vmem:[#allocation8 + $0x1b0] sm:$0xff]
    %v3736 = vld [vmem:[#allocation8 + $0x1b8] sm:$0xff]
    %v3737 = vld [vmem:[#allocation8 + $0x1c0] sm:$0xff]
    %v3738 = vld [vmem:[#allocation8 + $0x1c8] sm:$0xff]
    %v3739 = vld [vmem:[#allocation8 + $0x1d0] sm:$0xff]
    %v3740 = vld [vmem:[#allocation8 + $0x1d8] sm:$0xff]
    %v3741 = vld [vmem:[#allocation8 + $0x1e0] sm:$0xff]
    %v3742 = vld [vmem:[#allocation8 + $0x1e8] sm:$0xff]
    %v3743 = vld [vmem:[#allocation8 + $0x1f0] sm:$0xff]
    %v3744 = vld [vmem:[#allocation8 + $0x1f8] sm:$0xff]
    %3745 = vmatprep.subr.mxu0 %v3742
    %3746 = vmatpush1.msra.mxu0 %v3741
    %3747 = vmatprep.subr.mxu0 %v3738
    %3748 = vmatpush1.msra.mxu0 %v3737
    %3749 = vmatprep.subr.mxu0 %v3734
    %3750 = vmatpush1.msra.mxu0 %v3733
    %3751 = vmatprep.subr.mxu0 %v3730
    %3752 = vmatpush1.msra.mxu0 %v3729
    %3753 = vmatprep.subr.mxu0 %v3726
    %3754 = vmatpush1.msra.mxu0 %v3725
    %3755 = vmatprep.subr.mxu0 %v3722
    %3756 = vmatpush1.msra.mxu0 %v3721
    %3757 = vmatprep.subr.mxu0 %v3718
    %3758 = vmatpush1.msra.mxu0 %v3717
    %3759 = vmatprep.subr.mxu0 %v3714
    %3760 = vmatpush1.msra.mxu0 %v3713
    %3761 = vmatprep.subr.mxu0 %v3710
    %3762 = vmatpush1.msra.mxu0 %v3709
    %3763 = vmatprep.subr.mxu0 %v3706
    %3764 = vmatpush1.msra.mxu0 %v3705
    %3765 = vmatprep.subr.mxu0 %v3702
    %3766 = vmatpush1.msra.mxu0 %v3701
    %3767 = vmatprep.subr.mxu0 %v3698
    %3768 = vmatpush1.msra.mxu0 %v3697
    %3769 = vmatprep.subr.mxu0 %v3694
    %3770 = vmatpush1.msra.mxu0 %v3693
    %3771 = vmatprep.subr.mxu0 %v3690
    %3772 = vmatpush1.msra.mxu0 %v3689
    %3773 = vmatprep.subr.mxu0 %v3686
    %3774 = vmatpush1.msra.mxu0 %v3685
    %3775 = vmatprep.subr.mxu0 %v3682
    %3776 = vmatpush1.msra.mxu0 %v3681
    %3777 = vmatprep.subr.mxu0 0.0
    %3778 = vmatpush2.msra.mxu0 0.0
    %3779 = vmatprep.subr.mxu0 0.0
    %3780 = vmatpush2.msra.mxu0 0.0
    %3781 = vmatprep.subr.mxu0 0.0
    %3782 = vmatpush2.msra.mxu0 0.0
    %3783 = vmatprep.subr.mxu0 0.0
    %3784 = vmatpush2.msra.mxu0 0.0
    %3785 = vmatprep.subr.mxu0 0.0
    %3786 = vmatpush2.msra.mxu0 0.0
    %3787 = vmatprep.subr.mxu0 0.0
    %3788 = vmatpush2.msra.mxu0 0.0
    %3789 = vmatprep.subr.mxu0 0.0
    %3790 = vmatpush2.msra.mxu0 0.0
    %3791 = vmatprep.subr.mxu0 0.0
    %3792 = vmatpush2.msra.mxu0 0.0
    %3793 = vmatprep.subr.mxu0 0.0
    %3794 = vmatpush2.msra.mxu0 0.0
    %3795 = vmatprep.subr.mxu0 0.0
    %3796 = vmatpush2.msra.mxu0 0.0
    %3797 = vmatprep.subr.mxu0 0.0
    %3798 = vmatpush2.msra.mxu0 0.0
    %3799 = vmatprep.subr.mxu0 0.0
    %3800 = vmatpush2.msra.mxu0 0.0
    %3801 = vmatprep.subr.mxu0 0.0
    %3802 = vmatpush2.msra.mxu0 0.0
    %3803 = vmatprep.subr.mxu0 0.0
    %3804 = vmatpush2.msra.mxu0 0.0
    %3805 = vmatprep.subr.mxu0 0.0
    %3806 = vmatpush2.msra.mxu0 0.0
    %3807 = vmatprep.subr.mxu0 0.0
    %3808 = vmatpush2.msra.mxu0 0.0
    %3809 = vmatprep.mubr.f32.mxu0 0.0
    %3810 = vmatmul.mubr.f32.gmra.mxu0 %v3675
    %v3811 = vpop.f32.mrf.mxu0
    %v3812 = vadd.f32 0.0, %v3811
    %v3813 = vpop.f32.mrf.mxu0
    %v3814 = vadd.f32 0.0, %v3813
    %3815 = vdwg.mxu0
    %3816 = vmatprep.subr.mxu0 %v3744
    %3817 = vmatpush1.msra.mxu0 %v3743
    %3818 = vmatprep.subr.mxu0 %v3740
    %3819 = vmatpush1.msra.mxu0 %v3739
    %3820 = vmatprep.subr.mxu0 %v3736
    %3821 = vmatpush1.msra.mxu0 %v3735
    %3822 = vmatprep.subr.mxu0 %v3732
    %3823 = vmatpush1.msra.mxu0 %v3731
    %3824 = vmatprep.subr.mxu0 %v3728
    %3825 = vmatpush1.msra.mxu0 %v3727
    %3826 = vmatprep.subr.mxu0 %v3724
    %3827 = vmatpush1.msra.mxu0 %v3723
    %3828 = vmatprep.subr.mxu0 %v3720
    %3829 = vmatpush1.msra.mxu0 %v3719
    %3830 = vmatprep.subr.mxu0 %v3716
    %3831 = vmatpush1.msra.mxu0 %v3715
    %3832 = vmatprep.subr.mxu0 %v3712
    %3833 = vmatpush1.msra.mxu0 %v3711
    %3834 = vmatprep.subr.mxu0 %v3708
    %3835 = vmatpush1.msra.mxu0 %v3707
    %3836 = vmatprep.subr.mxu0 %v3704
    %3837 = vmatpush1.msra.mxu0 %v3703
    %3838 = vmatprep.subr.mxu0 %v3700
    %3839 = vmatpush1.msra.mxu0 %v3699
    %3840 = vmatprep.subr.mxu0 %v3696
    %3841 = vmatpush1.msra.mxu0 %v3695
    %3842 = vmatprep.subr.mxu0 %v3692
    %3843 = vmatpush1.msra.mxu0 %v3691
    %3844 = vmatprep.subr.mxu0 %v3688
    %3845 = vmatpush1.msra.mxu0 %v3687
    %3846 = vmatprep.subr.mxu0 %v3684
    %3847 = vmatpush1.msra.mxu0 %v3683
    %3848 = vmatprep.subr.mxu0 0.0
    %3849 = vmatpush2.msra.mxu0 0.0
    %3850 = vmatprep.subr.mxu0 0.0
    %3851 = vmatpush2.msra.mxu0 0.0
    %3852 = vmatprep.subr.mxu0 0.0
    %3853 = vmatpush2.msra.mxu0 0.0
    %3854 = vmatprep.subr.mxu0 0.0
    %3855 = vmatpush2.msra.mxu0 0.0
    %3856 = vmatprep.subr.mxu0 0.0
    %3857 = vmatpush2.msra.mxu0 0.0
    %3858 = vmatprep.subr.mxu0 0.0
    %3859 = vmatpush2.msra.mxu0 0.0
    %3860 = vmatprep.subr.mxu0 0.0
    %3861 = vmatpush2.msra.mxu0 0.0
    %3862 = vmatprep.subr.mxu0 0.0
    %3863 = vmatpush2.msra.mxu0 0.0
    %3864 = vmatprep.subr.mxu0 0.0
    %3865 = vmatpush2.msra.mxu0 0.0
    %3866 = vmatprep.subr.mxu0 0.0
    %3867 = vmatpush2.msra.mxu0 0.0
    %3868 = vmatprep.subr.mxu0 0.0
    %3869 = vmatpush2.msra.mxu0 0.0
    %3870 = vmatprep.subr.mxu0 0.0
    %3871 = vmatpush2.msra.mxu0 0.0
    %3872 = vmatprep.subr.mxu0 0.0
    %3873 = vmatpush2.msra.mxu0 0.0
    %3874 = vmatprep.subr.mxu0 0.0
    %3875 = vmatpush2.msra.mxu0 0.0
    %3876 = vmatprep.subr.mxu0 0.0
    %3877 = vmatpush2.msra.mxu0 0.0
    %3878 = vmatprep.subr.mxu0 0.0
    %3879 = vmatpush2.msra.mxu0 0.0
    %3880 = vmatprep.mubr.f32.mxu0 0.0
    %3881 = vmatmul.mubr.f32.gmra.mxu0 %v3675
    %v3882 = vpop.f32.mrf.mxu0
    %v3883 = vadd.f32 0.0, %v3882
    %v3884 = vpop.f32.mrf.mxu0
    %v3885 = vadd.f32 0.0, %v3884
    %3886 = vdwg.mxu0
    %v3887 = vadd.f32 %v3677, %v3812
    %v3888 = vadd.f32 %v3678, %v3814
    %v3889 = vadd.f32 %v3679, %v3883
    %v3890 = vadd.f32 %v3680, %v3885
    %v3891 = vxor.u32 %v3887, 2147483648
    %v3892 = vmul.f32 %v3891, 1.442695
    %v3893 = vpow.pop %v3892
    %v3894 = vadd.f32 %v3893, 1.0
    %v3895 = vrcp.pop %v3894
    %v3896 = vmul.f32 1.0, %v3895
    %v3897 = vxor.u32 %v3888, 2147483648
    %v3898 = vmul.f32 %v3897, 1.442695
    %v3899 = vpow.pop %v3898
    %v3900 = vadd.f32 %v3899, 1.0
    %v3901 = vrcp.pop %v3900
    %v3902 = vmul.f32 1.0, %v3901
    %v3903 = vtanh.pop %v3889
    %v3904 = vxor.u32 %v3890, 2147483648
    %v3905 = vmul.f32 %v3904, 1.442695
    %v3906 = vpow.pop %v3905
    %v3907 = vadd.f32 %v3906, 1.0
    %v3908 = vrcp.pop %v3907
    %v3909 = vmul.f32 1.0, %v3908
    %v3910 = vmul.f32 %v3902, %v3673
    %v3911 = vmul.f32 %v3896, %v3903
    %v3912 = vadd.f32 %v3910, %v3911
    %v3913 = vtanh.pop %v3912
    %v3914 = vmul.f32 %v3909, %v3913
    %3915 = vst [vmem:[%s1638] sm:$0xff] %v3914
    %v3916 = vld [vmem:[%s1642] sm:$0xff]
    %v3917 = vld [vmem:[%s1642 + $0x8] sm:$0xff]
    %v3918 = vld [vmem:[%s1642 + $0x10] sm:$0xff]
    %v3919 = vld [vmem:[%s1642 + $0x18] sm:$0xff]
    %v3920 = vld [vmem:[#allocation8] sm:$0xff]
    %v3921 = vld [vmem:[#allocation8 + $0x8] sm:$0xff]
    %v3922 = vld [vmem:[#allocation8 + $0x10] sm:$0xff]
    %v3923 = vld [vmem:[#allocation8 + $0x18] sm:$0xff]
    %v3924 = vld [vmem:[#allocation8 + $0x20] sm:$0xff]
    %v3925 = vld [vmem:[#allocation8 + $0x28] sm:$0xff]
    %v3926 = vld [vmem:[#allocation8 + $0x30] sm:$0xff]
    %v3927 = vld [vmem:[#allocation8 + $0x38] sm:$0xff]
    %v3928 = vld [vmem:[#allocation8 + $0x40] sm:$0xff]
    %v3929 = vld [vmem:[#allocation8 + $0x48] sm:$0xff]
    %v3930 = vld [vmem:[#allocation8 + $0x50] sm:$0xff]
    %v3931 = vld [vmem:[#allocation8 + $0x58] sm:$0xff]
    %v3932 = vld [vmem:[#allocation8 + $0x60] sm:$0xff]
    %v3933 = vld [vmem:[#allocation8 + $0x68] sm:$0xff]
    %v3934 = vld [vmem:[#allocation8 + $0x70] sm:$0xff]
    %v3935 = vld [vmem:[#allocation8 + $0x78] sm:$0xff]
    %v3936 = vld [vmem:[#allocation8 + $0x80] sm:$0xff]
    %v3937 = vld [vmem:[#allocation8 + $0x88] sm:$0xff]
    %v3938 = vld [vmem:[#allocation8 + $0x90] sm:$0xff]
    %v3939 = vld [vmem:[#allocation8 + $0x98] sm:$0xff]
    %v3940 = vld [vmem:[#allocation8 + $0xa0] sm:$0xff]
    %v3941 = vld [vmem:[#allocation8 + $0xa8] sm:$0xff]
    %v3942 = vld [vmem:[#allocation8 + $0xb0] sm:$0xff]
    %v3943 = vld [vmem:[#allocation8 + $0xb8] sm:$0xff]
    %v3944 = vld [vmem:[#allocation8 + $0xc0] sm:$0xff]
    %v3945 = vld [vmem:[#allocation8 + $0xc8] sm:$0xff]
    %v3946 = vld [vmem:[#allocation8 + $0xd0] sm:$0xff]
    %v3947 = vld [vmem:[#allocation8 + $0xd8] sm:$0xff]
    %v3948 = vld [vmem:[#allocation8 + $0xe0] sm:$0xff]
    %v3949 = vld [vmem:[#allocation8 + $0xe8] sm:$0xff]
    %v3950 = vld [vmem:[#allocation8 + $0xf0] sm:$0xff]
    %v3951 = vld [vmem:[#allocation8 + $0xf8] sm:$0xff]
    %v3952 = vld [vmem:[#allocation8 + $0x100] sm:$0xff]
    %v3953 = vld [vmem:[#allocation8 + $0x108] sm:$0xff]
    %v3954 = vld [vmem:[#allocation8 + $0x110] sm:$0xff]
    %v3955 = vld [vmem:[#allocation8 + $0x118] sm:$0xff]
    %v3956 = vld [vmem:[#allocation8 + $0x120] sm:$0xff]
    %v3957 = vld [vmem:[#allocation8 + $0x128] sm:$0xff]
    %v3958 = vld [vmem:[#allocation8 + $0x130] sm:$0xff]
    %v3959 = vld [vmem:[#allocation8 + $0x138] sm:$0xff]
    %v3960 = vld [vmem:[#allocation8 + $0x140] sm:$0xff]
    %v3961 = vld [vmem:[#allocation8 + $0x148] sm:$0xff]
    %v3962 = vld [vmem:[#allocation8 + $0x150] sm:$0xff]
    %v3963 = vld [vmem:[#allocation8 + $0x158] sm:$0xff]
    %v3964 = vld [vmem:[#allocation8 + $0x160] sm:$0xff]
    %v3965 = vld [vmem:[#allocation8 + $0x168] sm:$0xff]
    %v3966 = vld [vmem:[#allocation8 + $0x170] sm:$0xff]
    %v3967 = vld [vmem:[#allocation8 + $0x178] sm:$0xff]
    %v3968 = vld [vmem:[#allocation8 + $0x180] sm:$0xff]
    %v3969 = vld [vmem:[#allocation8 + $0x188] sm:$0xff]
    %v3970 = vld [vmem:[#allocation8 + $0x190] sm:$0xff]
    %v3971 = vld [vmem:[#allocation8 + $0x198] sm:$0xff]
    %v3972 = vld [vmem:[#allocation8 + $0x1a0] sm:$0xff]
    %v3973 = vld [vmem:[#allocation8 + $0x1a8] sm:$0xff]
    %v3974 = vld [vmem:[#allocation8 + $0x1b0] sm:$0xff]
    %v3975 = vld [vmem:[#allocation8 + $0x1b8] sm:$0xff]
    %v3976 = vld [vmem:[#allocation8 + $0x1c0] sm:$0xff]
    %v3977 = vld [vmem:[#allocation8 + $0x1c8] sm:$0xff]
    %v3978 = vld [vmem:[#allocation8 + $0x1d0] sm:$0xff]
    %v3979 = vld [vmem:[#allocation8 + $0x1d8] sm:$0xff]
    %v3980 = vld [vmem:[#allocation8 + $0x1e0] sm:$0xff]
    %v3981 = vld [vmem:[#allocation8 + $0x1e8] sm:$0xff]
    %v3982 = vld [vmem:[#allocation8 + $0x1f0] sm:$0xff]
    %v3983 = vld [vmem:[#allocation8 + $0x1f8] sm:$0xff]
    %3984 = vmatprep.subr.mxu0 %v3981
    %3985 = vmatpush1.msra.mxu0 %v3980
    %3986 = vmatprep.subr.mxu0 %v3977
    %3987 = vmatpush1.msra.mxu0 %v3976
    %3988 = vmatprep.subr.mxu0 %v3973
    %3989 = vmatpush1.msra.mxu0 %v3972
    %3990 = vmatprep.subr.mxu0 %v3969
    %3991 = vmatpush1.msra.mxu0 %v3968
    %3992 = vmatprep.subr.mxu0 %v3965
    %3993 = vmatpush1.msra.mxu0 %v3964
    %3994 = vmatprep.subr.mxu0 %v3961
    %3995 = vmatpush1.msra.mxu0 %v3960
    %3996 = vmatprep.subr.mxu0 %v3957
    %3997 = vmatpush1.msra.mxu0 %v3956
    %3998 = vmatprep.subr.mxu0 %v3953
    %3999 = vmatpush1.msra.mxu0 %v3952
    %4000 = vmatprep.subr.mxu0 %v3949
    %4001 = vmatpush1.msra.mxu0 %v3948
    %4002 = vmatprep.subr.mxu0 %v3945
    %4003 = vmatpush1.msra.mxu0 %v3944
    %4004 = vmatprep.subr.mxu0 %v3941
    %4005 = vmatpush1.msra.mxu0 %v3940
    %4006 = vmatprep.subr.mxu0 %v3937
    %4007 = vmatpush1.msra.mxu0 %v3936
    %4008 = vmatprep.subr.mxu0 %v3933
    %4009 = vmatpush1.msra.mxu0 %v3932
    %4010 = vmatprep.subr.mxu0 %v3929
    %4011 = vmatpush1.msra.mxu0 %v3928
    %4012 = vmatprep.subr.mxu0 %v3925
    %4013 = vmatpush1.msra.mxu0 %v3924
    %4014 = vmatprep.subr.mxu0 %v3921
    %4015 = vmatpush1.msra.mxu0 %v3920
    %4016 = vmatprep.subr.mxu0 0.0
    %4017 = vmatpush2.msra.mxu0 0.0
    %4018 = vmatprep.subr.mxu0 0.0
    %4019 = vmatpush2.msra.mxu0 0.0
    %4020 = vmatprep.subr.mxu0 0.0
    %4021 = vmatpush2.msra.mxu0 0.0
    %4022 = vmatprep.subr.mxu0 0.0
    %4023 = vmatpush2.msra.mxu0 0.0
    %4024 = vmatprep.subr.mxu0 0.0
    %4025 = vmatpush2.msra.mxu0 0.0
    %4026 = vmatprep.subr.mxu0 0.0
    %4027 = vmatpush2.msra.mxu0 0.0
    %4028 = vmatprep.subr.mxu0 0.0
    %4029 = vmatpush2.msra.mxu0 0.0
    %4030 = vmatprep.subr.mxu0 0.0
    %4031 = vmatpush2.msra.mxu0 0.0
    %4032 = vmatprep.subr.mxu0 0.0
    %4033 = vmatpush2.msra.mxu0 0.0
    %4034 = vmatprep.subr.mxu0 0.0
    %4035 = vmatpush2.msra.mxu0 0.0
    %4036 = vmatprep.subr.mxu0 0.0
    %4037 = vmatpush2.msra.mxu0 0.0
    %4038 = vmatprep.subr.mxu0 0.0
    %4039 = vmatpush2.msra.mxu0 0.0
    %4040 = vmatprep.subr.mxu0 0.0
    %4041 = vmatpush2.msra.mxu0 0.0
    %4042 = vmatprep.subr.mxu0 0.0
    %4043 = vmatpush2.msra.mxu0 0.0
    %4044 = vmatprep.subr.mxu0 0.0
    %4045 = vmatpush2.msra.mxu0 0.0
    %4046 = vmatprep.subr.mxu0 0.0
    %4047 = vmatpush2.msra.mxu0 0.0
    %4048 = vmatprep.mubr.f32.mxu0 0.0
    %4049 = vmatmul.mubr.f32.gmra.mxu0 %v3914
    %v4050 = vpop.f32.mrf.mxu0
    %v4051 = vadd.f32 0.0, %v4050
    %v4052 = vpop.f32.mrf.mxu0
    %v4053 = vadd.f32 0.0, %v4052
    %4054 = vdwg.mxu0
    %4055 = vmatprep.subr.mxu0 %v3983
    %4056 = vmatpush1.msra.mxu0 %v3982
    %4057 = vmatprep.subr.mxu0 %v3979
    %4058 = vmatpush1.msra.mxu0 %v3978
    %4059 = vmatprep.subr.mxu0 %v3975
    %4060 = vmatpush1.msra.mxu0 %v3974
    %4061 = vmatprep.subr.mxu0 %v3971
    %4062 = vmatpush1.msra.mxu0 %v3970
    %4063 = vmatprep.subr.mxu0 %v3967
    %4064 = vmatpush1.msra.mxu0 %v3966
    %4065 = vmatprep.subr.mxu0 %v3963
    %4066 = vmatpush1.msra.mxu0 %v3962
    %4067 = vmatprep.subr.mxu0 %v3959
    %4068 = vmatpush1.msra.mxu0 %v3958
    %4069 = vmatprep.subr.mxu0 %v3955
    %4070 = vmatpush1.msra.mxu0 %v3954
    %4071 = vmatprep.subr.mxu0 %v3951
    %4072 = vmatpush1.msra.mxu0 %v3950
    %4073 = vmatprep.subr.mxu0 %v3947
    %4074 = vmatpush1.msra.mxu0 %v3946
    %4075 = vmatprep.subr.mxu0 %v3943
    %4076 = vmatpush1.msra.mxu0 %v3942
    %4077 = vmatprep.subr.mxu0 %v3939
    %4078 = vmatpush1.msra.mxu0 %v3938
    %4079 = vmatprep.subr.mxu0 %v3935
    %4080 = vmatpush1.msra.mxu0 %v3934
    %4081 = vmatprep.subr.mxu0 %v3931
    %4082 = vmatpush1.msra.mxu0 %v3930
    %4083 = vmatprep.subr.mxu0 %v3927
    %4084 = vmatpush1.msra.mxu0 %v3926
    %4085 = vmatprep.subr.mxu0 %v3923
    %4086 = vmatpush1.msra.mxu0 %v3922
    %4087 = vmatprep.subr.mxu0 0.0
    %4088 = vmatpush2.msra.mxu0 0.0
    %4089 = vmatprep.subr.mxu0 0.0
    %4090 = vmatpush2.msra.mxu0 0.0
    %4091 = vmatprep.subr.mxu0 0.0
    %4092 = vmatpush2.msra.mxu0 0.0
    %4093 = vmatprep.subr.mxu0 0.0
    %4094 = vmatpush2.msra.mxu0 0.0
    %4095 = vmatprep.subr.mxu0 0.0
    %4096 = vmatpush2.msra.mxu0 0.0
    %4097 = vmatprep.subr.mxu0 0.0
    %4098 = vmatpush2.msra.mxu0 0.0
    %4099 = vmatprep.subr.mxu0 0.0
    %4100 = vmatpush2.msra.mxu0 0.0
    %4101 = vmatprep.subr.mxu0 0.0
    %4102 = vmatpush2.msra.mxu0 0.0
    %4103 = vmatprep.subr.mxu0 0.0
    %4104 = vmatpush2.msra.mxu0 0.0
    %4105 = vmatprep.subr.mxu0 0.0
    %4106 = vmatpush2.msra.mxu0 0.0
    %4107 = vmatprep.subr.mxu0 0.0
    %4108 = vmatpush2.msra.mxu0 0.0
    %4109 = vmatprep.subr.mxu0 0.0
    %4110 = vmatpush2.msra.mxu0 0.0
    %4111 = vmatprep.subr.mxu0 0.0
    %4112 = vmatpush2.msra.mxu0 0.0
    %4113 = vmatprep.subr.mxu0 0.0
    %4114 = vmatpush2.msra.mxu0 0.0
    %4115 = vmatprep.subr.mxu0 0.0
    %4116 = vmatpush2.msra.mxu0 0.0
    %4117 = vmatprep.subr.mxu0 0.0
    %4118 = vmatpush2.msra.mxu0 0.0
    %4119 = vmatprep.mubr.f32.mxu0 0.0
    %4120 = vmatmul.mubr.f32.gmra.mxu0 %v3914
    %v4121 = vpop.f32.mrf.mxu0
    %v4122 = vadd.f32 0.0, %v4121
    %v4123 = vpop.f32.mrf.mxu0
    %v4124 = vadd.f32 0.0, %v4123
    %4125 = vdwg.mxu0
    %v4126 = vadd.f32 %v3916, %v4051
    %v4127 = vadd.f32 %v3917, %v4053
    %v4128 = vadd.f32 %v3918, %v4122
    %v4129 = vadd.f32 %v3919, %v4124
    %v4130 = vxor.u32 %v4126, 2147483648
    %v4131 = vmul.f32 %v4130, 1.442695
    %v4132 = vpow.pop %v4131
    %v4133 = vadd.f32 %v4132, 1.0
    %v4134 = vrcp.pop %v4133
    %v4135 = vmul.f32 1.0, %v4134
    %v4136 = vxor.u32 %v4127, 2147483648
    %v4137 = vmul.f32 %v4136, 1.442695
    %v4138 = vpow.pop %v4137
    %v4139 = vadd.f32 %v4138, 1.0
    %v4140 = vrcp.pop %v4139
    %v4141 = vmul.f32 1.0, %v4140
    %v4142 = vtanh.pop %v4128
    %v4143 = vxor.u32 %v4129, 2147483648
    %v4144 = vmul.f32 %v4143, 1.442695
    %v4145 = vpow.pop %v4144
    %v4146 = vadd.f32 %v4145, 1.0
    %v4147 = vrcp.pop %v4146
    %v4148 = vmul.f32 1.0, %v4147
    %v4149 = vmul.f32 %v4141, %v3912
    %v4150 = vmul.f32 %v4135, %v4142
    %v4151 = vadd.f32 %v4149, %v4150
    %v4152 = vtanh.pop %v4151
    %v4153 = vmul.f32 %v4148, %v4152
    %4154 = vst [vmem:[%s1881] sm:$0xff] %v4153
    %v4155 = vld [vmem:[%s1885] sm:$0xff]
    %v4156 = vld [vmem:[%s1885 + $0x8] sm:$0xff]
    %v4157 = vld [vmem:[%s1885 + $0x10] sm:$0xff]
    %v4158 = vld [vmem:[%s1885 + $0x18] sm:$0xff]
    %v4159 = vld [vmem:[#allocation8] sm:$0xff]
    %v4160 = vld [vmem:[#allocation8 + $0x8] sm:$0xff]
    %v4161 = vld [vmem:[#allocation8 + $0x10] sm:$0xff]
    %v4162 = vld [vmem:[#allocation8 + $0x18] sm:$0xff]
    %v4163 = vld [vmem:[#allocation8 + $0x20] sm:$0xff]
    %v4164 = vld [vmem:[#allocation8 + $0x28] sm:$0xff]
    %v4165 = vld [vmem:[#allocation8 + $0x30] sm:$0xff]
    %v4166 = vld [vmem:[#allocation8 + $0x38] sm:$0xff]
    %v4167 = vld [vmem:[#allocation8 + $0x40] sm:$0xff]
    %v4168 = vld [vmem:[#allocation8 + $0x48] sm:$0xff]
    %v4169 = vld [vmem:[#allocation8 + $0x50] sm:$0xff]
    %v4170 = vld [vmem:[#allocation8 + $0x58] sm:$0xff]
    %v4171 = vld [vmem:[#allocation8 + $0x60] sm:$0xff]
    %v4172 = vld [vmem:[#allocation8 + $0x68] sm:$0xff]
    %v4173 = vld [vmem:[#allocation8 + $0x70] sm:$0xff]
    %v4174 = vld [vmem:[#allocation8 + $0x78] sm:$0xff]
    %v4175 = vld [vmem:[#allocation8 + $0x80] sm:$0xff]
    %v4176 = vld [vmem:[#allocation8 + $0x88] sm:$0xff]
    %v4177 = vld [vmem:[#allocation8 + $0x90] sm:$0xff]
    %v4178 = vld [vmem:[#allocation8 + $0x98] sm:$0xff]
    %v4179 = vld [vmem:[#allocation8 + $0xa0] sm:$0xff]
    %v4180 = vld [vmem:[#allocation8 + $0xa8] sm:$0xff]
    %v4181 = vld [vmem:[#allocation8 + $0xb0] sm:$0xff]
    %v4182 = vld [vmem:[#allocation8 + $0xb8] sm:$0xff]
    %v4183 = vld [vmem:[#allocation8 + $0xc0] sm:$0xff]
    %v4184 = vld [vmem:[#allocation8 + $0xc8] sm:$0xff]
    %v4185 = vld [vmem:[#allocation8 + $0xd0] sm:$0xff]
    %v4186 = vld [vmem:[#allocation8 + $0xd8] sm:$0xff]
    %v4187 = vld [vmem:[#allocation8 + $0xe0] sm:$0xff]
    %v4188 = vld [vmem:[#allocation8 + $0xe8] sm:$0xff]
    %v4189 = vld [vmem:[#allocation8 + $0xf0] sm:$0xff]
    %v4190 = vld [vmem:[#allocation8 + $0xf8] sm:$0xff]
    %v4191 = vld [vmem:[#allocation8 + $0x100] sm:$0xff]
    %v4192 = vld [vmem:[#allocation8 + $0x108] sm:$0xff]
    %v4193 = vld [vmem:[#allocation8 + $0x110] sm:$0xff]
    %v4194 = vld [vmem:[#allocation8 + $0x118] sm:$0xff]
    %v4195 = vld [vmem:[#allocation8 + $0x120] sm:$0xff]
    %v4196 = vld [vmem:[#allocation8 + $0x128] sm:$0xff]
    %v4197 = vld [vmem:[#allocation8 + $0x130] sm:$0xff]
    %v4198 = vld [vmem:[#allocation8 + $0x138] sm:$0xff]
    %v4199 = vld [vmem:[#allocation8 + $0x140] sm:$0xff]
    %v4200 = vld [vmem:[#allocation8 + $0x148] sm:$0xff]
    %v4201 = vld [vmem:[#allocation8 + $0x150] sm:$0xff]
    %v4202 = vld [vmem:[#allocation8 + $0x158] sm:$0xff]
    %v4203 = vld [vmem:[#allocation8 + $0x160] sm:$0xff]
    %v4204 = vld [vmem:[#allocation8 + $0x168] sm:$0xff]
    %v4205 = vld [vmem:[#allocation8 + $0x170] sm:$0xff]
    %v4206 = vld [vmem:[#allocation8 + $0x178] sm:$0xff]
    %v4207 = vld [vmem:[#allocation8 + $0x180] sm:$0xff]
    %v4208 = vld [vmem:[#allocation8 + $0x188] sm:$0xff]
    %v4209 = vld [vmem:[#allocation8 + $0x190] sm:$0xff]
    %v4210 = vld [vmem:[#allocation8 + $0x198] sm:$0xff]
    %v4211 = vld [vmem:[#allocation8 + $0x1a0] sm:$0xff]
    %v4212 = vld [vmem:[#allocation8 + $0x1a8] sm:$0xff]
    %v4213 = vld [vmem:[#allocation8 + $0x1b0] sm:$0xff]
    %v4214 = vld [vmem:[#allocation8 + $0x1b8] sm:$0xff]
    %v4215 = vld [vmem:[#allocation8 + $0x1c0] sm:$0xff]
    %v4216 = vld [vmem:[#allocation8 + $0x1c8] sm:$0xff]
    %v4217 = vld [vmem:[#allocation8 + $0x1d0] sm:$0xff]
    %v4218 = vld [vmem:[#allocation8 + $0x1d8] sm:$0xff]
    %v4219 = vld [vmem:[#allocation8 + $0x1e0] sm:$0xff]
    %v4220 = vld [vmem:[#allocation8 + $0x1e8] sm:$0xff]
    %v4221 = vld [vmem:[#allocation8 + $0x1f0] sm:$0xff]
    %v4222 = vld [vmem:[#allocation8 + $0x1f8] sm:$0xff]
    %4223 = vmatprep.subr.mxu0 %v4220
    %4224 = vmatpush1.msra.mxu0 %v4219
    %4225 = vmatprep.subr.mxu0 %v4216
    %4226 = vmatpush1.msra.mxu0 %v4215
    %4227 = vmatprep.subr.mxu0 %v4212
    %4228 = vmatpush1.msra.mxu0 %v4211
    %4229 = vmatprep.subr.mxu0 %v4208
    %4230 = vmatpush1.msra.mxu0 %v4207
    %4231 = vmatprep.subr.mxu0 %v4204
    %4232 = vmatpush1.msra.mxu0 %v4203
    %4233 = vmatprep.subr.mxu0 %v4200
    %4234 = vmatpush1.msra.mxu0 %v4199
    %4235 = vmatprep.subr.mxu0 %v4196
    %4236 = vmatpush1.msra.mxu0 %v4195
    %4237 = vmatprep.subr.mxu0 %v4192
    %4238 = vmatpush1.msra.mxu0 %v4191
    %4239 = vmatprep.subr.mxu0 %v4188
    %4240 = vmatpush1.msra.mxu0 %v4187
    %4241 = vmatprep.subr.mxu0 %v4184
    %4242 = vmatpush1.msra.mxu0 %v4183
    %4243 = vmatprep.subr.mxu0 %v4180
    %4244 = vmatpush1.msra.mxu0 %v4179
    %4245 = vmatprep.subr.mxu0 %v4176
    %4246 = vmatpush1.msra.mxu0 %v4175
    %4247 = vmatprep.subr.mxu0 %v4172
    %4248 = vmatpush1.msra.mxu0 %v4171
    %4249 = vmatprep.subr.mxu0 %v4168
    %4250 = vmatpush1.msra.mxu0 %v4167
    %4251 = vmatprep.subr.mxu0 %v4164
    %4252 = vmatpush1.msra.mxu0 %v4163
    %4253 = vmatprep.subr.mxu0 %v4160
    %4254 = vmatpush1.msra.mxu0 %v4159
    %4255 = vmatprep.subr.mxu0 0.0
    %4256 = vmatpush2.msra.mxu0 0.0
    %4257 = vmatprep.subr.mxu0 0.0
    %4258 = vmatpush2.msra.mxu0 0.0
    %4259 = vmatprep.subr.mxu0 0.0
    %4260 = vmatpush2.msra.mxu0 0.0
    %4261 = vmatprep.subr.mxu0 0.0
    %4262 = vmatpush2.msra.mxu0 0.0
    %4263 = vmatprep.subr.mxu0 0.0
    %4264 = vmatpush2.msra.mxu0 0.0
    %4265 = vmatprep.subr.mxu0 0.0
    %4266 = vmatpush2.msra.mxu0 0.0
    %4267 = vmatprep.subr.mxu0 0.0
    %4268 = vmatpush2.msra.mxu0 0.0
    %4269 = vmatprep.subr.mxu0 0.0
    %4270 = vmatpush2.msra.mxu0 0.0
    %4271 = vmatprep.subr.mxu0 0.0
    %4272 = vmatpush2.msra.mxu0 0.0
    %4273 = vmatprep.subr.mxu0 0.0
    %4274 = vmatpush2.msra.mxu0 0.0
    %4275 = vmatprep.subr.mxu0 0.0
    %4276 = vmatpush2.msra.mxu0 0.0
    %4277 = vmatprep.subr.mxu0 0.0
    %4278 = vmatpush2.msra.mxu0 0.0
    %4279 = vmatprep.subr.mxu0 0.0
    %4280 = vmatpush2.msra.mxu0 0.0
    %4281 = vmatprep.subr.mxu0 0.0
    %4282 = vmatpush2.msra.mxu0 0.0
    %4283 = vmatprep.subr.mxu0 0.0
    %4284 = vmatpush2.msra.mxu0 0.0
    %4285 = vmatprep.subr.mxu0 0.0
    %4286 = vmatpush2.msra.mxu0 0.0
    %4287 = vmatprep.mubr.f32.mxu0 0.0
    %4288 = vmatmul.mubr.f32.gmra.mxu0 %v4153
    %v4289 = vpop.f32.mrf.mxu0
    %v4290 = vadd.f32 0.0, %v4289
    %v4291 = vpop.f32.mrf.mxu0
    %v4292 = vadd.f32 0.0, %v4291
    %4293 = vdwg.mxu0
    %4294 = vmatprep.subr.mxu0 %v4222
    %4295 = vmatpush1.msra.mxu0 %v4221
    %4296 = vmatprep.subr.mxu0 %v4218
    %4297 = vmatpush1.msra.mxu0 %v4217
    %4298 = vmatprep.subr.mxu0 %v4214
    %4299 = vmatpush1.msra.mxu0 %v4213
    %4300 = vmatprep.subr.mxu0 %v4210
    %4301 = vmatpush1.msra.mxu0 %v4209
    %4302 = vmatprep.subr.mxu0 %v4206
    %4303 = vmatpush1.msra.mxu0 %v4205
    %4304 = vmatprep.subr.mxu0 %v4202
    %4305 = vmatpush1.msra.mxu0 %v4201
    %4306 = vmatprep.subr.mxu0 %v4198
    %4307 = vmatpush1.msra.mxu0 %v4197
    %4308 = vmatprep.subr.mxu0 %v4194
    %4309 = vmatpush1.msra.mxu0 %v4193
    %4310 = vmatprep.subr.mxu0 %v4190
    %4311 = vmatpush1.msra.mxu0 %v4189
    %4312 = vmatprep.subr.mxu0 %v4186
    %4313 = vmatpush1.msra.mxu0 %v4185
    %4314 = vmatprep.subr.mxu0 %v4182
    %4315 = vmatpush1.msra.mxu0 %v4181
    %4316 = vmatprep.subr.mxu0 %v4178
    %4317 = vmatpush1.msra.mxu0 %v4177
    %4318 = vmatprep.subr.mxu0 %v4174
    %4319 = vmatpush1.msra.mxu0 %v4173
    %4320 = vmatprep.subr.mxu0 %v4170
    %4321 = vmatpush1.msra.mxu0 %v4169
    %4322 = vmatprep.subr.mxu0 %v4166
    %4323 = vmatpush1.msra.mxu0 %v4165
    %4324 = vmatprep.subr.mxu0 %v4162
    %4325 = vmatpush1.msra.mxu0 %v4161
    %4326 = vmatprep.subr.mxu0 0.0
    %4327 = vmatpush2.msra.mxu0 0.0
    %4328 = vmatprep.subr.mxu0 0.0
    %4329 = vmatpush2.msra.mxu0 0.0
    %4330 = vmatprep.subr.mxu0 0.0
    %4331 = vmatpush2.msra.mxu0 0.0
    %4332 = vmatprep.subr.mxu0 0.0
    %4333 = vmatpush2.msra.mxu0 0.0
    %4334 = vmatprep.subr.mxu0 0.0
    %4335 = vmatpush2.msra.mxu0 0.0
    %4336 = vmatprep.subr.mxu0 0.0
    %4337 = vmatpush2.msra.mxu0 0.0
    %4338 = vmatprep.subr.mxu0 0.0
    %4339 = vmatpush2.msra.mxu0 0.0
    %4340 = vmatprep.subr.mxu0 0.0
    %4341 = vmatpush2.msra.mxu0 0.0
    %4342 = vmatprep.subr.mxu0 0.0
    %4343 = vmatpush2.msra.mxu0 0.0
    %4344 = vmatprep.subr.mxu0 0.0
    %4345 = vmatpush2.msra.mxu0 0.0
    %4346 = vmatprep.subr.mxu0 0.0
    %4347 = vmatpush2.msra.mxu0 0.0
    %4348 = vmatprep.subr.mxu0 0.0
    %4349 = vmatpush2.msra.mxu0 0.0
    %4350 = vmatprep.subr.mxu0 0.0
    %4351 = vmatpush2.msra.mxu0 0.0
    %4352 = vmatprep.subr.mxu0 0.0
    %4353 = vmatpush2.msra.mxu0 0.0
    %4354 = vmatprep.subr.mxu0 0.0
    %4355 = vmatpush2.msra.mxu0 0.0
    %4356 = vmatprep.subr.mxu0 0.0
    %4357 = vmatpush2.msra.mxu0 0.0
    %4358 = vmatprep.mubr.f32.mxu0 0.0
    %4359 = vmatmul.mubr.f32.gmra.mxu0 %v4153
    %v4360 = vpop.f32.mrf.mxu0
    %v4361 = vadd.f32 0.0, %v4360
    %v4362 = vpop.f32.mrf.mxu0
    %v4363 = vadd.f32 0.0, %v4362
    %4364 = vdwg.mxu0
    %v4365 = vadd.f32 %v4155, %v4290
    %v4366 = vadd.f32 %v4156, %v4292
    %v4367 = vadd.f32 %v4157, %v4361
    %v4368 = vadd.f32 %v4158, %v4363
    %v4369 = vxor.u32 %v4365, 2147483648
    %v4370 = vmul.f32 %v4369, 1.442695
    %v4371 = vpow.pop %v4370
    %v4372 = vadd.f32 %v4371, 1.0
    %v4373 = vrcp.pop %v4372
    %v4374 = vmul.f32 1.0, %v4373
    %v4375 = vxor.u32 %v4366, 2147483648
    %v4376 = vmul.f32 %v4375, 1.442695
    %v4377 = vpow.pop %v4376
    %v4378 = vadd.f32 %v4377, 1.0
    %v4379 = vrcp.pop %v4378
    %v4380 = vmul.f32 1.0, %v4379
    %v4381 = vtanh.pop %v4367
    %v4382 = vxor.u32 %v4368, 2147483648
    %v4383 = vmul.f32 %v4382, 1.442695
    %v4384 = vpow.pop %v4383
    %v4385 = vadd.f32 %v4384, 1.0
    %v4386 = vrcp.pop %v4385
    %v4387 = vmul.f32 1.0, %v4386
    %v4388 = vmul.f32 %v4380, %v4151
    %v4389 = vmul.f32 %v4374, %v4381
    %v4390 = vadd.f32 %v4388, %v4389
    %v4391 = vtanh.pop %v4390
    %v4392 = vmul.f32 %v4387, %v4391
    %4393 = vst [vmem:[%s2124] sm:$0xff] %v4392
    %v4394 = vld [vmem:[%s2128] sm:$0xff]
    %v4395 = vld [vmem:[%s2128 + $0x8] sm:$0xff]
    %v4396 = vld [vmem:[%s2128 + $0x10] sm:$0xff]
    %v4397 = vld [vmem:[%s2128 + $0x18] sm:$0xff]
    %v4398 = vld [vmem:[#allocation8] sm:$0xff]
    %v4399 = vld [vmem:[#allocation8 + $0x8] sm:$0xff]
    %v4400 = vld [vmem:[#allocation8 + $0x10] sm:$0xff]
    %v4401 = vld [vmem:[#allocation8 + $0x18] sm:$0xff]
    %v4402 = vld [vmem:[#allocation8 + $0x20] sm:$0xff]
    %v4403 = vld [vmem:[#allocation8 + $0x28] sm:$0xff]
    %v4404 = vld [vmem:[#allocation8 + $0x30] sm:$0xff]
    %v4405 = vld [vmem:[#allocation8 + $0x38] sm:$0xff]
    %v4406 = vld [vmem:[#allocation8 + $0x40] sm:$0xff]
    %v4407 = vld [vmem:[#allocation8 + $0x48] sm:$0xff]
    %v4408 = vld [vmem:[#allocation8 + $0x50] sm:$0xff]
    %v4409 = vld [vmem:[#allocation8 + $0x58] sm:$0xff]
    %v4410 = vld [vmem:[#allocation8 + $0x60] sm:$0xff]
    %v4411 = vld [vmem:[#allocation8 + $0x68] sm:$0xff]
    %v4412 = vld [vmem:[#allocation8 + $0x70] sm:$0xff]
    %v4413 = vld [vmem:[#allocation8 + $0x78] sm:$0xff]
    %v4414 = vld [vmem:[#allocation8 + $0x80] sm:$0xff]
    %v4415 = vld [vmem:[#allocation8 + $0x88] sm:$0xff]
    %v4416 = vld [vmem:[#allocation8 + $0x90] sm:$0xff]
    %v4417 = vld [vmem:[#allocation8 + $0x98] sm:$0xff]
    %v4418 = vld [vmem:[#allocation8 + $0xa0] sm:$0xff]
    %v4419 = vld [vmem:[#allocation8 + $0xa8] sm:$0xff]
    %v4420 = vld [vmem:[#allocation8 + $0xb0] sm:$0xff]
    %v4421 = vld [vmem:[#allocation8 + $0xb8] sm:$0xff]
    %v4422 = vld [vmem:[#allocation8 + $0xc0] sm:$0xff]
    %v4423 = vld [vmem:[#allocation8 + $0xc8] sm:$0xff]
    %v4424 = vld [vmem:[#allocation8 + $0xd0] sm:$0xff]
    %v4425 = vld [vmem:[#allocation8 + $0xd8] sm:$0xff]
    %v4426 = vld [vmem:[#allocation8 + $0xe0] sm:$0xff]
    %v4427 = vld [vmem:[#allocation8 + $0xe8] sm:$0xff]
    %v4428 = vld [vmem:[#allocation8 + $0xf0] sm:$0xff]
    %v4429 = vld [vmem:[#allocation8 + $0xf8] sm:$0xff]
    %v4430 = vld [vmem:[#allocation8 + $0x100] sm:$0xff]
    %v4431 = vld [vmem:[#allocation8 + $0x108] sm:$0xff]
    %v4432 = vld [vmem:[#allocation8 + $0x110] sm:$0xff]
    %v4433 = vld [vmem:[#allocation8 + $0x118] sm:$0xff]
    %v4434 = vld [vmem:[#allocation8 + $0x120] sm:$0xff]
    %v4435 = vld [vmem:[#allocation8 + $0x128] sm:$0xff]
    %v4436 = vld [vmem:[#allocation8 + $0x130] sm:$0xff]
    %v4437 = vld [vmem:[#allocation8 + $0x138] sm:$0xff]
    %v4438 = vld [vmem:[#allocation8 + $0x140] sm:$0xff]
    %v4439 = vld [vmem:[#allocation8 + $0x148] sm:$0xff]
    %v4440 = vld [vmem:[#allocation8 + $0x150] sm:$0xff]
    %v4441 = vld [vmem:[#allocation8 + $0x158] sm:$0xff]
    %v4442 = vld [vmem:[#allocation8 + $0x160] sm:$0xff]
    %v4443 = vld [vmem:[#allocation8 + $0x168] sm:$0xff]
    %v4444 = vld [vmem:[#allocation8 + $0x170] sm:$0xff]
    %v4445 = vld [vmem:[#allocation8 + $0x178] sm:$0xff]
    %v4446 = vld [vmem:[#allocation8 + $0x180] sm:$0xff]
    %v4447 = vld [vmem:[#allocation8 + $0x188] sm:$0xff]
    %v4448 = vld [vmem:[#allocation8 + $0x190] sm:$0xff]
    %v4449 = vld [vmem:[#allocation8 + $0x198] sm:$0xff]
    %v4450 = vld [vmem:[#allocation8 + $0x1a0] sm:$0xff]
    %v4451 = vld [vmem:[#allocation8 + $0x1a8] sm:$0xff]
    %v4452 = vld [vmem:[#allocation8 + $0x1b0] sm:$0xff]
    %v4453 = vld [vmem:[#allocation8 + $0x1b8] sm:$0xff]
    %v4454 = vld [vmem:[#allocation8 + $0x1c0] sm:$0xff]
    %v4455 = vld [vmem:[#allocation8 + $0x1c8] sm:$0xff]
    %v4456 = vld [vmem:[#allocation8 + $0x1d0] sm:$0xff]
    %v4457 = vld [vmem:[#allocation8 + $0x1d8] sm:$0xff]
    %v4458 = vld [vmem:[#allocation8 + $0x1e0] sm:$0xff]
    %v4459 = vld [vmem:[#allocation8 + $0x1e8] sm:$0xff]
    %v4460 = vld [vmem:[#allocation8 + $0x1f0] sm:$0xff]
    %v4461 = vld [vmem:[#allocation8 + $0x1f8] sm:$0xff]
    %4462 = vmatprep.subr.mxu0 %v4459
    %4463 = vmatpush1.msra.mxu0 %v4458
    %4464 = vmatprep.subr.mxu0 %v4455
    %4465 = vmatpush1.msra.mxu0 %v4454
    %4466 = vmatprep.subr.mxu0 %v4451
    %4467 = vmatpush1.msra.mxu0 %v4450
    %4468 = vmatprep.subr.mxu0 %v4447
    %4469 = vmatpush1.msra.mxu0 %v4446
    %4470 = vmatprep.subr.mxu0 %v4443
    %4471 = vmatpush1.msra.mxu0 %v4442
    %4472 = vmatprep.subr.mxu0 %v4439
    %4473 = vmatpush1.msra.mxu0 %v4438
    %4474 = vmatprep.subr.mxu0 %v4435
    %4475 = vmatpush1.msra.mxu0 %v4434
    %4476 = vmatprep.subr.mxu0 %v4431
    %4477 = vmatpush1.msra.mxu0 %v4430
    %4478 = vmatprep.subr.mxu0 %v4427
    %4479 = vmatpush1.msra.mxu0 %v4426
    %4480 = vmatprep.subr.mxu0 %v4423
    %4481 = vmatpush1.msra.mxu0 %v4422
    %4482 = vmatprep.subr.mxu0 %v4419
    %4483 = vmatpush1.msra.mxu0 %v4418
    %4484 = vmatprep.subr.mxu0 %v4415
    %4485 = vmatpush1.msra.mxu0 %v4414
    %4486 = vmatprep.subr.mxu0 %v4411
    %4487 = vmatpush1.msra.mxu0 %v4410
    %4488 = vmatprep.subr.mxu0 %v4407
    %4489 = vmatpush1.msra.mxu0 %v4406
    %4490 = vmatprep.subr.mxu0 %v4403
    %4491 = vmatpush1.msra.mxu0 %v4402
    %4492 = vmatprep.subr.mxu0 %v4399
    %4493 = vmatpush1.msra.mxu0 %v4398
    %4494 = vmatprep.subr.mxu0 0.0
    %4495 = vmatpush2.msra.mxu0 0.0
    %4496 = vmatprep.subr.mxu0 0.0
    %4497 = vmatpush2.msra.mxu0 0.0
    %4498 = vmatprep.subr.mxu0 0.0
    %4499 = vmatpush2.msra.mxu0 0.0
    %4500 = vmatprep.subr.mxu0 0.0
    %4501 = vmatpush2.msra.mxu0 0.0
    %4502 = vmatprep.subr.mxu0 0.0
    %4503 = vmatpush2.msra.mxu0 0.0
    %4504 = vmatprep.subr.mxu0 0.0
    %4505 = vmatpush2.msra.mxu0 0.0
    %4506 = vmatprep.subr.mxu0 0.0
    %4507 = vmatpush2.msra.mxu0 0.0
    %4508 = vmatprep.subr.mxu0 0.0
    %4509 = vmatpush2.msra.mxu0 0.0
    %4510 = vmatprep.subr.mxu0 0.0
    %4511 = vmatpush2.msra.mxu0 0.0
    %4512 = vmatprep.subr.mxu0 0.0
    %4513 = vmatpush2.msra.mxu0 0.0
    %4514 = vmatprep.subr.mxu0 0.0
    %4515 = vmatpush2.msra.mxu0 0.0
    %4516 = vmatprep.subr.mxu0 0.0
    %4517 = vmatpush2.msra.mxu0 0.0
    %4518 = vmatprep.subr.mxu0 0.0
    %4519 = vmatpush2.msra.mxu0 0.0
    %4520 = vmatprep.subr.mxu0 0.0
    %4521 = vmatpush2.msra.mxu0 0.0
    %4522 = vmatprep.subr.mxu0 0.0
    %4523 = vmatpush2.msra.mxu0 0.0
    %4524 = vmatprep.subr.mxu0 0.0
    %4525 = vmatpush2.msra.mxu0 0.0
    %4526 = vmatprep.mubr.f32.mxu0 0.0
    %4527 = vmatmul.mubr.f32.gmra.mxu0 %v4392
    %v4528 = vpop.f32.mrf.mxu0
    %v4529 = vadd.f32 0.0, %v4528
    %v4530 = vpop.f32.mrf.mxu0
    %v4531 = vadd.f32 0.0, %v4530
    %4532 = vdwg.mxu0
    %4533 = vmatprep.subr.mxu0 %v4461
    %4534 = vmatpush1.msra.mxu0 %v4460
    %4535 = vmatprep.subr.mxu0 %v4457
    %4536 = vmatpush1.msra.mxu0 %v4456
    %4537 = vmatprep.subr.mxu0 %v4453
    %4538 = vmatpush1.msra.mxu0 %v4452
    %4539 = vmatprep.subr.mxu0 %v4449
    %4540 = vmatpush1.msra.mxu0 %v4448
    %4541 = vmatprep.subr.mxu0 %v4445
    %4542 = vmatpush1.msra.mxu0 %v4444
    %4543 = vmatprep.subr.mxu0 %v4441
    %4544 = vmatpush1.msra.mxu0 %v4440
    %4545 = vmatprep.subr.mxu0 %v4437
    %4546 = vmatpush1.msra.mxu0 %v4436
    %4547 = vmatprep.subr.mxu0 %v4433
    %4548 = vmatpush1.msra.mxu0 %v4432
    %4549 = vmatprep.subr.mxu0 %v4429
    %4550 = vmatpush1.msra.mxu0 %v4428
    %4551 = vmatprep.subr.mxu0 %v4425
    %4552 = vmatpush1.msra.mxu0 %v4424
    %4553 = vmatprep.subr.mxu0 %v4421
    %4554 = vmatpush1.msra.mxu0 %v4420
    %4555 = vmatprep.subr.mxu0 %v4417
    %4556 = vmatpush1.msra.mxu0 %v4416
    %4557 = vmatprep.subr.mxu0 %v4413
    %4558 = vmatpush1.msra.mxu0 %v4412
    %4559 = vmatprep.subr.mxu0 %v4409
    %4560 = vmatpush1.msra.mxu0 %v4408
    %4561 = vmatprep.subr.mxu0 %v4405
    %4562 = vmatpush1.msra.mxu0 %v4404
    %4563 = vmatprep.subr.mxu0 %v4401
    %4564 = vmatpush1.msra.mxu0 %v4400
    %4565 = vmatprep.subr.mxu0 0.0
    %4566 = vmatpush2.msra.mxu0 0.0
    %4567 = vmatprep.subr.mxu0 0.0
    %4568 = vmatpush2.msra.mxu0 0.0
    %4569 = vmatprep.subr.mxu0 0.0
    %4570 = vmatpush2.msra.mxu0 0.0
    %4571 = vmatprep.subr.mxu0 0.0
    %4572 = vmatpush2.msra.mxu0 0.0
    %4573 = vmatprep.subr.mxu0 0.0
    %4574 = vmatpush2.msra.mxu0 0.0
    %4575 = vmatprep.subr.mxu0 0.0
    %4576 = vmatpush2.msra.mxu0 0.0
    %4577 = vmatprep.subr.mxu0 0.0
    %4578 = vmatpush2.msra.mxu0 0.0
    %4579 = vmatprep.subr.mxu0 0.0
    %4580 = vmatpush2.msra.mxu0 0.0
    %4581 = vmatprep.subr.mxu0 0.0
    %4582 = vmatpush2.msra.mxu0 0.0
    %4583 = vmatprep.subr.mxu0 0.0
    %4584 = vmatpush2.msra.mxu0 0.0
    %4585 = vmatprep.subr.mxu0 0.0
    %4586 = vmatpush2.msra.mxu0 0.0
    %4587 = vmatprep.subr.mxu0 0.0
    %4588 = vmatpush2.msra.mxu0 0.0
    %4589 = vmatprep.subr.mxu0 0.0
    %4590 = vmatpush2.msra.mxu0 0.0
    %4591 = vmatprep.subr.mxu0 0.0
    %4592 = vmatpush2.msra.mxu0 0.0
    %4593 = vmatprep.subr.mxu0 0.0
    %4594 = vmatpush2.msra.mxu0 0.0
    %4595 = vmatprep.subr.mxu0 0.0
    %4596 = vmatpush2.msra.mxu0 0.0
    %4597 = vmatprep.mubr.f32.mxu0 0.0
    %4598 = vmatmul.mubr.f32.gmra.mxu0 %v4392
    %v4599 = vpop.f32.mrf.mxu0
    %v4600 = vadd.f32 0.0, %v4599
    %v4601 = vpop.f32.mrf.mxu0
    %v4602 = vadd.f32 0.0, %v4601
    %4603 = vdwg.mxu0
    %v4604 = vadd.f32 %v4394, %v4529
    %v4605 = vadd.f32 %v4395, %v4531
    %v4606 = vadd.f32 %v4396, %v4600
    %v4607 = vadd.f32 %v4397, %v4602
    %v4608 = vxor.u32 %v4604, 2147483648
    %v4609 = vmul.f32 %v4608, 1.442695
    %v4610 = vpow.pop %v4609
    %v4611 = vadd.f32 %v4610, 1.0
    %v4612 = vrcp.pop %v4611
    %v4613 = vmul.f32 1.0, %v4612
    %v4614 = vxor.u32 %v4605, 2147483648
    %v4615 = vmul.f32 %v4614, 1.442695
    %v4616 = vpow.pop %v4615
    %v4617 = vadd.f32 %v4616, 1.0
    %v4618 = vrcp.pop %v4617
    %v4619 = vmul.f32 1.0, %v4618
    %v4620 = vtanh.pop %v4606
    %v4621 = vxor.u32 %v4607, 2147483648
    %v4622 = vmul.f32 %v4621, 1.442695
    %v4623 = vpow.pop %v4622
    %v4624 = vadd.f32 %v4623, 1.0
    %v4625 = vrcp.pop %v4624
    %v4626 = vmul.f32 1.0, %v4625
    %v4627 = vmul.f32 %v4619, %v4390
    %v4628 = vmul.f32 %v4613, %v4620
    %v4629 = vadd.f32 %v4627, %v4628
    %v4630 = vtanh.pop %v4629
    %v4631 = vmul.f32 %v4626, %v4630
    %4632 = vst [vmem:[%s2367] sm:$0xff] %v4631
    %v4633 = vld [vmem:[#allocation3] sm:$0xff]
    %v4634 = vld [vmem:[#allocation3 + $0x8] sm:$0xff]
    %v4635 = vld [vmem:[#allocation3 + $0x10] sm:$0xff]
    %v4636 = vld [vmem:[#allocation3 + $0x18] sm:$0xff]
    %v4637 = vld [vmem:[#allocation3 + $0x20] sm:$0xff]
    %v4638 = vld [vmem:[#allocation3 + $0x28] sm:$0xff]
    %v4639 = vld [vmem:[#allocation3 + $0x30] sm:$0xff]
    %v4640 = vld [vmem:[#allocation3 + $0x38] sm:$0xff]
    %v4641 = vld [vmem:[#allocation9] sm:$0xff]
    %v4642 = vld [vmem:[#allocation9 + $0x8] sm:$0xff]
    %v4643 = vld [vmem:[#allocation9 + $0x10] sm:$0xff]
    %v4644 = vld [vmem:[#allocation9 + $0x18] sm:$0xff]
    %v4645 = vld [vmem:[#allocation9 + $0x20] sm:$0xff]
    %v4646 = vld [vmem:[#allocation9 + $0x28] sm:$0xff]
    %v4647 = vld [vmem:[#allocation9 + $0x30] sm:$0xff]
    %v4648 = vld [vmem:[#allocation9 + $0x38] sm:$0xff]
    %v4649 = vld [vmem:[#allocation9 + $0x40] sm:$0xff]
    %v4650 = vld [vmem:[#allocation9 + $0x48] sm:$0xff]
    %v4651 = vld [vmem:[#allocation9 + $0x50] sm:$0xff]
    %v4652 = vld [vmem:[#allocation9 + $0x58] sm:$0xff]
    %v4653 = vld [vmem:[#allocation9 + $0x60] sm:$0xff]
    %v4654 = vld [vmem:[#allocation9 + $0x68] sm:$0xff]
    %v4655 = vld [vmem:[#allocation9 + $0x70] sm:$0xff]
    %v4656 = vld [vmem:[#allocation9 + $0x78] sm:$0xff]
    %v4657 = vld [vmem:[#allocation9 + $0x80] sm:$0xff]
    %v4658 = vld [vmem:[#allocation9 + $0x88] sm:$0xff]
    %v4659 = vld [vmem:[#allocation9 + $0x90] sm:$0xff]
    %v4660 = vld [vmem:[#allocation9 + $0x98] sm:$0xff]
    %v4661 = vld [vmem:[#allocation9 + $0xa0] sm:$0xff]
    %v4662 = vld [vmem:[#allocation9 + $0xa8] sm:$0xff]
    %v4663 = vld [vmem:[#allocation9 + $0xb0] sm:$0xff]
    %v4664 = vld [vmem:[#allocation9 + $0xb8] sm:$0xff]
    %v4665 = vld [vmem:[#allocation9 + $0xc0] sm:$0xff]
    %v4666 = vld [vmem:[#allocation9 + $0xc8] sm:$0xff]
    %v4667 = vld [vmem:[#allocation9 + $0xd0] sm:$0xff]
    %v4668 = vld [vmem:[#allocation9 + $0xd8] sm:$0xff]
    %v4669 = vld [vmem:[#allocation9 + $0xe0] sm:$0xff]
    %v4670 = vld [vmem:[#allocation9 + $0xe8] sm:$0xff]
    %v4671 = vld [vmem:[#allocation9 + $0xf0] sm:$0xff]
    %v4672 = vld [vmem:[#allocation9 + $0xf8] sm:$0xff]
    %v4673 = vld [vmem:[#allocation9 + $0x100] sm:$0xff]
    %v4674 = vld [vmem:[#allocation9 + $0x108] sm:$0xff]
    %v4675 = vld [vmem:[#allocation9 + $0x110] sm:$0xff]
    %v4676 = vld [vmem:[#allocation9 + $0x118] sm:$0xff]
    %v4677 = vld [vmem:[#allocation9 + $0x120] sm:$0xff]
    %v4678 = vld [vmem:[#allocation9 + $0x128] sm:$0xff]
    %v4679 = vld [vmem:[#allocation9 + $0x130] sm:$0xff]
    %v4680 = vld [vmem:[#allocation9 + $0x138] sm:$0xff]
    %v4681 = vld [vmem:[#allocation9 + $0x140] sm:$0xff]
    %v4682 = vld [vmem:[#allocation9 + $0x148] sm:$0xff]
    %v4683 = vld [vmem:[#allocation9 + $0x150] sm:$0xff]
    %v4684 = vld [vmem:[#allocation9 + $0x158] sm:$0xff]
    %v4685 = vld [vmem:[#allocation9 + $0x160] sm:$0xff]
    %v4686 = vld [vmem:[#allocation9 + $0x168] sm:$0xff]
    %v4687 = vld [vmem:[#allocation9 + $0x170] sm:$0xff]
    %v4688 = vld [vmem:[#allocation9 + $0x178] sm:$0xff]
    %v4689 = vld [vmem:[#allocation9 + $0x180] sm:$0xff]
    %v4690 = vld [vmem:[#allocation9 + $0x188] sm:$0xff]
    %v4691 = vld [vmem:[#allocation9 + $0x190] sm:$0xff]
    %v4692 = vld [vmem:[#allocation9 + $0x198] sm:$0xff]
    %v4693 = vld [vmem:[#allocation9 + $0x1a0] sm:$0xff]
    %v4694 = vld [vmem:[#allocation9 + $0x1a8] sm:$0xff]
    %v4695 = vld [vmem:[#allocation9 + $0x1b0] sm:$0xff]
    %v4696 = vld [vmem:[#allocation9 + $0x1b8] sm:$0xff]
    %v4697 = vld [vmem:[#allocation9 + $0x1c0] sm:$0xff]
    %v4698 = vld [vmem:[#allocation9 + $0x1c8] sm:$0xff]
    %v4699 = vld [vmem:[#allocation9 + $0x1d0] sm:$0xff]
    %v4700 = vld [vmem:[#allocation9 + $0x1d8] sm:$0xff]
    %v4701 = vld [vmem:[#allocation9 + $0x1e0] sm:$0xff]
    %v4702 = vld [vmem:[#allocation9 + $0x1e8] sm:$0xff]
    %v4703 = vld [vmem:[#allocation9 + $0x1f0] sm:$0xff]
    %v4704 = vld [vmem:[#allocation9 + $0x1f8] sm:$0xff]
    %v4705 = vld [vmem:[%s9] sm:$0xf]
    %v4707 = vlaneseq
    %v4708 = vshrl.u32 %v4707, 7
    %v4709 = vsub.s32 0, %v4708
    %v4710 = vrot.slane %v4705, %v4709
    %v4711 = vlaneseq
    %v4712 = vshrl.u32 %v4711, 7
    %v4713 = vsub.s32 1, %v4712
    %v4714 = vrot.slane %v4705, %v4713
    %v4715 = vlaneseq
    %v4716 = vshrl.u32 %v4715, 7
    %v4717 = vsub.s32 2, %v4716
    %v4718 = vrot.slane %v4705, %v4717
    %v4719 = vlaneseq
    %v4720 = vshrl.u32 %v4719, 7
    %v4721 = vsub.s32 3, %v4720
    %v4722 = vrot.slane %v4705, %v4721
    %4727 = vmatprep.subr.mxu0 %v4702
    %4728 = vmatpush1.msra.mxu0 %v4701
    %4729 = vmatprep.subr.mxu0 %v4698
    %4730 = vmatpush1.msra.mxu0 %v4697
    %4731 = vmatprep.subr.mxu0 %v4694
    %4732 = vmatpush1.msra.mxu0 %v4693
    %4733 = vmatprep.subr.mxu0 %v4690
    %4734 = vmatpush1.msra.mxu0 %v4689
    %4735 = vmatprep.subr.mxu0 %v4686
    %4736 = vmatpush1.msra.mxu0 %v4685
    %4737 = vmatprep.subr.mxu0 %v4682
    %4738 = vmatpush1.msra.mxu0 %v4681
    %4739 = vmatprep.subr.mxu0 %v4678
    %4740 = vmatpush1.msra.mxu0 %v4677
    %4741 = vmatprep.subr.mxu0 %v4674
    %4742 = vmatpush1.msra.mxu0 %v4673
    %4743 = vmatprep.subr.mxu0 %v4670
    %4744 = vmatpush1.msra.mxu0 %v4669
    %4745 = vmatprep.subr.mxu0 %v4666
    %4746 = vmatpush1.msra.mxu0 %v4665
    %4747 = vmatprep.subr.mxu0 %v4662
    %4748 = vmatpush1.msra.mxu0 %v4661
    %4749 = vmatprep.subr.mxu0 %v4658
    %4750 = vmatpush1.msra.mxu0 %v4657
    %4751 = vmatprep.subr.mxu0 %v4654
    %4752 = vmatpush1.msra.mxu0 %v4653
    %4753 = vmatprep.subr.mxu0 %v4650
    %4754 = vmatpush1.msra.mxu0 %v4649
    %4755 = vmatprep.subr.mxu0 %v4646
    %4756 = vmatpush1.msra.mxu0 %v4645
    %4757 = vmatprep.subr.mxu0 %v4642
    %4758 = vmatpush1.msra.mxu0 %v4641
    %4759 = vmatprep.subr.mxu0 0.0
    %4760 = vmatpush2.msra.mxu0 0.0
    %4761 = vmatprep.subr.mxu0 0.0
    %4762 = vmatpush2.msra.mxu0 0.0
    %4763 = vmatprep.subr.mxu0 0.0
    %4764 = vmatpush2.msra.mxu0 0.0
    %4765 = vmatprep.subr.mxu0 0.0
    %4766 = vmatpush2.msra.mxu0 0.0
    %4767 = vmatprep.subr.mxu0 0.0
    %4768 = vmatpush2.msra.mxu0 0.0
    %4769 = vmatprep.subr.mxu0 0.0
    %4770 = vmatpush2.msra.mxu0 0.0
    %4771 = vmatprep.subr.mxu0 0.0
    %4772 = vmatpush2.msra.mxu0 0.0
    %4773 = vmatprep.subr.mxu0 0.0
    %4774 = vmatpush2.msra.mxu0 0.0
    %4775 = vmatprep.subr.mxu0 0.0
    %4776 = vmatpush2.msra.mxu0 0.0
    %4777 = vmatprep.subr.mxu0 0.0
    %4778 = vmatpush2.msra.mxu0 0.0
    %4779 = vmatprep.subr.mxu0 0.0
    %4780 = vmatpush2.msra.mxu0 0.0
    %4781 = vmatprep.subr.mxu0 0.0
    %4782 = vmatpush2.msra.mxu0 0.0
    %4783 = vmatprep.subr.mxu0 0.0
    %4784 = vmatpush2.msra.mxu0 0.0
    %4785 = vmatprep.subr.mxu0 0.0
    %4786 = vmatpush2.msra.mxu0 0.0
    %4787 = vmatprep.subr.mxu0 0.0
    %4788 = vmatpush2.msra.mxu0 0.0
    %4789 = vmatprep.subr.mxu0 0.0
    %4790 = vmatpush2.msra.mxu0 0.0
    %4791 = vmatprep.mubr.f32.mxu0 0.0
    %4792 = vmatmul.mubr.f32.gmra.mxu0 %v4633
    %v4793 = vpop.f32.mrf.mxu0
    %v4794 = vadd.f32 %v4710, %v4793
    %v4795 = vpop.f32.mrf.mxu0
    %v4796 = vadd.f32 %v4714, %v4795
    %4797 = vmatprep.mubr.f32.mxu0 0.0
    %4798 = vmatmul.mubr.f32.gmra.mxu0 %v4634
    %v4799 = vpop.f32.mrf.mxu0
    %v4800 = vadd.f32 %v4710, %v4799
    %v4801 = vpop.f32.mrf.mxu0
    %v4802 = vadd.f32 %v4714, %v4801
    %4803 = vmatprep.mubr.f32.mxu0 0.0
    %4804 = vmatmul.mubr.f32.gmra.mxu0 %v4635
    %v4805 = vpop.f32.mrf.mxu0
    %v4806 = vadd.f32 %v4710, %v4805
    %v4807 = vpop.f32.mrf.mxu0
    %v4808 = vadd.f32 %v4714, %v4807
    %4809 = vmatprep.mubr.f32.mxu0 0.0
    %4810 = vmatmul.mubr.f32.gmra.mxu0 %v4636
    %v4811 = vpop.f32.mrf.mxu0
    %v4812 = vadd.f32 %v4710, %v4811
    %v4813 = vpop.f32.mrf.mxu0
    %v4814 = vadd.f32 %v4714, %v4813
    %4815 = vmatprep.mubr.f32.mxu0 0.0
    %4816 = vmatmul.mubr.f32.gmra.mxu0 %v4637
    %v4817 = vpop.f32.mrf.mxu0
    %v4818 = vadd.f32 %v4710, %v4817
    %v4819 = vpop.f32.mrf.mxu0
    %v4820 = vadd.f32 %v4714, %v4819
    %4821 = vmatprep.mubr.f32.mxu0 0.0
    %4822 = vmatmul.mubr.f32.gmra.mxu0 %v4638
    %v4823 = vpop.f32.mrf.mxu0
    %v4824 = vadd.f32 %v4710, %v4823
    %v4825 = vpop.f32.mrf.mxu0
    %v4826 = vadd.f32 %v4714, %v4825
    %4827 = vmatprep.mubr.f32.mxu0 0.0
    %4828 = vmatmul.mubr.f32.gmra.mxu0 %v4639
    %v4829 = vpop.f32.mrf.mxu0
    %v4830 = vadd.f32 %v4710, %v4829
    %v4831 = vpop.f32.mrf.mxu0
    %v4832 = vadd.f32 %v4714, %v4831
    %4833 = vmatprep.mubr.f32.mxu0 0.0
    %4834 = vmatmul.mubr.f32.gmra.mxu0 %v4640
    %v4835 = vpop.f32.mrf.mxu0
    %v4836 = vadd.f32 %v4710, %v4835
    %v4837 = vpop.f32.mrf.mxu0
    %v4838 = vadd.f32 %v4714, %v4837
    %4839 = vdwg.mxu0
    %4840 = vmatprep.subr.mxu0 %v4704
    %4841 = vmatpush1.msra.mxu0 %v4703
    %4842 = vmatprep.subr.mxu0 %v4700
    %4843 = vmatpush1.msra.mxu0 %v4699
    %4844 = vmatprep.subr.mxu0 %v4696
    %4845 = vmatpush1.msra.mxu0 %v4695
    %4846 = vmatprep.subr.mxu0 %v4692
    %4847 = vmatpush1.msra.mxu0 %v4691
    %4848 = vmatprep.subr.mxu0 %v4688
    %4849 = vmatpush1.msra.mxu0 %v4687
    %4850 = vmatprep.subr.mxu0 %v4684
    %4851 = vmatpush1.msra.mxu0 %v4683
    %4852 = vmatprep.subr.mxu0 %v4680
    %4853 = vmatpush1.msra.mxu0 %v4679
    %4854 = vmatprep.subr.mxu0 %v4676
    %4855 = vmatpush1.msra.mxu0 %v4675
    %4856 = vmatprep.subr.mxu0 %v4672
    %4857 = vmatpush1.msra.mxu0 %v4671
    %4858 = vmatprep.subr.mxu0 %v4668
    %4859 = vmatpush1.msra.mxu0 %v4667
    %4860 = vmatprep.subr.mxu0 %v4664
    %4861 = vmatpush1.msra.mxu0 %v4663
    %4862 = vmatprep.subr.mxu0 %v4660
    %4863 = vmatpush1.msra.mxu0 %v4659
    %4864 = vmatprep.subr.mxu0 %v4656
    %4865 = vmatpush1.msra.mxu0 %v4655
    %4866 = vmatprep.subr.mxu0 %v4652
    %4867 = vmatpush1.msra.mxu0 %v4651
    %4868 = vmatprep.subr.mxu0 %v4648
    %4869 = vmatpush1.msra.mxu0 %v4647
    %4870 = vmatprep.subr.mxu0 %v4644
    %4871 = vmatpush1.msra.mxu0 %v4643
    %4872 = vmatprep.subr.mxu0 0.0
    %4873 = vmatpush2.msra.mxu0 0.0
    %4874 = vmatprep.subr.mxu0 0.0
    %4875 = vmatpush2.msra.mxu0 0.0
    %4876 = vmatprep.subr.mxu0 0.0
    %4877 = vmatpush2.msra.mxu0 0.0
    %4878 = vmatprep.subr.mxu0 0.0
    %4879 = vmatpush2.msra.mxu0 0.0
    %4880 = vmatprep.subr.mxu0 0.0
    %4881 = vmatpush2.msra.mxu0 0.0
    %4882 = vmatprep.subr.mxu0 0.0
    %4883 = vmatpush2.msra.mxu0 0.0
    %4884 = vmatprep.subr.mxu0 0.0
    %4885 = vmatpush2.msra.mxu0 0.0
    %4886 = vmatprep.subr.mxu0 0.0
    %4887 = vmatpush2.msra.mxu0 0.0
    %4888 = vmatprep.subr.mxu0 0.0
    %4889 = vmatpush2.msra.mxu0 0.0
    %4890 = vmatprep.subr.mxu0 0.0
    %4891 = vmatpush2.msra.mxu0 0.0
    %4892 = vmatprep.subr.mxu0 0.0
    %4893 = vmatpush2.msra.mxu0 0.0
    %4894 = vmatprep.subr.mxu0 0.0
    %4895 = vmatpush2.msra.mxu0 0.0
    %4896 = vmatprep.subr.mxu0 0.0
    %4897 = vmatpush2.msra.mxu0 0.0
    %4898 = vmatprep.subr.mxu0 0.0
    %4899 = vmatpush2.msra.mxu0 0.0
    %4900 = vmatprep.subr.mxu0 0.0
    %4901 = vmatpush2.msra.mxu0 0.0
    %4902 = vmatprep.subr.mxu0 0.0
    %4903 = vmatpush2.msra.mxu0 0.0
    %4904 = vmatprep.mubr.f32.mxu0 0.0
    %4905 = vmatmul.mubr.f32.gmra.mxu0 %v4633
    %v4906 = vpop.f32.mrf.mxu0
    %v4907 = vadd.f32 %v4718, %v4906
    %v4908 = vpop.f32.mrf.mxu0
    %v4909 = vadd.f32 %v4722, %v4908
    %4910 = vmatprep.mubr.f32.mxu0 0.0
    %4911 = vmatmul.mubr.f32.gmra.mxu0 %v4634
    %v4912 = vpop.f32.mrf.mxu0
    %v4913 = vadd.f32 %v4718, %v4912
    %v4914 = vpop.f32.mrf.mxu0
    %v4915 = vadd.f32 %v4722, %v4914
    %4916 = vmatprep.mubr.f32.mxu0 0.0
    %4917 = vmatmul.mubr.f32.gmra.mxu0 %v4635
    %v4918 = vpop.f32.mrf.mxu0
    %v4919 = vadd.f32 %v4718, %v4918
    %v4920 = vpop.f32.mrf.mxu0
    %v4921 = vadd.f32 %v4722, %v4920
    %4922 = vmatprep.mubr.f32.mxu0 0.0
    %4923 = vmatmul.mubr.f32.gmra.mxu0 %v4636
    %v4924 = vpop.f32.mrf.mxu0
    %v4925 = vadd.f32 %v4718, %v4924
    %v4926 = vpop.f32.mrf.mxu0
    %v4927 = vadd.f32 %v4722, %v4926
    %4928 = vmatprep.mubr.f32.mxu0 0.0
    %4929 = vmatmul.mubr.f32.gmra.mxu0 %v4637
    %v4930 = vpop.f32.mrf.mxu0
    %v4931 = vadd.f32 %v4718, %v4930
    %v4932 = vpop.f32.mrf.mxu0
    %v4933 = vadd.f32 %v4722, %v4932
    %4934 = vmatprep.mubr.f32.mxu0 0.0
    %4935 = vmatmul.mubr.f32.gmra.mxu0 %v4638
    %v4936 = vpop.f32.mrf.mxu0
    %v4937 = vadd.f32 %v4718, %v4936
    %v4938 = vpop.f32.mrf.mxu0
    %v4939 = vadd.f32 %v4722, %v4938
    %4940 = vmatprep.mubr.f32.mxu0 0.0
    %4941 = vmatmul.mubr.f32.gmra.mxu0 %v4639
    %v4942 = vpop.f32.mrf.mxu0
    %v4943 = vadd.f32 %v4718, %v4942
    %v4944 = vpop.f32.mrf.mxu0
    %v4945 = vadd.f32 %v4722, %v4944
    %4946 = vmatprep.mubr.f32.mxu0 0.0
    %4947 = vmatmul.mubr.f32.gmra.mxu0 %v4640
    %v4948 = vpop.f32.mrf.mxu0
    %v4949 = vadd.f32 %v4718, %v4948
    %v4950 = vpop.f32.mrf.mxu0
    %v4951 = vadd.f32 %v4722, %v4950
    %4952 = vdwg.mxu0
    %4953 = vst [vmem:[#allocation2] sm:$0xff] %v4794
    %4954 = vst [vmem:[#allocation2 + $0x8] sm:$0xff] %v4796
    %4955 = vst [vmem:[#allocation2 + $0x10] sm:$0xff] %v4907
    %4956 = vst [vmem:[#allocation2 + $0x18] sm:$0xff] %v4909
    %4957 = vst [vmem:[#allocation2 + $0x20] sm:$0xff] %v4800
    %4958 = vst [vmem:[#allocation2 + $0x28] sm:$0xff] %v4802
    %4959 = vst [vmem:[#allocation2 + $0x30] sm:$0xff] %v4913
    %4960 = vst [vmem:[#allocation2 + $0x38] sm:$0xff] %v4915
    %4961 = vst [vmem:[#allocation2 + $0x40] sm:$0xff] %v4806
    %4962 = vst [vmem:[#allocation2 + $0x48] sm:$0xff] %v4808
    %4963 = vst [vmem:[#allocation2 + $0x50] sm:$0xff] %v4919
    %4964 = vst [vmem:[#allocation2 + $0x58] sm:$0xff] %v4921
    %4965 = vst [vmem:[#allocation2 + $0x60] sm:$0xff] %v4812
    %4966 = vst [vmem:[#allocation2 + $0x68] sm:$0xff] %v4814
    %4967 = vst [vmem:[#allocation2 + $0x70] sm:$0xff] %v4925
    %4968 = vst [vmem:[#allocation2 + $0x78] sm:$0xff] %v4927
    %4969 = vst [vmem:[#allocation2 + $0x80] sm:$0xff] %v4818
    %4970 = vst [vmem:[#allocation2 + $0x88] sm:$0xff] %v4820
    %4971 = vst [vmem:[#allocation2 + $0x90] sm:$0xff] %v4931
    %4972 = vst [vmem:[#allocation2 + $0x98] sm:$0xff] %v4933
    %4973 = vst [vmem:[#allocation2 + $0xa0] sm:$0xff] %v4824
    %4974 = vst [vmem:[#allocation2 + $0xa8] sm:$0xff] %v4826
    %4975 = vst [vmem:[#allocation2 + $0xb0] sm:$0xff] %v4937
    %4976 = vst [vmem:[#allocation2 + $0xb8] sm:$0xff] %v4939
    %4977 = vst [vmem:[#allocation2 + $0xc0] sm:$0xff] %v4830
    %4978 = vst [vmem:[#allocation2 + $0xc8] sm:$0xff] %v4832
    %4979 = vst [vmem:[#allocation2 + $0xd0] sm:$0xff] %v4943
    %4980 = vst [vmem:[#allocation2 + $0xd8] sm:$0xff] %v4945
    %4981 = vst [vmem:[#allocation2 + $0xe0] sm:$0xff] %v4836
    %4982 = vst [vmem:[#allocation2 + $0xe8] sm:$0xff] %v4838
    %4983 = vst [vmem:[#allocation2 + $0xf0] sm:$0xff] %v4949
    %4984 = vst [vmem:[#allocation2 + $0xf8] sm:$0xff] %v4951
    %v4985 = vld [vmem:[%s428] sm:$0xff]
    %v4986 = vld [vmem:[%s428 + $0x8] sm:$0xff]
    %v4987 = vld [vmem:[%s428 + $0x10] sm:$0xff]
    %v4988 = vld [vmem:[%s428 + $0x18] sm:$0xff]
    %v4989 = vld [vmem:[#allocation11] sm:$0xff]
    %v4990 = vld [vmem:[#allocation11 + $0x8] sm:$0xff]
    %v4991 = vld [vmem:[#allocation11 + $0x10] sm:$0xff]
    %v4992 = vld [vmem:[#allocation11 + $0x18] sm:$0xff]
    %v4993 = vld [vmem:[#allocation11 + $0x20] sm:$0xff]
    %v4994 = vld [vmem:[#allocation11 + $0x28] sm:$0xff]
    %v4995 = vld [vmem:[#allocation11 + $0x30] sm:$0xff]
    %v4996 = vld [vmem:[#allocation11 + $0x38] sm:$0xff]
    %v4997 = vld [vmem:[#allocation11 + $0x40] sm:$0xff]
    %v4998 = vld [vmem:[#allocation11 + $0x48] sm:$0xff]
    %v4999 = vld [vmem:[#allocation11 + $0x50] sm:$0xff]
    %v5000 = vld [vmem:[#allocation11 + $0x58] sm:$0xff]
    %v5001 = vld [vmem:[#allocation11 + $0x60] sm:$0xff]
    %v5002 = vld [vmem:[#allocation11 + $0x68] sm:$0xff]
    %v5003 = vld [vmem:[#allocation11 + $0x70] sm:$0xff]
    %v5004 = vld [vmem:[#allocation11 + $0x78] sm:$0xff]
    %v5005 = vld [vmem:[#allocation11 + $0x80] sm:$0xff]
    %v5006 = vld [vmem:[#allocation11 + $0x88] sm:$0xff]
    %v5007 = vld [vmem:[#allocation11 + $0x90] sm:$0xff]
    %v5008 = vld [vmem:[#allocation11 + $0x98] sm:$0xff]
    %v5009 = vld [vmem:[#allocation11 + $0xa0] sm:$0xff]
    %v5010 = vld [vmem:[#allocation11 + $0xa8] sm:$0xff]
    %v5011 = vld [vmem:[#allocation11 + $0xb0] sm:$0xff]
    %v5012 = vld [vmem:[#allocation11 + $0xb8] sm:$0xff]
    %v5013 = vld [vmem:[#allocation11 + $0xc0] sm:$0xff]
    %v5014 = vld [vmem:[#allocation11 + $0xc8] sm:$0xff]
    %v5015 = vld [vmem:[#allocation11 + $0xd0] sm:$0xff]
    %v5016 = vld [vmem:[#allocation11 + $0xd8] sm:$0xff]
    %v5017 = vld [vmem:[#allocation11 + $0xe0] sm:$0xff]
    %v5018 = vld [vmem:[#allocation11 + $0xe8] sm:$0xff]
    %v5019 = vld [vmem:[#allocation11 + $0xf0] sm:$0xff]
    %v5020 = vld [vmem:[#allocation11 + $0xf8] sm:$0xff]
    %v5021 = vld [vmem:[#allocation11 + $0x100] sm:$0xff]
    %v5022 = vld [vmem:[#allocation11 + $0x108] sm:$0xff]
    %v5023 = vld [vmem:[#allocation11 + $0x110] sm:$0xff]
    %v5024 = vld [vmem:[#allocation11 + $0x118] sm:$0xff]
    %v5025 = vld [vmem:[#allocation11 + $0x120] sm:$0xff]
    %v5026 = vld [vmem:[#allocation11 + $0x128] sm:$0xff]
    %v5027 = vld [vmem:[#allocation11 + $0x130] sm:$0xff]
    %v5028 = vld [vmem:[#allocation11 + $0x138] sm:$0xff]
    %v5029 = vld [vmem:[#allocation11 + $0x140] sm:$0xff]
    %v5030 = vld [vmem:[#allocation11 + $0x148] sm:$0xff]
    %v5031 = vld [vmem:[#allocation11 + $0x150] sm:$0xff]
    %v5032 = vld [vmem:[#allocation11 + $0x158] sm:$0xff]
    %v5033 = vld [vmem:[#allocation11 + $0x160] sm:$0xff]
    %v5034 = vld [vmem:[#allocation11 + $0x168] sm:$0xff]
    %v5035 = vld [vmem:[#allocation11 + $0x170] sm:$0xff]
    %v5036 = vld [vmem:[#allocation11 + $0x178] sm:$0xff]
    %v5037 = vld [vmem:[#allocation11 + $0x180] sm:$0xff]
    %v5038 = vld [vmem:[#allocation11 + $0x188] sm:$0xff]
    %v5039 = vld [vmem:[#allocation11 + $0x190] sm:$0xff]
    %v5040 = vld [vmem:[#allocation11 + $0x198] sm:$0xff]
    %v5041 = vld [vmem:[#allocation11 + $0x1a0] sm:$0xff]
    %v5042 = vld [vmem:[#allocation11 + $0x1a8] sm:$0xff]
    %v5043 = vld [vmem:[#allocation11 + $0x1b0] sm:$0xff]
    %v5044 = vld [vmem:[#allocation11 + $0x1b8] sm:$0xff]
    %v5045 = vld [vmem:[#allocation11 + $0x1c0] sm:$0xff]
    %v5046 = vld [vmem:[#allocation11 + $0x1c8] sm:$0xff]
    %v5047 = vld [vmem:[#allocation11 + $0x1d0] sm:$0xff]
    %v5048 = vld [vmem:[#allocation11 + $0x1d8] sm:$0xff]
    %v5049 = vld [vmem:[#allocation11 + $0x1e0] sm:$0xff]
    %v5050 = vld [vmem:[#allocation11 + $0x1e8] sm:$0xff]
    %v5051 = vld [vmem:[#allocation11 + $0x1f0] sm:$0xff]
    %v5052 = vld [vmem:[#allocation11 + $0x1f8] sm:$0xff]
    %5053 = vmatprep.subr.mxu0 %v5050
    %5054 = vmatpush1.msra.mxu0 %v5049
    %5055 = vmatprep.subr.mxu0 %v5046
    %5056 = vmatpush1.msra.mxu0 %v5045
    %5057 = vmatprep.subr.mxu0 %v5042
    %5058 = vmatpush1.msra.mxu0 %v5041
    %5059 = vmatprep.subr.mxu0 %v5038
    %5060 = vmatpush1.msra.mxu0 %v5037
    %5061 = vmatprep.subr.mxu0 %v5034
    %5062 = vmatpush1.msra.mxu0 %v5033
    %5063 = vmatprep.subr.mxu0 %v5030
    %5064 = vmatpush1.msra.mxu0 %v5029
    %5065 = vmatprep.subr.mxu0 %v5026
    %5066 = vmatpush1.msra.mxu0 %v5025
    %5067 = vmatprep.subr.mxu0 %v5022
    %5068 = vmatpush1.msra.mxu0 %v5021
    %5069 = vmatprep.subr.mxu0 %v5018
    %5070 = vmatpush1.msra.mxu0 %v5017
    %5071 = vmatprep.subr.mxu0 %v5014
    %5072 = vmatpush1.msra.mxu0 %v5013
    %5073 = vmatprep.subr.mxu0 %v5010
    %5074 = vmatpush1.msra.mxu0 %v5009
    %5075 = vmatprep.subr.mxu0 %v5006
    %5076 = vmatpush1.msra.mxu0 %v5005
    %5077 = vmatprep.subr.mxu0 %v5002
    %5078 = vmatpush1.msra.mxu0 %v5001
    %5079 = vmatprep.subr.mxu0 %v4998
    %5080 = vmatpush1.msra.mxu0 %v4997
    %5081 = vmatprep.subr.mxu0 %v4994
    %5082 = vmatpush1.msra.mxu0 %v4993
    %5083 = vmatprep.subr.mxu0 %v4990
    %5084 = vmatpush1.msra.mxu0 %v4989
    %5085 = vmatprep.subr.mxu0 0.0
    %5086 = vmatpush2.msra.mxu0 0.0
    %5087 = vmatprep.subr.mxu0 0.0
    %5088 = vmatpush2.msra.mxu0 0.0
    %5089 = vmatprep.subr.mxu0 0.0
    %5090 = vmatpush2.msra.mxu0 0.0
    %5091 = vmatprep.subr.mxu0 0.0
    %5092 = vmatpush2.msra.mxu0 0.0
    %5093 = vmatprep.subr.mxu0 0.0
    %5094 = vmatpush2.msra.mxu0 0.0
    %5095 = vmatprep.subr.mxu0 0.0
    %5096 = vmatpush2.msra.mxu0 0.0
    %5097 = vmatprep.subr.mxu0 0.0
    %5098 = vmatpush2.msra.mxu0 0.0
    %5099 = vmatprep.subr.mxu0 0.0
    %5100 = vmatpush2.msra.mxu0 0.0
    %5101 = vmatprep.subr.mxu0 0.0
    %5102 = vmatpush2.msra.mxu0 0.0
    %5103 = vmatprep.subr.mxu0 0.0
    %5104 = vmatpush2.msra.mxu0 0.0
    %5105 = vmatprep.subr.mxu0 0.0
    %5106 = vmatpush2.msra.mxu0 0.0
    %5107 = vmatprep.subr.mxu0 0.0
    %5108 = vmatpush2.msra.mxu0 0.0
    %5109 = vmatprep.subr.mxu0 0.0
    %5110 = vmatpush2.msra.mxu0 0.0
    %5111 = vmatprep.subr.mxu0 0.0
    %5112 = vmatpush2.msra.mxu0 0.0
    %5113 = vmatprep.subr.mxu0 0.0
    %5114 = vmatpush2.msra.mxu0 0.0
    %5115 = vmatprep.subr.mxu0 0.0
    %5116 = vmatpush2.msra.mxu0 0.0
    %5117 = vmatprep.mubr.f32.mxu0 0.0
    %5118 = vmatmul.mubr.f32.gmra.mxu0 0.0
    %v5119 = vpop.f32.mrf.mxu0
    %v5120 = vadd.f32 0.0, %v5119
    %v5121 = vpop.f32.mrf.mxu0
    %v5122 = vadd.f32 0.0, %v5121
    %5123 = vdwg.mxu0
    %5124 = vmatprep.subr.mxu0 %v5052
    %5125 = vmatpush1.msra.mxu0 %v5051
    %5126 = vmatprep.subr.mxu0 %v5048
    %5127 = vmatpush1.msra.mxu0 %v5047
    %5128 = vmatprep.subr.mxu0 %v5044
    %5129 = vmatpush1.msra.mxu0 %v5043
    %5130 = vmatprep.subr.mxu0 %v5040
    %5131 = vmatpush1.msra.mxu0 %v5039
    %5132 = vmatprep.subr.mxu0 %v5036
    %5133 = vmatpush1.msra.mxu0 %v5035
    %5134 = vmatprep.subr.mxu0 %v5032
    %5135 = vmatpush1.msra.mxu0 %v5031
    %5136 = vmatprep.subr.mxu0 %v5028
    %5137 = vmatpush1.msra.mxu0 %v5027
    %5138 = vmatprep.subr.mxu0 %v5024
    %5139 = vmatpush1.msra.mxu0 %v5023
    %5140 = vmatprep.subr.mxu0 %v5020
    %5141 = vmatpush1.msra.mxu0 %v5019
    %5142 = vmatprep.subr.mxu0 %v5016
    %5143 = vmatpush1.msra.mxu0 %v5015
    %5144 = vmatprep.subr.mxu0 %v5012
    %5145 = vmatpush1.msra.mxu0 %v5011
    %5146 = vmatprep.subr.mxu0 %v5008
    %5147 = vmatpush1.msra.mxu0 %v5007
    %5148 = vmatprep.subr.mxu0 %v5004
    %5149 = vmatpush1.msra.mxu0 %v5003
    %5150 = vmatprep.subr.mxu0 %v5000
    %5151 = vmatpush1.msra.mxu0 %v4999
    %5152 = vmatprep.subr.mxu0 %v4996
    %5153 = vmatpush1.msra.mxu0 %v4995
    %5154 = vmatprep.subr.mxu0 %v4992
    %5155 = vmatpush1.msra.mxu0 %v4991
    %5156 = vmatprep.subr.mxu0 0.0
    %5157 = vmatpush2.msra.mxu0 0.0
    %5158 = vmatprep.subr.mxu0 0.0
    %5159 = vmatpush2.msra.mxu0 0.0
    %5160 = vmatprep.subr.mxu0 0.0
    %5161 = vmatpush2.msra.mxu0 0.0
    %5162 = vmatprep.subr.mxu0 0.0
    %5163 = vmatpush2.msra.mxu0 0.0
    %5164 = vmatprep.subr.mxu0 0.0
    %5165 = vmatpush2.msra.mxu0 0.0
    %5166 = vmatprep.subr.mxu0 0.0
    %5167 = vmatpush2.msra.mxu0 0.0
    %5168 = vmatprep.subr.mxu0 0.0
    %5169 = vmatpush2.msra.mxu0 0.0
    %5170 = vmatprep.subr.mxu0 0.0
    %5171 = vmatpush2.msra.mxu0 0.0
    %5172 = vmatprep.subr.mxu0 0.0
    %5173 = vmatpush2.msra.mxu0 0.0
    %5174 = vmatprep.subr.mxu0 0.0
    %5175 = vmatpush2.msra.mxu0 0.0
    %5176 = vmatprep.subr.mxu0 0.0
    %5177 = vmatpush2.msra.mxu0 0.0
    %5178 = vmatprep.subr.mxu0 0.0
    %5179 = vmatpush2.msra.mxu0 0.0
    %5180 = vmatprep.subr.mxu0 0.0
    %5181 = vmatpush2.msra.mxu0 0.0
    %5182 = vmatprep.subr.mxu0 0.0
    %5183 = vmatpush2.msra.mxu0 0.0
    %5184 = vmatprep.subr.mxu0 0.0
    %5185 = vmatpush2.msra.mxu0 0.0
    %5186 = vmatprep.subr.mxu0 0.0
    %5187 = vmatpush2.msra.mxu0 0.0
    %5188 = vmatprep.mubr.f32.mxu0 0.0
    %5189 = vmatmul.mubr.f32.gmra.mxu0 0.0
    %v5190 = vpop.f32.mrf.mxu0
    %v5191 = vadd.f32 0.0, %v5190
    %v5192 = vpop.f32.mrf.mxu0
    %v5193 = vadd.f32 0.0, %v5192
    %5194 = vdwg.mxu0
    %v5195 = vadd.f32 %v4985, %v5120
    %v5196 = vadd.f32 %v4986, %v5122
    %v5197 = vadd.f32 %v4987, %v5191
    %v5198 = vadd.f32 %v4988, %v5193
    %v5199 = vxor.u32 %v5195, 2147483648
    %v5200 = vmul.f32 %v5199, 1.442695
    %v5201 = vpow.pop %v5200
    %v5202 = vadd.f32 %v5201, 1.0
    %v5203 = vrcp.pop %v5202
    %v5204 = vmul.f32 1.0, %v5203
    %v5205 = vxor.u32 %v5196, 2147483648
    %v5206 = vmul.f32 %v5205, 1.442695
    %v5207 = vpow.pop %v5206
    %v5208 = vadd.f32 %v5207, 1.0
    %v5209 = vrcp.pop %v5208
    %v5210 = vmul.f32 1.0, %v5209
    %v5211 = vtanh.pop %v5197
    %v5212 = vxor.u32 %v5198, 2147483648
    %v5213 = vmul.f32 %v5212, 1.442695
    %v5214 = vpow.pop %v5213
    %v5215 = vadd.f32 %v5214, 1.0
    %v5216 = vrcp.pop %v5215
    %v5217 = vmul.f32 1.0, %v5216
    %v5218 = vmul.f32 %v5210, 0.0
    %v5219 = vmul.f32 %v5204, %v5211
    %v5220 = vadd.f32 %v5218, %v5219
    %v5221 = vtanh.pop %v5220
    %v5222 = vmul.f32 %v5217, %v5221
    %v5223 = vld [vmem:[%s670] sm:$0xff]
    %v5224 = vld [vmem:[%s670 + $0x8] sm:$0xff]
    %v5225 = vld [vmem:[%s670 + $0x10] sm:$0xff]
    %v5226 = vld [vmem:[%s670 + $0x18] sm:$0xff]
    %5227 = vmatprep.subr.mxu0 %v5050
    %5228 = vmatpush1.msra.mxu0 %v5049
    %5229 = vmatprep.subr.mxu0 %v5046
    %5230 = vmatpush1.msra.mxu0 %v5045
    %5231 = vmatprep.subr.mxu0 %v5042
    %5232 = vmatpush1.msra.mxu0 %v5041
    %5233 = vmatprep.subr.mxu0 %v5038
    %5234 = vmatpush1.msra.mxu0 %v5037
    %5235 = vmatprep.subr.mxu0 %v5034
    %5236 = vmatpush1.msra.mxu0 %v5033
    %5237 = vmatprep.subr.mxu0 %v5030
    %5238 = vmatpush1.msra.mxu0 %v5029
    %5239 = vmatprep.subr.mxu0 %v5026
    %5240 = vmatpush1.msra.mxu0 %v5025
    %5241 = vmatprep.subr.mxu0 %v5022
    %5242 = vmatpush1.msra.mxu0 %v5021
    %5243 = vmatprep.subr.mxu0 %v5018
    %5244 = vmatpush1.msra.mxu0 %v5017
    %5245 = vmatprep.subr.mxu0 %v5014
    %5246 = vmatpush1.msra.mxu0 %v5013
    %5247 = vmatprep.subr.mxu0 %v5010
    %5248 = vmatpush1.msra.mxu0 %v5009
    %5249 = vmatprep.subr.mxu0 %v5006
    %5250 = vmatpush1.msra.mxu0 %v5005
    %5251 = vmatprep.subr.mxu0 %v5002
    %5252 = vmatpush1.msra.mxu0 %v5001
    %5253 = vmatprep.subr.mxu0 %v4998
    %5254 = vmatpush1.msra.mxu0 %v4997
    %5255 = vmatprep.subr.mxu0 %v4994
    %5256 = vmatpush1.msra.mxu0 %v4993
    %5257 = vmatprep.subr.mxu0 %v4990
    %5258 = vmatpush1.msra.mxu0 %v4989
    %5259 = vmatprep.subr.mxu0 0.0
    %5260 = vmatpush2.msra.mxu0 0.0
    %5261 = vmatprep.subr.mxu0 0.0
    %5262 = vmatpush2.msra.mxu0 0.0
    %5263 = vmatprep.subr.mxu0 0.0
    %5264 = vmatpush2.msra.mxu0 0.0
    %5265 = vmatprep.subr.mxu0 0.0
    %5266 = vmatpush2.msra.mxu0 0.0
    %5267 = vmatprep.subr.mxu0 0.0
    %5268 = vmatpush2.msra.mxu0 0.0
    %5269 = vmatprep.subr.mxu0 0.0
    %5270 = vmatpush2.msra.mxu0 0.0
    %5271 = vmatprep.subr.mxu0 0.0
    %5272 = vmatpush2.msra.mxu0 0.0
    %5273 = vmatprep.subr.mxu0 0.0
    %5274 = vmatpush2.msra.mxu0 0.0
    %5275 = vmatprep.subr.mxu0 0.0
    %5276 = vmatpush2.msra.mxu0 0.0
    %5277 = vmatprep.subr.mxu0 0.0
    %5278 = vmatpush2.msra.mxu0 0.0
    %5279 = vmatprep.subr.mxu0 0.0
    %5280 = vmatpush2.msra.mxu0 0.0
    %5281 = vmatprep.subr.mxu0 0.0
    %5282 = vmatpush2.msra.mxu0 0.0
    %5283 = vmatprep.subr.mxu0 0.0
    %5284 = vmatpush2.msra.mxu0 0.0
    %5285 = vmatprep.subr.mxu0 0.0
    %5286 = vmatpush2.msra.mxu0 0.0
    %5287 = vmatprep.subr.mxu0 0.0
    %5288 = vmatpush2.msra.mxu0 0.0
    %5289 = vmatprep.subr.mxu0 0.0
    %5290 = vmatpush2.msra.mxu0 0.0
    %5291 = vmatprep.mubr.f32.mxu0 0.0
    %5292 = vmatmul.mubr.f32.gmra.mxu0 %v5222
    %v5293 = vpop.f32.mrf.mxu0
    %v5294 = vadd.f32 0.0, %v5293
    %v5295 = vpop.f32.mrf.mxu0
    %v5296 = vadd.f32 0.0, %v5295
    %5297 = vdwg.mxu0
    %5298 = vmatprep.subr.mxu0 %v5052
    %5299 = vmatpush1.msra.mxu0 %v5051
    %5300 = vmatprep.subr.mxu0 %v5048
    %5301 = vmatpush1.msra.mxu0 %v5047
    %5302 = vmatprep.subr.mxu0 %v5044
    %5303 = vmatpush1.msra.mxu0 %v5043
    %5304 = vmatprep.subr.mxu0 %v5040
    %5305 = vmatpush1.msra.mxu0 %v5039
    %5306 = vmatprep.subr.mxu0 %v5036
    %5307 = vmatpush1.msra.mxu0 %v5035
    %5308 = vmatprep.subr.mxu0 %v5032
    %5309 = vmatpush1.msra.mxu0 %v5031
    %5310 = vmatprep.subr.mxu0 %v5028
    %5311 = vmatpush1.msra.mxu0 %v5027
    %5312 = vmatprep.subr.mxu0 %v5024
    %5313 = vmatpush1.msra.mxu0 %v5023
    %5314 = vmatprep.subr.mxu0 %v5020
    %5315 = vmatpush1.msra.mxu0 %v5019
    %5316 = vmatprep.subr.mxu0 %v5016
    %5317 = vmatpush1.msra.mxu0 %v5015
    %5318 = vmatprep.subr.mxu0 %v5012
    %5319 = vmatpush1.msra.mxu0 %v5011
    %5320 = vmatprep.subr.mxu0 %v5008
    %5321 = vmatpush1.msra.mxu0 %v5007
    %5322 = vmatprep.subr.mxu0 %v5004
    %5323 = vmatpush1.msra.mxu0 %v5003
    %5324 = vmatprep.subr.mxu0 %v5000
    %5325 = vmatpush1.msra.mxu0 %v4999
    %5326 = vmatprep.subr.mxu0 %v4996
    %5327 = vmatpush1.msra.mxu0 %v4995
    %5328 = vmatprep.subr.mxu0 %v4992
    %5329 = vmatpush1.msra.mxu0 %v4991
    %5330 = vmatprep.subr.mxu0 0.0
    %5331 = vmatpush2.msra.mxu0 0.0
    %5332 = vmatprep.subr.mxu0 0.0
    %5333 = vmatpush2.msra.mxu0 0.0
    %5334 = vmatprep.subr.mxu0 0.0
    %5335 = vmatpush2.msra.mxu0 0.0
    %5336 = vmatprep.subr.mxu0 0.0
    %5337 = vmatpush2.msra.mxu0 0.0
    %5338 = vmatprep.subr.mxu0 0.0
    %5339 = vmatpush2.msra.mxu0 0.0
    %5340 = vmatprep.subr.mxu0 0.0
    %5341 = vmatpush2.msra.mxu0 0.0
    %5342 = vmatprep.subr.mxu0 0.0
    %5343 = vmatpush2.msra.mxu0 0.0
    %5344 = vmatprep.subr.mxu0 0.0
    %5345 = vmatpush2.msra.mxu0 0.0
    %5346 = vmatprep.subr.mxu0 0.0
    %5347 = vmatpush2.msra.mxu0 0.0
    %5348 = vmatprep.subr.mxu0 0.0
    %5349 = vmatpush2.msra.mxu0 0.0
    %5350 = vmatprep.subr.mxu0 0.0
    %5351 = vmatpush2.msra.mxu0 0.0
    %5352 = vmatprep.subr.mxu0 0.0
    %5353 = vmatpush2.msra.mxu0 0.0
    %5354 = vmatprep.subr.mxu0 0.0
    %5355 = vmatpush2.msra.mxu0 0.0
    %5356 = vmatprep.subr.mxu0 0.0
    %5357 = vmatpush2.msra.mxu0 0.0
    %5358 = vmatprep.subr.mxu0 0.0
    %5359 = vmatpush2.msra.mxu0 0.0
    %5360 = vmatprep.subr.mxu0 0.0
    %5361 = vmatpush2.msra.mxu0 0.0
    %5362 = vmatprep.mubr.f32.mxu0 0.0
    %5363 = vmatmul.mubr.f32.gmra.mxu0 %v5222
    %v5364 = vpop.f32.mrf.mxu0
    %v5365 = vadd.f32 0.0, %v5364
    %v5366 = vpop.f32.mrf.mxu0
    %v5367 = vadd.f32 0.0, %v5366
    %5368 = vdwg.mxu0
    %v5369 = vadd.f32 %v5223, %v5294
    %v5370 = vadd.f32 %v5224, %v5296
    %v5371 = vadd.f32 %v5225, %v5365
    %v5372 = vadd.f32 %v5226, %v5367
    %v5373 = vxor.u32 %v5369, 2147483648
    %v5374 = vmul.f32 %v5373, 1.442695
    %v5375 = vpow.pop %v5374
    %v5376 = vadd.f32 %v5375, 1.0
    %v5377 = vrcp.pop %v5376
    %v5378 = vmul.f32 1.0, %v5377
    %v5379 = vxor.u32 %v5370, 2147483648
    %v5380 = vmul.f32 %v5379, 1.442695
    %v5381 = vpow.pop %v5380
    %v5382 = vadd.f32 %v5381, 1.0
    %v5383 = vrcp.pop %v5382
    %v5384 = vmul.f32 1.0, %v5383
    %v5385 = vtanh.pop %v5371
    %v5386 = vxor.u32 %v5372, 2147483648
    %v5387 = vmul.f32 %v5386, 1.442695
    %v5388 = vpow.pop %v5387
    %v5389 = vadd.f32 %v5388, 1.0
    %v5390 = vrcp.pop %v5389
    %v5391 = vmul.f32 1.0, %v5390
    %v5392 = vmul.f32 %v5384, %v5220
    %v5393 = vmul.f32 %v5378, %v5385
    %v5394 = vadd.f32 %v5392, %v5393
    %v5395 = vtanh.pop %v5394
    %v5396 = vmul.f32 %v5391, %v5395
    %v5397 = vld [vmem:[%s913] sm:$0xff]
    %v5398 = vld [vmem:[%s913 + $0x8] sm:$0xff]
    %v5399 = vld [vmem:[%s913 + $0x10] sm:$0xff]
    %v5400 = vld [vmem:[%s913 + $0x18] sm:$0xff]
    %5401 = vmatprep.subr.mxu0 %v5050
    %5402 = vmatpush1.msra.mxu0 %v5049
    %5403 = vmatprep.subr.mxu0 %v5046
    %5404 = vmatpush1.msra.mxu0 %v5045
    %5405 = vmatprep.subr.mxu0 %v5042
    %5406 = vmatpush1.msra.mxu0 %v5041
    %5407 = vmatprep.subr.mxu0 %v5038
    %5408 = vmatpush1.msra.mxu0 %v5037
    %5409 = vmatprep.subr.mxu0 %v5034
    %5410 = vmatpush1.msra.mxu0 %v5033
    %5411 = vmatprep.subr.mxu0 %v5030
    %5412 = vmatpush1.msra.mxu0 %v5029
    %5413 = vmatprep.subr.mxu0 %v5026
    %5414 = vmatpush1.msra.mxu0 %v5025
    %5415 = vmatprep.subr.mxu0 %v5022
    %5416 = vmatpush1.msra.mxu0 %v5021
    %5417 = vmatprep.subr.mxu0 %v5018
    %5418 = vmatpush1.msra.mxu0 %v5017
    %5419 = vmatprep.subr.mxu0 %v5014
    %5420 = vmatpush1.msra.mxu0 %v5013
    %5421 = vmatprep.subr.mxu0 %v5010
    %5422 = vmatpush1.msra.mxu0 %v5009
    %5423 = vmatprep.subr.mxu0 %v5006
    %5424 = vmatpush1.msra.mxu0 %v5005
    %5425 = vmatprep.subr.mxu0 %v5002
    %5426 = vmatpush1.msra.mxu0 %v5001
    %5427 = vmatprep.subr.mxu0 %v4998
    %5428 = vmatpush1.msra.mxu0 %v4997
    %5429 = vmatprep.subr.mxu0 %v4994
    %5430 = vmatpush1.msra.mxu0 %v4993
    %5431 = vmatprep.subr.mxu0 %v4990
    %5432 = vmatpush1.msra.mxu0 %v4989
    %5433 = vmatprep.subr.mxu0 0.0
    %5434 = vmatpush2.msra.mxu0 0.0
    %5435 = vmatprep.subr.mxu0 0.0
    %5436 = vmatpush2.msra.mxu0 0.0
    %5437 = vmatprep.subr.mxu0 0.0
    %5438 = vmatpush2.msra.mxu0 0.0
    %5439 = vmatprep.subr.mxu0 0.0
    %5440 = vmatpush2.msra.mxu0 0.0
    %5441 = vmatprep.subr.mxu0 0.0
    %5442 = vmatpush2.msra.mxu0 0.0
    %5443 = vmatprep.subr.mxu0 0.0
    %5444 = vmatpush2.msra.mxu0 0.0
    %5445 = vmatprep.subr.mxu0 0.0
    %5446 = vmatpush2.msra.mxu0 0.0
    %5447 = vmatprep.subr.mxu0 0.0
    %5448 = vmatpush2.msra.mxu0 0.0
    %5449 = vmatprep.subr.mxu0 0.0
    %5450 = vmatpush2.msra.mxu0 0.0
    %5451 = vmatprep.subr.mxu0 0.0
    %5452 = vmatpush2.msra.mxu0 0.0
    %5453 = vmatprep.subr.mxu0 0.0
    %5454 = vmatpush2.msra.mxu0 0.0
    %5455 = vmatprep.subr.mxu0 0.0
    %5456 = vmatpush2.msra.mxu0 0.0
    %5457 = vmatprep.subr.mxu0 0.0
    %5458 = vmatpush2.msra.mxu0 0.0
    %5459 = vmatprep.subr.mxu0 0.0
    %5460 = vmatpush2.msra.mxu0 0.0
    %5461 = vmatprep.subr.mxu0 0.0
    %5462 = vmatpush2.msra.mxu0 0.0
    %5463 = vmatprep.subr.mxu0 0.0
    %5464 = vmatpush2.msra.mxu0 0.0
    %5465 = vmatprep.mubr.f32.mxu0 0.0
    %5466 = vmatmul.mubr.f32.gmra.mxu0 %v5396
    %v5467 = vpop.f32.mrf.mxu0
    %v5468 = vadd.f32 0.0, %v5467
    %v5469 = vpop.f32.mrf.mxu0
    %v5470 = vadd.f32 0.0, %v5469
    %5471 = vdwg.mxu0
    %5472 = vmatprep.subr.mxu0 %v5052
    %5473 = vmatpush1.msra.mxu0 %v5051
    %5474 = vmatprep.subr.mxu0 %v5048
    %5475 = vmatpush1.msra.mxu0 %v5047
    %5476 = vmatprep.subr.mxu0 %v5044
    %5477 = vmatpush1.msra.mxu0 %v5043
    %5478 = vmatprep.subr.mxu0 %v5040
    %5479 = vmatpush1.msra.mxu0 %v5039
    %5480 = vmatprep.subr.mxu0 %v5036
    %5481 = vmatpush1.msra.mxu0 %v5035
    %5482 = vmatprep.subr.mxu0 %v5032
    %5483 = vmatpush1.msra.mxu0 %v5031
    %5484 = vmatprep.subr.mxu0 %v5028
    %5485 = vmatpush1.msra.mxu0 %v5027
    %5486 = vmatprep.subr.mxu0 %v5024
    %5487 = vmatpush1.msra.mxu0 %v5023
    %5488 = vmatprep.subr.mxu0 %v5020
    %5489 = vmatpush1.msra.mxu0 %v5019
    %5490 = vmatprep.subr.mxu0 %v5016
    %5491 = vmatpush1.msra.mxu0 %v5015
    %5492 = vmatprep.subr.mxu0 %v5012
    %5493 = vmatpush1.msra.mxu0 %v5011
    %5494 = vmatprep.subr.mxu0 %v5008
    %5495 = vmatpush1.msra.mxu0 %v5007
    %5496 = vmatprep.subr.mxu0 %v5004
    %5497 = vmatpush1.msra.mxu0 %v5003
    %5498 = vmatprep.subr.mxu0 %v5000
    %5499 = vmatpush1.msra.mxu0 %v4999
    %5500 = vmatprep.subr.mxu0 %v4996
    %5501 = vmatpush1.msra.mxu0 %v4995
    %5502 = vmatprep.subr.mxu0 %v4992
    %5503 = vmatpush1.msra.mxu0 %v4991
    %5504 = vmatprep.subr.mxu0 0.0
    %5505 = vmatpush2.msra.mxu0 0.0
    %5506 = vmatprep.subr.mxu0 0.0
    %5507 = vmatpush2.msra.mxu0 0.0
    %5508 = vmatprep.subr.mxu0 0.0
    %5509 = vmatpush2.msra.mxu0 0.0
    %5510 = vmatprep.subr.mxu0 0.0
    %5511 = vmatpush2.msra.mxu0 0.0
    %5512 = vmatprep.subr.mxu0 0.0
    %5513 = vmatpush2.msra.mxu0 0.0
    %5514 = vmatprep.subr.mxu0 0.0
    %5515 = vmatpush2.msra.mxu0 0.0
    %5516 = vmatprep.subr.mxu0 0.0
    %5517 = vmatpush2.msra.mxu0 0.0
    %5518 = vmatprep.subr.mxu0 0.0
    %5519 = vmatpush2.msra.mxu0 0.0
    %5520 = vmatprep.subr.mxu0 0.0
    %5521 = vmatpush2.msra.mxu0 0.0
    %5522 = vmatprep.subr.mxu0 0.0
    %5523 = vmatpush2.msra.mxu0 0.0
    %5524 = vmatprep.subr.mxu0 0.0
    %5525 = vmatpush2.msra.mxu0 0.0
    %5526 = vmatprep.subr.mxu0 0.0
    %5527 = vmatpush2.msra.mxu0 0.0
    %5528 = vmatprep.subr.mxu0 0.0
    %5529 = vmatpush2.msra.mxu0 0.0
    %5530 = vmatprep.subr.mxu0 0.0
    %5531 = vmatpush2.msra.mxu0 0.0
    %5532 = vmatprep.subr.mxu0 0.0
    %5533 = vmatpush2.msra.mxu0 0.0
    %5534 = vmatprep.subr.mxu0 0.0
    %5535 = vmatpush2.msra.mxu0 0.0
    %5536 = vmatprep.mubr.f32.mxu0 0.0
    %5537 = vmatmul.mubr.f32.gmra.mxu0 %v5396
    %v5538 = vpop.f32.mrf.mxu0
    %v5539 = vadd.f32 0.0, %v5538
    %v5540 = vpop.f32.mrf.mxu0
    %v5541 = vadd.f32 0.0, %v5540
    %5542 = vdwg.mxu0
    %v5543 = vadd.f32 %v5397, %v5468
    %v5544 = vadd.f32 %v5398, %v5470
    %v5545 = vadd.f32 %v5399, %v5539
    %v5546 = vadd.f32 %v5400, %v5541
    %v5547 = vxor.u32 %v5543, 2147483648
    %v5548 = vmul.f32 %v5547, 1.442695
    %v5549 = vpow.pop %v5548
    %v5550 = vadd.f32 %v5549, 1.0
    %v5551 = vrcp.pop %v5550
    %v5552 = vmul.f32 1.0, %v5551
    %v5553 = vxor.u32 %v5544, 2147483648
    %v5554 = vmul.f32 %v5553, 1.442695
    %v5555 = vpow.pop %v5554
    %v5556 = vadd.f32 %v5555, 1.0
    %v5557 = vrcp.pop %v5556
    %v5558 = vmul.f32 1.0, %v5557
    %v5559 = vtanh.pop %v5545
    %v5560 = vxor.u32 %v5546, 2147483648
    %v5561 = vmul.f32 %v5560, 1.442695
    %v5562 = vpow.pop %v5561
    %v5563 = vadd.f32 %v5562, 1.0
    %v5564 = vrcp.pop %v5563
    %v5565 = vmul.f32 1.0, %v5564
    %v5566 = vmul.f32 %v5558, %v5394
    %v5567 = vmul.f32 %v5552, %v5559
    %v5568 = vadd.f32 %v5566, %v5567
    %v5569 = vtanh.pop %v5568
    %v5570 = vmul.f32 %v5565, %v5569
    %v5571 = vld [vmem:[%s1156] sm:$0xff]
    %v5572 = vld [vmem:[%s1156 + $0x8] sm:$0xff]
    %v5573 = vld [vmem:[%s1156 + $0x10] sm:$0xff]
    %v5574 = vld [vmem:[%s1156 + $0x18] sm:$0xff]
    %5575 = vmatprep.subr.mxu0 %v5050
    %5576 = vmatpush1.msra.mxu0 %v5049
    %5577 = vmatprep.subr.mxu0 %v5046
    %5578 = vmatpush1.msra.mxu0 %v5045
    %5579 = vmatprep.subr.mxu0 %v5042
    %5580 = vmatpush1.msra.mxu0 %v5041
    %5581 = vmatprep.subr.mxu0 %v5038
    %5582 = vmatpush1.msra.mxu0 %v5037
    %5583 = vmatprep.subr.mxu0 %v5034
    %5584 = vmatpush1.msra.mxu0 %v5033
    %5585 = vmatprep.subr.mxu0 %v5030
    %5586 = vmatpush1.msra.mxu0 %v5029
    %5587 = vmatprep.subr.mxu0 %v5026
    %5588 = vmatpush1.msra.mxu0 %v5025
    %5589 = vmatprep.subr.mxu0 %v5022
    %5590 = vmatpush1.msra.mxu0 %v5021
    %5591 = vmatprep.subr.mxu0 %v5018
    %5592 = vmatpush1.msra.mxu0 %v5017
    %5593 = vmatprep.subr.mxu0 %v5014
    %5594 = vmatpush1.msra.mxu0 %v5013
    %5595 = vmatprep.subr.mxu0 %v5010
    %5596 = vmatpush1.msra.mxu0 %v5009
    %5597 = vmatprep.subr.mxu0 %v5006
    %5598 = vmatpush1.msra.mxu0 %v5005
    %5599 = vmatprep.subr.mxu0 %v5002
    %5600 = vmatpush1.msra.mxu0 %v5001
    %5601 = vmatprep.subr.mxu0 %v4998
    %5602 = vmatpush1.msra.mxu0 %v4997
    %5603 = vmatprep.subr.mxu0 %v4994
    %5604 = vmatpush1.msra.mxu0 %v4993
    %5605 = vmatprep.subr.mxu0 %v4990
    %5606 = vmatpush1.msra.mxu0 %v4989
    %5607 = vmatprep.subr.mxu0 0.0
    %5608 = vmatpush2.msra.mxu0 0.0
    %5609 = vmatprep.subr.mxu0 0.0
    %5610 = vmatpush2.msra.mxu0 0.0
    %5611 = vmatprep.subr.mxu0 0.0
    %5612 = vmatpush2.msra.mxu0 0.0
    %5613 = vmatprep.subr.mxu0 0.0
    %5614 = vmatpush2.msra.mxu0 0.0
    %5615 = vmatprep.subr.mxu0 0.0
    %5616 = vmatpush2.msra.mxu0 0.0
    %5617 = vmatprep.subr.mxu0 0.0
    %5618 = vmatpush2.msra.mxu0 0.0
    %5619 = vmatprep.subr.mxu0 0.0
    %5620 = vmatpush2.msra.mxu0 0.0
    %5621 = vmatprep.subr.mxu0 0.0
    %5622 = vmatpush2.msra.mxu0 0.0
    %5623 = vmatprep.subr.mxu0 0.0
    %5624 = vmatpush2.msra.mxu0 0.0
    %5625 = vmatprep.subr.mxu0 0.0
    %5626 = vmatpush2.msra.mxu0 0.0
    %5627 = vmatprep.subr.mxu0 0.0
    %5628 = vmatpush2.msra.mxu0 0.0
    %5629 = vmatprep.subr.mxu0 0.0
    %5630 = vmatpush2.msra.mxu0 0.0
    %5631 = vmatprep.subr.mxu0 0.0
    %5632 = vmatpush2.msra.mxu0 0.0
    %5633 = vmatprep.subr.mxu0 0.0
    %5634 = vmatpush2.msra.mxu0 0.0
    %5635 = vmatprep.subr.mxu0 0.0
    %5636 = vmatpush2.msra.mxu0 0.0
    %5637 = vmatprep.subr.mxu0 0.0
    %5638 = vmatpush2.msra.mxu0 0.0
    %5639 = vmatprep.mubr.f32.mxu0 0.0
    %5640 = vmatmul.mubr.f32.gmra.mxu0 %v5570
    %v5641 = vpop.f32.mrf.mxu0
    %v5642 = vadd.f32 0.0, %v5641
    %v5643 = vpop.f32.mrf.mxu0
    %v5644 = vadd.f32 0.0, %v5643
    %5645 = vdwg.mxu0
    %5646 = vmatprep.subr.mxu0 %v5052
    %5647 = vmatpush1.msra.mxu0 %v5051
    %5648 = vmatprep.subr.mxu0 %v5048
    %5649 = vmatpush1.msra.mxu0 %v5047
    %5650 = vmatprep.subr.mxu0 %v5044
    %5651 = vmatpush1.msra.mxu0 %v5043
    %5652 = vmatprep.subr.mxu0 %v5040
    %5653 = vmatpush1.msra.mxu0 %v5039
    %5654 = vmatprep.subr.mxu0 %v5036
    %5655 = vmatpush1.msra.mxu0 %v5035
    %5656 = vmatprep.subr.mxu0 %v5032
    %5657 = vmatpush1.msra.mxu0 %v5031
    %5658 = vmatprep.subr.mxu0 %v5028
    %5659 = vmatpush1.msra.mxu0 %v5027
    %5660 = vmatprep.subr.mxu0 %v5024
    %5661 = vmatpush1.msra.mxu0 %v5023
    %5662 = vmatprep.subr.mxu0 %v5020
    %5663 = vmatpush1.msra.mxu0 %v5019
    %5664 = vmatprep.subr.mxu0 %v5016
    %5665 = vmatpush1.msra.mxu0 %v5015
    %5666 = vmatprep.subr.mxu0 %v5012
    %5667 = vmatpush1.msra.mxu0 %v5011
    %5668 = vmatprep.subr.mxu0 %v5008
    %5669 = vmatpush1.msra.mxu0 %v5007
    %5670 = vmatprep.subr.mxu0 %v5004
    %5671 = vmatpush1.msra.mxu0 %v5003
    %5672 = vmatprep.subr.mxu0 %v5000
    %5673 = vmatpush1.msra.mxu0 %v4999
    %5674 = vmatprep.subr.mxu0 %v4996
    %5675 = vmatpush1.msra.mxu0 %v4995
    %5676 = vmatprep.subr.mxu0 %v4992
    %5677 = vmatpush1.msra.mxu0 %v4991
    %5678 = vmatprep.subr.mxu0 0.0
    %5679 = vmatpush2.msra.mxu0 0.0
    %5680 = vmatprep.subr.mxu0 0.0
    %5681 = vmatpush2.msra.mxu0 0.0
    %5682 = vmatprep.subr.mxu0 0.0
    %5683 = vmatpush2.msra.mxu0 0.0
    %5684 = vmatprep.subr.mxu0 0.0
    %5685 = vmatpush2.msra.mxu0 0.0
    %5686 = vmatprep.subr.mxu0 0.0
    %5687 = vmatpush2.msra.mxu0 0.0
    %5688 = vmatprep.subr.mxu0 0.0
    %5689 = vmatpush2.msra.mxu0 0.0
    %5690 = vmatprep.subr.mxu0 0.0
    %5691 = vmatpush2.msra.mxu0 0.0
    %5692 = vmatprep.subr.mxu0 0.0
    %5693 = vmatpush2.msra.mxu0 0.0
    %5694 = vmatprep.subr.mxu0 0.0
    %5695 = vmatpush2.msra.mxu0 0.0
    %5696 = vmatprep.subr.mxu0 0.0
    %5697 = vmatpush2.msra.mxu0 0.0
    %5698 = vmatprep.subr.mxu0 0.0
    %5699 = vmatpush2.msra.mxu0 0.0
    %5700 = vmatprep.subr.mxu0 0.0
    %5701 = vmatpush2.msra.mxu0 0.0
    %5702 = vmatprep.subr.mxu0 0.0
    %5703 = vmatpush2.msra.mxu0 0.0
    %5704 = vmatprep.subr.mxu0 0.0
    %5705 = vmatpush2.msra.mxu0 0.0
    %5706 = vmatprep.subr.mxu0 0.0
    %5707 = vmatpush2.msra.mxu0 0.0
    %5708 = vmatprep.subr.mxu0 0.0
    %5709 = vmatpush2.msra.mxu0 0.0
    %5710 = vmatprep.mubr.f32.mxu0 0.0
    %5711 = vmatmul.mubr.f32.gmra.mxu0 %v5570
    %v5712 = vpop.f32.mrf.mxu0
    %v5713 = vadd.f32 0.0, %v5712
    %v5714 = vpop.f32.mrf.mxu0
    %v5715 = vadd.f32 0.0, %v5714
    %5716 = vdwg.mxu0
    %v5717 = vadd.f32 %v5571, %v5642
    %v5718 = vadd.f32 %v5572, %v5644
    %v5719 = vadd.f32 %v5573, %v5713
    %v5720 = vadd.f32 %v5574, %v5715
    %v5721 = vxor.u32 %v5717, 2147483648
    %v5722 = vmul.f32 %v5721, 1.442695
    %v5723 = vpow.pop %v5722
    %v5724 = vadd.f32 %v5723, 1.0
    %v5725 = vrcp.pop %v5724
    %v5726 = vmul.f32 1.0, %v5725
    %v5727 = vxor.u32 %v5718, 2147483648
    %v5728 = vmul.f32 %v5727, 1.442695
    %v5729 = vpow.pop %v5728
    %v5730 = vadd.f32 %v5729, 1.0
    %v5731 = vrcp.pop %v5730
    %v5732 = vmul.f32 1.0, %v5731
    %v5733 = vtanh.pop %v5719
    %v5734 = vxor.u32 %v5720, 2147483648
    %v5735 = vmul.f32 %v5734, 1.442695
    %v5736 = vpow.pop %v5735
    %v5737 = vadd.f32 %v5736, 1.0
    %v5738 = vrcp.pop %v5737
    %v5739 = vmul.f32 1.0, %v5738
    %v5740 = vmul.f32 %v5732, %v5568
    %v5741 = vmul.f32 %v5726, %v5733
    %v5742 = vadd.f32 %v5740, %v5741
    %v5743 = vtanh.pop %v5742
    %v5744 = vmul.f32 %v5739, %v5743
    %v5745 = vld [vmem:[%s1399] sm:$0xff]
    %v5746 = vld [vmem:[%s1399 + $0x8] sm:$0xff]
    %v5747 = vld [vmem:[%s1399 + $0x10] sm:$0xff]
    %v5748 = vld [vmem:[%s1399 + $0x18] sm:$0xff]
    %5749 = vmatprep.subr.mxu0 %v5050
    %5750 = vmatpush1.msra.mxu0 %v5049
    %5751 = vmatprep.subr.mxu0 %v5046
    %5752 = vmatpush1.msra.mxu0 %v5045
    %5753 = vmatprep.subr.mxu0 %v5042
    %5754 = vmatpush1.msra.mxu0 %v5041
    %5755 = vmatprep.subr.mxu0 %v5038
    %5756 = vmatpush1.msra.mxu0 %v5037
    %5757 = vmatprep.subr.mxu0 %v5034
    %5758 = vmatpush1.msra.mxu0 %v5033
    %5759 = vmatprep.subr.mxu0 %v5030
    %5760 = vmatpush1.msra.mxu0 %v5029
    %5761 = vmatprep.subr.mxu0 %v5026
    %5762 = vmatpush1.msra.mxu0 %v5025
    %5763 = vmatprep.subr.mxu0 %v5022
    %5764 = vmatpush1.msra.mxu0 %v5021
    %5765 = vmatprep.subr.mxu0 %v5018
    %5766 = vmatpush1.msra.mxu0 %v5017
    %5767 = vmatprep.subr.mxu0 %v5014
    %5768 = vmatpush1.msra.mxu0 %v5013
    %5769 = vmatprep.subr.mxu0 %v5010
    %5770 = vmatpush1.msra.mxu0 %v5009
    %5771 = vmatprep.subr.mxu0 %v5006
    %5772 = vmatpush1.msra.mxu0 %v5005
    %5773 = vmatprep.subr.mxu0 %v5002
    %5774 = vmatpush1.msra.mxu0 %v5001
    %5775 = vmatprep.subr.mxu0 %v4998
    %5776 = vmatpush1.msra.mxu0 %v4997
    %5777 = vmatprep.subr.mxu0 %v4994
    %5778 = vmatpush1.msra.mxu0 %v4993
    %5779 = vmatprep.subr.mxu0 %v4990
    %5780 = vmatpush1.msra.mxu0 %v4989
    %5781 = vmatprep.subr.mxu0 0.0
    %5782 = vmatpush2.msra.mxu0 0.0
    %5783 = vmatprep.subr.mxu0 0.0
    %5784 = vmatpush2.msra.mxu0 0.0
    %5785 = vmatprep.subr.mxu0 0.0
    %5786 = vmatpush2.msra.mxu0 0.0
    %5787 = vmatprep.subr.mxu0 0.0
    %5788 = vmatpush2.msra.mxu0 0.0
    %5789 = vmatprep.subr.mxu0 0.0
    %5790 = vmatpush2.msra.mxu0 0.0
    %5791 = vmatprep.subr.mxu0 0.0
    %5792 = vmatpush2.msra.mxu0 0.0
    %5793 = vmatprep.subr.mxu0 0.0
    %5794 = vmatpush2.msra.mxu0 0.0
    %5795 = vmatprep.subr.mxu0 0.0
    %5796 = vmatpush2.msra.mxu0 0.0
    %5797 = vmatprep.subr.mxu0 0.0
    %5798 = vmatpush2.msra.mxu0 0.0
    %5799 = vmatprep.subr.mxu0 0.0
    %5800 = vmatpush2.msra.mxu0 0.0
    %5801 = vmatprep.subr.mxu0 0.0
    %5802 = vmatpush2.msra.mxu0 0.0
    %5803 = vmatprep.subr.mxu0 0.0
    %5804 = vmatpush2.msra.mxu0 0.0
    %5805 = vmatprep.subr.mxu0 0.0
    %5806 = vmatpush2.msra.mxu0 0.0
    %5807 = vmatprep.subr.mxu0 0.0
    %5808 = vmatpush2.msra.mxu0 0.0
    %5809 = vmatprep.subr.mxu0 0.0
    %5810 = vmatpush2.msra.mxu0 0.0
    %5811 = vmatprep.subr.mxu0 0.0
    %5812 = vmatpush2.msra.mxu0 0.0
    %5813 = vmatprep.mubr.f32.mxu0 0.0
    %5814 = vmatmul.mubr.f32.gmra.mxu0 %v5744
    %v5815 = vpop.f32.mrf.mxu0
    %v5816 = vadd.f32 0.0, %v5815
    %v5817 = vpop.f32.mrf.mxu0
    %v5818 = vadd.f32 0.0, %v5817
    %5819 = vdwg.mxu0
    %5820 = vmatprep.subr.mxu0 %v5052
    %5821 = vmatpush1.msra.mxu0 %v5051
    %5822 = vmatprep.subr.mxu0 %v5048
    %5823 = vmatpush1.msra.mxu0 %v5047
    %5824 = vmatprep.subr.mxu0 %v5044
    %5825 = vmatpush1.msra.mxu0 %v5043
    %5826 = vmatprep.subr.mxu0 %v5040
    %5827 = vmatpush1.msra.mxu0 %v5039
    %5828 = vmatprep.subr.mxu0 %v5036
    %5829 = vmatpush1.msra.mxu0 %v5035
    %5830 = vmatprep.subr.mxu0 %v5032
    %5831 = vmatpush1.msra.mxu0 %v5031
    %5832 = vmatprep.subr.mxu0 %v5028
    %5833 = vmatpush1.msra.mxu0 %v5027
    %5834 = vmatprep.subr.mxu0 %v5024
    %5835 = vmatpush1.msra.mxu0 %v5023
    %5836 = vmatprep.subr.mxu0 %v5020
    %5837 = vmatpush1.msra.mxu0 %v5019
    %5838 = vmatprep.subr.mxu0 %v5016
    %5839 = vmatpush1.msra.mxu0 %v5015
    %5840 = vmatprep.subr.mxu0 %v5012
    %5841 = vmatpush1.msra.mxu0 %v5011
    %5842 = vmatprep.subr.mxu0 %v5008
    %5843 = vmatpush1.msra.mxu0 %v5007
    %5844 = vmatprep.subr.mxu0 %v5004
    %5845 = vmatpush1.msra.mxu0 %v5003
    %5846 = vmatprep.subr.mxu0 %v5000
    %5847 = vmatpush1.msra.mxu0 %v4999
    %5848 = vmatprep.subr.mxu0 %v4996
    %5849 = vmatpush1.msra.mxu0 %v4995
    %5850 = vmatprep.subr.mxu0 %v4992
    %5851 = vmatpush1.msra.mxu0 %v4991
    %5852 = vmatprep.subr.mxu0 0.0
    %5853 = vmatpush2.msra.mxu0 0.0
    %5854 = vmatprep.subr.mxu0 0.0
    %5855 = vmatpush2.msra.mxu0 0.0
    %5856 = vmatprep.subr.mxu0 0.0
    %5857 = vmatpush2.msra.mxu0 0.0
    %5858 = vmatprep.subr.mxu0 0.0
    %5859 = vmatpush2.msra.mxu0 0.0
    %5860 = vmatprep.subr.mxu0 0.0
    %5861 = vmatpush2.msra.mxu0 0.0
    %5862 = vmatprep.subr.mxu0 0.0
    %5863 = vmatpush2.msra.mxu0 0.0
    %5864 = vmatprep.subr.mxu0 0.0
    %5865 = vmatpush2.msra.mxu0 0.0
    %5866 = vmatprep.subr.mxu0 0.0
    %5867 = vmatpush2.msra.mxu0 0.0
    %5868 = vmatprep.subr.mxu0 0.0
    %5869 = vmatpush2.msra.mxu0 0.0
    %5870 = vmatprep.subr.mxu0 0.0
    %5871 = vmatpush2.msra.mxu0 0.0
    %5872 = vmatprep.subr.mxu0 0.0
    %5873 = vmatpush2.msra.mxu0 0.0
    %5874 = vmatprep.subr.mxu0 0.0
    %5875 = vmatpush2.msra.mxu0 0.0
    %5876 = vmatprep.subr.mxu0 0.0
    %5877 = vmatpush2.msra.mxu0 0.0
    %5878 = vmatprep.subr.mxu0 0.0
    %5879 = vmatpush2.msra.mxu0 0.0
    %5880 = vmatprep.subr.mxu0 0.0
    %5881 = vmatpush2.msra.mxu0 0.0
    %5882 = vmatprep.subr.mxu0 0.0
    %5883 = vmatpush2.msra.mxu0 0.0
    %5884 = vmatprep.mubr.f32.mxu0 0.0
    %5885 = vmatmul.mubr.f32.gmra.mxu0 %v5744
    %v5886 = vpop.f32.mrf.mxu0
    %v5887 = vadd.f32 0.0, %v5886
    %v5888 = vpop.f32.mrf.mxu0
    %v5889 = vadd.f32 0.0, %v5888
    %5890 = vdwg.mxu0
    %v5891 = vadd.f32 %v5745, %v5816
    %v5892 = vadd.f32 %v5746, %v5818
    %v5893 = vadd.f32 %v5747, %v5887
    %v5894 = vadd.f32 %v5748, %v5889
    %v5895 = vxor.u32 %v5891, 2147483648
    %v5896 = vmul.f32 %v5895, 1.442695
    %v5897 = vpow.pop %v5896
    %v5898 = vadd.f32 %v5897, 1.0
    %v5899 = vrcp.pop %v5898
    %v5900 = vmul.f32 1.0, %v5899
    %v5901 = vxor.u32 %v5892, 2147483648
    %v5902 = vmul.f32 %v5901, 1.442695
    %v5903 = vpow.pop %v5902
    %v5904 = vadd.f32 %v5903, 1.0
    %v5905 = vrcp.pop %v5904
    %v5906 = vmul.f32 1.0, %v5905
    %v5907 = vtanh.pop %v5893
    %v5908 = vxor.u32 %v5894, 2147483648
    %v5909 = vmul.f32 %v5908, 1.442695
    %v5910 = vpow.pop %v5909
    %v5911 = vadd.f32 %v5910, 1.0
    %v5912 = vrcp.pop %v5911
    %v5913 = vmul.f32 1.0, %v5912
    %v5914 = vmul.f32 %v5906, %v5742
    %v5915 = vmul.f32 %v5900, %v5907
    %v5916 = vadd.f32 %v5914, %v5915
    %v5917 = vtanh.pop %v5916
    %v5918 = vmul.f32 %v5913, %v5917
    %v5919 = vld [vmem:[%s1642] sm:$0xff]
    %v5920 = vld [vmem:[%s1642 + $0x8] sm:$0xff]
    %v5921 = vld [vmem:[%s1642 + $0x10] sm:$0xff]
    %v5922 = vld [vmem:[%s1642 + $0x18] sm:$0xff]
    %5923 = vmatprep.subr.mxu0 %v5050
    %5924 = vmatpush1.msra.mxu0 %v5049
    %5925 = vmatprep.subr.mxu0 %v5046
    %5926 = vmatpush1.msra.mxu0 %v5045
    %5927 = vmatprep.subr.mxu0 %v5042
    %5928 = vmatpush1.msra.mxu0 %v5041
    %5929 = vmatprep.subr.mxu0 %v5038
    %5930 = vmatpush1.msra.mxu0 %v5037
    %5931 = vmatprep.subr.mxu0 %v5034
    %5932 = vmatpush1.msra.mxu0 %v5033
    %5933 = vmatprep.subr.mxu0 %v5030
    %5934 = vmatpush1.msra.mxu0 %v5029
    %5935 = vmatprep.subr.mxu0 %v5026
    %5936 = vmatpush1.msra.mxu0 %v5025
    %5937 = vmatprep.subr.mxu0 %v5022
    %5938 = vmatpush1.msra.mxu0 %v5021
    %5939 = vmatprep.subr.mxu0 %v5018
    %5940 = vmatpush1.msra.mxu0 %v5017
    %5941 = vmatprep.subr.mxu0 %v5014
    %5942 = vmatpush1.msra.mxu0 %v5013
    %5943 = vmatprep.subr.mxu0 %v5010
    %5944 = vmatpush1.msra.mxu0 %v5009
    %5945 = vmatprep.subr.mxu0 %v5006
    %5946 = vmatpush1.msra.mxu0 %v5005
    %5947 = vmatprep.subr.mxu0 %v5002
    %5948 = vmatpush1.msra.mxu0 %v5001
    %5949 = vmatprep.subr.mxu0 %v4998
    %5950 = vmatpush1.msra.mxu0 %v4997
    %5951 = vmatprep.subr.mxu0 %v4994
    %5952 = vmatpush1.msra.mxu0 %v4993
    %5953 = vmatprep.subr.mxu0 %v4990
    %5954 = vmatpush1.msra.mxu0 %v4989
    %5955 = vmatprep.subr.mxu0 0.0
    %5956 = vmatpush2.msra.mxu0 0.0
    %5957 = vmatprep.subr.mxu0 0.0
    %5958 = vmatpush2.msra.mxu0 0.0
    %5959 = vmatprep.subr.mxu0 0.0
    %5960 = vmatpush2.msra.mxu0 0.0
    %5961 = vmatprep.subr.mxu0 0.0
    %5962 = vmatpush2.msra.mxu0 0.0
    %5963 = vmatprep.subr.mxu0 0.0
    %5964 = vmatpush2.msra.mxu0 0.0
    %5965 = vmatprep.subr.mxu0 0.0
    %5966 = vmatpush2.msra.mxu0 0.0
    %5967 = vmatprep.subr.mxu0 0.0
    %5968 = vmatpush2.msra.mxu0 0.0
    %5969 = vmatprep.subr.mxu0 0.0
    %5970 = vmatpush2.msra.mxu0 0.0
    %5971 = vmatprep.subr.mxu0 0.0
    %5972 = vmatpush2.msra.mxu0 0.0
    %5973 = vmatprep.subr.mxu0 0.0
    %5974 = vmatpush2.msra.mxu0 0.0
    %5975 = vmatprep.subr.mxu0 0.0
    %5976 = vmatpush2.msra.mxu0 0.0
    %5977 = vmatprep.subr.mxu0 0.0
    %5978 = vmatpush2.msra.mxu0 0.0
    %5979 = vmatprep.subr.mxu0 0.0
    %5980 = vmatpush2.msra.mxu0 0.0
    %5981 = vmatprep.subr.mxu0 0.0
    %5982 = vmatpush2.msra.mxu0 0.0
    %5983 = vmatprep.subr.mxu0 0.0
    %5984 = vmatpush2.msra.mxu0 0.0
    %5985 = vmatprep.subr.mxu0 0.0
    %5986 = vmatpush2.msra.mxu0 0.0
    %5987 = vmatprep.mubr.f32.mxu0 0.0
    %5988 = vmatmul.mubr.f32.gmra.mxu0 %v5918
    %v5989 = vpop.f32.mrf.mxu0
    %v5990 = vadd.f32 0.0, %v5989
    %v5991 = vpop.f32.mrf.mxu0
    %v5992 = vadd.f32 0.0, %v5991
    %5993 = vdwg.mxu0
    %5994 = vmatprep.subr.mxu0 %v5052
    %5995 = vmatpush1.msra.mxu0 %v5051
    %5996 = vmatprep.subr.mxu0 %v5048
    %5997 = vmatpush1.msra.mxu0 %v5047
    %5998 = vmatprep.subr.mxu0 %v5044
    %5999 = vmatpush1.msra.mxu0 %v5043
    %6000 = vmatprep.subr.mxu0 %v5040
    %6001 = vmatpush1.msra.mxu0 %v5039
    %6002 = vmatprep.subr.mxu0 %v5036
    %6003 = vmatpush1.msra.mxu0 %v5035
    %6004 = vmatprep.subr.mxu0 %v5032
    %6005 = vmatpush1.msra.mxu0 %v5031
    %6006 = vmatprep.subr.mxu0 %v5028
    %6007 = vmatpush1.msra.mxu0 %v5027
    %6008 = vmatprep.subr.mxu0 %v5024
    %6009 = vmatpush1.msra.mxu0 %v5023
    %6010 = vmatprep.subr.mxu0 %v5020
    %6011 = vmatpush1.msra.mxu0 %v5019
    %6012 = vmatprep.subr.mxu0 %v5016
    %6013 = vmatpush1.msra.mxu0 %v5015
    %6014 = vmatprep.subr.mxu0 %v5012
    %6015 = vmatpush1.msra.mxu0 %v5011
    %6016 = vmatprep.subr.mxu0 %v5008
    %6017 = vmatpush1.msra.mxu0 %v5007
    %6018 = vmatprep.subr.mxu0 %v5004
    %6019 = vmatpush1.msra.mxu0 %v5003
    %6020 = vmatprep.subr.mxu0 %v5000
    %6021 = vmatpush1.msra.mxu0 %v4999
    %6022 = vmatprep.subr.mxu0 %v4996
    %6023 = vmatpush1.msra.mxu0 %v4995
    %6024 = vmatprep.subr.mxu0 %v4992
    %6025 = vmatpush1.msra.mxu0 %v4991
    %6026 = vmatprep.subr.mxu0 0.0
    %6027 = vmatpush2.msra.mxu0 0.0
    %6028 = vmatprep.subr.mxu0 0.0
    %6029 = vmatpush2.msra.mxu0 0.0
    %6030 = vmatprep.subr.mxu0 0.0
    %6031 = vmatpush2.msra.mxu0 0.0
    %6032 = vmatprep.subr.mxu0 0.0
    %6033 = vmatpush2.msra.mxu0 0.0
    %6034 = vmatprep.subr.mxu0 0.0
    %6035 = vmatpush2.msra.mxu0 0.0
    %6036 = vmatprep.subr.mxu0 0.0
    %6037 = vmatpush2.msra.mxu0 0.0
    %6038 = vmatprep.subr.mxu0 0.0
    %6039 = vmatpush2.msra.mxu0 0.0
    %6040 = vmatprep.subr.mxu0 0.0
    %6041 = vmatpush2.msra.mxu0 0.0
    %6042 = vmatprep.subr.mxu0 0.0
    %6043 = vmatpush2.msra.mxu0 0.0
    %6044 = vmatprep.subr.mxu0 0.0
    %6045 = vmatpush2.msra.mxu0 0.0
    %6046 = vmatprep.subr.mxu0 0.0
    %6047 = vmatpush2.msra.mxu0 0.0
    %6048 = vmatprep.subr.mxu0 0.0
    %6049 = vmatpush2.msra.mxu0 0.0
    %6050 = vmatprep.subr.mxu0 0.0
    %6051 = vmatpush2.msra.mxu0 0.0
    %6052 = vmatprep.subr.mxu0 0.0
    %6053 = vmatpush2.msra.mxu0 0.0
    %6054 = vmatprep.subr.mxu0 0.0
    %6055 = vmatpush2.msra.mxu0 0.0
    %6056 = vmatprep.subr.mxu0 0.0
    %6057 = vmatpush2.msra.mxu0 0.0
    %6058 = vmatprep.mubr.f32.mxu0 0.0
    %6059 = vmatmul.mubr.f32.gmra.mxu0 %v5918
    %v6060 = vpop.f32.mrf.mxu0
    %v6061 = vadd.f32 0.0, %v6060
    %v6062 = vpop.f32.mrf.mxu0
    %v6063 = vadd.f32 0.0, %v6062
    %6064 = vdwg.mxu0
    %v6065 = vadd.f32 %v5919, %v5990
    %v6066 = vadd.f32 %v5920, %v5992
    %v6067 = vadd.f32 %v5921, %v6061
    %v6068 = vadd.f32 %v5922, %v6063
    %v6069 = vxor.u32 %v6065, 2147483648
    %v6070 = vmul.f32 %v6069, 1.442695
    %v6071 = vpow.pop %v6070
    %v6072 = vadd.f32 %v6071, 1.0
    %v6073 = vrcp.pop %v6072
    %v6074 = vmul.f32 1.0, %v6073
    %v6075 = vxor.u32 %v6066, 2147483648
    %v6076 = vmul.f32 %v6075, 1.442695
    %v6077 = vpow.pop %v6076
    %v6078 = vadd.f32 %v6077, 1.0
    %v6079 = vrcp.pop %v6078
    %v6080 = vmul.f32 1.0, %v6079
    %v6081 = vtanh.pop %v6067
    %v6082 = vxor.u32 %v6068, 2147483648
    %v6083 = vmul.f32 %v6082, 1.442695
    %v6084 = vpow.pop %v6083
    %v6085 = vadd.f32 %v6084, 1.0
    %v6086 = vrcp.pop %v6085
    %v6087 = vmul.f32 1.0, %v6086
    %v6088 = vmul.f32 %v6080, %v5916
    %v6089 = vmul.f32 %v6074, %v6081
    %v6090 = vadd.f32 %v6088, %v6089
    %v6091 = vtanh.pop %v6090
    %v6092 = vmul.f32 %v6087, %v6091
    %v6093 = vld [vmem:[%s1885] sm:$0xff]
    %v6094 = vld [vmem:[%s1885 + $0x8] sm:$0xff]
    %v6095 = vld [vmem:[%s1885 + $0x10] sm:$0xff]
    %v6096 = vld [vmem:[%s1885 + $0x18] sm:$0xff]
    %6097 = vmatprep.subr.mxu0 %v5050
    %6098 = vmatpush1.msra.mxu0 %v5049
    %6099 = vmatprep.subr.mxu0 %v5046
    %6100 = vmatpush1.msra.mxu0 %v5045
    %6101 = vmatprep.subr.mxu0 %v5042
    %6102 = vmatpush1.msra.mxu0 %v5041
    %6103 = vmatprep.subr.mxu0 %v5038
    %6104 = vmatpush1.msra.mxu0 %v5037
    %6105 = vmatprep.subr.mxu0 %v5034
    %6106 = vmatpush1.msra.mxu0 %v5033
    %6107 = vmatprep.subr.mxu0 %v5030
    %6108 = vmatpush1.msra.mxu0 %v5029
    %6109 = vmatprep.subr.mxu0 %v5026
    %6110 = vmatpush1.msra.mxu0 %v5025
    %6111 = vmatprep.subr.mxu0 %v5022
    %6112 = vmatpush1.msra.mxu0 %v5021
    %6113 = vmatprep.subr.mxu0 %v5018
    %6114 = vmatpush1.msra.mxu0 %v5017
    %6115 = vmatprep.subr.mxu0 %v5014
    %6116 = vmatpush1.msra.mxu0 %v5013
    %6117 = vmatprep.subr.mxu0 %v5010
    %6118 = vmatpush1.msra.mxu0 %v5009
    %6119 = vmatprep.subr.mxu0 %v5006
    %6120 = vmatpush1.msra.mxu0 %v5005
    %6121 = vmatprep.subr.mxu0 %v5002
    %6122 = vmatpush1.msra.mxu0 %v5001
    %6123 = vmatprep.subr.mxu0 %v4998
    %6124 = vmatpush1.msra.mxu0 %v4997
    %6125 = vmatprep.subr.mxu0 %v4994
    %6126 = vmatpush1.msra.mxu0 %v4993
    %6127 = vmatprep.subr.mxu0 %v4990
    %6128 = vmatpush1.msra.mxu0 %v4989
    %6129 = vmatprep.subr.mxu0 0.0
    %6130 = vmatpush2.msra.mxu0 0.0
    %6131 = vmatprep.subr.mxu0 0.0
    %6132 = vmatpush2.msra.mxu0 0.0
    %6133 = vmatprep.subr.mxu0 0.0
    %6134 = vmatpush2.msra.mxu0 0.0
    %6135 = vmatprep.subr.mxu0 0.0
    %6136 = vmatpush2.msra.mxu0 0.0
    %6137 = vmatprep.subr.mxu0 0.0
    %6138 = vmatpush2.msra.mxu0 0.0
    %6139 = vmatprep.subr.mxu0 0.0
    %6140 = vmatpush2.msra.mxu0 0.0
    %6141 = vmatprep.subr.mxu0 0.0
    %6142 = vmatpush2.msra.mxu0 0.0
    %6143 = vmatprep.subr.mxu0 0.0
    %6144 = vmatpush2.msra.mxu0 0.0
    %6145 = vmatprep.subr.mxu0 0.0
    %6146 = vmatpush2.msra.mxu0 0.0
    %6147 = vmatprep.subr.mxu0 0.0
    %6148 = vmatpush2.msra.mxu0 0.0
    %6149 = vmatprep.subr.mxu0 0.0
    %6150 = vmatpush2.msra.mxu0 0.0
    %6151 = vmatprep.subr.mxu0 0.0
    %6152 = vmatpush2.msra.mxu0 0.0
    %6153 = vmatprep.subr.mxu0 0.0
    %6154 = vmatpush2.msra.mxu0 0.0
    %6155 = vmatprep.subr.mxu0 0.0
    %6156 = vmatpush2.msra.mxu0 0.0
    %6157 = vmatprep.subr.mxu0 0.0
    %6158 = vmatpush2.msra.mxu0 0.0
    %6159 = vmatprep.subr.mxu0 0.0
    %6160 = vmatpush2.msra.mxu0 0.0
    %6161 = vmatprep.mubr.f32.mxu0 0.0
    %6162 = vmatmul.mubr.f32.gmra.mxu0 %v6092
    %v6163 = vpop.f32.mrf.mxu0
    %v6164 = vadd.f32 0.0, %v6163
    %v6165 = vpop.f32.mrf.mxu0
    %v6166 = vadd.f32 0.0, %v6165
    %6167 = vdwg.mxu0
    %6168 = vmatprep.subr.mxu0 %v5052
    %6169 = vmatpush1.msra.mxu0 %v5051
    %6170 = vmatprep.subr.mxu0 %v5048
    %6171 = vmatpush1.msra.mxu0 %v5047
    %6172 = vmatprep.subr.mxu0 %v5044
    %6173 = vmatpush1.msra.mxu0 %v5043
    %6174 = vmatprep.subr.mxu0 %v5040
    %6175 = vmatpush1.msra.mxu0 %v5039
    %6176 = vmatprep.subr.mxu0 %v5036
    %6177 = vmatpush1.msra.mxu0 %v5035
    %6178 = vmatprep.subr.mxu0 %v5032
    %6179 = vmatpush1.msra.mxu0 %v5031
    %6180 = vmatprep.subr.mxu0 %v5028
    %6181 = vmatpush1.msra.mxu0 %v5027
    %6182 = vmatprep.subr.mxu0 %v5024
    %6183 = vmatpush1.msra.mxu0 %v5023
    %6184 = vmatprep.subr.mxu0 %v5020
    %6185 = vmatpush1.msra.mxu0 %v5019
    %6186 = vmatprep.subr.mxu0 %v5016
    %6187 = vmatpush1.msra.mxu0 %v5015
    %6188 = vmatprep.subr.mxu0 %v5012
    %6189 = vmatpush1.msra.mxu0 %v5011
    %6190 = vmatprep.subr.mxu0 %v5008
    %6191 = vmatpush1.msra.mxu0 %v5007
    %6192 = vmatprep.subr.mxu0 %v5004
    %6193 = vmatpush1.msra.mxu0 %v5003
    %6194 = vmatprep.subr.mxu0 %v5000
    %6195 = vmatpush1.msra.mxu0 %v4999
    %6196 = vmatprep.subr.mxu0 %v4996
    %6197 = vmatpush1.msra.mxu0 %v4995
    %6198 = vmatprep.subr.mxu0 %v4992
    %6199 = vmatpush1.msra.mxu0 %v4991
    %6200 = vmatprep.subr.mxu0 0.0
    %6201 = vmatpush2.msra.mxu0 0.0
    %6202 = vmatprep.subr.mxu0 0.0
    %6203 = vmatpush2.msra.mxu0 0.0
    %6204 = vmatprep.subr.mxu0 0.0
    %6205 = vmatpush2.msra.mxu0 0.0
    %6206 = vmatprep.subr.mxu0 0.0
    %6207 = vmatpush2.msra.mxu0 0.0
    %6208 = vmatprep.subr.mxu0 0.0
    %6209 = vmatpush2.msra.mxu0 0.0
    %6210 = vmatprep.subr.mxu0 0.0
    %6211 = vmatpush2.msra.mxu0 0.0
    %6212 = vmatprep.subr.mxu0 0.0
    %6213 = vmatpush2.msra.mxu0 0.0
    %6214 = vmatprep.subr.mxu0 0.0
    %6215 = vmatpush2.msra.mxu0 0.0
    %6216 = vmatprep.subr.mxu0 0.0
    %6217 = vmatpush2.msra.mxu0 0.0
    %6218 = vmatprep.subr.mxu0 0.0
    %6219 = vmatpush2.msra.mxu0 0.0
    %6220 = vmatprep.subr.mxu0 0.0
    %6221 = vmatpush2.msra.mxu0 0.0
    %6222 = vmatprep.subr.mxu0 0.0
    %6223 = vmatpush2.msra.mxu0 0.0
    %6224 = vmatprep.subr.mxu0 0.0
    %6225 = vmatpush2.msra.mxu0 0.0
    %6226 = vmatprep.subr.mxu0 0.0
    %6227 = vmatpush2.msra.mxu0 0.0
    %6228 = vmatprep.subr.mxu0 0.0
    %6229 = vmatpush2.msra.mxu0 0.0
    %6230 = vmatprep.subr.mxu0 0.0
    %6231 = vmatpush2.msra.mxu0 0.0
    %6232 = vmatprep.mubr.f32.mxu0 0.0
    %6233 = vmatmul.mubr.f32.gmra.mxu0 %v6092
    %v6234 = vpop.f32.mrf.mxu0
    %v6235 = vadd.f32 0.0, %v6234
    %v6236 = vpop.f32.mrf.mxu0
    %v6237 = vadd.f32 0.0, %v6236
    %6238 = vdwg.mxu0
    %v6239 = vadd.f32 %v6093, %v6164
    %v6240 = vadd.f32 %v6094, %v6166
    %v6241 = vadd.f32 %v6095, %v6235
    %v6242 = vadd.f32 %v6096, %v6237
    %v6243 = vxor.u32 %v6239, 2147483648
    %v6244 = vmul.f32 %v6243, 1.442695
    %v6245 = vpow.pop %v6244
    %v6246 = vadd.f32 %v6245, 1.0
    %v6247 = vrcp.pop %v6246
    %v6248 = vmul.f32 1.0, %v6247
    %v6249 = vxor.u32 %v6240, 2147483648
    %v6250 = vmul.f32 %v6249, 1.442695
    %v6251 = vpow.pop %v6250
    %v6252 = vadd.f32 %v6251, 1.0
    %v6253 = vrcp.pop %v6252
    %v6254 = vmul.f32 1.0, %v6253
    %v6255 = vtanh.pop %v6241
    %v6256 = vxor.u32 %v6242, 2147483648
    %v6257 = vmul.f32 %v6256, 1.442695
    %v6258 = vpow.pop %v6257
    %v6259 = vadd.f32 %v6258, 1.0
    %v6260 = vrcp.pop %v6259
    %v6261 = vmul.f32 1.0, %v6260
    %v6262 = vmul.f32 %v6254, %v6090
    %v6263 = vmul.f32 %v6248, %v6255
    %v6264 = vadd.f32 %v6262, %v6263
    %v6265 = vtanh.pop %v6264
    %v6266 = vmul.f32 %v6261, %v6265
    %v6267 = vld [vmem:[%s2128] sm:$0xff]
    %v6268 = vld [vmem:[%s2128 + $0x8] sm:$0xff]
    %v6269 = vld [vmem:[%s2128 + $0x10] sm:$0xff]
    %v6270 = vld [vmem:[%s2128 + $0x18] sm:$0xff]
    %6271 = vmatprep.subr.mxu0 %v5050
    %6272 = vmatpush1.msra.mxu0 %v5049
    %6273 = vmatprep.subr.mxu0 %v5046
    %6274 = vmatpush1.msra.mxu0 %v5045
    %6275 = vmatprep.subr.mxu0 %v5042
    %6276 = vmatpush1.msra.mxu0 %v5041
    %6277 = vmatprep.subr.mxu0 %v5038
    %6278 = vmatpush1.msra.mxu0 %v5037
    %6279 = vmatprep.subr.mxu0 %v5034
    %6280 = vmatpush1.msra.mxu0 %v5033
    %6281 = vmatprep.subr.mxu0 %v5030
    %6282 = vmatpush1.msra.mxu0 %v5029
    %6283 = vmatprep.subr.mxu0 %v5026
    %6284 = vmatpush1.msra.mxu0 %v5025
    %6285 = vmatprep.subr.mxu0 %v5022
    %6286 = vmatpush1.msra.mxu0 %v5021
    %6287 = vmatprep.subr.mxu0 %v5018
    %6288 = vmatpush1.msra.mxu0 %v5017
    %6289 = vmatprep.subr.mxu0 %v5014
    %6290 = vmatpush1.msra.mxu0 %v5013
    %6291 = vmatprep.subr.mxu0 %v5010
    %6292 = vmatpush1.msra.mxu0 %v5009
    %6293 = vmatprep.subr.mxu0 %v5006
    %6294 = vmatpush1.msra.mxu0 %v5005
    %6295 = vmatprep.subr.mxu0 %v5002
    %6296 = vmatpush1.msra.mxu0 %v5001
    %6297 = vmatprep.subr.mxu0 %v4998
    %6298 = vmatpush1.msra.mxu0 %v4997
    %6299 = vmatprep.subr.mxu0 %v4994
    %6300 = vmatpush1.msra.mxu0 %v4993
    %6301 = vmatprep.subr.mxu0 %v4990
    %6302 = vmatpush1.msra.mxu0 %v4989
    %6303 = vmatprep.subr.mxu0 0.0
    %6304 = vmatpush2.msra.mxu0 0.0
    %6305 = vmatprep.subr.mxu0 0.0
    %6306 = vmatpush2.msra.mxu0 0.0
    %6307 = vmatprep.subr.mxu0 0.0
    %6308 = vmatpush2.msra.mxu0 0.0
    %6309 = vmatprep.subr.mxu0 0.0
    %6310 = vmatpush2.msra.mxu0 0.0
    %6311 = vmatprep.subr.mxu0 0.0
    %6312 = vmatpush2.msra.mxu0 0.0
    %6313 = vmatprep.subr.mxu0 0.0
    %6314 = vmatpush2.msra.mxu0 0.0
    %6315 = vmatprep.subr.mxu0 0.0
    %6316 = vmatpush2.msra.mxu0 0.0
    %6317 = vmatprep.subr.mxu0 0.0
    %6318 = vmatpush2.msra.mxu0 0.0
    %6319 = vmatprep.subr.mxu0 0.0
    %6320 = vmatpush2.msra.mxu0 0.0
    %6321 = vmatprep.subr.mxu0 0.0
    %6322 = vmatpush2.msra.mxu0 0.0
    %6323 = vmatprep.subr.mxu0 0.0
    %6324 = vmatpush2.msra.mxu0 0.0
    %6325 = vmatprep.subr.mxu0 0.0
    %6326 = vmatpush2.msra.mxu0 0.0
    %6327 = vmatprep.subr.mxu0 0.0
    %6328 = vmatpush2.msra.mxu0 0.0
    %6329 = vmatprep.subr.mxu0 0.0
    %6330 = vmatpush2.msra.mxu0 0.0
    %6331 = vmatprep.subr.mxu0 0.0
    %6332 = vmatpush2.msra.mxu0 0.0
    %6333 = vmatprep.subr.mxu0 0.0
    %6334 = vmatpush2.msra.mxu0 0.0
    %6335 = vmatprep.mubr.f32.mxu0 0.0
    %6336 = vmatmul.mubr.f32.gmra.mxu0 %v6266
    %v6337 = vpop.f32.mrf.mxu0
    %v6338 = vadd.f32 0.0, %v6337
    %v6339 = vpop.f32.mrf.mxu0
    %v6340 = vadd.f32 0.0, %v6339
    %6341 = vdwg.mxu0
    %6342 = vmatprep.subr.mxu0 %v5052
    %6343 = vmatpush1.msra.mxu0 %v5051
    %6344 = vmatprep.subr.mxu0 %v5048
    %6345 = vmatpush1.msra.mxu0 %v5047
    %6346 = vmatprep.subr.mxu0 %v5044
    %6347 = vmatpush1.msra.mxu0 %v5043
    %6348 = vmatprep.subr.mxu0 %v5040
    %6349 = vmatpush1.msra.mxu0 %v5039
    %6350 = vmatprep.subr.mxu0 %v5036
    %6351 = vmatpush1.msra.mxu0 %v5035
    %6352 = vmatprep.subr.mxu0 %v5032
    %6353 = vmatpush1.msra.mxu0 %v5031
    %6354 = vmatprep.subr.mxu0 %v5028
    %6355 = vmatpush1.msra.mxu0 %v5027
    %6356 = vmatprep.subr.mxu0 %v5024
    %6357 = vmatpush1.msra.mxu0 %v5023
    %6358 = vmatprep.subr.mxu0 %v5020
    %6359 = vmatpush1.msra.mxu0 %v5019
    %6360 = vmatprep.subr.mxu0 %v5016
    %6361 = vmatpush1.msra.mxu0 %v5015
    %6362 = vmatprep.subr.mxu0 %v5012
    %6363 = vmatpush1.msra.mxu0 %v5011
    %6364 = vmatprep.subr.mxu0 %v5008
    %6365 = vmatpush1.msra.mxu0 %v5007
    %6366 = vmatprep.subr.mxu0 %v5004
    %6367 = vmatpush1.msra.mxu0 %v5003
    %6368 = vmatprep.subr.mxu0 %v5000
    %6369 = vmatpush1.msra.mxu0 %v4999
    %6370 = vmatprep.subr.mxu0 %v4996
    %6371 = vmatpush1.msra.mxu0 %v4995
    %6372 = vmatprep.subr.mxu0 %v4992
    %6373 = vmatpush1.msra.mxu0 %v4991
    %6374 = vmatprep.subr.mxu0 0.0
    %6375 = vmatpush2.msra.mxu0 0.0
    %6376 = vmatprep.subr.mxu0 0.0
    %6377 = vmatpush2.msra.mxu0 0.0
    %6378 = vmatprep.subr.mxu0 0.0
    %6379 = vmatpush2.msra.mxu0 0.0
    %6380 = vmatprep.subr.mxu0 0.0
    %6381 = vmatpush2.msra.mxu0 0.0
    %6382 = vmatprep.subr.mxu0 0.0
    %6383 = vmatpush2.msra.mxu0 0.0
    %6384 = vmatprep.subr.mxu0 0.0
    %6385 = vmatpush2.msra.mxu0 0.0
    %6386 = vmatprep.subr.mxu0 0.0
    %6387 = vmatpush2.msra.mxu0 0.0
    %6388 = vmatprep.subr.mxu0 0.0
    %6389 = vmatpush2.msra.mxu0 0.0
    %6390 = vmatprep.subr.mxu0 0.0
    %6391 = vmatpush2.msra.mxu0 0.0
    %6392 = vmatprep.subr.mxu0 0.0
    %6393 = vmatpush2.msra.mxu0 0.0
    %6394 = vmatprep.subr.mxu0 0.0
    %6395 = vmatpush2.msra.mxu0 0.0
    %6396 = vmatprep.subr.mxu0 0.0
    %6397 = vmatpush2.msra.mxu0 0.0
    %6398 = vmatprep.subr.mxu0 0.0
    %6399 = vmatpush2.msra.mxu0 0.0
    %6400 = vmatprep.subr.mxu0 0.0
    %6401 = vmatpush2.msra.mxu0 0.0
    %6402 = vmatprep.subr.mxu0 0.0
    %6403 = vmatpush2.msra.mxu0 0.0
    %6404 = vmatprep.subr.mxu0 0.0
    %6405 = vmatpush2.msra.mxu0 0.0
    %6406 = vmatprep.mubr.f32.mxu0 0.0
    %6407 = vmatmul.mubr.f32.gmra.mxu0 %v6266
    %v6408 = vpop.f32.mrf.mxu0
    %v6409 = vadd.f32 0.0, %v6408
    %v6410 = vpop.f32.mrf.mxu0
    %v6411 = vadd.f32 0.0, %v6410
    %6412 = vdwg.mxu0
    %v6413 = vadd.f32 %v6267, %v6338
    %v6414 = vadd.f32 %v6268, %v6340
    %v6415 = vadd.f32 %v6269, %v6409
    %v6416 = vadd.f32 %v6270, %v6411
    %v6417 = vxor.u32 %v6413, 2147483648
    %v6418 = vmul.f32 %v6417, 1.442695
    %v6419 = vpow.pop %v6418
    %v6420 = vadd.f32 %v6419, 1.0
    %v6421 = vrcp.pop %v6420
    %v6422 = vmul.f32 1.0, %v6421
    %v6423 = vxor.u32 %v6414, 2147483648
    %v6424 = vmul.f32 %v6423, 1.442695
    %v6425 = vpow.pop %v6424
    %v6426 = vadd.f32 %v6425, 1.0
    %v6427 = vrcp.pop %v6426
    %v6428 = vmul.f32 1.0, %v6427
    %v6429 = vtanh.pop %v6415
    %v6430 = vxor.u32 %v6416, 2147483648
    %v6431 = vmul.f32 %v6430, 1.442695
    %v6432 = vpow.pop %v6431
    %v6433 = vadd.f32 %v6432, 1.0
    %v6434 = vrcp.pop %v6433
    %v6435 = vmul.f32 1.0, %v6434
    %v6436 = vmul.f32 %v6428, %v6264
    %v6437 = vmul.f32 %v6422, %v6429
    %v6438 = vadd.f32 %v6436, %v6437
    %v6439 = vtanh.pop %v6438
    %v6440 = vmul.f32 %v6435, %v6439
    %v6441 = vld [vmem:[%s10] sm:$0xff]
    %v6442 = vld [vmem:[%s10 + $0x8] sm:$0xff]
    %v6443 = vld [vmem:[%s10 + $0x10] sm:$0xff]
    %v6444 = vld [vmem:[%s10 + $0x18] sm:$0xff]
    %v6445 = vld [vmem:[%s10 + $0x20] sm:$0xff]
    %v6446 = vld [vmem:[%s10 + $0x28] sm:$0xff]
    %v6447 = vld [vmem:[%s10 + $0x30] sm:$0xff]
    %v6448 = vld [vmem:[%s10 + $0x38] sm:$0xff]
    %v6449 = vld [vmem:[%s10 + $0x40] sm:$0xff]
    %v6450 = vld [vmem:[%s10 + $0x48] sm:$0xff]
    %v6451 = vld [vmem:[%s10 + $0x50] sm:$0xff]
    %v6452 = vld [vmem:[%s10 + $0x58] sm:$0xff]
    %v6453 = vld [vmem:[%s10 + $0x60] sm:$0xff]
    %v6454 = vld [vmem:[%s10 + $0x68] sm:$0xff]
    %v6455 = vld [vmem:[%s10 + $0x70] sm:$0xff]
    %v6456 = vld [vmem:[%s10 + $0x78] sm:$0xff]
    %v6457 = vld [vmem:[%s11] sm:$0x1]
    %v6459 = vlaneseq
    %v6460 = vshrl.u32 %v6459, 7
    %v6461 = vsub.s32 0, %v6460
    %v6462 = vrot.slane %v6457, %v6461
    %6464 = vmatprep.subr.mxu0 0.0
    %6465 = vmatpush1.msra.mxu0 %v6456
    %6466 = vmatprep.subr.mxu0 0.0
    %6467 = vmatpush1.msra.mxu0 %v6455
    %6468 = vmatprep.subr.mxu0 0.0
    %6469 = vmatpush1.msra.mxu0 %v6454
    %6470 = vmatprep.subr.mxu0 0.0
    %6471 = vmatpush1.msra.mxu0 %v6453
    %6472 = vmatprep.subr.mxu0 0.0
    %6473 = vmatpush1.msra.mxu0 %v6452
    %6474 = vmatprep.subr.mxu0 0.0
    %6475 = vmatpush1.msra.mxu0 %v6451
    %6476 = vmatprep.subr.mxu0 0.0
    %6477 = vmatpush1.msra.mxu0 %v6450
    %6478 = vmatprep.subr.mxu0 0.0
    %6479 = vmatpush1.msra.mxu0 %v6449
    %6480 = vmatprep.subr.mxu0 0.0
    %6481 = vmatpush1.msra.mxu0 %v6448
    %6482 = vmatprep.subr.mxu0 0.0
    %6483 = vmatpush1.msra.mxu0 %v6447
    %6484 = vmatprep.subr.mxu0 0.0
    %6485 = vmatpush1.msra.mxu0 %v6446
    %6486 = vmatprep.subr.mxu0 0.0
    %6487 = vmatpush1.msra.mxu0 %v6445
    %6488 = vmatprep.subr.mxu0 0.0
    %6489 = vmatpush1.msra.mxu0 %v6444
    %6490 = vmatprep.subr.mxu0 0.0
    %6491 = vmatpush1.msra.mxu0 %v6443
    %6492 = vmatprep.subr.mxu0 0.0
    %6493 = vmatpush1.msra.mxu0 %v6442
    %6494 = vmatprep.subr.mxu0 0.0
    %6495 = vmatpush1.msra.mxu0 %v6441
    %6496 = vmatprep.subr.mxu0 0.0
    %6497 = vmatpush2.msra.mxu0 0.0
    %6498 = vmatprep.subr.mxu0 0.0
    %6499 = vmatpush2.msra.mxu0 0.0
    %6500 = vmatprep.subr.mxu0 0.0
    %6501 = vmatpush2.msra.mxu0 0.0
    %6502 = vmatprep.subr.mxu0 0.0
    %6503 = vmatpush2.msra.mxu0 0.0
    %6504 = vmatprep.subr.mxu0 0.0
    %6505 = vmatpush2.msra.mxu0 0.0
    %6506 = vmatprep.subr.mxu0 0.0
    %6507 = vmatpush2.msra.mxu0 0.0
    %6508 = vmatprep.subr.mxu0 0.0
    %6509 = vmatpush2.msra.mxu0 0.0
    %6510 = vmatprep.subr.mxu0 0.0
    %6511 = vmatpush2.msra.mxu0 0.0
    %6512 = vmatprep.subr.mxu0 0.0
    %6513 = vmatpush2.msra.mxu0 0.0
    %6514 = vmatprep.subr.mxu0 0.0
    %6515 = vmatpush2.msra.mxu0 0.0
    %6516 = vmatprep.subr.mxu0 0.0
    %6517 = vmatpush2.msra.mxu0 0.0
    %6518 = vmatprep.subr.mxu0 0.0
    %6519 = vmatpush2.msra.mxu0 0.0
    %6520 = vmatprep.subr.mxu0 0.0
    %6521 = vmatpush2.msra.mxu0 0.0
    %6522 = vmatprep.subr.mxu0 0.0
    %6523 = vmatpush2.msra.mxu0 0.0
    %6524 = vmatprep.subr.mxu0 0.0
    %6525 = vmatpush2.msra.mxu0 0.0
    %6526 = vmatprep.subr.mxu0 0.0
    %6527 = vmatpush2.msra.mxu0 0.0
    %6528 = vmatprep.mubr.f32.mxu0 0.0
    %6529 = vmatmul.mubr.f32.gmra.mxu0 %v6440
    %v6530 = vpop.f32.mrf.mxu0
    %v6531 = vadd.f32 %v6462, %v6530
    %v6532 = vpop.f32.mrf.mxu0
    %6533 = vdwg.mxu0
    %v6534 = vxor.u32 %v6531, 2147483648
    %v6535 = vmul.f32 %v6534, 1.442695
    %v6536 = vpow.pop %v6535
    %v6537 = vadd.f32 %v6536, 1.0
    %v6538 = vrcp.pop %v6537
    %v6539 = vmul.f32 1.0, %v6538
    %vm6540 = vcmask 31744
    %6541 = vst.msk [vmem:[%s12] sm:$0xff] %vm6540, %v6539
    // Predicated region
    $region70: #{time_series_classifier_forward.1} parent=1 // pred_check
      _
    $region71: #{time_series_classifier_forward.1} parent=1 // pred_check_branch
      %6543 = sbr.rel (0) target = $region73
    $region72: #{time_series_classifier_forward.1} parent=1 // pred_region
      _
    $region73: #{time_series_classifier_forward.1} parent=1 // pred_fallthru
      _
    // Predicated region
    $region74: #{time_series_classifier_forward.1} parent=1 // pred_check
      _
    $region75: #{time_series_classifier_forward.1} parent=1 // pred_check_branch
      %6545 = sbr.rel (0) target = $region77
    $region76: #{time_series_classifier_forward.1} parent=1 // pred_region
      _
    $region77: #{time_series_classifier_forward.1} parent=1 // pred_fallthru
      _
    %6546 = vsyncpa [#allocation5], 1
    %6547 = vsyncpa [#allocation7], 1
    %6548 = vsyncpa [#allocation10], 1

</llo_original>
